<compile_context>
chip_gen: v7x
topology: tpu7x:2x2x1
jax: 0.10.0
libtpu: 0.0.40
codegen_flags: <defaults>
</compile_context>

<pallas_src>
import functools

import numpy as np
import jax
import jax.numpy as jnp
from jax.experimental import pallas as pl
from jax.experimental.pallas import tpu as pltpu


# ------------------------ sub-pixel decomposition constants -------------------------
# ConvTranspose2d(k=3, s=2, p=1, op=1): output parity -> which input shifts / kernel taps.
_SHIFTS = ((0, 0), (0, 1), (1, 0), (1, 1))          # (dh, dw) input shifts
_PAR = {0: (0, 1), 1: (1,)}                          # output parities that use a shift
_TAP = {(0, 0): 1, (1, 0): 2, (1, 1): 0}             # (parity, shift) -> kernel tap index


def _pairs(dh, dw):
    """Output phases (a, b) that consume input shift (dh, dw), in a fixed order."""
    return tuple((a, b) for a in _PAR[dh] for b in _PAR[dw])


def _geometry(H, W):
    """Static plane/slice geometry.  Every phase plane has the same width WQ."""
    assert H % 4 == 0 and W % 4 == 0, "spatial dims must be divisible by 4"
    WQ = W // 4 + 1                    # common phase-plane width (valid + 1 pad col)
    WV = W // 4                        # valid columns per plane row (= store length)
    cfg = dict(
        WQ=WQ, WV=WV,
        H1=H // 2, H2=H // 4, H3=H // 2,
        XROWS=(H + 2) * WQ,            # x: 4 W-phase planes, H padded both sides
        H1ROWS=(H // 2 + 2) * WQ,      # h1: 2 W-phase planes, padded both sides
        H2ROWS=(H // 4 + 1) * WQ,      # h2: single plane, high-padded
        D1ROWS=(H // 2 + 1) * WQ,      # d1: 2 W-phase planes, high-padded
        D2ROWS=(H + 2) * WQ,           # d2: 4 W-phase planes, padded both sides
        L1=2 * WQ * (H // 2 - 1) + WV, # tap-slice lengths (junk rows included)
        L2=2 * WQ * (H // 4 - 1) + WV,
        L3=WQ * (H // 4 - 1) + WV,
        L4=WQ * (H // 2 - 1) + WV,
        L5=WQ * (H - 1) + WV,
    )
    return cfg


# --------------------------------- fused kernel -------------------------------------

def _autoencoder_kernel(x_ref, w1_ref, b1_ref, w2_ref, b2_ref,
                        wt1p_ref, db1_ref, wt2p_ref, db2_ref, w3_ref, cb3_ref,
                        out_ref, h1_ref, h2_ref, d1_ref, d2_ref, *, cfg):
    f32 = jnp.float32
    WQ, WV = cfg["WQ"], cfg["WV"]
    H1, H2, H3 = cfg["H1"], cfg["H2"], cfg["H3"]
    C, cin, cout = cfg["C"], cfg["cin"], cfg["cout"]
    CD1, CD2 = cfg["CD1"], cfg["CD2"]

    # Scratch persists across grid steps: re-zero every plane so pad/garbage positions
    # read as genuine zeros for this image (replaces the implicit zeroing the old
    # scatter matmuls performed).
    h1_ref[...] = jnp.zeros(h1_ref.shape, f32)
    h2_ref[...] = jnp.zeros(h2_ref.shape, f32)
    d1_ref[...] = jnp.zeros(d1_ref.shape, f32)
    d2_ref[...] = jnp.zeros(d2_ref.shape, f32)

    # ---------------- encoder conv1 (stride 2, pad 1): Cin -> 16*no_enc -----------------
    # Computed per output-column parity b so the result can be written straight into the
    # two W-phase planes conv2 consumes (strided VMEM writes replace the old P1 matmul).
    for b in range(2):
        acc = jnp.zeros((cfg["L1"], C), f32)
        for kh in range(3):
            for kw in range(3):
                s = 2 * b + kw
                xs = x_ref[0, s % 4, pl.ds(kh * WQ + s // 4, cfg["L1"]), :]
                w = w1_ref[3 * kh + kw]                          # (Cin, C)
                if cin == 1:
                    acc = acc + xs * w                           # degenerate matmul -> VPU
                else:
                    acc = acc + jnp.dot(xs, w, preferred_element_type=f32)
        h = jnp.maximum(acc + b1_ref[...], 0.0)
        for i in range(H1):
            h1_ref[1 - b, pl.ds((i + 1) * WQ + b, WV), :] = h[2 * WQ * i:2 * WQ * i + WV, :]

    # ---------------- encoder conv2 (stride 2, pad 1): block-diagonal 48 -> 48 ----------
    acc = jnp.zeros((cfg["L2"], C), f32)
    for kh in range(3):
        for kw in range(3):
            xs = h1_ref[kw % 2, pl.ds(kh * WQ + kw // 2, cfg["L2"]), :]
            acc = acc + jnp.dot(xs, w2_ref[3 * kh + kw], preferred_element_type=f32)
    h = jnp.maximum(acc + b2_ref[...], 0.0)
    for m in range(H2):                                          # replaces P2
        h2_ref[pl.ds(m * WQ, WV), :] = h[2 * WQ * m:2 * WQ * m + WV, :]
    # (the mean over encoders is folded into wt1, so no explicit mean stage)

    # -------- transposed convs via sub-pixel phases; taps packed per input shift --------
    def transposed_conv(read_slice, wp_ref, bias_ref, cd):
        """One wide matmul per input shift; columns hold all output phases using it."""
        parts = {}
        for si, (dh, dw) in enumerate(_SHIFTS):
            xs = read_slice(dh, dw)
            r = jnp.dot(xs, wp_ref[si], preferred_element_type=f32)
            for k, ab in enumerate(_pairs(dh, dw)):
                col = r[:, k * cd:(k + 1) * cd]
                parts[ab] = col if ab not in parts else parts[ab] + col
        return {ab: jnp.maximum(v + bias_ref[...], 0.0) for ab, v in parts.items()}

    # ConvTranspose2d(16*no_enc -> 32) with the 1/no_enc encoder-mean folded in.
    z1 = transposed_conv(lambda dh, dw: h2_ref[pl.ds(dh * WQ + dw, cfg["L3"]), :],
                         wt1p_ref, db1_ref, CD1)
    for (a, b) in ((0, 0), (0, 1), (1, 0), (1, 1)):
        z = z1[(a, b)]
        for m in range(H2):                                      # replaces P3
            d1_ref[b, pl.ds((2 * m + a) * WQ, WV), :] = z[WQ * m:WQ * m + WV, :]

    # ConvTranspose2d(32 -> 16); d1 is consumed W-phase-split, so the output is produced
    # split 4 ways (one pass per input-column parity c).
    for c in range(2):
        z2 = transposed_conv(
            lambda dh, dw, c=c: d1_ref[(c + dw) % 2,
                                       pl.ds(dh * WQ + (c + dw) // 2, cfg["L4"]), :],
            wt2p_ref, db2_ref, CD2)
        for (a, b) in ((0, 0), (0, 1), (1, 0), (1, 1)):
            z = z2[(a, b)]
            code = 2 * c + b + 1
            phi, delta = code % 4, code // 4
            for p in range(H3):                                  # replaces P4
                d2_ref[phi, pl.ds((2 * p + a + 1) * WQ + delta, WV), :] = \
                    z[WQ * p:WQ * p + WV, :]

    # ---------------- final conv (stride 1, pad 1): 16 -> Cout, 4 column phases ----------
    outs = []
    for e in range(4):
        if cout == 1:
            acc = jnp.zeros((cfg["L5"], CD2), f32)               # lane-dense VPU accumulation
        else:
            acc = jnp.zeros((cfg["L5"], cout), f32)
        for kh in range(3):
            for kw in range(3):
                s = e + kw
                xs = d2_ref[s % 4, pl.ds(kh * WQ + s // 4, cfg["L5"]), :]
                if cout == 1:
                    acc = acc + xs * w3_ref[3 * kh + kw]
                else:
                    acc = acc + jnp.dot(xs, w3_ref[3 * kh + kw], preferred_element_type=f32)
        if cout == 1:
            o = jnp.sum(acc, axis=1, keepdims=True) + cb3_ref[...]
        else:
            o = acc + cb3_ref[...]
        outs.append(jnp.maximum(o, 0.0))
    # 4 column phases packed along lanes -> (L5, 4*cout) store instead of (L5, 1).
    out_ref[0] = jnp.concatenate(outs, axis=1)


# ------------------------------------ wrapper ----------------------------------------

def _pack_transpose_weights(wt):
    """(3,3,Cin,Cd) ConvT weight -> (4, Cin, 4*Cd): per input shift, the taps of all
    output phases that use that shift are concatenated along output columns (zero padded
    to 4*Cd so all four packs share one array)."""
    cd = wt.shape[3]
    packs = []
    for dh, dw in _SHIFTS:
        cols = [wt[_TAP[(a, dh)], _TAP[(b, dw)]] for (a, b) in _pairs(dh, dw)]
        m = jnp.concatenate(cols, axis=1)
        packs.append(jnp.pad(m, ((0, 0), (0, 4 * cd - m.shape[1]))))
    return jnp.stack(packs)


def autoencoder_forward(params, x_nchw):
    N, cin, H, W = x_nchw.shape
    no_enc = len(params["encoders"])
    C = 16 * no_enc
    cout = params["cw3"].shape[0]
    cfg = _geometry(H, W)
    WQ, WV, L5 = cfg["WQ"], cfg["WV"], cfg["L5"]

    # ----- weight packing (tiny; runs once under jit) -----
    w1 = jnp.concatenate(
        [jnp.transpose(e["w1"], (2, 3, 1, 0)).reshape(9, cin, 16)
         for e in params["encoders"]], axis=-1)                                 # (9,Cin,C)
    b1 = jnp.concatenate([e["b1"] for e in params["encoders"]]).reshape(1, C)
    w2 = jnp.zeros((9, C, C), jnp.float32)                                      # block diag
    for i, e in enumerate(params["encoders"]):
        blk = jnp.transpose(e["w2"], (2, 3, 1, 0)).reshape(9, 16, 16)
        w2 = w2.at[:, 16 * i:16 * (i + 1), 16 * i:16 * (i + 1)].set(blk)
    b2 = jnp.concatenate([e["b2"] for e in params["encoders"]]).reshape(1, C)
    # ConvTranspose2d(16,32) with the 1/no_enc encoder-mean folded in -> (3,3,C,32)
    wt1 = jnp.tile(jnp.transpose(params["dw1"], (2, 3, 0, 1)), (1, 1, no_enc, 1)) / no_enc
    wt1p = _pack_transpose_weights(wt1)                                          # (4,C,128)
    db1 = params["db1"].reshape(1, -1)
    wt2p = _pack_transpose_weights(jnp.transpose(params["dw2"], (2, 3, 0, 1)))   # (4,32,64)
    db2 = params["db2"].reshape(1, -1)
    if cout == 1:
        w3 = jnp.transpose(params["cw3"], (2, 3, 0, 1)).reshape(9, 1, 16)        # VPU form
    else:
        w3 = jnp.transpose(params["cw3"], (2, 3, 1, 0)).reshape(9, 16, cout)     # matmul form
    cb3 = params["cb3"].reshape(1, cout)
    CD1, CD2 = wt1.shape[-1], params["dw2"].shape[1]

    # ----- input prep: NCHW -> NHWC, pad to (H+2, W+4), split W into 4 phases, flatten ---
    xh = jnp.transpose(x_nchw, (0, 2, 3, 1))
    xp = jnp.pad(xh, ((0, 0), (1, 1), (1, 3), (0, 0)))
    x_ph = jnp.stack([xp[:, :, q::4, :] for q in range(4)], axis=1)   # (N,4,H+2,WQ,Cin)
    x_ph = x_ph.reshape(N, 4, cfg["XROWS"], cin)

    kcfg = dict(cfg, C=C, cin=cin, cout=cout, CD1=CD1, CD2=CD2)
    kernel = functools.partial(_autoencoder_kernel, cfg=kcfg)

    inputs = (x_ph, w1, b1, w2, b2, wt1p, db1, wt2p, db2, w3, cb3)

    def _full(a):
        return pl.BlockSpec(a.shape, lambda n: (0,) * a.ndim)

    flops = 2 * N * (2 * 9 * cfg["L1"] * cin * C
                     + 9 * cfg["L2"] * C * C
                     + 9 * cfg["L3"] * C * CD1
                     + 2 * 9 * cfg["L4"] * CD1 * CD2
                     + 4 * 9 * cfg["L5"] * CD2 * max(cout, 1))
    bytes_accessed = 4 * (sum(int(np.prod(a.shape)) for a in inputs) + N * L5 * 4 * cout)

    out = pl.pallas_call(
        kernel,
        out_shape=jax.ShapeDtypeStruct((N, L5, 4 * cout), jnp.float32),
        grid=(N,),
        in_specs=[pl.BlockSpec((1, 4, cfg["XROWS"], cin), lambda n: (n, 0, 0, 0))]
                 + [_full(a) for a in inputs[1:]],
        out_specs=pl.BlockSpec((1, L5, 4 * cout), lambda n: (n, 0, 0)),
        scratch_shapes=[
            pltpu.VMEM((2, cfg["H1ROWS"], C), jnp.float32),    # conv1 out (2 W-phase planes)
            pltpu.VMEM((cfg["H2ROWS"], C), jnp.float32),       # conv2 out (high-padded)
            pltpu.VMEM((2, cfg["D1ROWS"], CD1), jnp.float32),  # convT1 out (2 W-phase planes)
            pltpu.VMEM((4, cfg["D2ROWS"], CD2), jnp.float32),  # convT2 out (4 W-phase planes)
        ],
        compiler_params=pltpu.CompilerParams(dimension_semantics=("parallel",)),
        cost_estimate=pl.CostEstimate(flops=flops, transcendentals=0,
                                      bytes_accessed=bytes_accessed),
    )(*inputs)

    # ----- un-phase the output: rows are (i*WQ + f) with one junk row per image row,
    #       lanes are the 4 column phases e (x cout); final column index j = 4*f + e -----
    o = out.reshape(N, L5, 4, cout)
    o = jnp.pad(o, ((0, 0), (0, H * WQ - L5), (0, 0), (0, 0)))
    o = o.reshape(N, H, WQ, 4, cout)[:, :, :WV, :, :]                 # (N, H, f, e, cout)
    y = jnp.transpose(o, (0, 4, 1, 2, 3)).reshape(N, cout, H, W)
    return y


# -------------------------------- parameter init -------------------------------------

def init_params(key, input_channels=1, no_encoder=3):
    def w(key, shape, scale=0.1):
        return scale * jax.random.normal(key, shape, dtype=jnp.float32)

    keys = jax.random.split(key, 6 * no_encoder + 10)
    ki = iter(range(len(keys)))
    params = {"encoders": []}
    for _ in range(no_encoder):
        params["encoders"].append({
            "w1": w(keys[next(ki)], (16, input_channels, 3, 3)),
            "b1": w(keys[next(ki)], (16,)),
            "w2": w(keys[next(ki)], (16, 16, 3, 3)),
            "b2": w(keys[next(ki)], (16,)),
        })
    params["dw1"] = w(keys[next(ki)], (16, 32, 3, 3))   # ConvTranspose2d(16->32)
    params["db1"] = w(keys[next(ki)], (32,))
    params["dw2"] = w(keys[next(ki)], (32, 16, 3, 3))   # ConvTranspose2d(32->16)
    params["db2"] = w(keys[next(ki)], (16,))
    params["cw3"] = w(keys[next(ki)], (input_channels, 16, 3, 3))  # Conv2d(16->Cin)
    params["cb3"] = w(keys[next(ki)], (input_channels,))
    return params


# ----------------------- pure-JAX reference (for the check) --------------------------

def _ref_conv2d(x, w_oihw, b, stride, pad, relu=True):
    w_hwio = jnp.transpose(w_oihw, (2, 3, 1, 0))
    out = jax.lax.conv_general_dilated(
        x, w_hwio, window_strides=(stride, stride),
        padding=((pad, pad), (pad, pad)),
        dimension_numbers=("NHWC", "HWIO", "NHWC"))
    out = out + b.reshape(1, 1, 1, -1)
    return jnp.maximum(out, 0.0) if relu else out


def _ref_conv_transpose2d(x, w_t, b, stride, pad, out_pad, relu=True):
    k = w_t.shape[2]
    w_conv = jnp.transpose(w_t[:, :, ::-1, ::-1], (1, 0, 2, 3))
    w_hwio = jnp.transpose(w_conv, (2, 3, 1, 0))
    pb = k - 1 - pad
    pa = k - 1 - pad + out_pad
    out = jax.lax.conv_general_dilated(
        x, w_hwio, window_strides=(1, 1),
        padding=((pb, pa), (pb, pa)),
        lhs_dilation=(stride, stride),
        dimension_numbers=("NHWC", "HWIO", "NHWC"))
    out = out + b.reshape(1, 1, 1, -1)
    return jnp.maximum(out, 0.0) if relu else out


def _ref_forward(params, x_nchw):
    x = jnp.transpose(x_nchw, (0, 2, 3, 1))
    encs = []
    for ep in params["encoders"]:
        h = _ref_conv2d(x, ep["w1"], ep["b1"], 2, 1)
        h = _ref_conv2d(h, ep["w2"], ep["b2"], 2, 1)
        encs.append(h)
    enc = jnp.mean(jnp.stack(encs), axis=0)
    d = _ref_conv_transpose2d(enc, params["dw1"], params["db1"], 2, 1, 1)
    d = _ref_conv_transpose2d(d, params["dw2"], params["db2"], 2, 1, 1)
    d = _ref_conv2d(d, params["cw3"], params["cb3"], 1, 1)
    return jnp.transpose(d, (0, 3, 1, 2))


# ---------------------------------------- main ---------------------------------------

if __name__ == "__main__":
    key = jax.random.PRNGKey(0)
    k_params, k_x = jax.random.split(key)

    input_channels = 1
    params = init_params(k_params, input_channels=input_channels, no_encoder=3)
    x = jax.random.normal(k_x, (2, input_channels, 16, 16), dtype=jnp.float32)

    fwd = jax.jit(autoencoder_forward)
    out = jax.block_until_ready(fwd(params, x))
    assert out.shape == (2, input_channels, 16, 16), out.shape

    ref = jax.block_until_ready(_ref_forward(params, x))
    max_err = float(jnp.max(jnp.abs(out - ref)))
    assert jnp.allclose(out, ref, atol=5e-4, rtol=5e-4), max_err

    print("KERNEL_OK")
</pallas_src>

<mosaic_0001>
module attributes {stable_mosaic.version = 11 : i64} {
  func.func @_autoencoder_kernel(%arg0: i32, %arg1: memref<1x4x90x1xf32, #tpu.memory_space<vmem>>, %arg2: memref<9x1x48xf32, #tpu.memory_space<vmem>>, %arg3: memref<1x48xf32, #tpu.memory_space<vmem>>, %arg4: memref<9x48x48xf32, #tpu.memory_space<vmem>>, %arg5: memref<1x48xf32, #tpu.memory_space<vmem>>, %arg6: memref<4x48x128xf32, #tpu.memory_space<vmem>>, %arg7: memref<1x32xf32, #tpu.memory_space<vmem>>, %arg8: memref<4x32x64xf32, #tpu.memory_space<vmem>>, %arg9: memref<1x16xf32, #tpu.memory_space<vmem>>, %arg10: memref<9x1x16xf32, #tpu.memory_space<vmem>>, %arg11: memref<1x1xf32, #tpu.memory_space<vmem>>, %arg12: memref<1x79x4xf32, #tpu.memory_space<vmem>>, %arg13: memref<2x50x48xf32, #tpu.memory_space<vmem>>, %arg14: memref<25x48xf32, #tpu.memory_space<vmem>>, %arg15: memref<2x45x32xf32, #tpu.memory_space<vmem>>, %arg16: memref<4x90x16xf32, #tpu.memory_space<vmem>>) attributes {dimension_semantics = [#tpu.dimension_semantics<parallel>], iteration_bounds = array<i64: 2>, scalar_prefetch = 0 : i64, scratch_operands = 4 : i64, tpu.core_type = #tpu.core_type<tc>, window_params = [{transform_indices = @transform_0, window_bounds = array<i64: 1, 4, 90, 1>}, {pipeline_mode = #tpu.pipeline_mode<synchronous>, transform_indices = @transform_1, window_bounds = array<i64: 9, 1, 48>}, {pipeline_mode = #tpu.pipeline_mode<synchronous>, transform_indices = @transform_2, window_bounds = array<i64: 1, 48>}, {pipeline_mode = #tpu.pipeline_mode<synchronous>, transform_indices = @transform_3, window_bounds = array<i64: 9, 48, 48>}, {pipeline_mode = #tpu.pipeline_mode<synchronous>, transform_indices = @transform_4, window_bounds = array<i64: 1, 48>}, {pipeline_mode = #tpu.pipeline_mode<synchronous>, transform_indices = @transform_5, window_bounds = array<i64: 4, 48, 128>}, {pipeline_mode = #tpu.pipeline_mode<synchronous>, transform_indices = @transform_6, window_bounds = array<i64: 1, 32>}, {pipeline_mode = #tpu.pipeline_mode<synchronous>, transform_indices = @transform_7, window_bounds = array<i64: 4, 32, 64>}, {pipeline_mode = #tpu.pipeline_mode<synchronous>, transform_indices = @transform_8, window_bounds = array<i64: 1, 16>}, {pipeline_mode = #tpu.pipeline_mode<synchronous>, transform_indices = @transform_9, window_bounds = array<i64: 9, 1, 16>}, {pipeline_mode = #tpu.pipeline_mode<synchronous>, transform_indices = @transform_10, window_bounds = array<i64: 1, 1>}, {transform_indices = @transform_11, window_bounds = array<i64: 1, 79, 4>}]} {
    %cst = arith.constant 0.000000e+00 : f32
    %0 = vector.broadcast %cst : f32 to vector<2x50x48xf32>
    %c0 = arith.constant 0 : index
    %c0_0 = arith.constant 0 : index
    %c0_1 = arith.constant 0 : index
    %1 = vector.load %arg13[%c0, %c0_0, %c0_1] : memref<2x50x48xf32, #tpu.memory_space<vmem>>, vector<2x50x48xf32>
    tpu.vector_store %arg13[%c0, %c0_0, %c0_1], %0 {strides = array<i32>} : memref<2x50x48xf32, #tpu.memory_space<vmem>>, vector<2x50x48xf32>,
    %cst_2 = arith.constant 0.000000e+00 : f32
    %2 = vector.broadcast %cst_2 : f32 to vector<25x48xf32>
    %c0_3 = arith.constant 0 : index
    %c0_4 = arith.constant 0 : index
    %3 = vector.load %arg14[%c0_3, %c0_4] : memref<25x48xf32, #tpu.memory_space<vmem>>, vector<25x48xf32>
    tpu.vector_store %arg14[%c0_3, %c0_4], %2 {strides = array<i32>} : memref<25x48xf32, #tpu.memory_space<vmem>>, vector<25x48xf32>,
    %cst_5 = arith.constant 0.000000e+00 : f32
    %4 = vector.broadcast %cst_5 : f32 to vector<2x45x32xf32>
    %c0_6 = arith.constant 0 : index
    %c0_7 = arith.constant 0 : index
    %c0_8 = arith.constant 0 : index
    %5 = vector.load %arg15[%c0_6, %c0_7, %c0_8] : memref<2x45x32xf32, #tpu.memory_space<vmem>>, vector<2x45x32xf32>
    tpu.vector_store %arg15[%c0_6, %c0_7, %c0_8], %4 {strides = array<i32>} : memref<2x45x32xf32, #tpu.memory_space<vmem>>, vector<2x45x32xf32>,
    %cst_9 = arith.constant 0.000000e+00 : f32
    %6 = vector.broadcast %cst_9 : f32 to vector<4x90x16xf32>
    %c0_10 = arith.constant 0 : index
    %c0_11 = arith.constant 0 : index
    %c0_12 = arith.constant 0 : index
    %7 = vector.load %arg16[%c0_10, %c0_11, %c0_12] : memref<4x90x16xf32, #tpu.memory_space<vmem>>, vector<4x90x16xf32>
    tpu.vector_store %arg16[%c0_10, %c0_11, %c0_12], %6 {strides = array<i32>} : memref<4x90x16xf32, #tpu.memory_space<vmem>>, vector<4x90x16xf32>,
    %cst_13 = arith.constant 0.000000e+00 : f32
    %8 = vector.broadcast %cst_13 : f32 to vector<74x48xf32>
    %c0_14 = arith.constant 0 : index
    %c0_15 = arith.constant 0 : index
    %c0_16 = arith.constant 0 : index
    %c0_17 = arith.constant 0 : index
    %9 = vector.load %arg1[%c0_14, %c0_15, %c0_16, %c0_17] : memref<1x4x90x1xf32, #tpu.memory_space<vmem>>, vector<1x1x74x1xf32>
    %10 = vector.shape_cast %9 : vector<1x1x74x1xf32> to vector<74x1xf32>
    %c0_18 = arith.constant 0 : index
    %c0_19 = arith.constant 0 : index
    %c0_20 = arith.constant 0 : index
    %11 = vector.load %arg2[%c0_18, %c0_19, %c0_20] : memref<9x1x48xf32, #tpu.memory_space<vmem>>, vector<1x1x48xf32>
    %12 = vector.shape_cast %11 : vector<1x1x48xf32> to vector<1x48xf32>
    %13 = vector.broadcast %10 : vector<74x1xf32> to vector<74x48xf32>
    %14 = vector.broadcast %12 : vector<1x48xf32> to vector<74x48xf32>
    %15 = arith.mulf %13, %14 : vector<74x48xf32>
    %16 = arith.addf %8, %15 : vector<74x48xf32>
    %c0_21 = arith.constant 0 : index
    %c1 = arith.constant 1 : index
    %c0_22 = arith.constant 0 : index
    %c0_23 = arith.constant 0 : index
    %17 = vector.load %arg1[%c0_21, %c1, %c0_22, %c0_23] : memref<1x4x90x1xf32, #tpu.memory_space<vmem>>, vector<1x1x74x1xf32>
    %18 = vector.shape_cast %17 : vector<1x1x74x1xf32> to vector<74x1xf32>
    %c1_24 = arith.constant 1 : index
    %c0_25 = arith.constant 0 : index
    %c0_26 = arith.constant 0 : index
    %19 = vector.load %arg2[%c1_24, %c0_25, %c0_26] : memref<9x1x48xf32, #tpu.memory_space<vmem>>, vector<1x1x48xf32>
    %20 = vector.shape_cast %19 : vector<1x1x48xf32> to vector<1x48xf32>
    %21 = vector.broadcast %18 : vector<74x1xf32> to vector<74x48xf32>
    %22 = vector.broadcast %20 : vector<1x48xf32> to vector<74x48xf32>
    %23 = arith.mulf %21, %22 : vector<74x48xf32>
    %24 = arith.addf %16, %23 : vector<74x48xf32>
    %c0_27 = arith.constant 0 : index
    %c2 = arith.constant 2 : index
    %c0_28 = arith.constant 0 : index
    %c0_29 = arith.constant 0 : index
    %25 = vector.load %arg1[%c0_27, %c2, %c0_28, %c0_29] : memref<1x4x90x1xf32, #tpu.memory_space<vmem>>, vector<1x1x74x1xf32>
    %26 = vector.shape_cast %25 : vector<1x1x74x1xf32> to vector<74x1xf32>
    %c2_30 = arith.constant 2 : index
    %c0_31 = arith.constant 0 : index
    %c0_32 = arith.constant 0 : index
    %27 = vector.load %arg2[%c2_30, %c0_31, %c0_32] : memref<9x1x48xf32, #tpu.memory_space<vmem>>, vector<1x1x48xf32>
    %28 = vector.shape_cast %27 : vector<1x1x48xf32> to vector<1x48xf32>
    %29 = vector.broadcast %26 : vector<74x1xf32> to vector<74x48xf32>
    %30 = vector.broadcast %28 : vector<1x48xf32> to vector<74x48xf32>
    %31 = arith.mulf %29, %30 : vector<74x48xf32>
    %32 = arith.addf %24, %31 : vector<74x48xf32>
    %c0_33 = arith.constant 0 : index
    %c0_34 = arith.constant 0 : index
    %c5 = arith.constant 5 : index
    %c0_35 = arith.constant 0 : index
    %33 = vector.load %arg1[%c0_33, %c0_34, %c5, %c0_35] : memref<1x4x90x1xf32, #tpu.memory_space<vmem>>, vector<1x1x74x1xf32>
    %34 = vector.shape_cast %33 : vector<1x1x74x1xf32> to vector<74x1xf32>
    %c3 = arith.constant 3 : index
    %c0_36 = arith.constant 0 : index
    %c0_37 = arith.constant 0 : index
    %35 = vector.load %arg2[%c3, %c0_36, %c0_37] : memref<9x1x48xf32, #tpu.memory_space<vmem>>, vector<1x1x48xf32>
    %36 = vector.shape_cast %35 : vector<1x1x48xf32> to vector<1x48xf32>
    %37 = vector.broadcast %34 : vector<74x1xf32> to vector<74x48xf32>
    %38 = vector.broadcast %36 : vector<1x48xf32> to vector<74x48xf32>
    %39 = arith.mulf %37, %38 : vector<74x48xf32>
    %40 = arith.addf %32, %39 : vector<74x48xf32>
    %c0_38 = arith.constant 0 : index
    %c1_39 = arith.constant 1 : index
    %c5_40 = arith.constant 5 : index
    %c0_41 = arith.constant 0 : index
    %41 = vector.load %arg1[%c0_38, %c1_39, %c5_40, %c0_41] : memref<1x4x90x1xf32, #tpu.memory_space<vmem>>, vector<1x1x74x1xf32>
    %42 = vector.shape_cast %41 : vector<1x1x74x1xf32> to vector<74x1xf32>
    %c4 = arith.constant 4 : index
    %c0_42 = arith.constant 0 : index
    %c0_43 = arith.constant 0 : index
    %43 = vector.load %arg2[%c4, %c0_42, %c0_43] : memref<9x1x48xf32, #tpu.memory_space<vmem>>, vector<1x1x48xf32>
    %44 = vector.shape_cast %43 : vector<1x1x48xf32> to vector<1x48xf32>
    %45 = vector.broadcast %42 : vector<74x1xf32> to vector<74x48xf32>
    %46 = vector.broadcast %44 : vector<1x48xf32> to vector<74x48xf32>
    %47 = arith.mulf %45, %46 : vector<74x48xf32>
    %48 = arith.addf %40, %47 : vector<74x48xf32>
    %c0_44 = arith.constant 0 : index
    %c2_45 = arith.constant 2 : index
    %c5_46 = arith.constant 5 : index
    %c0_47 = arith.constant 0 : index
    %49 = vector.load %arg1[%c0_44, %c2_45, %c5_46, %c0_47] : memref<1x4x90x1xf32, #tpu.memory_space<vmem>>, vector<1x1x74x1xf32>
    %50 = vector.shape_cast %49 : vector<1x1x74x1xf32> to vector<74x1xf32>
    %c5_48 = arith.constant 5 : index
    %c0_49 = arith.constant 0 : index
    %c0_50 = arith.constant 0 : index
    %51 = vector.load %arg2[%c5_48, %c0_49, %c0_50] : memref<9x1x48xf32, #tpu.memory_space<vmem>>, vector<1x1x48xf32>
    %52 = vector.shape_cast %51 : vector<1x1x48xf32> to vector<1x48xf32>
    %53 = vector.broadcast %50 : vector<74x1xf32> to vector<74x48xf32>
    %54 = vector.broadcast %52 : vector<1x48xf32> to vector<74x48xf32>
    %55 = arith.mulf %53, %54 : vector<74x48xf32>
    %56 = arith.addf %48, %55 : vector<74x48xf32>
    %c0_51 = arith.constant 0 : index
    %c0_52 = arith.constant 0 : index
    %c10 = arith.constant 10 : index
    %c0_53 = arith.constant 0 : index
    %57 = vector.load %arg1[%c0_51, %c0_52, %c10, %c0_53] : memref<1x4x90x1xf32, #tpu.memory_space<vmem>>, vector<1x1x74x1xf32>
    %58 = vector.shape_cast %57 : vector<1x1x74x1xf32> to vector<74x1xf32>
    %c6 = arith.constant 6 : index
    %c0_54 = arith.constant 0 : index
    %c0_55 = arith.constant 0 : index
    %59 = vector.load %arg2[%c6, %c0_54, %c0_55] : memref<9x1x48xf32, #tpu.memory_space<vmem>>, vector<1x1x48xf32>
    %60 = vector.shape_cast %59 : vector<1x1x48xf32> to vector<1x48xf32>
    %61 = vector.broadcast %58 : vector<74x1xf32> to vector<74x48xf32>
    %62 = vector.broadcast %60 : vector<1x48xf32> to vector<74x48xf32>
    %63 = arith.mulf %61, %62 : vector<74x48xf32>
    %64 = arith.addf %56, %63 : vector<74x48xf32>
    %c0_56 = arith.constant 0 : index
    %c1_57 = arith.constant 1 : index
    %c10_58 = arith.constant 10 : index
    %c0_59 = arith.constant 0 : index
    %65 = vector.load %arg1[%c0_56, %c1_57, %c10_58, %c0_59] : memref<1x4x90x1xf32, #tpu.memory_space<vmem>>, vector<1x1x74x1xf32>
    %66 = vector.shape_cast %65 : vector<1x1x74x1xf32> to vector<74x1xf32>
    %c7 = arith.constant 7 : index
    %c0_60 = arith.constant 0 : index
    %c0_61 = arith.constant 0 : index
    %67 = vector.load %arg2[%c7, %c0_60, %c0_61] : memref<9x1x48xf32, #tpu.memory_space<vmem>>, vector<1x1x48xf32>
    %68 = vector.shape_cast %67 : vector<1x1x48xf32> to vector<1x48xf32>
    %69 = vector.broadcast %66 : vector<74x1xf32> to vector<74x48xf32>
    %70 = vector.broadcast %68 : vector<1x48xf32> to vector<74x48xf32>
    %71 = arith.mulf %69, %70 : vector<74x48xf32>
    %72 = arith.addf %64, %71 : vector<74x48xf32>
    %c0_62 = arith.constant 0 : index
    %c2_63 = arith.constant 2 : index
    %c10_64 = arith.constant 10 : index
    %c0_65 = arith.constant 0 : index
    %73 = vector.load %arg1[%c0_62, %c2_63, %c10_64, %c0_65] : memref<1x4x90x1xf32, #tpu.memory_space<vmem>>, vector<1x1x74x1xf32>
    %74 = vector.shape_cast %73 : vector<1x1x74x1xf32> to vector<74x1xf32>
    %c8 = arith.constant 8 : index
    %c0_66 = arith.constant 0 : index
    %c0_67 = arith.constant 0 : index
    %75 = vector.load %arg2[%c8, %c0_66, %c0_67] : memref<9x1x48xf32, #tpu.memory_space<vmem>>, vector<1x1x48xf32>
    %76 = vector.shape_cast %75 : vector<1x1x48xf32> to vector<1x48xf32>
    %77 = vector.broadcast %74 : vector<74x1xf32> to vector<74x48xf32>
    %78 = vector.broadcast %76 : vector<1x48xf32> to vector<74x48xf32>
    %79 = arith.mulf %77, %78 : vector<74x48xf32>
    %80 = arith.addf %72, %79 : vector<74x48xf32>
    %c0_68 = arith.constant 0 : index
    %c0_69 = arith.constant 0 : index
    %81 = vector.load %arg3[%c0_68, %c0_69] : memref<1x48xf32, #tpu.memory_space<vmem>>, vector<1x48xf32>
    %82 = vector.broadcast %81 : vector<1x48xf32> to vector<74x48xf32>
    %83 = arith.addf %80, %82 : vector<74x48xf32>
    %cst_70 = arith.constant 0.000000e+00 : f32
    %84 = vector.broadcast %cst_70 : f32 to vector<74x48xf32>
    %85 = arith.maximumf %83, %84 : vector<74x48xf32>
    %86 = vector.extract_strided_slice %85 {offsets = [0, 0], sizes = [4, 48], strides = [1, 1]} : vector<74x48xf32> to vector<4x48xf32>
    %c1_71 = arith.constant 1 : index
    %c5_72 = arith.constant 5 : index
    %c0_73 = arith.constant 0 : index
    %87 = vector.load %arg13[%c1_71, %c5_72, %c0_73] : memref<2x50x48xf32, #tpu.memory_space<vmem>>, vector<1x4x48xf32>
    %88 = vector.shape_cast %87 : vector<1x4x48xf32> to vector<4x48xf32>
    %89 = vector.shape_cast %86 : vector<4x48xf32> to vector<1x4x48xf32>
    tpu.vector_store %arg13[%c1_71, %c5_72, %c0_73], %89 {strides = array<i32>} : memref<2x50x48xf32, #tpu.memory_space<vmem>>, vector<1x4x48xf32>,
    %90 = vector.extract_strided_slice %85 {offsets = [10, 0], sizes = [4, 48], strides = [1, 1]} : vector<74x48xf32> to vector<4x48xf32>
    %c1_74 = arith.constant 1 : index
    %c10_75 = arith.constant 10 : index
    %c0_76 = arith.constant 0 : index
    %91 = vector.load %arg13[%c1_74, %c10_75, %c0_76] : memref<2x50x48xf32, #tpu.memory_space<vmem>>, vector<1x4x48xf32>
    %92 = vector.shape_cast %91 : vector<1x4x48xf32> to vector<4x48xf32>
    %93 = vector.shape_cast %90 : vector<4x48xf32> to vector<1x4x48xf32>
    tpu.vector_store %arg13[%c1_74, %c10_75, %c0_76], %93 {strides = array<i32>} : memref<2x50x48xf32, #tpu.memory_space<vmem>>, vector<1x4x48xf32>,
    %94 = vector.extract_strided_slice %85 {offsets = [20, 0], sizes = [4, 48], strides = [1, 1]} : vector<74x48xf32> to vector<4x48xf32>
    %c1_77 = arith.constant 1 : index
    %c15 = arith.constant 15 : index
    %c0_78 = arith.constant 0 : index
    %95 = vector.load %arg13[%c1_77, %c15, %c0_78] : memref<2x50x48xf32, #tpu.memory_space<vmem>>, vector<1x4x48xf32>
    %96 = vector.shape_cast %95 : vector<1x4x48xf32> to vector<4x48xf32>
    %97 = vector.shape_cast %94 : vector<4x48xf32> to vector<1x4x48xf32>
    tpu.vector_store %arg13[%c1_77, %c15, %c0_78], %97 {strides = array<i32>} : memref<2x50x48xf32, #tpu.memory_space<vmem>>, vector<1x4x48xf32>,
    %98 = vector.extract_strided_slice %85 {offsets = [30, 0], sizes = [4, 48], strides = [1, 1]} : vector<74x48xf32> to vector<4x48xf32>
    %c1_79 = arith.constant 1 : index
    %c20 = arith.constant 20 : index
    %c0_80 = arith.constant 0 : index
    %99 = vector.load %arg13[%c1_79, %c20, %c0_80] : memref<2x50x48xf32, #tpu.memory_space<vmem>>, vector<1x4x48xf32>
    %100 = vector.shape_cast %99 : vector<1x4x48xf32> to vector<4x48xf32>
    %101 = vector.shape_cast %98 : vector<4x48xf32> to vector<1x4x48xf32>
    tpu.vector_store %arg13[%c1_79, %c20, %c0_80], %101 {strides = array<i32>} : memref<2x50x48xf32, #tpu.memory_space<vmem>>, vector<1x4x48xf32>,
    %102 = vector.extract_strided_slice %85 {offsets = [40, 0], sizes = [4, 48], strides = [1, 1]} : vector<74x48xf32> to vector<4x48xf32>
    %c1_81 = arith.constant 1 : index
    %c25 = arith.constant 25 : index
    %c0_82 = arith.constant 0 : index
    %103 = vector.load %arg13[%c1_81, %c25, %c0_82] : memref<2x50x48xf32, #tpu.memory_space<vmem>>, vector<1x4x48xf32>
    %104 = vector.shape_cast %103 : vector<1x4x48xf32> to vector<4x48xf32>
    %105 = vector.shape_cast %102 : vector<4x48xf32> to vector<1x4x48xf32>
    tpu.vector_store %arg13[%c1_81, %c25, %c0_82], %105 {strides = array<i32>} : memref<2x50x48xf32, #tpu.memory_space<vmem>>, vector<1x4x48xf32>,
    %106 = vector.extract_strided_slice %85 {offsets = [50, 0], sizes = [4, 48], strides = [1, 1]} : vector<74x48xf32> to vector<4x48xf32>
    %c1_83 = arith.constant 1 : index
    %c30 = arith.constant 30 : index
    %c0_84 = arith.constant 0 : index
    %107 = vector.load %arg13[%c1_83, %c30, %c0_84] : memref<2x50x48xf32, #tpu.memory_space<vmem>>, vector<1x4x48xf32>
    %108 = vector.shape_cast %107 : vector<1x4x48xf32> to vector<4x48xf32>
    %109 = vector.shape_cast %106 : vector<4x48xf32> to vector<1x4x48xf32>
    tpu.vector_store %arg13[%c1_83, %c30, %c0_84], %109 {strides = array<i32>} : memref<2x50x48xf32, #tpu.memory_space<vmem>>, vector<1x4x48xf32>,
    %110 = vector.extract_strided_slice %85 {offsets = [60, 0], sizes = [4, 48], strides = [1, 1]} : vector<74x48xf32> to vector<4x48xf32>
    %c1_85 = arith.constant 1 : index
    %c35 = arith.constant 35 : index
    %c0_86 = arith.constant 0 : index
    %111 = vector.load %arg13[%c1_85, %c35, %c0_86] : memref<2x50x48xf32, #tpu.memory_space<vmem>>, vector<1x4x48xf32>
    %112 = vector.shape_cast %111 : vector<1x4x48xf32> to vector<4x48xf32>
    %113 = vector.shape_cast %110 : vector<4x48xf32> to vector<1x4x48xf32>
    tpu.vector_store %arg13[%c1_85, %c35, %c0_86], %113 {strides = array<i32>} : memref<2x50x48xf32, #tpu.memory_space<vmem>>, vector<1x4x48xf32>,
    %114 = vector.extract_strided_slice %85 {offsets = [70, 0], sizes = [4, 48], strides = [1, 1]} : vector<74x48xf32> to vector<4x48xf32>
    %c1_87 = arith.constant 1 : index
    %c40 = arith.constant 40 : index
    %c0_88 = arith.constant 0 : index
    %115 = vector.load %arg13[%c1_87, %c40, %c0_88] : memref<2x50x48xf32, #tpu.memory_space<vmem>>, vector<1x4x48xf32>
    %116 = vector.shape_cast %115 : vector<1x4x48xf32> to vector<4x48xf32>
    %117 = vector.shape_cast %114 : vector<4x48xf32> to vector<1x4x48xf32>
    tpu.vector_store %arg13[%c1_87, %c40, %c0_88], %117 {strides = array<i32>} : memref<2x50x48xf32, #tpu.memory_space<vmem>>, vector<1x4x48xf32>,
    %cst_89 = arith.constant 0.000000e+00 : f32
    %118 = vector.broadcast %cst_89 : f32 to vector<74x48xf32>
    %c0_90 = arith.constant 0 : index
    %c2_91 = arith.constant 2 : index
    %c0_92 = arith.constant 0 : index
    %c0_93 = arith.constant 0 : index
    %119 = vector.load %arg1[%c0_90, %c2_91, %c0_92, %c0_93] : memref<1x4x90x1xf32, #tpu.memory_space<vmem>>, vector<1x1x74x1xf32>
    %120 = vector.shape_cast %119 : vector<1x1x74x1xf32> to vector<74x1xf32>
    %c0_94 = arith.constant 0 : index
    %c0_95 = arith.constant 0 : index
    %c0_96 = arith.constant 0 : index
    %121 = vector.load %arg2[%c0_94, %c0_95, %c0_96] : memref<9x1x48xf32, #tpu.memory_space<vmem>>, vector<1x1x48xf32>
    %122 = vector.shape_cast %121 : vector<1x1x48xf32> to vector<1x48xf32>
    %123 = vector.broadcast %120 : vector<74x1xf32> to vector<74x48xf32>
    %124 = vector.broadcast %122 : vector<1x48xf32> to vector<74x48xf32>
    %125 = arith.mulf %123, %124 : vector<74x48xf32>
    %126 = arith.addf %118, %125 : vector<74x48xf32>
    %c0_97 = arith.constant 0 : index
    %c3_98 = arith.constant 3 : index
    %c0_99 = arith.constant 0 : index
    %c0_100 = arith.constant 0 : index
    %127 = vector.load %arg1[%c0_97, %c3_98, %c0_99, %c0_100] : memref<1x4x90x1xf32, #tpu.memory_space<vmem>>, vector<1x1x74x1xf32>
    %128 = vector.shape_cast %127 : vector<1x1x74x1xf32> to vector<74x1xf32>
    %c1_101 = arith.constant 1 : index
    %c0_102 = arith.constant 0 : index
    %c0_103 = arith.constant 0 : index
    %129 = vector.load %arg2[%c1_101, %c0_102, %c0_103] : memref<9x1x48xf32, #tpu.memory_space<vmem>>, vector<1x1x48xf32>
    %130 = vector.shape_cast %129 : vector<1x1x48xf32> to vector<1x48xf32>
    %131 = vector.broadcast %128 : vector<74x1xf32> to vector<74x48xf32>
    %132 = vector.broadcast %130 : vector<1x48xf32> to vector<74x48xf32>
    %133 = arith.mulf %131, %132 : vector<74x48xf32>
    %134 = arith.addf %126, %133 : vector<74x48xf32>
    %c0_104 = arith.constant 0 : index
    %c0_105 = arith.constant 0 : index
    %c1_106 = arith.constant 1 : index
    %c0_107 = arith.constant 0 : index
    %135 = vector.load %arg1[%c0_104, %c0_105, %c1_106, %c0_107] : memref<1x4x90x1xf32, #tpu.memory_space<vmem>>, vector<1x1x74x1xf32>
    %136 = vector.shape_cast %135 : vector<1x1x74x1xf32> to vector<74x1xf32>
    %c2_108 = arith.constant 2 : index
    %c0_109 = arith.constant 0 : index
    %c0_110 = arith.constant 0 : index
    %137 = vector.load %arg2[%c2_108, %c0_109, %c0_110] : memref<9x1x48xf32, #tpu.memory_space<vmem>>, vector<1x1x48xf32>
    %138 = vector.shape_cast %137 : vector<1x1x48xf32> to vector<1x48xf32>
    %139 = vector.broadcast %136 : vector<74x1xf32> to vector<74x48xf32>
    %140 = vector.broadcast %138 : vector<1x48xf32> to vector<74x48xf32>
    %141 = arith.mulf %139, %140 : vector<74x48xf32>
    %142 = arith.addf %134, %141 : vector<74x48xf32>
    %c0_111 = arith.constant 0 : index
    %c2_112 = arith.constant 2 : index
    %c5_113 = arith.constant 5 : index
    %c0_114 = arith.constant 0 : index
    %143 = vector.load %arg1[%c0_111, %c2_112, %c5_113, %c0_114] : memref<1x4x90x1xf32, #tpu.memory_space<vmem>>, vector<1x1x74x1xf32>
    %144 = vector.shape_cast %143 : vector<1x1x74x1xf32> to vector<74x1xf32>
    %c3_115 = arith.constant 3 : index
    %c0_116 = arith.constant 0 : index
    %c0_117 = arith.constant 0 : index
    %145 = vector.load %arg2[%c3_115, %c0_116, %c0_117] : memref<9x1x48xf32, #tpu.memory_space<vmem>>, vector<1x1x48xf32>
    %146 = vector.shape_cast %145 : vector<1x1x48xf32> to vector<1x48xf32>
    %147 = vector.broadcast %144 : vector<74x1xf32> to vector<74x48xf32>
    %148 = vector.broadcast %146 : vector<1x48xf32> to vector<74x48xf32>
    %149 = arith.mulf %147, %148 : vector<74x48xf32>
    %150 = arith.addf %142, %149 : vector<74x48xf32>
    %c0_118 = arith.constant 0 : index
    %c3_119 = arith.constant 3 : index
    %c5_120 = arith.constant 5 : index
    %c0_121 = arith.constant 0 : index
    %151 = vector.load %arg1[%c0_118, %c3_119, %c5_120, %c0_121] : memref<1x4x90x1xf32, #tpu.memory_space<vmem>>, vector<1x1x74x1xf32>
    %152 = vector.shape_cast %151 : vector<1x1x74x1xf32> to vector<74x1xf32>
    %c4_122 = arith.constant 4 : index
    %c0_123 = arith.constant 0 : index
    %c0_124 = arith.constant 0 : index
    %153 = vector.load %arg2[%c4_122, %c0_123, %c0_124] : memref<9x1x48xf32, #tpu.memory_space<vmem>>, vector<1x1x48xf32>
    %154 = vector.shape_cast %153 : vector<1x1x48xf32> to vector<1x48xf32>
    %155 = vector.broadcast %152 : vector<74x1xf32> to vector<74x48xf32>
    %156 = vector.broadcast %154 : vector<1x48xf32> to vector<74x48xf32>
    %157 = arith.mulf %155, %156 : vector<74x48xf32>
    %158 = arith.addf %150, %157 : vector<74x48xf32>
    %c0_125 = arith.constant 0 : index
    %c0_126 = arith.constant 0 : index
    %c6_127 = arith.constant 6 : index
    %c0_128 = arith.constant 0 : index
    %159 = vector.load %arg1[%c0_125, %c0_126, %c6_127, %c0_128] : memref<1x4x90x1xf32, #tpu.memory_space<vmem>>, vector<1x1x74x1xf32>
    %160 = vector.shape_cast %159 : vector<1x1x74x1xf32> to vector<74x1xf32>
    %c5_129 = arith.constant 5 : index
    %c0_130 = arith.constant 0 : index
    %c0_131 = arith.constant 0 : index
    %161 = vector.load %arg2[%c5_129, %c0_130, %c0_131] : memref<9x1x48xf32, #tpu.memory_space<vmem>>, vector<1x1x48xf32>
    %162 = vector.shape_cast %161 : vector<1x1x48xf32> to vector<1x48xf32>
    %163 = vector.broadcast %160 : vector<74x1xf32> to vector<74x48xf32>
    %164 = vector.broadcast %162 : vector<1x48xf32> to vector<74x48xf32>
    %165 = arith.mulf %163, %164 : vector<74x48xf32>
    %166 = arith.addf %158, %165 : vector<74x48xf32>
    %c0_132 = arith.constant 0 : index
    %c2_133 = arith.constant 2 : index
    %c10_134 = arith.constant 10 : index
    %c0_135 = arith.constant 0 : index
    %167 = vector.load %arg1[%c0_132, %c2_133, %c10_134, %c0_135] : memref<1x4x90x1xf32, #tpu.memory_space<vmem>>, vector<1x1x74x1xf32>
    %168 = vector.shape_cast %167 : vector<1x1x74x1xf32> to vector<74x1xf32>
    %c6_136 = arith.constant 6 : index
    %c0_137 = arith.constant 0 : index
    %c0_138 = arith.constant 0 : index
    %169 = vector.load %arg2[%c6_136, %c0_137, %c0_138] : memref<9x1x48xf32, #tpu.memory_space<vmem>>, vector<1x1x48xf32>
    %170 = vector.shape_cast %169 : vector<1x1x48xf32> to vector<1x48xf32>
    %171 = vector.broadcast %168 : vector<74x1xf32> to vector<74x48xf32>
    %172 = vector.broadcast %170 : vector<1x48xf32> to vector<74x48xf32>
    %173 = arith.mulf %171, %172 : vector<74x48xf32>
    %174 = arith.addf %166, %173 : vector<74x48xf32>
    %c0_139 = arith.constant 0 : index
    %c3_140 = arith.constant 3 : index
    %c10_141 = arith.constant 10 : index
    %c0_142 = arith.constant 0 : index
    %175 = vector.load %arg1[%c0_139, %c3_140, %c10_141, %c0_142] : memref<1x4x90x1xf32, #tpu.memory_space<vmem>>, vector<1x1x74x1xf32>
    %176 = vector.shape_cast %175 : vector<1x1x74x1xf32> to vector<74x1xf32>
    %c7_143 = arith.constant 7 : index
    %c0_144 = arith.constant 0 : index
    %c0_145 = arith.constant 0 : index
    %177 = vector.load %arg2[%c7_143, %c0_144, %c0_145] : memref<9x1x48xf32, #tpu.memory_space<vmem>>, vector<1x1x48xf32>
    %178 = vector.shape_cast %177 : vector<1x1x48xf32> to vector<1x48xf32>
    %179 = vector.broadcast %176 : vector<74x1xf32> to vector<74x48xf32>
    %180 = vector.broadcast %178 : vector<1x48xf32> to vector<74x48xf32>
    %181 = arith.mulf %179, %180 : vector<74x48xf32>
    %182 = arith.addf %174, %181 : vector<74x48xf32>
    %c0_146 = arith.constant 0 : index
    %c0_147 = arith.constant 0 : index
    %c11 = arith.constant 11 : index
    %c0_148 = arith.constant 0 : index
    %183 = vector.load %arg1[%c0_146, %c0_147, %c11, %c0_148] : memref<1x4x90x1xf32, #tpu.memory_space<vmem>>, vector<1x1x74x1xf32>
    %184 = vector.shape_cast %183 : vector<1x1x74x1xf32> to vector<74x1xf32>
    %c8_149 = arith.constant 8 : index
    %c0_150 = arith.constant 0 : index
    %c0_151 = arith.constant 0 : index
    %185 = vector.load %arg2[%c8_149, %c0_150, %c0_151] : memref<9x1x48xf32, #tpu.memory_space<vmem>>, vector<1x1x48xf32>
    %186 = vector.shape_cast %185 : vector<1x1x48xf32> to vector<1x48xf32>
    %187 = vector.broadcast %184 : vector<74x1xf32> to vector<74x48xf32>
    %188 = vector.broadcast %186 : vector<1x48xf32> to vector<74x48xf32>
    %189 = arith.mulf %187, %188 : vector<74x48xf32>
    %190 = arith.addf %182, %189 : vector<74x48xf32>
    %c0_152 = arith.constant 0 : index
    %c0_153 = arith.constant 0 : index
    %191 = vector.load %arg3[%c0_152, %c0_153] : memref<1x48xf32, #tpu.memory_space<vmem>>, vector<1x48xf32>
    %192 = vector.broadcast %191 : vector<1x48xf32> to vector<74x48xf32>
    %193 = arith.addf %190, %192 : vector<74x48xf32>
    %cst_154 = arith.constant 0.000000e+00 : f32
    %194 = vector.broadcast %cst_154 : f32 to vector<74x48xf32>
    %195 = arith.maximumf %193, %194 : vector<74x48xf32>
    %196 = vector.extract_strided_slice %195 {offsets = [0, 0], sizes = [4, 48], strides = [1, 1]} : vector<74x48xf32> to vector<4x48xf32>
    %c0_155 = arith.constant 0 : index
    %c6_156 = arith.constant 6 : index
    %c0_157 = arith.constant 0 : index
    %197 = vector.load %arg13[%c0_155, %c6_156, %c0_157] : memref<2x50x48xf32, #tpu.memory_space<vmem>>, vector<1x4x48xf32>
    %198 = vector.shape_cast %197 : vector<1x4x48xf32> to vector<4x48xf32>
    %199 = vector.shape_cast %196 : vector<4x48xf32> to vector<1x4x48xf32>
    tpu.vector_store %arg13[%c0_155, %c6_156, %c0_157], %199 {strides = array<i32>} : memref<2x50x48xf32, #tpu.memory_space<vmem>>, vector<1x4x48xf32>,
    %200 = vector.extract_strided_slice %195 {offsets = [10, 0], sizes = [4, 48], strides = [1, 1]} : vector<74x48xf32> to vector<4x48xf32>
    %c0_158 = arith.constant 0 : index
    %c11_159 = arith.constant 11 : index
    %c0_160 = arith.constant 0 : index
    %201 = vector.load %arg13[%c0_158, %c11_159, %c0_160] : memref<2x50x48xf32, #tpu.memory_space<vmem>>, vector<1x4x48xf32>
    %202 = vector.shape_cast %201 : vector<1x4x48xf32> to vector<4x48xf32>
    %203 = vector.shape_cast %200 : vector<4x48xf32> to vector<1x4x48xf32>
    tpu.vector_store %arg13[%c0_158, %c11_159, %c0_160], %203 {strides = array<i32>} : memref<2x50x48xf32, #tpu.memory_space<vmem>>, vector<1x4x48xf32>,
    %204 = vector.extract_strided_slice %195 {offsets = [20, 0], sizes = [4, 48], strides = [1, 1]} : vector<74x48xf32> to vector<4x48xf32>
    %c0_161 = arith.constant 0 : index
    %c16 = arith.constant 16 : index
    %c0_162 = arith.constant 0 : index
    %205 = vector.load %arg13[%c0_161, %c16, %c0_162] : memref<2x50x48xf32, #tpu.memory_space<vmem>>, vector<1x4x48xf32>
    %206 = vector.shape_cast %205 : vector<1x4x48xf32> to vector<4x48xf32>
    %207 = vector.shape_cast %204 : vector<4x48xf32> to vector<1x4x48xf32>
    tpu.vector_store %arg13[%c0_161, %c16, %c0_162], %207 {strides = array<i32>} : memref<2x50x48xf32, #tpu.memory_space<vmem>>, vector<1x4x48xf32>,
    %208 = vector.extract_strided_slice %195 {offsets = [30, 0], sizes = [4, 48], strides = [1, 1]} : vector<74x48xf32> to vector<4x48xf32>
    %c0_163 = arith.constant 0 : index
    %c21 = arith.constant 21 : index
    %c0_164 = arith.constant 0 : index
    %209 = vector.load %arg13[%c0_163, %c21, %c0_164] : memref<2x50x48xf32, #tpu.memory_space<vmem>>, vector<1x4x48xf32>
    %210 = vector.shape_cast %209 : vector<1x4x48xf32> to vector<4x48xf32>
    %211 = vector.shape_cast %208 : vector<4x48xf32> to vector<1x4x48xf32>
    tpu.vector_store %arg13[%c0_163, %c21, %c0_164], %211 {strides = array<i32>} : memref<2x50x48xf32, #tpu.memory_space<vmem>>, vector<1x4x48xf32>,
    %212 = vector.extract_strided_slice %195 {offsets = [40, 0], sizes = [4, 48], strides = [1, 1]} : vector<74x48xf32> to vector<4x48xf32>
    %c0_165 = arith.constant 0 : index
    %c26 = arith.constant 26 : index
    %c0_166 = arith.constant 0 : index
    %213 = vector.load %arg13[%c0_165, %c26, %c0_166] : memref<2x50x48xf32, #tpu.memory_space<vmem>>, vector<1x4x48xf32>
    %214 = vector.shape_cast %213 : vector<1x4x48xf32> to vector<4x48xf32>
    %215 = vector.shape_cast %212 : vector<4x48xf32> to vector<1x4x48xf32>
    tpu.vector_store %arg13[%c0_165, %c26, %c0_166], %215 {strides = array<i32>} : memref<2x50x48xf32, #tpu.memory_space<vmem>>, vector<1x4x48xf32>,
    %216 = vector.extract_strided_slice %195 {offsets = [50, 0], sizes = [4, 48], strides = [1, 1]} : vector<74x48xf32> to vector<4x48xf32>
    %c0_167 = arith.constant 0 : index
    %c31 = arith.constant 31 : index
    %c0_168 = arith.constant 0 : index
    %217 = vector.load %arg13[%c0_167, %c31, %c0_168] : memref<2x50x48xf32, #tpu.memory_space<vmem>>, vector<1x4x48xf32>
    %218 = vector.shape_cast %217 : vector<1x4x48xf32> to vector<4x48xf32>
    %219 = vector.shape_cast %216 : vector<4x48xf32> to vector<1x4x48xf32>
    tpu.vector_store %arg13[%c0_167, %c31, %c0_168], %219 {strides = array<i32>} : memref<2x50x48xf32, #tpu.memory_space<vmem>>, vector<1x4x48xf32>,
    %220 = vector.extract_strided_slice %195 {offsets = [60, 0], sizes = [4, 48], strides = [1, 1]} : vector<74x48xf32> to vector<4x48xf32>
    %c0_169 = arith.constant 0 : index
    %c36 = arith.constant 36 : index
    %c0_170 = arith.constant 0 : index
    %221 = vector.load %arg13[%c0_169, %c36, %c0_170] : memref<2x50x48xf32, #tpu.memory_space<vmem>>, vector<1x4x48xf32>
    %222 = vector.shape_cast %221 : vector<1x4x48xf32> to vector<4x48xf32>
    %223 = vector.shape_cast %220 : vector<4x48xf32> to vector<1x4x48xf32>
    tpu.vector_store %arg13[%c0_169, %c36, %c0_170], %223 {strides = array<i32>} : memref<2x50x48xf32, #tpu.memory_space<vmem>>, vector<1x4x48xf32>,
    %224 = vector.extract_strided_slice %195 {offsets = [70, 0], sizes = [4, 48], strides = [1, 1]} : vector<74x48xf32> to vector<4x48xf32>
    %c0_171 = arith.constant 0 : index
    %c41 = arith.constant 41 : index
    %c0_172 = arith.constant 0 : index
    %225 = vector.load %arg13[%c0_171, %c41, %c0_172] : memref<2x50x48xf32, #tpu.memory_space<vmem>>, vector<1x4x48xf32>
    %226 = vector.shape_cast %225 : vector<1x4x48xf32> to vector<4x48xf32>
    %227 = vector.shape_cast %224 : vector<4x48xf32> to vector<1x4x48xf32>
    tpu.vector_store %arg13[%c0_171, %c41, %c0_172], %227 {strides = array<i32>} : memref<2x50x48xf32, #tpu.memory_space<vmem>>, vector<1x4x48xf32>,
    %cst_173 = arith.constant 0.000000e+00 : f32
    %228 = vector.broadcast %cst_173 : f32 to vector<34x48xf32>
    %c0_174 = arith.constant 0 : index
    %c0_175 = arith.constant 0 : index
    %c0_176 = arith.constant 0 : index
    %229 = vector.load %arg13[%c0_174, %c0_175, %c0_176] : memref<2x50x48xf32, #tpu.memory_space<vmem>>, vector<1x34x48xf32>
    %230 = vector.shape_cast %229 : vector<1x34x48xf32> to vector<34x48xf32>
    %c0_177 = arith.constant 0 : index
    %c0_178 = arith.constant 0 : index
    %c0_179 = arith.constant 0 : index
    %231 = vector.load %arg4[%c0_177, %c0_178, %c0_179] : memref<9x48x48xf32, #tpu.memory_space<vmem>>, vector<1x48x48xf32>
    %232 = vector.shape_cast %231 : vector<1x48x48xf32> to vector<48x48xf32>
    %cst_180 = arith.constant dense<0.000000e+00> : vector<34x48xf32>
    %233 = tpu.matmul %230, %232, %cst_180 {dimension_numbers = #tpu.dot_dimension_numbers<[1], [0], [0], [1], [0, 0, 1, 1], [], []>} : vector<34x48xf32>, vector<48x48xf32>, vector<34x48xf32> -> vector<34x48xf32>
    %234 = arith.addf %228, %233 : vector<34x48xf32>
    %c1_181 = arith.constant 1 : index
    %c0_182 = arith.constant 0 : index
    %c0_183 = arith.constant 0 : index
    %235 = vector.load %arg13[%c1_181, %c0_182, %c0_183] : memref<2x50x48xf32, #tpu.memory_space<vmem>>, vector<1x34x48xf32>
    %236 = vector.shape_cast %235 : vector<1x34x48xf32> to vector<34x48xf32>
    %c1_184 = arith.constant 1 : index
    %c0_185 = arith.constant 0 : index
    %c0_186 = arith.constant 0 : index
    %237 = vector.load %arg4[%c1_184, %c0_185, %c0_186] : memref<9x48x48xf32, #tpu.memory_space<vmem>>, vector<1x48x48xf32>
    %238 = vector.shape_cast %237 : vector<1x48x48xf32> to vector<48x48xf32>
    %cst_187 = arith.constant dense<0.000000e+00> : vector<34x48xf32>
    %239 = tpu.matmul %236, %238, %cst_187 {dimension_numbers = #tpu.dot_dimension_numbers<[1], [0], [0], [1], [0, 0, 1, 1], [], []>} : vector<34x48xf32>, vector<48x48xf32>, vector<34x48xf32> -> vector<34x48xf32>
    %240 = arith.addf %234, %239 : vector<34x48xf32>
    %c0_188 = arith.constant 0 : index
    %c1_189 = arith.constant 1 : index
    %c0_190 = arith.constant 0 : index
    %241 = vector.load %arg13[%c0_188, %c1_189, %c0_190] : memref<2x50x48xf32, #tpu.memory_space<vmem>>, vector<1x34x48xf32>
    %242 = vector.shape_cast %241 : vector<1x34x48xf32> to vector<34x48xf32>
    %c2_191 = arith.constant 2 : index
    %c0_192 = arith.constant 0 : index
    %c0_193 = arith.constant 0 : index
    %243 = vector.load %arg4[%c2_191, %c0_192, %c0_193] : memref<9x48x48xf32, #tpu.memory_space<vmem>>, vector<1x48x48xf32>
    %244 = vector.shape_cast %243 : vector<1x48x48xf32> to vector<48x48xf32>
    %cst_194 = arith.constant dense<0.000000e+00> : vector<34x48xf32>
    %245 = tpu.matmul %242, %244, %cst_194 {dimension_numbers = #tpu.dot_dimension_numbers<[1], [0], [0], [1], [0, 0, 1, 1], [], []>} : vector<34x48xf32>, vector<48x48xf32>, vector<34x48xf32> -> vector<34x48xf32>
    %246 = arith.addf %240, %245 : vector<34x48xf32>
    %c0_195 = arith.constant 0 : index
    %c5_196 = arith.constant 5 : index
    %c0_197 = arith.constant 0 : index
    %247 = vector.load %arg13[%c0_195, %c5_196, %c0_197] : memref<2x50x48xf32, #tpu.memory_space<vmem>>, vector<1x34x48xf32>
    %248 = vector.shape_cast %247 : vector<1x34x48xf32> to vector<34x48xf32>
    %c3_198 = arith.constant 3 : index
    %c0_199 = arith.constant 0 : index
    %c0_200 = arith.constant 0 : index
    %249 = vector.load %arg4[%c3_198, %c0_199, %c0_200] : memref<9x48x48xf32, #tpu.memory_space<vmem>>, vector<1x48x48xf32>
    %250 = vector.shape_cast %249 : vector<1x48x48xf32> to vector<48x48xf32>
    %cst_201 = arith.constant dense<0.000000e+00> : vector<34x48xf32>
    %251 = tpu.matmul %248, %250, %cst_201 {dimension_numbers = #tpu.dot_dimension_numbers<[1], [0], [0], [1], [0, 0, 1, 1], [], []>} : vector<34x48xf32>, vector<48x48xf32>, vector<34x48xf32> -> vector<34x48xf32>
    %252 = arith.addf %246, %251 : vector<34x48xf32>
    %c1_202 = arith.constant 1 : index
    %c5_203 = arith.constant 5 : index
    %c0_204 = arith.constant 0 : index
    %253 = vector.load %arg13[%c1_202, %c5_203, %c0_204] : memref<2x50x48xf32, #tpu.memory_space<vmem>>, vector<1x34x48xf32>
    %254 = vector.shape_cast %253 : vector<1x34x48xf32> to vector<34x48xf32>
    %c4_205 = arith.constant 4 : index
    %c0_206 = arith.constant 0 : index
    %c0_207 = arith.constant 0 : index
    %255 = vector.load %arg4[%c4_205, %c0_206, %c0_207] : memref<9x48x48xf32, #tpu.memory_space<vmem>>, vector<1x48x48xf32>
    %256 = vector.shape_cast %255 : vector<1x48x48xf32> to vector<48x48xf32>
    %cst_208 = arith.constant dense<0.000000e+00> : vector<34x48xf32>
    %257 = tpu.matmul %254, %256, %cst_208 {dimension_numbers = #tpu.dot_dimension_numbers<[1], [0], [0], [1], [0, 0, 1, 1], [], []>} : vector<34x48xf32>, vector<48x48xf32>, vector<34x48xf32> -> vector<34x48xf32>
    %258 = arith.addf %252, %257 : vector<34x48xf32>
    %c0_209 = arith.constant 0 : index
    %c6_210 = arith.constant 6 : index
    %c0_211 = arith.constant 0 : index
    %259 = vector.load %arg13[%c0_209, %c6_210, %c0_211] : memref<2x50x48xf32, #tpu.memory_space<vmem>>, vector<1x34x48xf32>
    %260 = vector.shape_cast %259 : vector<1x34x48xf32> to vector<34x48xf32>
    %c5_212 = arith.constant 5 : index
    %c0_213 = arith.constant 0 : index
    %c0_214 = arith.constant 0 : index
    %261 = vector.load %arg4[%c5_212, %c0_213, %c0_214] : memref<9x48x48xf32, #tpu.memory_space<vmem>>, vector<1x48x48xf32>
    %262 = vector.shape_cast %261 : vector<1x48x48xf32> to vector<48x48xf32>
    %cst_215 = arith.constant dense<0.000000e+00> : vector<34x48xf32>
    %263 = tpu.matmul %260, %262, %cst_215 {dimension_numbers = #tpu.dot_dimension_numbers<[1], [0], [0], [1], [0, 0, 1, 1], [], []>} : vector<34x48xf32>, vector<48x48xf32>, vector<34x48xf32> -> vector<34x48xf32>
    %264 = arith.addf %258, %263 : vector<34x48xf32>
    %c0_216 = arith.constant 0 : index
    %c10_217 = arith.constant 10 : index
    %c0_218 = arith.constant 0 : index
    %265 = vector.load %arg13[%c0_216, %c10_217, %c0_218] : memref<2x50x48xf32, #tpu.memory_space<vmem>>, vector<1x34x48xf32>
    %266 = vector.shape_cast %265 : vector<1x34x48xf32> to vector<34x48xf32>
    %c6_219 = arith.constant 6 : index
    %c0_220 = arith.constant 0 : index
    %c0_221 = arith.constant 0 : index
    %267 = vector.load %arg4[%c6_219, %c0_220, %c0_221] : memref<9x48x48xf32, #tpu.memory_space<vmem>>, vector<1x48x48xf32>
    %268 = vector.shape_cast %267 : vector<1x48x48xf32> to vector<48x48xf32>
    %cst_222 = arith.constant dense<0.000000e+00> : vector<34x48xf32>
    %269 = tpu.matmul %266, %268, %cst_222 {dimension_numbers = #tpu.dot_dimension_numbers<[1], [0], [0], [1], [0, 0, 1, 1], [], []>} : vector<34x48xf32>, vector<48x48xf32>, vector<34x48xf32> -> vector<34x48xf32>
    %270 = arith.addf %264, %269 : vector<34x48xf32>
    %c1_223 = arith.constant 1 : index
    %c10_224 = arith.constant 10 : index
    %c0_225 = arith.constant 0 : index
    %271 = vector.load %arg13[%c1_223, %c10_224, %c0_225] : memref<2x50x48xf32, #tpu.memory_space<vmem>>, vector<1x34x48xf32>
    %272 = vector.shape_cast %271 : vector<1x34x48xf32> to vector<34x48xf32>
    %c7_226 = arith.constant 7 : index
    %c0_227 = arith.constant 0 : index
    %c0_228 = arith.constant 0 : index
    %273 = vector.load %arg4[%c7_226, %c0_227, %c0_228] : memref<9x48x48xf32, #tpu.memory_space<vmem>>, vector<1x48x48xf32>
    %274 = vector.shape_cast %273 : vector<1x48x48xf32> to vector<48x48xf32>
    %cst_229 = arith.constant dense<0.000000e+00> : vector<34x48xf32>
    %275 = tpu.matmul %272, %274, %cst_229 {dimension_numbers = #tpu.dot_dimension_numbers<[1], [0], [0], [1], [0, 0, 1, 1], [], []>} : vector<34x48xf32>, vector<48x48xf32>, vector<34x48xf32> -> vector<34x48xf32>
    %276 = arith.addf %270, %275 : vector<34x48xf32>
    %c0_230 = arith.constant 0 : index
    %c11_231 = arith.constant 11 : index
    %c0_232 = arith.constant 0 : index
    %277 = vector.load %arg13[%c0_230, %c11_231, %c0_232] : memref<2x50x48xf32, #tpu.memory_space<vmem>>, vector<1x34x48xf32>
    %278 = vector.shape_cast %277 : vector<1x34x48xf32> to vector<34x48xf32>
    %c8_233 = arith.constant 8 : index
    %c0_234 = arith.constant 0 : index
    %c0_235 = arith.constant 0 : index
    %279 = vector.load %arg4[%c8_233, %c0_234, %c0_235] : memref<9x48x48xf32, #tpu.memory_space<vmem>>, vector<1x48x48xf32>
    %280 = vector.shape_cast %279 : vector<1x48x48xf32> to vector<48x48xf32>
    %cst_236 = arith.constant dense<0.000000e+00> : vector<34x48xf32>
    %281 = tpu.matmul %278, %280, %cst_236 {dimension_numbers = #tpu.dot_dimension_numbers<[1], [0], [0], [1], [0, 0, 1, 1], [], []>} : vector<34x48xf32>, vector<48x48xf32>, vector<34x48xf32> -> vector<34x48xf32>
    %282 = arith.addf %276, %281 : vector<34x48xf32>
    %c0_237 = arith.constant 0 : index
    %c0_238 = arith.constant 0 : index
    %283 = vector.load %arg5[%c0_237, %c0_238] : memref<1x48xf32, #tpu.memory_space<vmem>>, vector<1x48xf32>
    %284 = vector.broadcast %283 : vector<1x48xf32> to vector<34x48xf32>
    %285 = arith.addf %282, %284 : vector<34x48xf32>
    %cst_239 = arith.constant 0.000000e+00 : f32
    %286 = vector.broadcast %cst_239 : f32 to vector<34x48xf32>
    %287 = arith.maximumf %285, %286 : vector<34x48xf32>
    %288 = vector.extract_strided_slice %287 {offsets = [0, 0], sizes = [4, 48], strides = [1, 1]} : vector<34x48xf32> to vector<4x48xf32>
    %c0_240 = arith.constant 0 : index
    %c0_241 = arith.constant 0 : index
    %289 = vector.load %arg14[%c0_240, %c0_241] : memref<25x48xf32, #tpu.memory_space<vmem>>, vector<4x48xf32>
    tpu.vector_store %arg14[%c0_240, %c0_241], %288 {strides = array<i32>} : memref<25x48xf32, #tpu.memory_space<vmem>>, vector<4x48xf32>,
    %290 = vector.extract_strided_slice %287 {offsets = [10, 0], sizes = [4, 48], strides = [1, 1]} : vector<34x48xf32> to vector<4x48xf32>
    %c5_242 = arith.constant 5 : index
    %c0_243 = arith.constant 0 : index
    %291 = vector.load %arg14[%c5_242, %c0_243] : memref<25x48xf32, #tpu.memory_space<vmem>>, vector<4x48xf32>
    tpu.vector_store %arg14[%c5_242, %c0_243], %290 {strides = array<i32>} : memref<25x48xf32, #tpu.memory_space<vmem>>, vector<4x48xf32>,
    %292 = vector.extract_strided_slice %287 {offsets = [20, 0], sizes = [4, 48], strides = [1, 1]} : vector<34x48xf32> to vector<4x48xf32>
    %c10_244 = arith.constant 10 : index
    %c0_245 = arith.constant 0 : index
    %293 = vector.load %arg14[%c10_244, %c0_245] : memref<25x48xf32, #tpu.memory_space<vmem>>, vector<4x48xf32>
    tpu.vector_store %arg14[%c10_244, %c0_245], %292 {strides = array<i32>} : memref<25x48xf32, #tpu.memory_space<vmem>>, vector<4x48xf32>,
    %294 = vector.extract_strided_slice %287 {offsets = [30, 0], sizes = [4, 48], strides = [1, 1]} : vector<34x48xf32> to vector<4x48xf32>
    %c15_246 = arith.constant 15 : index
    %c0_247 = arith.constant 0 : index
    %295 = vector.load %arg14[%c15_246, %c0_247] : memref<25x48xf32, #tpu.memory_space<vmem>>, vector<4x48xf32>
    tpu.vector_store %arg14[%c15_246, %c0_247], %294 {strides = array<i32>} : memref<25x48xf32, #tpu.memory_space<vmem>>, vector<4x48xf32>,
    %c0_248 = arith.constant 0 : index
    %c0_249 = arith.constant 0 : index
    %296 = vector.load %arg14[%c0_248, %c0_249] : memref<25x48xf32, #tpu.memory_space<vmem>>, vector<19x48xf32>
    %c0_250 = arith.constant 0 : index
    %c0_251 = arith.constant 0 : index
    %c0_252 = arith.constant 0 : index
    %297 = vector.load %arg6[%c0_250, %c0_251, %c0_252] : memref<4x48x128xf32, #tpu.memory_space<vmem>>, vector<1x48x128xf32>
    %298 = vector.shape_cast %297 : vector<1x48x128xf32> to vector<48x128xf32>
    %cst_253 = arith.constant dense<0.000000e+00> : vector<19x128xf32>
    %299 = tpu.matmul %296, %298, %cst_253 {dimension_numbers = #tpu.dot_dimension_numbers<[1], [0], [0], [1], [0, 0, 1, 1], [], []>} : vector<19x48xf32>, vector<48x128xf32>, vector<19x128xf32> -> vector<19x128xf32>
    %300 = vector.extract_strided_slice %299 {offsets = [0, 0], sizes = [19, 32], strides = [1, 1]} : vector<19x128xf32> to vector<19x32xf32>
    %301 = vector.extract_strided_slice %299 {offsets = [0, 32], sizes = [19, 32], strides = [1, 1]} : vector<19x128xf32> to vector<19x32xf32>
    %302 = vector.extract_strided_slice %299 {offsets = [0, 64], sizes = [19, 32], strides = [1, 1]} : vector<19x128xf32> to vector<19x32xf32>
    %303 = vector.extract_strided_slice %299 {offsets = [0, 96], sizes = [19, 32], strides = [1, 1]} : vector<19x128xf32> to vector<19x32xf32>
    %c1_254 = arith.constant 1 : index
    %c0_255 = arith.constant 0 : index
    %304 = vector.load %arg14[%c1_254, %c0_255] : memref<25x48xf32, #tpu.memory_space<vmem>>, vector<19x48xf32>
    %c1_256 = arith.constant 1 : index
    %c0_257 = arith.constant 0 : index
    %c0_258 = arith.constant 0 : index
    %305 = vector.load %arg6[%c1_256, %c0_257, %c0_258] : memref<4x48x128xf32, #tpu.memory_space<vmem>>, vector<1x48x128xf32>
    %306 = vector.shape_cast %305 : vector<1x48x128xf32> to vector<48x128xf32>
    %cst_259 = arith.constant dense<0.000000e+00> : vector<19x128xf32>
    %307 = tpu.matmul %304, %306, %cst_259 {dimension_numbers = #tpu.dot_dimension_numbers<[1], [0], [0], [1], [0, 0, 1, 1], [], []>} : vector<19x48xf32>, vector<48x128xf32>, vector<19x128xf32> -> vector<19x128xf32>
    %308 = vector.extract_strided_slice %307 {offsets = [0, 0], sizes = [19, 32], strides = [1, 1]} : vector<19x128xf32> to vector<19x32xf32>
    %309 = arith.addf %301, %308 : vector<19x32xf32>
    %310 = vector.extract_strided_slice %307 {offsets = [0, 32], sizes = [19, 32], strides = [1, 1]} : vector<19x128xf32> to vector<19x32xf32>
    %311 = arith.addf %303, %310 : vector<19x32xf32>
    %c5_260 = arith.constant 5 : index
    %c0_261 = arith.constant 0 : index
    %312 = vector.load %arg14[%c5_260, %c0_261] : memref<25x48xf32, #tpu.memory_space<vmem>>, vector<19x48xf32>
    %c2_262 = arith.constant 2 : index
    %c0_263 = arith.constant 0 : index
    %c0_264 = arith.constant 0 : index
    %313 = vector.load %arg6[%c2_262, %c0_263, %c0_264] : memref<4x48x128xf32, #tpu.memory_space<vmem>>, vector<1x48x128xf32>
    %314 = vector.shape_cast %313 : vector<1x48x128xf32> to vector<48x128xf32>
    %cst_265 = arith.constant dense<0.000000e+00> : vector<19x128xf32>
    %315 = tpu.matmul %312, %314, %cst_265 {dimension_numbers = #tpu.dot_dimension_numbers<[1], [0], [0], [1], [0, 0, 1, 1], [], []>} : vector<19x48xf32>, vector<48x128xf32>, vector<19x128xf32> -> vector<19x128xf32>
    %316 = vector.extract_strided_slice %315 {offsets = [0, 0], sizes = [19, 32], strides = [1, 1]} : vector<19x128xf32> to vector<19x32xf32>
    %317 = arith.addf %302, %316 : vector<19x32xf32>
    %318 = vector.extract_strided_slice %315 {offsets = [0, 32], sizes = [19, 32], strides = [1, 1]} : vector<19x128xf32> to vector<19x32xf32>
    %319 = arith.addf %311, %318 : vector<19x32xf32>
    %c6_266 = arith.constant 6 : index
    %c0_267 = arith.constant 0 : index
    %320 = vector.load %arg14[%c6_266, %c0_267] : memref<25x48xf32, #tpu.memory_space<vmem>>, vector<19x48xf32>
    %c3_268 = arith.constant 3 : index
    %c0_269 = arith.constant 0 : index
    %c0_270 = arith.constant 0 : index
    %321 = vector.load %arg6[%c3_268, %c0_269, %c0_270] : memref<4x48x128xf32, #tpu.memory_space<vmem>>, vector<1x48x128xf32>
    %322 = vector.shape_cast %321 : vector<1x48x128xf32> to vector<48x128xf32>
    %cst_271 = arith.constant dense<0.000000e+00> : vector<19x128xf32>
    %323 = tpu.matmul %320, %322, %cst_271 {dimension_numbers = #tpu.dot_dimension_numbers<[1], [0], [0], [1], [0, 0, 1, 1], [], []>} : vector<19x48xf32>, vector<48x128xf32>, vector<19x128xf32> -> vector<19x128xf32>
    %324 = vector.extract_strided_slice %323 {offsets = [0, 0], sizes = [19, 32], strides = [1, 1]} : vector<19x128xf32> to vector<19x32xf32>
    %325 = arith.addf %319, %324 : vector<19x32xf32>
    %c0_272 = arith.constant 0 : index
    %c0_273 = arith.constant 0 : index
    %326 = vector.load %arg7[%c0_272, %c0_273] : memref<1x32xf32, #tpu.memory_space<vmem>>, vector<1x32xf32>
    %327 = vector.broadcast %326 : vector<1x32xf32> to vector<19x32xf32>
    %328 = arith.addf %300, %327 : vector<19x32xf32>
    %cst_274 = arith.constant 0.000000e+00 : f32
    %329 = vector.broadcast %cst_274 : f32 to vector<19x32xf32>
    %330 = arith.maximumf %328, %329 : vector<19x32xf32>
    %c0_275 = arith.constant 0 : index
    %c0_276 = arith.constant 0 : index
    %331 = vector.load %arg7[%c0_275, %c0_276] : memref<1x32xf32, #tpu.memory_space<vmem>>, vector<1x32xf32>
    %332 = vector.broadcast %331 : vector<1x32xf32> to vector<19x32xf32>
    %333 = arith.addf %309, %332 : vector<19x32xf32>
    %cst_277 = arith.constant 0.000000e+00 : f32
    %334 = vector.broadcast %cst_277 : f32 to vector<19x32xf32>
    %335 = arith.maximumf %333, %334 : vector<19x32xf32>
    %c0_278 = arith.constant 0 : index
    %c0_279 = arith.constant 0 : index
    %336 = vector.load %arg7[%c0_278, %c0_279] : memref<1x32xf32, #tpu.memory_space<vmem>>, vector<1x32xf32>
    %337 = vector.broadcast %336 : vector<1x32xf32> to vector<19x32xf32>
    %338 = arith.addf %317, %337 : vector<19x32xf32>
    %cst_280 = arith.constant 0.000000e+00 : f32
    %339 = vector.broadcast %cst_280 : f32 to vector<19x32xf32>
    %340 = arith.maximumf %338, %339 : vector<19x32xf32>
    %c0_281 = arith.constant 0 : index
    %c0_282 = arith.constant 0 : index
    %341 = vector.load %arg7[%c0_281, %c0_282] : memref<1x32xf32, #tpu.memory_space<vmem>>, vector<1x32xf32>
    %342 = vector.broadcast %341 : vector<1x32xf32> to vector<19x32xf32>
    %343 = arith.addf %325, %342 : vector<19x32xf32>
    %cst_283 = arith.constant 0.000000e+00 : f32
    %344 = vector.broadcast %cst_283 : f32 to vector<19x32xf32>
    %345 = arith.maximumf %343, %344 : vector<19x32xf32>
    %346 = vector.extract_strided_slice %330 {offsets = [0, 0], sizes = [4, 32], strides = [1, 1]} : vector<19x32xf32> to vector<4x32xf32>
    %c0_284 = arith.constant 0 : index
    %c0_285 = arith.constant 0 : index
    %c0_286 = arith.constant 0 : index
    %347 = vector.load %arg15[%c0_284, %c0_285, %c0_286] : memref<2x45x32xf32, #tpu.memory_space<vmem>>, vector<1x4x32xf32>
    %348 = vector.shape_cast %347 : vector<1x4x32xf32> to vector<4x32xf32>
    %349 = vector.shape_cast %346 : vector<4x32xf32> to vector<1x4x32xf32>
    tpu.vector_store %arg15[%c0_284, %c0_285, %c0_286], %349 {strides = array<i32>} : memref<2x45x32xf32, #tpu.memory_space<vmem>>, vector<1x4x32xf32>,
    %350 = vector.extract_strided_slice %330 {offsets = [5, 0], sizes = [4, 32], strides = [1, 1]} : vector<19x32xf32> to vector<4x32xf32>
    %c0_287 = arith.constant 0 : index
    %c10_288 = arith.constant 10 : index
    %c0_289 = arith.constant 0 : index
    %351 = vector.load %arg15[%c0_287, %c10_288, %c0_289] : memref<2x45x32xf32, #tpu.memory_space<vmem>>, vector<1x4x32xf32>
    %352 = vector.shape_cast %351 : vector<1x4x32xf32> to vector<4x32xf32>
    %353 = vector.shape_cast %350 : vector<4x32xf32> to vector<1x4x32xf32>
    tpu.vector_store %arg15[%c0_287, %c10_288, %c0_289], %353 {strides = array<i32>} : memref<2x45x32xf32, #tpu.memory_space<vmem>>, vector<1x4x32xf32>,
    %354 = vector.extract_strided_slice %330 {offsets = [10, 0], sizes = [4, 32], strides = [1, 1]} : vector<19x32xf32> to vector<4x32xf32>
    %c0_290 = arith.constant 0 : index
    %c20_291 = arith.constant 20 : index
    %c0_292 = arith.constant 0 : index
    %355 = vector.load %arg15[%c0_290, %c20_291, %c0_292] : memref<2x45x32xf32, #tpu.memory_space<vmem>>, vector<1x4x32xf32>
    %356 = vector.shape_cast %355 : vector<1x4x32xf32> to vector<4x32xf32>
    %357 = vector.shape_cast %354 : vector<4x32xf32> to vector<1x4x32xf32>
    tpu.vector_store %arg15[%c0_290, %c20_291, %c0_292], %357 {strides = array<i32>} : memref<2x45x32xf32, #tpu.memory_space<vmem>>, vector<1x4x32xf32>,
    %358 = vector.extract_strided_slice %330 {offsets = [15, 0], sizes = [4, 32], strides = [1, 1]} : vector<19x32xf32> to vector<4x32xf32>
    %c0_293 = arith.constant 0 : index
    %c30_294 = arith.constant 30 : index
    %c0_295 = arith.constant 0 : index
    %359 = vector.load %arg15[%c0_293, %c30_294, %c0_295] : memref<2x45x32xf32, #tpu.memory_space<vmem>>, vector<1x4x32xf32>
    %360 = vector.shape_cast %359 : vector<1x4x32xf32> to vector<4x32xf32>
    %361 = vector.shape_cast %358 : vector<4x32xf32> to vector<1x4x32xf32>
    tpu.vector_store %arg15[%c0_293, %c30_294, %c0_295], %361 {strides = array<i32>} : memref<2x45x32xf32, #tpu.memory_space<vmem>>, vector<1x4x32xf32>,
    %362 = vector.extract_strided_slice %335 {offsets = [0, 0], sizes = [4, 32], strides = [1, 1]} : vector<19x32xf32> to vector<4x32xf32>
    %c1_296 = arith.constant 1 : index
    %c0_297 = arith.constant 0 : index
    %c0_298 = arith.constant 0 : index
    %363 = vector.load %arg15[%c1_296, %c0_297, %c0_298] : memref<2x45x32xf32, #tpu.memory_space<vmem>>, vector<1x4x32xf32>
    %364 = vector.shape_cast %363 : vector<1x4x32xf32> to vector<4x32xf32>
    %365 = vector.shape_cast %362 : vector<4x32xf32> to vector<1x4x32xf32>
    tpu.vector_store %arg15[%c1_296, %c0_297, %c0_298], %365 {strides = array<i32>} : memref<2x45x32xf32, #tpu.memory_space<vmem>>, vector<1x4x32xf32>,
    %366 = vector.extract_strided_slice %335 {offsets = [5, 0], sizes = [4, 32], strides = [1, 1]} : vector<19x32xf32> to vector<4x32xf32>
    %c1_299 = arith.constant 1 : index
    %c10_300 = arith.constant 10 : index
    %c0_301 = arith.constant 0 : index
    %367 = vector.load %arg15[%c1_299, %c10_300, %c0_301] : memref<2x45x32xf32, #tpu.memory_space<vmem>>, vector<1x4x32xf32>
    %368 = vector.shape_cast %367 : vector<1x4x32xf32> to vector<4x32xf32>
    %369 = vector.shape_cast %366 : vector<4x32xf32> to vector<1x4x32xf32>
    tpu.vector_store %arg15[%c1_299, %c10_300, %c0_301], %369 {strides = array<i32>} : memref<2x45x32xf32, #tpu.memory_space<vmem>>, vector<1x4x32xf32>,
    %370 = vector.extract_strided_slice %335 {offsets = [10, 0], sizes = [4, 32], strides = [1, 1]} : vector<19x32xf32> to vector<4x32xf32>
    %c1_302 = arith.constant 1 : index
    %c20_303 = arith.constant 20 : index
    %c0_304 = arith.constant 0 : index
    %371 = vector.load %arg15[%c1_302, %c20_303, %c0_304] : memref<2x45x32xf32, #tpu.memory_space<vmem>>, vector<1x4x32xf32>
    %372 = vector.shape_cast %371 : vector<1x4x32xf32> to vector<4x32xf32>
    %373 = vector.shape_cast %370 : vector<4x32xf32> to vector<1x4x32xf32>
    tpu.vector_store %arg15[%c1_302, %c20_303, %c0_304], %373 {strides = array<i32>} : memref<2x45x32xf32, #tpu.memory_space<vmem>>, vector<1x4x32xf32>,
    %374 = vector.extract_strided_slice %335 {offsets = [15, 0], sizes = [4, 32], strides = [1, 1]} : vector<19x32xf32> to vector<4x32xf32>
    %c1_305 = arith.constant 1 : index
    %c30_306 = arith.constant 30 : index
    %c0_307 = arith.constant 0 : index
    %375 = vector.load %arg15[%c1_305, %c30_306, %c0_307] : memref<2x45x32xf32, #tpu.memory_space<vmem>>, vector<1x4x32xf32>
    %376 = vector.shape_cast %375 : vector<1x4x32xf32> to vector<4x32xf32>
    %377 = vector.shape_cast %374 : vector<4x32xf32> to vector<1x4x32xf32>
    tpu.vector_store %arg15[%c1_305, %c30_306, %c0_307], %377 {strides = array<i32>} : memref<2x45x32xf32, #tpu.memory_space<vmem>>, vector<1x4x32xf32>,
    %378 = vector.extract_strided_slice %340 {offsets = [0, 0], sizes = [4, 32], strides = [1, 1]} : vector<19x32xf32> to vector<4x32xf32>
    %c0_308 = arith.constant 0 : index
    %c5_309 = arith.constant 5 : index
    %c0_310 = arith.constant 0 : index
    %379 = vector.load %arg15[%c0_308, %c5_309, %c0_310] : memref<2x45x32xf32, #tpu.memory_space<vmem>>, vector<1x4x32xf32>
    %380 = vector.shape_cast %379 : vector<1x4x32xf32> to vector<4x32xf32>
    %381 = vector.shape_cast %378 : vector<4x32xf32> to vector<1x4x32xf32>
    tpu.vector_store %arg15[%c0_308, %c5_309, %c0_310], %381 {strides = array<i32>} : memref<2x45x32xf32, #tpu.memory_space<vmem>>, vector<1x4x32xf32>,
    %382 = vector.extract_strided_slice %340 {offsets = [5, 0], sizes = [4, 32], strides = [1, 1]} : vector<19x32xf32> to vector<4x32xf32>
    %c0_311 = arith.constant 0 : index
    %c15_312 = arith.constant 15 : index
    %c0_313 = arith.constant 0 : index
    %383 = vector.load %arg15[%c0_311, %c15_312, %c0_313] : memref<2x45x32xf32, #tpu.memory_space<vmem>>, vector<1x4x32xf32>
    %384 = vector.shape_cast %383 : vector<1x4x32xf32> to vector<4x32xf32>
    %385 = vector.shape_cast %382 : vector<4x32xf32> to vector<1x4x32xf32>
    tpu.vector_store %arg15[%c0_311, %c15_312, %c0_313], %385 {strides = array<i32>} : memref<2x45x32xf32, #tpu.memory_space<vmem>>, vector<1x4x32xf32>,
    %386 = vector.extract_strided_slice %340 {offsets = [10, 0], sizes = [4, 32], strides = [1, 1]} : vector<19x32xf32> to vector<4x32xf32>
    %c0_314 = arith.constant 0 : index
    %c25_315 = arith.constant 25 : index
    %c0_316 = arith.constant 0 : index
    %387 = vector.load %arg15[%c0_314, %c25_315, %c0_316] : memref<2x45x32xf32, #tpu.memory_space<vmem>>, vector<1x4x32xf32>
    %388 = vector.shape_cast %387 : vector<1x4x32xf32> to vector<4x32xf32>
    %389 = vector.shape_cast %386 : vector<4x32xf32> to vector<1x4x32xf32>
    tpu.vector_store %arg15[%c0_314, %c25_315, %c0_316], %389 {strides = array<i32>} : memref<2x45x32xf32, #tpu.memory_space<vmem>>, vector<1x4x32xf32>,
    %390 = vector.extract_strided_slice %340 {offsets = [15, 0], sizes = [4, 32], strides = [1, 1]} : vector<19x32xf32> to vector<4x32xf32>
    %c0_317 = arith.constant 0 : index
    %c35_318 = arith.constant 35 : index
    %c0_319 = arith.constant 0 : index
    %391 = vector.load %arg15[%c0_317, %c35_318, %c0_319] : memref<2x45x32xf32, #tpu.memory_space<vmem>>, vector<1x4x32xf32>
    %392 = vector.shape_cast %391 : vector<1x4x32xf32> to vector<4x32xf32>
    %393 = vector.shape_cast %390 : vector<4x32xf32> to vector<1x4x32xf32>
    tpu.vector_store %arg15[%c0_317, %c35_318, %c0_319], %393 {strides = array<i32>} : memref<2x45x32xf32, #tpu.memory_space<vmem>>, vector<1x4x32xf32>,
    %394 = vector.extract_strided_slice %345 {offsets = [0, 0], sizes = [4, 32], strides = [1, 1]} : vector<19x32xf32> to vector<4x32xf32>
    %c1_320 = arith.constant 1 : index
    %c5_321 = arith.constant 5 : index
    %c0_322 = arith.constant 0 : index
    %395 = vector.load %arg15[%c1_320, %c5_321, %c0_322] : memref<2x45x32xf32, #tpu.memory_space<vmem>>, vector<1x4x32xf32>
    %396 = vector.shape_cast %395 : vector<1x4x32xf32> to vector<4x32xf32>
    %397 = vector.shape_cast %394 : vector<4x32xf32> to vector<1x4x32xf32>
    tpu.vector_store %arg15[%c1_320, %c5_321, %c0_322], %397 {strides = array<i32>} : memref<2x45x32xf32, #tpu.memory_space<vmem>>, vector<1x4x32xf32>,
    %398 = vector.extract_strided_slice %345 {offsets = [5, 0], sizes = [4, 32], strides = [1, 1]} : vector<19x32xf32> to vector<4x32xf32>
    %c1_323 = arith.constant 1 : index
    %c15_324 = arith.constant 15 : index
    %c0_325 = arith.constant 0 : index
    %399 = vector.load %arg15[%c1_323, %c15_324, %c0_325] : memref<2x45x32xf32, #tpu.memory_space<vmem>>, vector<1x4x32xf32>
    %400 = vector.shape_cast %399 : vector<1x4x32xf32> to vector<4x32xf32>
    %401 = vector.shape_cast %398 : vector<4x32xf32> to vector<1x4x32xf32>
    tpu.vector_store %arg15[%c1_323, %c15_324, %c0_325], %401 {strides = array<i32>} : memref<2x45x32xf32, #tpu.memory_space<vmem>>, vector<1x4x32xf32>,
    %402 = vector.extract_strided_slice %345 {offsets = [10, 0], sizes = [4, 32], strides = [1, 1]} : vector<19x32xf32> to vector<4x32xf32>
    %c1_326 = arith.constant 1 : index
    %c25_327 = arith.constant 25 : index
    %c0_328 = arith.constant 0 : index
    %403 = vector.load %arg15[%c1_326, %c25_327, %c0_328] : memref<2x45x32xf32, #tpu.memory_space<vmem>>, vector<1x4x32xf32>
    %404 = vector.shape_cast %403 : vector<1x4x32xf32> to vector<4x32xf32>
    %405 = vector.shape_cast %402 : vector<4x32xf32> to vector<1x4x32xf32>
    tpu.vector_store %arg15[%c1_326, %c25_327, %c0_328], %405 {strides = array<i32>} : memref<2x45x32xf32, #tpu.memory_space<vmem>>, vector<1x4x32xf32>,
    %406 = vector.extract_strided_slice %345 {offsets = [15, 0], sizes = [4, 32], strides = [1, 1]} : vector<19x32xf32> to vector<4x32xf32>
    %c1_329 = arith.constant 1 : index
    %c35_330 = arith.constant 35 : index
    %c0_331 = arith.constant 0 : index
    %407 = vector.load %arg15[%c1_329, %c35_330, %c0_331] : memref<2x45x32xf32, #tpu.memory_space<vmem>>, vector<1x4x32xf32>
    %408 = vector.shape_cast %407 : vector<1x4x32xf32> to vector<4x32xf32>
    %409 = vector.shape_cast %406 : vector<4x32xf32> to vector<1x4x32xf32>
    tpu.vector_store %arg15[%c1_329, %c35_330, %c0_331], %409 {strides = array<i32>} : memref<2x45x32xf32, #tpu.memory_space<vmem>>, vector<1x4x32xf32>,
    %c0_332 = arith.constant 0 : index
    %c0_333 = arith.constant 0 : index
    %c0_334 = arith.constant 0 : index
    %410 = vector.load %arg15[%c0_332, %c0_333, %c0_334] : memref<2x45x32xf32, #tpu.memory_space<vmem>>, vector<1x39x32xf32>
    %411 = vector.shape_cast %410 : vector<1x39x32xf32> to vector<39x32xf32>
    %c0_335 = arith.constant 0 : index
    %c0_336 = arith.constant 0 : index
    %c0_337 = arith.constant 0 : index
    %412 = vector.load %arg8[%c0_335, %c0_336, %c0_337] : memref<4x32x64xf32, #tpu.memory_space<vmem>>, vector<1x32x64xf32>
    %413 = vector.shape_cast %412 : vector<1x32x64xf32> to vector<32x64xf32>
    %cst_338 = arith.constant dense<0.000000e+00> : vector<39x64xf32>
    %414 = tpu.matmul %411, %413, %cst_338 {dimension_numbers = #tpu.dot_dimension_numbers<[1], [0], [0], [1], [0, 0, 1, 1], [], []>} : vector<39x32xf32>, vector<32x64xf32>, vector<39x64xf32> -> vector<39x64xf32>
    %415 = vector.extract_strided_slice %414 {offsets = [0, 0], sizes = [39, 16], strides = [1, 1]} : vector<39x64xf32> to vector<39x16xf32>
    %416 = vector.extract_strided_slice %414 {offsets = [0, 16], sizes = [39, 16], strides = [1, 1]} : vector<39x64xf32> to vector<39x16xf32>
    %417 = vector.extract_strided_slice %414 {offsets = [0, 32], sizes = [39, 16], strides = [1, 1]} : vector<39x64xf32> to vector<39x16xf32>
    %418 = vector.extract_strided_slice %414 {offsets = [0, 48], sizes = [39, 16], strides = [1, 1]} : vector<39x64xf32> to vector<39x16xf32>
    %c1_339 = arith.constant 1 : index
    %c0_340 = arith.constant 0 : index
    %c0_341 = arith.constant 0 : index
    %419 = vector.load %arg15[%c1_339, %c0_340, %c0_341] : memref<2x45x32xf32, #tpu.memory_space<vmem>>, vector<1x39x32xf32>
    %420 = vector.shape_cast %419 : vector<1x39x32xf32> to vector<39x32xf32>
    %c1_342 = arith.constant 1 : index
    %c0_343 = arith.constant 0 : index
    %c0_344 = arith.constant 0 : index
    %421 = vector.load %arg8[%c1_342, %c0_343, %c0_344] : memref<4x32x64xf32, #tpu.memory_space<vmem>>, vector<1x32x64xf32>
    %422 = vector.shape_cast %421 : vector<1x32x64xf32> to vector<32x64xf32>
    %cst_345 = arith.constant dense<0.000000e+00> : vector<39x64xf32>
    %423 = tpu.matmul %420, %422, %cst_345 {dimension_numbers = #tpu.dot_dimension_numbers<[1], [0], [0], [1], [0, 0, 1, 1], [], []>} : vector<39x32xf32>, vector<32x64xf32>, vector<39x64xf32> -> vector<39x64xf32>
    %424 = vector.extract_strided_slice %423 {offsets = [0, 0], sizes = [39, 16], strides = [1, 1]} : vector<39x64xf32> to vector<39x16xf32>
    %425 = arith.addf %416, %424 : vector<39x16xf32>
    %426 = vector.extract_strided_slice %423 {offsets = [0, 16], sizes = [39, 16], strides = [1, 1]} : vector<39x64xf32> to vector<39x16xf32>
    %427 = arith.addf %418, %426 : vector<39x16xf32>
    %c0_346 = arith.constant 0 : index
    %c5_347 = arith.constant 5 : index
    %c0_348 = arith.constant 0 : index
    %428 = vector.load %arg15[%c0_346, %c5_347, %c0_348] : memref<2x45x32xf32, #tpu.memory_space<vmem>>, vector<1x39x32xf32>
    %429 = vector.shape_cast %428 : vector<1x39x32xf32> to vector<39x32xf32>
    %c2_349 = arith.constant 2 : index
    %c0_350 = arith.constant 0 : index
    %c0_351 = arith.constant 0 : index
    %430 = vector.load %arg8[%c2_349, %c0_350, %c0_351] : memref<4x32x64xf32, #tpu.memory_space<vmem>>, vector<1x32x64xf32>
    %431 = vector.shape_cast %430 : vector<1x32x64xf32> to vector<32x64xf32>
    %cst_352 = arith.constant dense<0.000000e+00> : vector<39x64xf32>
    %432 = tpu.matmul %429, %431, %cst_352 {dimension_numbers = #tpu.dot_dimension_numbers<[1], [0], [0], [1], [0, 0, 1, 1], [], []>} : vector<39x32xf32>, vector<32x64xf32>, vector<39x64xf32> -> vector<39x64xf32>
    %433 = vector.extract_strided_slice %432 {offsets = [0, 0], sizes = [39, 16], strides = [1, 1]} : vector<39x64xf32> to vector<39x16xf32>
    %434 = arith.addf %417, %433 : vector<39x16xf32>
    %435 = vector.extract_strided_slice %432 {offsets = [0, 16], sizes = [39, 16], strides = [1, 1]} : vector<39x64xf32> to vector<39x16xf32>
    %436 = arith.addf %427, %435 : vector<39x16xf32>
    %c1_353 = arith.constant 1 : index
    %c5_354 = arith.constant 5 : index
    %c0_355 = arith.constant 0 : index
    %437 = vector.load %arg15[%c1_353, %c5_354, %c0_355] : memref<2x45x32xf32, #tpu.memory_space<vmem>>, vector<1x39x32xf32>
    %438 = vector.shape_cast %437 : vector<1x39x32xf32> to vector<39x32xf32>
    %c3_356 = arith.constant 3 : index
    %c0_357 = arith.constant 0 : index
    %c0_358 = arith.constant 0 : index
    %439 = vector.load %arg8[%c3_356, %c0_357, %c0_358] : memref<4x32x64xf32, #tpu.memory_space<vmem>>, vector<1x32x64xf32>
    %440 = vector.shape_cast %439 : vector<1x32x64xf32> to vector<32x64xf32>
    %cst_359 = arith.constant dense<0.000000e+00> : vector<39x64xf32>
    %441 = tpu.matmul %438, %440, %cst_359 {dimension_numbers = #tpu.dot_dimension_numbers<[1], [0], [0], [1], [0, 0, 1, 1], [], []>} : vector<39x32xf32>, vector<32x64xf32>, vector<39x64xf32> -> vector<39x64xf32>
    %442 = vector.extract_strided_slice %441 {offsets = [0, 0], sizes = [39, 16], strides = [1, 1]} : vector<39x64xf32> to vector<39x16xf32>
    %443 = arith.addf %436, %442 : vector<39x16xf32>
    %c0_360 = arith.constant 0 : index
    %c0_361 = arith.constant 0 : index
    %444 = vector.load %arg9[%c0_360, %c0_361] : memref<1x16xf32, #tpu.memory_space<vmem>>, vector<1x16xf32>
    %445 = vector.broadcast %444 : vector<1x16xf32> to vector<39x16xf32>
    %446 = arith.addf %415, %445 : vector<39x16xf32>
    %cst_362 = arith.constant 0.000000e+00 : f32
    %447 = vector.broadcast %cst_362 : f32 to vector<39x16xf32>
    %448 = arith.maximumf %446, %447 : vector<39x16xf32>
    %c0_363 = arith.constant 0 : index
    %c0_364 = arith.constant 0 : index
    %449 = vector.load %arg9[%c0_363, %c0_364] : memref<1x16xf32, #tpu.memory_space<vmem>>, vector<1x16xf32>
    %450 = vector.broadcast %449 : vector<1x16xf32> to vector<39x16xf32>
    %451 = arith.addf %425, %450 : vector<39x16xf32>
    %cst_365 = arith.constant 0.000000e+00 : f32
    %452 = vector.broadcast %cst_365 : f32 to vector<39x16xf32>
    %453 = arith.maximumf %451, %452 : vector<39x16xf32>
    %c0_366 = arith.constant 0 : index
    %c0_367 = arith.constant 0 : index
    %454 = vector.load %arg9[%c0_366, %c0_367] : memref<1x16xf32, #tpu.memory_space<vmem>>, vector<1x16xf32>
    %455 = vector.broadcast %454 : vector<1x16xf32> to vector<39x16xf32>
    %456 = arith.addf %434, %455 : vector<39x16xf32>
    %cst_368 = arith.constant 0.000000e+00 : f32
    %457 = vector.broadcast %cst_368 : f32 to vector<39x16xf32>
    %458 = arith.maximumf %456, %457 : vector<39x16xf32>
    %c0_369 = arith.constant 0 : index
    %c0_370 = arith.constant 0 : index
    %459 = vector.load %arg9[%c0_369, %c0_370] : memref<1x16xf32, #tpu.memory_space<vmem>>, vector<1x16xf32>
    %460 = vector.broadcast %459 : vector<1x16xf32> to vector<39x16xf32>
    %461 = arith.addf %443, %460 : vector<39x16xf32>
    %cst_371 = arith.constant 0.000000e+00 : f32
    %462 = vector.broadcast %cst_371 : f32 to vector<39x16xf32>
    %463 = arith.maximumf %461, %462 : vector<39x16xf32>
    %464 = vector.extract_strided_slice %448 {offsets = [0, 0], sizes = [4, 16], strides = [1, 1]} : vector<39x16xf32> to vector<4x16xf32>
    %c1_372 = arith.constant 1 : index
    %c5_373 = arith.constant 5 : index
    %c0_374 = arith.constant 0 : index
    %465 = vector.load %arg16[%c1_372, %c5_373, %c0_374] : memref<4x90x16xf32, #tpu.memory_space<vmem>>, vector<1x4x16xf32>
    %466 = vector.shape_cast %465 : vector<1x4x16xf32> to vector<4x16xf32>
    %467 = vector.shape_cast %464 : vector<4x16xf32> to vector<1x4x16xf32>
    tpu.vector_store %arg16[%c1_372, %c5_373, %c0_374], %467 {strides = array<i32>} : memref<4x90x16xf32, #tpu.memory_space<vmem>>, vector<1x4x16xf32>,
    %468 = vector.extract_strided_slice %448 {offsets = [5, 0], sizes = [4, 16], strides = [1, 1]} : vector<39x16xf32> to vector<4x16xf32>
    %c1_375 = arith.constant 1 : index
    %c15_376 = arith.constant 15 : index
    %c0_377 = arith.constant 0 : index
    %469 = vector.load %arg16[%c1_375, %c15_376, %c0_377] : memref<4x90x16xf32, #tpu.memory_space<vmem>>, vector<1x4x16xf32>
    %470 = vector.shape_cast %469 : vector<1x4x16xf32> to vector<4x16xf32>
    %471 = vector.shape_cast %468 : vector<4x16xf32> to vector<1x4x16xf32>
    tpu.vector_store %arg16[%c1_375, %c15_376, %c0_377], %471 {strides = array<i32>} : memref<4x90x16xf32, #tpu.memory_space<vmem>>, vector<1x4x16xf32>,
    %472 = vector.extract_strided_slice %448 {offsets = [10, 0], sizes = [4, 16], strides = [1, 1]} : vector<39x16xf32> to vector<4x16xf32>
    %c1_378 = arith.constant 1 : index
    %c25_379 = arith.constant 25 : index
    %c0_380 = arith.constant 0 : index
    %473 = vector.load %arg16[%c1_378, %c25_379, %c0_380] : memref<4x90x16xf32, #tpu.memory_space<vmem>>, vector<1x4x16xf32>
    %474 = vector.shape_cast %473 : vector<1x4x16xf32> to vector<4x16xf32>
    %475 = vector.shape_cast %472 : vector<4x16xf32> to vector<1x4x16xf32>
    tpu.vector_store %arg16[%c1_378, %c25_379, %c0_380], %475 {strides = array<i32>} : memref<4x90x16xf32, #tpu.memory_space<vmem>>, vector<1x4x16xf32>,
    %476 = vector.extract_strided_slice %448 {offsets = [15, 0], sizes = [4, 16], strides = [1, 1]} : vector<39x16xf32> to vector<4x16xf32>
    %c1_381 = arith.constant 1 : index
    %c35_382 = arith.constant 35 : index
    %c0_383 = arith.constant 0 : index
    %477 = vector.load %arg16[%c1_381, %c35_382, %c0_383] : memref<4x90x16xf32, #tpu.memory_space<vmem>>, vector<1x4x16xf32>
    %478 = vector.shape_cast %477 : vector<1x4x16xf32> to vector<4x16xf32>
    %479 = vector.shape_cast %476 : vector<4x16xf32> to vector<1x4x16xf32>
    tpu.vector_store %arg16[%c1_381, %c35_382, %c0_383], %479 {strides = array<i32>} : memref<4x90x16xf32, #tpu.memory_space<vmem>>, vector<1x4x16xf32>,
    %480 = vector.extract_strided_slice %448 {offsets = [20, 0], sizes = [4, 16], strides = [1, 1]} : vector<39x16xf32> to vector<4x16xf32>
    %c1_384 = arith.constant 1 : index
    %c45 = arith.constant 45 : index
    %c0_385 = arith.constant 0 : index
    %481 = vector.load %arg16[%c1_384, %c45, %c0_385] : memref<4x90x16xf32, #tpu.memory_space<vmem>>, vector<1x4x16xf32>
    %482 = vector.shape_cast %481 : vector<1x4x16xf32> to vector<4x16xf32>
    %483 = vector.shape_cast %480 : vector<4x16xf32> to vector<1x4x16xf32>
    tpu.vector_store %arg16[%c1_384, %c45, %c0_385], %483 {strides = array<i32>} : memref<4x90x16xf32, #tpu.memory_space<vmem>>, vector<1x4x16xf32>,
    %484 = vector.extract_strided_slice %448 {offsets = [25, 0], sizes = [4, 16], strides = [1, 1]} : vector<39x16xf32> to vector<4x16xf32>
    %c1_386 = arith.constant 1 : index
    %c55 = arith.constant 55 : index
    %c0_387 = arith.constant 0 : index
    %485 = vector.load %arg16[%c1_386, %c55, %c0_387] : memref<4x90x16xf32, #tpu.memory_space<vmem>>, vector<1x4x16xf32>
    %486 = vector.shape_cast %485 : vector<1x4x16xf32> to vector<4x16xf32>
    %487 = vector.shape_cast %484 : vector<4x16xf32> to vector<1x4x16xf32>
    tpu.vector_store %arg16[%c1_386, %c55, %c0_387], %487 {strides = array<i32>} : memref<4x90x16xf32, #tpu.memory_space<vmem>>, vector<1x4x16xf32>,
    %488 = vector.extract_strided_slice %448 {offsets = [30, 0], sizes = [4, 16], strides = [1, 1]} : vector<39x16xf32> to vector<4x16xf32>
    %c1_388 = arith.constant 1 : index
    %c65 = arith.constant 65 : index
    %c0_389 = arith.constant 0 : index
    %489 = vector.load %arg16[%c1_388, %c65, %c0_389] : memref<4x90x16xf32, #tpu.memory_space<vmem>>, vector<1x4x16xf32>
    %490 = vector.shape_cast %489 : vector<1x4x16xf32> to vector<4x16xf32>
    %491 = vector.shape_cast %488 : vector<4x16xf32> to vector<1x4x16xf32>
    tpu.vector_store %arg16[%c1_388, %c65, %c0_389], %491 {strides = array<i32>} : memref<4x90x16xf32, #tpu.memory_space<vmem>>, vector<1x4x16xf32>,
    %492 = vector.extract_strided_slice %448 {offsets = [35, 0], sizes = [4, 16], strides = [1, 1]} : vector<39x16xf32> to vector<4x16xf32>
    %c1_390 = arith.constant 1 : index
    %c75 = arith.constant 75 : index
    %c0_391 = arith.constant 0 : index
    %493 = vector.load %arg16[%c1_390, %c75, %c0_391] : memref<4x90x16xf32, #tpu.memory_space<vmem>>, vector<1x4x16xf32>
    %494 = vector.shape_cast %493 : vector<1x4x16xf32> to vector<4x16xf32>
    %495 = vector.shape_cast %492 : vector<4x16xf32> to vector<1x4x16xf32>
    tpu.vector_store %arg16[%c1_390, %c75, %c0_391], %495 {strides = array<i32>} : memref<4x90x16xf32, #tpu.memory_space<vmem>>, vector<1x4x16xf32>,
    %496 = vector.extract_strided_slice %453 {offsets = [0, 0], sizes = [4, 16], strides = [1, 1]} : vector<39x16xf32> to vector<4x16xf32>
    %c2_392 = arith.constant 2 : index
    %c5_393 = arith.constant 5 : index
    %c0_394 = arith.constant 0 : index
    %497 = vector.load %arg16[%c2_392, %c5_393, %c0_394] : memref<4x90x16xf32, #tpu.memory_space<vmem>>, vector<1x4x16xf32>
    %498 = vector.shape_cast %497 : vector<1x4x16xf32> to vector<4x16xf32>
    %499 = vector.shape_cast %496 : vector<4x16xf32> to vector<1x4x16xf32>
    tpu.vector_store %arg16[%c2_392, %c5_393, %c0_394], %499 {strides = array<i32>} : memref<4x90x16xf32, #tpu.memory_space<vmem>>, vector<1x4x16xf32>,
    %500 = vector.extract_strided_slice %453 {offsets = [5, 0], sizes = [4, 16], strides = [1, 1]} : vector<39x16xf32> to vector<4x16xf32>
    %c2_395 = arith.constant 2 : index
    %c15_396 = arith.constant 15 : index
    %c0_397 = arith.constant 0 : index
    %501 = vector.load %arg16[%c2_395, %c15_396, %c0_397] : memref<4x90x16xf32, #tpu.memory_space<vmem>>, vector<1x4x16xf32>
    %502 = vector.shape_cast %501 : vector<1x4x16xf32> to vector<4x16xf32>
    %503 = vector.shape_cast %500 : vector<4x16xf32> to vector<1x4x16xf32>
    tpu.vector_store %arg16[%c2_395, %c15_396, %c0_397], %503 {strides = array<i32>} : memref<4x90x16xf32, #tpu.memory_space<vmem>>, vector<1x4x16xf32>,
    %504 = vector.extract_strided_slice %453 {offsets = [10, 0], sizes = [4, 16], strides = [1, 1]} : vector<39x16xf32> to vector<4x16xf32>
    %c2_398 = arith.constant 2 : index
    %c25_399 = arith.constant 25 : index
    %c0_400 = arith.constant 0 : index
    %505 = vector.load %arg16[%c2_398, %c25_399, %c0_400] : memref<4x90x16xf32, #tpu.memory_space<vmem>>, vector<1x4x16xf32>
    %506 = vector.shape_cast %505 : vector<1x4x16xf32> to vector<4x16xf32>
    %507 = vector.shape_cast %504 : vector<4x16xf32> to vector<1x4x16xf32>
    tpu.vector_store %arg16[%c2_398, %c25_399, %c0_400], %507 {strides = array<i32>} : memref<4x90x16xf32, #tpu.memory_space<vmem>>, vector<1x4x16xf32>,
    %508 = vector.extract_strided_slice %453 {offsets = [15, 0], sizes = [4, 16], strides = [1, 1]} : vector<39x16xf32> to vector<4x16xf32>
    %c2_401 = arith.constant 2 : index
    %c35_402 = arith.constant 35 : index
    %c0_403 = arith.constant 0 : index
    %509 = vector.load %arg16[%c2_401, %c35_402, %c0_403] : memref<4x90x16xf32, #tpu.memory_space<vmem>>, vector<1x4x16xf32>
    %510 = vector.shape_cast %509 : vector<1x4x16xf32> to vector<4x16xf32>
    %511 = vector.shape_cast %508 : vector<4x16xf32> to vector<1x4x16xf32>
    tpu.vector_store %arg16[%c2_401, %c35_402, %c0_403], %511 {strides = array<i32>} : memref<4x90x16xf32, #tpu.memory_space<vmem>>, vector<1x4x16xf32>,
    %512 = vector.extract_strided_slice %453 {offsets = [20, 0], sizes = [4, 16], strides = [1, 1]} : vector<39x16xf32> to vector<4x16xf32>
    %c2_404 = arith.constant 2 : index
    %c45_405 = arith.constant 45 : index
    %c0_406 = arith.constant 0 : index
    %513 = vector.load %arg16[%c2_404, %c45_405, %c0_406] : memref<4x90x16xf32, #tpu.memory_space<vmem>>, vector<1x4x16xf32>
    %514 = vector.shape_cast %513 : vector<1x4x16xf32> to vector<4x16xf32>
    %515 = vector.shape_cast %512 : vector<4x16xf32> to vector<1x4x16xf32>
    tpu.vector_store %arg16[%c2_404, %c45_405, %c0_406], %515 {strides = array<i32>} : memref<4x90x16xf32, #tpu.memory_space<vmem>>, vector<1x4x16xf32>,
    %516 = vector.extract_strided_slice %453 {offsets = [25, 0], sizes = [4, 16], strides = [1, 1]} : vector<39x16xf32> to vector<4x16xf32>
    %c2_407 = arith.constant 2 : index
    %c55_408 = arith.constant 55 : index
    %c0_409 = arith.constant 0 : index
    %517 = vector.load %arg16[%c2_407, %c55_408, %c0_409] : memref<4x90x16xf32, #tpu.memory_space<vmem>>, vector<1x4x16xf32>
    %518 = vector.shape_cast %517 : vector<1x4x16xf32> to vector<4x16xf32>
    %519 = vector.shape_cast %516 : vector<4x16xf32> to vector<1x4x16xf32>
    tpu.vector_store %arg16[%c2_407, %c55_408, %c0_409], %519 {strides = array<i32>} : memref<4x90x16xf32, #tpu.memory_space<vmem>>, vector<1x4x16xf32>,
    %520 = vector.extract_strided_slice %453 {offsets = [30, 0], sizes = [4, 16], strides = [1, 1]} : vector<39x16xf32> to vector<4x16xf32>
    %c2_410 = arith.constant 2 : index
    %c65_411 = arith.constant 65 : index
    %c0_412 = arith.constant 0 : index
    %521 = vector.load %arg16[%c2_410, %c65_411, %c0_412] : memref<4x90x16xf32, #tpu.memory_space<vmem>>, vector<1x4x16xf32>
    %522 = vector.shape_cast %521 : vector<1x4x16xf32> to vector<4x16xf32>
    %523 = vector.shape_cast %520 : vector<4x16xf32> to vector<1x4x16xf32>
    tpu.vector_store %arg16[%c2_410, %c65_411, %c0_412], %523 {strides = array<i32>} : memref<4x90x16xf32, #tpu.memory_space<vmem>>, vector<1x4x16xf32>,
    %524 = vector.extract_strided_slice %453 {offsets = [35, 0], sizes = [4, 16], strides = [1, 1]} : vector<39x16xf32> to vector<4x16xf32>
    %c2_413 = arith.constant 2 : index
    %c75_414 = arith.constant 75 : index
    %c0_415 = arith.constant 0 : index
    %525 = vector.load %arg16[%c2_413, %c75_414, %c0_415] : memref<4x90x16xf32, #tpu.memory_space<vmem>>, vector<1x4x16xf32>
    %526 = vector.shape_cast %525 : vector<1x4x16xf32> to vector<4x16xf32>
    %527 = vector.shape_cast %524 : vector<4x16xf32> to vector<1x4x16xf32>
    tpu.vector_store %arg16[%c2_413, %c75_414, %c0_415], %527 {strides = array<i32>} : memref<4x90x16xf32, #tpu.memory_space<vmem>>, vector<1x4x16xf32>,
    %528 = vector.extract_strided_slice %458 {offsets = [0, 0], sizes = [4, 16], strides = [1, 1]} : vector<39x16xf32> to vector<4x16xf32>
    %c1_416 = arith.constant 1 : index
    %c10_417 = arith.constant 10 : index
    %c0_418 = arith.constant 0 : index
    %529 = vector.load %arg16[%c1_416, %c10_417, %c0_418] : memref<4x90x16xf32, #tpu.memory_space<vmem>>, vector<1x4x16xf32>
    %530 = vector.shape_cast %529 : vector<1x4x16xf32> to vector<4x16xf32>
    %531 = vector.shape_cast %528 : vector<4x16xf32> to vector<1x4x16xf32>
    tpu.vector_store %arg16[%c1_416, %c10_417, %c0_418], %531 {strides = array<i32>} : memref<4x90x16xf32, #tpu.memory_space<vmem>>, vector<1x4x16xf32>,
    %532 = vector.extract_strided_slice %458 {offsets = [5, 0], sizes = [4, 16], strides = [1, 1]} : vector<39x16xf32> to vector<4x16xf32>
    %c1_419 = arith.constant 1 : index
    %c20_420 = arith.constant 20 : index
    %c0_421 = arith.constant 0 : index
    %533 = vector.load %arg16[%c1_419, %c20_420, %c0_421] : memref<4x90x16xf32, #tpu.memory_space<vmem>>, vector<1x4x16xf32>
    %534 = vector.shape_cast %533 : vector<1x4x16xf32> to vector<4x16xf32>
    %535 = vector.shape_cast %532 : vector<4x16xf32> to vector<1x4x16xf32>
    tpu.vector_store %arg16[%c1_419, %c20_420, %c0_421], %535 {strides = array<i32>} : memref<4x90x16xf32, #tpu.memory_space<vmem>>, vector<1x4x16xf32>,
    %536 = vector.extract_strided_slice %458 {offsets = [10, 0], sizes = [4, 16], strides = [1, 1]} : vector<39x16xf32> to vector<4x16xf32>
    %c1_422 = arith.constant 1 : index
    %c30_423 = arith.constant 30 : index
    %c0_424 = arith.constant 0 : index
    %537 = vector.load %arg16[%c1_422, %c30_423, %c0_424] : memref<4x90x16xf32, #tpu.memory_space<vmem>>, vector<1x4x16xf32>
    %538 = vector.shape_cast %537 : vector<1x4x16xf32> to vector<4x16xf32>
    %539 = vector.shape_cast %536 : vector<4x16xf32> to vector<1x4x16xf32>
    tpu.vector_store %arg16[%c1_422, %c30_423, %c0_424], %539 {strides = array<i32>} : memref<4x90x16xf32, #tpu.memory_space<vmem>>, vector<1x4x16xf32>,
    %540 = vector.extract_strided_slice %458 {offsets = [15, 0], sizes = [4, 16], strides = [1, 1]} : vector<39x16xf32> to vector<4x16xf32>
    %c1_425 = arith.constant 1 : index
    %c40_426 = arith.constant 40 : index
    %c0_427 = arith.constant 0 : index
    %541 = vector.load %arg16[%c1_425, %c40_426, %c0_427] : memref<4x90x16xf32, #tpu.memory_space<vmem>>, vector<1x4x16xf32>
    %542 = vector.shape_cast %541 : vector<1x4x16xf32> to vector<4x16xf32>
    %543 = vector.shape_cast %540 : vector<4x16xf32> to vector<1x4x16xf32>
    tpu.vector_store %arg16[%c1_425, %c40_426, %c0_427], %543 {strides = array<i32>} : memref<4x90x16xf32, #tpu.memory_space<vmem>>, vector<1x4x16xf32>,
    %544 = vector.extract_strided_slice %458 {offsets = [20, 0], sizes = [4, 16], strides = [1, 1]} : vector<39x16xf32> to vector<4x16xf32>
    %c1_428 = arith.constant 1 : index
    %c50 = arith.constant 50 : index
    %c0_429 = arith.constant 0 : index
    %545 = vector.load %arg16[%c1_428, %c50, %c0_429] : memref<4x90x16xf32, #tpu.memory_space<vmem>>, vector<1x4x16xf32>
    %546 = vector.shape_cast %545 : vector<1x4x16xf32> to vector<4x16xf32>
    %547 = vector.shape_cast %544 : vector<4x16xf32> to vector<1x4x16xf32>
    tpu.vector_store %arg16[%c1_428, %c50, %c0_429], %547 {strides = array<i32>} : memref<4x90x16xf32, #tpu.memory_space<vmem>>, vector<1x4x16xf32>,
    %548 = vector.extract_strided_slice %458 {offsets = [25, 0], sizes = [4, 16], strides = [1, 1]} : vector<39x16xf32> to vector<4x16xf32>
    %c1_430 = arith.constant 1 : index
    %c60 = arith.constant 60 : index
    %c0_431 = arith.constant 0 : index
    %549 = vector.load %arg16[%c1_430, %c60, %c0_431] : memref<4x90x16xf32, #tpu.memory_space<vmem>>, vector<1x4x16xf32>
    %550 = vector.shape_cast %549 : vector<1x4x16xf32> to vector<4x16xf32>
    %551 = vector.shape_cast %548 : vector<4x16xf32> to vector<1x4x16xf32>
    tpu.vector_store %arg16[%c1_430, %c60, %c0_431], %551 {strides = array<i32>} : memref<4x90x16xf32, #tpu.memory_space<vmem>>, vector<1x4x16xf32>,
    %552 = vector.extract_strided_slice %458 {offsets = [30, 0], sizes = [4, 16], strides = [1, 1]} : vector<39x16xf32> to vector<4x16xf32>
    %c1_432 = arith.constant 1 : index
    %c70 = arith.constant 70 : index
    %c0_433 = arith.constant 0 : index
    %553 = vector.load %arg16[%c1_432, %c70, %c0_433] : memref<4x90x16xf32, #tpu.memory_space<vmem>>, vector<1x4x16xf32>
    %554 = vector.shape_cast %553 : vector<1x4x16xf32> to vector<4x16xf32>
    %555 = vector.shape_cast %552 : vector<4x16xf32> to vector<1x4x16xf32>
    tpu.vector_store %arg16[%c1_432, %c70, %c0_433], %555 {strides = array<i32>} : memref<4x90x16xf32, #tpu.memory_space<vmem>>, vector<1x4x16xf32>,
    %556 = vector.extract_strided_slice %458 {offsets = [35, 0], sizes = [4, 16], strides = [1, 1]} : vector<39x16xf32> to vector<4x16xf32>
    %c1_434 = arith.constant 1 : index
    %c80 = arith.constant 80 : index
    %c0_435 = arith.constant 0 : index
    %557 = vector.load %arg16[%c1_434, %c80, %c0_435] : memref<4x90x16xf32, #tpu.memory_space<vmem>>, vector<1x4x16xf32>
    %558 = vector.shape_cast %557 : vector<1x4x16xf32> to vector<4x16xf32>
    %559 = vector.shape_cast %556 : vector<4x16xf32> to vector<1x4x16xf32>
    tpu.vector_store %arg16[%c1_434, %c80, %c0_435], %559 {strides = array<i32>} : memref<4x90x16xf32, #tpu.memory_space<vmem>>, vector<1x4x16xf32>,
    %560 = vector.extract_strided_slice %463 {offsets = [0, 0], sizes = [4, 16], strides = [1, 1]} : vector<39x16xf32> to vector<4x16xf32>
    %c2_436 = arith.constant 2 : index
    %c10_437 = arith.constant 10 : index
    %c0_438 = arith.constant 0 : index
    %561 = vector.load %arg16[%c2_436, %c10_437, %c0_438] : memref<4x90x16xf32, #tpu.memory_space<vmem>>, vector<1x4x16xf32>
    %562 = vector.shape_cast %561 : vector<1x4x16xf32> to vector<4x16xf32>
    %563 = vector.shape_cast %560 : vector<4x16xf32> to vector<1x4x16xf32>
    tpu.vector_store %arg16[%c2_436, %c10_437, %c0_438], %563 {strides = array<i32>} : memref<4x90x16xf32, #tpu.memory_space<vmem>>, vector<1x4x16xf32>,
    %564 = vector.extract_strided_slice %463 {offsets = [5, 0], sizes = [4, 16], strides = [1, 1]} : vector<39x16xf32> to vector<4x16xf32>
    %c2_439 = arith.constant 2 : index
    %c20_440 = arith.constant 20 : index
    %c0_441 = arith.constant 0 : index
    %565 = vector.load %arg16[%c2_439, %c20_440, %c0_441] : memref<4x90x16xf32, #tpu.memory_space<vmem>>, vector<1x4x16xf32>
    %566 = vector.shape_cast %565 : vector<1x4x16xf32> to vector<4x16xf32>
    %567 = vector.shape_cast %564 : vector<4x16xf32> to vector<1x4x16xf32>
    tpu.vector_store %arg16[%c2_439, %c20_440, %c0_441], %567 {strides = array<i32>} : memref<4x90x16xf32, #tpu.memory_space<vmem>>, vector<1x4x16xf32>,
    %568 = vector.extract_strided_slice %463 {offsets = [10, 0], sizes = [4, 16], strides = [1, 1]} : vector<39x16xf32> to vector<4x16xf32>
    %c2_442 = arith.constant 2 : index
    %c30_443 = arith.constant 30 : index
    %c0_444 = arith.constant 0 : index
    %569 = vector.load %arg16[%c2_442, %c30_443, %c0_444] : memref<4x90x16xf32, #tpu.memory_space<vmem>>, vector<1x4x16xf32>
    %570 = vector.shape_cast %569 : vector<1x4x16xf32> to vector<4x16xf32>
    %571 = vector.shape_cast %568 : vector<4x16xf32> to vector<1x4x16xf32>
    tpu.vector_store %arg16[%c2_442, %c30_443, %c0_444], %571 {strides = array<i32>} : memref<4x90x16xf32, #tpu.memory_space<vmem>>, vector<1x4x16xf32>,
    %572 = vector.extract_strided_slice %463 {offsets = [15, 0], sizes = [4, 16], strides = [1, 1]} : vector<39x16xf32> to vector<4x16xf32>
    %c2_445 = arith.constant 2 : index
    %c40_446 = arith.constant 40 : index
    %c0_447 = arith.constant 0 : index
    %573 = vector.load %arg16[%c2_445, %c40_446, %c0_447] : memref<4x90x16xf32, #tpu.memory_space<vmem>>, vector<1x4x16xf32>
    %574 = vector.shape_cast %573 : vector<1x4x16xf32> to vector<4x16xf32>
    %575 = vector.shape_cast %572 : vector<4x16xf32> to vector<1x4x16xf32>
    tpu.vector_store %arg16[%c2_445, %c40_446, %c0_447], %575 {strides = array<i32>} : memref<4x90x16xf32, #tpu.memory_space<vmem>>, vector<1x4x16xf32>,
    %576 = vector.extract_strided_slice %463 {offsets = [20, 0], sizes = [4, 16], strides = [1, 1]} : vector<39x16xf32> to vector<4x16xf32>
    %c2_448 = arith.constant 2 : index
    %c50_449 = arith.constant 50 : index
    %c0_450 = arith.constant 0 : index
    %577 = vector.load %arg16[%c2_448, %c50_449, %c0_450] : memref<4x90x16xf32, #tpu.memory_space<vmem>>, vector<1x4x16xf32>
    %578 = vector.shape_cast %577 : vector<1x4x16xf32> to vector<4x16xf32>
    %579 = vector.shape_cast %576 : vector<4x16xf32> to vector<1x4x16xf32>
    tpu.vector_store %arg16[%c2_448, %c50_449, %c0_450], %579 {strides = array<i32>} : memref<4x90x16xf32, #tpu.memory_space<vmem>>, vector<1x4x16xf32>,
    %580 = vector.extract_strided_slice %463 {offsets = [25, 0], sizes = [4, 16], strides = [1, 1]} : vector<39x16xf32> to vector<4x16xf32>
    %c2_451 = arith.constant 2 : index
    %c60_452 = arith.constant 60 : index
    %c0_453 = arith.constant 0 : index
    %581 = vector.load %arg16[%c2_451, %c60_452, %c0_453] : memref<4x90x16xf32, #tpu.memory_space<vmem>>, vector<1x4x16xf32>
    %582 = vector.shape_cast %581 : vector<1x4x16xf32> to vector<4x16xf32>
    %583 = vector.shape_cast %580 : vector<4x16xf32> to vector<1x4x16xf32>
    tpu.vector_store %arg16[%c2_451, %c60_452, %c0_453], %583 {strides = array<i32>} : memref<4x90x16xf32, #tpu.memory_space<vmem>>, vector<1x4x16xf32>,
    %584 = vector.extract_strided_slice %463 {offsets = [30, 0], sizes = [4, 16], strides = [1, 1]} : vector<39x16xf32> to vector<4x16xf32>
    %c2_454 = arith.constant 2 : index
    %c70_455 = arith.constant 70 : index
    %c0_456 = arith.constant 0 : index
    %585 = vector.load %arg16[%c2_454, %c70_455, %c0_456] : memref<4x90x16xf32, #tpu.memory_space<vmem>>, vector<1x4x16xf32>
    %586 = vector.shape_cast %585 : vector<1x4x16xf32> to vector<4x16xf32>
    %587 = vector.shape_cast %584 : vector<4x16xf32> to vector<1x4x16xf32>
    tpu.vector_store %arg16[%c2_454, %c70_455, %c0_456], %587 {strides = array<i32>} : memref<4x90x16xf32, #tpu.memory_space<vmem>>, vector<1x4x16xf32>,
    %588 = vector.extract_strided_slice %463 {offsets = [35, 0], sizes = [4, 16], strides = [1, 1]} : vector<39x16xf32> to vector<4x16xf32>
    %c2_457 = arith.constant 2 : index
    %c80_458 = arith.constant 80 : index
    %c0_459 = arith.constant 0 : index
    %589 = vector.load %arg16[%c2_457, %c80_458, %c0_459] : memref<4x90x16xf32, #tpu.memory_space<vmem>>, vector<1x4x16xf32>
    %590 = vector.shape_cast %589 : vector<1x4x16xf32> to vector<4x16xf32>
    %591 = vector.shape_cast %588 : vector<4x16xf32> to vector<1x4x16xf32>
    tpu.vector_store %arg16[%c2_457, %c80_458, %c0_459], %591 {strides = array<i32>} : memref<4x90x16xf32, #tpu.memory_space<vmem>>, vector<1x4x16xf32>,
    %c1_460 = arith.constant 1 : index
    %c0_461 = arith.constant 0 : index
    %c0_462 = arith.constant 0 : index
    %592 = vector.load %arg15[%c1_460, %c0_461, %c0_462] : memref<2x45x32xf32, #tpu.memory_space<vmem>>, vector<1x39x32xf32>
    %593 = vector.shape_cast %592 : vector<1x39x32xf32> to vector<39x32xf32>
    %c0_463 = arith.constant 0 : index
    %c0_464 = arith.constant 0 : index
    %c0_465 = arith.constant 0 : index
    %594 = vector.load %arg8[%c0_463, %c0_464, %c0_465] : memref<4x32x64xf32, #tpu.memory_space<vmem>>, vector<1x32x64xf32>
    %595 = vector.shape_cast %594 : vector<1x32x64xf32> to vector<32x64xf32>
    %cst_466 = arith.constant dense<0.000000e+00> : vector<39x64xf32>
    %596 = tpu.matmul %593, %595, %cst_466 {dimension_numbers = #tpu.dot_dimension_numbers<[1], [0], [0], [1], [0, 0, 1, 1], [], []>} : vector<39x32xf32>, vector<32x64xf32>, vector<39x64xf32> -> vector<39x64xf32>
    %597 = vector.extract_strided_slice %596 {offsets = [0, 0], sizes = [39, 16], strides = [1, 1]} : vector<39x64xf32> to vector<39x16xf32>
    %598 = vector.extract_strided_slice %596 {offsets = [0, 16], sizes = [39, 16], strides = [1, 1]} : vector<39x64xf32> to vector<39x16xf32>
    %599 = vector.extract_strided_slice %596 {offsets = [0, 32], sizes = [39, 16], strides = [1, 1]} : vector<39x64xf32> to vector<39x16xf32>
    %600 = vector.extract_strided_slice %596 {offsets = [0, 48], sizes = [39, 16], strides = [1, 1]} : vector<39x64xf32> to vector<39x16xf32>
    %c0_467 = arith.constant 0 : index
    %c1_468 = arith.constant 1 : index
    %c0_469 = arith.constant 0 : index
    %601 = vector.load %arg15[%c0_467, %c1_468, %c0_469] : memref<2x45x32xf32, #tpu.memory_space<vmem>>, vector<1x39x32xf32>
    %602 = vector.shape_cast %601 : vector<1x39x32xf32> to vector<39x32xf32>
    %c1_470 = arith.constant 1 : index
    %c0_471 = arith.constant 0 : index
    %c0_472 = arith.constant 0 : index
    %603 = vector.load %arg8[%c1_470, %c0_471, %c0_472] : memref<4x32x64xf32, #tpu.memory_space<vmem>>, vector<1x32x64xf32>
    %604 = vector.shape_cast %603 : vector<1x32x64xf32> to vector<32x64xf32>
    %cst_473 = arith.constant dense<0.000000e+00> : vector<39x64xf32>
    %605 = tpu.matmul %602, %604, %cst_473 {dimension_numbers = #tpu.dot_dimension_numbers<[1], [0], [0], [1], [0, 0, 1, 1], [], []>} : vector<39x32xf32>, vector<32x64xf32>, vector<39x64xf32> -> vector<39x64xf32>
    %606 = vector.extract_strided_slice %605 {offsets = [0, 0], sizes = [39, 16], strides = [1, 1]} : vector<39x64xf32> to vector<39x16xf32>
    %607 = arith.addf %598, %606 : vector<39x16xf32>
    %608 = vector.extract_strided_slice %605 {offsets = [0, 16], sizes = [39, 16], strides = [1, 1]} : vector<39x64xf32> to vector<39x16xf32>
    %609 = arith.addf %600, %608 : vector<39x16xf32>
    %c1_474 = arith.constant 1 : index
    %c5_475 = arith.constant 5 : index
    %c0_476 = arith.constant 0 : index
    %610 = vector.load %arg15[%c1_474, %c5_475, %c0_476] : memref<2x45x32xf32, #tpu.memory_space<vmem>>, vector<1x39x32xf32>
    %611 = vector.shape_cast %610 : vector<1x39x32xf32> to vector<39x32xf32>
    %c2_477 = arith.constant 2 : index
    %c0_478 = arith.constant 0 : index
    %c0_479 = arith.constant 0 : index
    %612 = vector.load %arg8[%c2_477, %c0_478, %c0_479] : memref<4x32x64xf32, #tpu.memory_space<vmem>>, vector<1x32x64xf32>
    %613 = vector.shape_cast %612 : vector<1x32x64xf32> to vector<32x64xf32>
    %cst_480 = arith.constant dense<0.000000e+00> : vector<39x64xf32>
    %614 = tpu.matmul %611, %613, %cst_480 {dimension_numbers = #tpu.dot_dimension_numbers<[1], [0], [0], [1], [0, 0, 1, 1], [], []>} : vector<39x32xf32>, vector<32x64xf32>, vector<39x64xf32> -> vector<39x64xf32>
    %615 = vector.extract_strided_slice %614 {offsets = [0, 0], sizes = [39, 16], strides = [1, 1]} : vector<39x64xf32> to vector<39x16xf32>
    %616 = arith.addf %599, %615 : vector<39x16xf32>
    %617 = vector.extract_strided_slice %614 {offsets = [0, 16], sizes = [39, 16], strides = [1, 1]} : vector<39x64xf32> to vector<39x16xf32>
    %618 = arith.addf %609, %617 : vector<39x16xf32>
    %c0_481 = arith.constant 0 : index
    %c6_482 = arith.constant 6 : index
    %c0_483 = arith.constant 0 : index
    %619 = vector.load %arg15[%c0_481, %c6_482, %c0_483] : memref<2x45x32xf32, #tpu.memory_space<vmem>>, vector<1x39x32xf32>
    %620 = vector.shape_cast %619 : vector<1x39x32xf32> to vector<39x32xf32>
    %c3_484 = arith.constant 3 : index
    %c0_485 = arith.constant 0 : index
    %c0_486 = arith.constant 0 : index
    %621 = vector.load %arg8[%c3_484, %c0_485, %c0_486] : memref<4x32x64xf32, #tpu.memory_space<vmem>>, vector<1x32x64xf32>
    %622 = vector.shape_cast %621 : vector<1x32x64xf32> to vector<32x64xf32>
    %cst_487 = arith.constant dense<0.000000e+00> : vector<39x64xf32>
    %623 = tpu.matmul %620, %622, %cst_487 {dimension_numbers = #tpu.dot_dimension_numbers<[1], [0], [0], [1], [0, 0, 1, 1], [], []>} : vector<39x32xf32>, vector<32x64xf32>, vector<39x64xf32> -> vector<39x64xf32>
    %624 = vector.extract_strided_slice %623 {offsets = [0, 0], sizes = [39, 16], strides = [1, 1]} : vector<39x64xf32> to vector<39x16xf32>
    %625 = arith.addf %618, %624 : vector<39x16xf32>
    %c0_488 = arith.constant 0 : index
    %c0_489 = arith.constant 0 : index
    %626 = vector.load %arg9[%c0_488, %c0_489] : memref<1x16xf32, #tpu.memory_space<vmem>>, vector<1x16xf32>
    %627 = vector.broadcast %626 : vector<1x16xf32> to vector<39x16xf32>
    %628 = arith.addf %597, %627 : vector<39x16xf32>
    %cst_490 = arith.constant 0.000000e+00 : f32
    %629 = vector.broadcast %cst_490 : f32 to vector<39x16xf32>
    %630 = arith.maximumf %628, %629 : vector<39x16xf32>
    %c0_491 = arith.constant 0 : index
    %c0_492 = arith.constant 0 : index
    %631 = vector.load %arg9[%c0_491, %c0_492] : memref<1x16xf32, #tpu.memory_space<vmem>>, vector<1x16xf32>
    %632 = vector.broadcast %631 : vector<1x16xf32> to vector<39x16xf32>
    %633 = arith.addf %607, %632 : vector<39x16xf32>
    %cst_493 = arith.constant 0.000000e+00 : f32
    %634 = vector.broadcast %cst_493 : f32 to vector<39x16xf32>
    %635 = arith.maximumf %633, %634 : vector<39x16xf32>
    %c0_494 = arith.constant 0 : index
    %c0_495 = arith.constant 0 : index
    %636 = vector.load %arg9[%c0_494, %c0_495] : memref<1x16xf32, #tpu.memory_space<vmem>>, vector<1x16xf32>
    %637 = vector.broadcast %636 : vector<1x16xf32> to vector<39x16xf32>
    %638 = arith.addf %616, %637 : vector<39x16xf32>
    %cst_496 = arith.constant 0.000000e+00 : f32
    %639 = vector.broadcast %cst_496 : f32 to vector<39x16xf32>
    %640 = arith.maximumf %638, %639 : vector<39x16xf32>
    %c0_497 = arith.constant 0 : index
    %c0_498 = arith.constant 0 : index
    %641 = vector.load %arg9[%c0_497, %c0_498] : memref<1x16xf32, #tpu.memory_space<vmem>>, vector<1x16xf32>
    %642 = vector.broadcast %641 : vector<1x16xf32> to vector<39x16xf32>
    %643 = arith.addf %625, %642 : vector<39x16xf32>
    %cst_499 = arith.constant 0.000000e+00 : f32
    %644 = vector.broadcast %cst_499 : f32 to vector<39x16xf32>
    %645 = arith.maximumf %643, %644 : vector<39x16xf32>
    %646 = vector.extract_strided_slice %630 {offsets = [0, 0], sizes = [4, 16], strides = [1, 1]} : vector<39x16xf32> to vector<4x16xf32>
    %c3_500 = arith.constant 3 : index
    %c5_501 = arith.constant 5 : index
    %c0_502 = arith.constant 0 : index
    %647 = vector.load %arg16[%c3_500, %c5_501, %c0_502] : memref<4x90x16xf32, #tpu.memory_space<vmem>>, vector<1x4x16xf32>
    %648 = vector.shape_cast %647 : vector<1x4x16xf32> to vector<4x16xf32>
    %649 = vector.shape_cast %646 : vector<4x16xf32> to vector<1x4x16xf32>
    tpu.vector_store %arg16[%c3_500, %c5_501, %c0_502], %649 {strides = array<i32>} : memref<4x90x16xf32, #tpu.memory_space<vmem>>, vector<1x4x16xf32>,
    %650 = vector.extract_strided_slice %630 {offsets = [5, 0], sizes = [4, 16], strides = [1, 1]} : vector<39x16xf32> to vector<4x16xf32>
    %c3_503 = arith.constant 3 : index
    %c15_504 = arith.constant 15 : index
    %c0_505 = arith.constant 0 : index
    %651 = vector.load %arg16[%c3_503, %c15_504, %c0_505] : memref<4x90x16xf32, #tpu.memory_space<vmem>>, vector<1x4x16xf32>
    %652 = vector.shape_cast %651 : vector<1x4x16xf32> to vector<4x16xf32>
    %653 = vector.shape_cast %650 : vector<4x16xf32> to vector<1x4x16xf32>
    tpu.vector_store %arg16[%c3_503, %c15_504, %c0_505], %653 {strides = array<i32>} : memref<4x90x16xf32, #tpu.memory_space<vmem>>, vector<1x4x16xf32>,
    %654 = vector.extract_strided_slice %630 {offsets = [10, 0], sizes = [4, 16], strides = [1, 1]} : vector<39x16xf32> to vector<4x16xf32>
    %c3_506 = arith.constant 3 : index
    %c25_507 = arith.constant 25 : index
    %c0_508 = arith.constant 0 : index
    %655 = vector.load %arg16[%c3_506, %c25_507, %c0_508] : memref<4x90x16xf32, #tpu.memory_space<vmem>>, vector<1x4x16xf32>
    %656 = vector.shape_cast %655 : vector<1x4x16xf32> to vector<4x16xf32>
    %657 = vector.shape_cast %654 : vector<4x16xf32> to vector<1x4x16xf32>
    tpu.vector_store %arg16[%c3_506, %c25_507, %c0_508], %657 {strides = array<i32>} : memref<4x90x16xf32, #tpu.memory_space<vmem>>, vector<1x4x16xf32>,
    %658 = vector.extract_strided_slice %630 {offsets = [15, 0], sizes = [4, 16], strides = [1, 1]} : vector<39x16xf32> to vector<4x16xf32>
    %c3_509 = arith.constant 3 : index
    %c35_510 = arith.constant 35 : index
    %c0_511 = arith.constant 0 : index
    %659 = vector.load %arg16[%c3_509, %c35_510, %c0_511] : memref<4x90x16xf32, #tpu.memory_space<vmem>>, vector<1x4x16xf32>
    %660 = vector.shape_cast %659 : vector<1x4x16xf32> to vector<4x16xf32>
    %661 = vector.shape_cast %658 : vector<4x16xf32> to vector<1x4x16xf32>
    tpu.vector_store %arg16[%c3_509, %c35_510, %c0_511], %661 {strides = array<i32>} : memref<4x90x16xf32, #tpu.memory_space<vmem>>, vector<1x4x16xf32>,
    %662 = vector.extract_strided_slice %630 {offsets = [20, 0], sizes = [4, 16], strides = [1, 1]} : vector<39x16xf32> to vector<4x16xf32>
    %c3_512 = arith.constant 3 : index
    %c45_513 = arith.constant 45 : index
    %c0_514 = arith.constant 0 : index
    %663 = vector.load %arg16[%c3_512, %c45_513, %c0_514] : memref<4x90x16xf32, #tpu.memory_space<vmem>>, vector<1x4x16xf32>
    %664 = vector.shape_cast %663 : vector<1x4x16xf32> to vector<4x16xf32>
    %665 = vector.shape_cast %662 : vector<4x16xf32> to vector<1x4x16xf32>
    tpu.vector_store %arg16[%c3_512, %c45_513, %c0_514], %665 {strides = array<i32>} : memref<4x90x16xf32, #tpu.memory_space<vmem>>, vector<1x4x16xf32>,
    %666 = vector.extract_strided_slice %630 {offsets = [25, 0], sizes = [4, 16], strides = [1, 1]} : vector<39x16xf32> to vector<4x16xf32>
    %c3_515 = arith.constant 3 : index
    %c55_516 = arith.constant 55 : index
    %c0_517 = arith.constant 0 : index
    %667 = vector.load %arg16[%c3_515, %c55_516, %c0_517] : memref<4x90x16xf32, #tpu.memory_space<vmem>>, vector<1x4x16xf32>
    %668 = vector.shape_cast %667 : vector<1x4x16xf32> to vector<4x16xf32>
    %669 = vector.shape_cast %666 : vector<4x16xf32> to vector<1x4x16xf32>
    tpu.vector_store %arg16[%c3_515, %c55_516, %c0_517], %669 {strides = array<i32>} : memref<4x90x16xf32, #tpu.memory_space<vmem>>, vector<1x4x16xf32>,
    %670 = vector.extract_strided_slice %630 {offsets = [30, 0], sizes = [4, 16], strides = [1, 1]} : vector<39x16xf32> to vector<4x16xf32>
    %c3_518 = arith.constant 3 : index
    %c65_519 = arith.constant 65 : index
    %c0_520 = arith.constant 0 : index
    %671 = vector.load %arg16[%c3_518, %c65_519, %c0_520] : memref<4x90x16xf32, #tpu.memory_space<vmem>>, vector<1x4x16xf32>
    %672 = vector.shape_cast %671 : vector<1x4x16xf32> to vector<4x16xf32>
    %673 = vector.shape_cast %670 : vector<4x16xf32> to vector<1x4x16xf32>
    tpu.vector_store %arg16[%c3_518, %c65_519, %c0_520], %673 {strides = array<i32>} : memref<4x90x16xf32, #tpu.memory_space<vmem>>, vector<1x4x16xf32>,
    %674 = vector.extract_strided_slice %630 {offsets = [35, 0], sizes = [4, 16], strides = [1, 1]} : vector<39x16xf32> to vector<4x16xf32>
    %c3_521 = arith.constant 3 : index
    %c75_522 = arith.constant 75 : index
    %c0_523 = arith.constant 0 : index
    %675 = vector.load %arg16[%c3_521, %c75_522, %c0_523] : memref<4x90x16xf32, #tpu.memory_space<vmem>>, vector<1x4x16xf32>
    %676 = vector.shape_cast %675 : vector<1x4x16xf32> to vector<4x16xf32>
    %677 = vector.shape_cast %674 : vector<4x16xf32> to vector<1x4x16xf32>
    tpu.vector_store %arg16[%c3_521, %c75_522, %c0_523], %677 {strides = array<i32>} : memref<4x90x16xf32, #tpu.memory_space<vmem>>, vector<1x4x16xf32>,
    %678 = vector.extract_strided_slice %635 {offsets = [0, 0], sizes = [4, 16], strides = [1, 1]} : vector<39x16xf32> to vector<4x16xf32>
    %c0_524 = arith.constant 0 : index
    %c6_525 = arith.constant 6 : index
    %c0_526 = arith.constant 0 : index
    %679 = vector.load %arg16[%c0_524, %c6_525, %c0_526] : memref<4x90x16xf32, #tpu.memory_space<vmem>>, vector<1x4x16xf32>
    %680 = vector.shape_cast %679 : vector<1x4x16xf32> to vector<4x16xf32>
    %681 = vector.shape_cast %678 : vector<4x16xf32> to vector<1x4x16xf32>
    tpu.vector_store %arg16[%c0_524, %c6_525, %c0_526], %681 {strides = array<i32>} : memref<4x90x16xf32, #tpu.memory_space<vmem>>, vector<1x4x16xf32>,
    %682 = vector.extract_strided_slice %635 {offsets = [5, 0], sizes = [4, 16], strides = [1, 1]} : vector<39x16xf32> to vector<4x16xf32>
    %c0_527 = arith.constant 0 : index
    %c16_528 = arith.constant 16 : index
    %c0_529 = arith.constant 0 : index
    %683 = vector.load %arg16[%c0_527, %c16_528, %c0_529] : memref<4x90x16xf32, #tpu.memory_space<vmem>>, vector<1x4x16xf32>
    %684 = vector.shape_cast %683 : vector<1x4x16xf32> to vector<4x16xf32>
    %685 = vector.shape_cast %682 : vector<4x16xf32> to vector<1x4x16xf32>
    tpu.vector_store %arg16[%c0_527, %c16_528, %c0_529], %685 {strides = array<i32>} : memref<4x90x16xf32, #tpu.memory_space<vmem>>, vector<1x4x16xf32>,
    %686 = vector.extract_strided_slice %635 {offsets = [10, 0], sizes = [4, 16], strides = [1, 1]} : vector<39x16xf32> to vector<4x16xf32>
    %c0_530 = arith.constant 0 : index
    %c26_531 = arith.constant 26 : index
    %c0_532 = arith.constant 0 : index
    %687 = vector.load %arg16[%c0_530, %c26_531, %c0_532] : memref<4x90x16xf32, #tpu.memory_space<vmem>>, vector<1x4x16xf32>
    %688 = vector.shape_cast %687 : vector<1x4x16xf32> to vector<4x16xf32>
    %689 = vector.shape_cast %686 : vector<4x16xf32> to vector<1x4x16xf32>
    tpu.vector_store %arg16[%c0_530, %c26_531, %c0_532], %689 {strides = array<i32>} : memref<4x90x16xf32, #tpu.memory_space<vmem>>, vector<1x4x16xf32>,
    %690 = vector.extract_strided_slice %635 {offsets = [15, 0], sizes = [4, 16], strides = [1, 1]} : vector<39x16xf32> to vector<4x16xf32>
    %c0_533 = arith.constant 0 : index
    %c36_534 = arith.constant 36 : index
    %c0_535 = arith.constant 0 : index
    %691 = vector.load %arg16[%c0_533, %c36_534, %c0_535] : memref<4x90x16xf32, #tpu.memory_space<vmem>>, vector<1x4x16xf32>
    %692 = vector.shape_cast %691 : vector<1x4x16xf32> to vector<4x16xf32>
    %693 = vector.shape_cast %690 : vector<4x16xf32> to vector<1x4x16xf32>
    tpu.vector_store %arg16[%c0_533, %c36_534, %c0_535], %693 {strides = array<i32>} : memref<4x90x16xf32, #tpu.memory_space<vmem>>, vector<1x4x16xf32>,
    %694 = vector.extract_strided_slice %635 {offsets = [20, 0], sizes = [4, 16], strides = [1, 1]} : vector<39x16xf32> to vector<4x16xf32>
    %c0_536 = arith.constant 0 : index
    %c46 = arith.constant 46 : index
    %c0_537 = arith.constant 0 : index
    %695 = vector.load %arg16[%c0_536, %c46, %c0_537] : memref<4x90x16xf32, #tpu.memory_space<vmem>>, vector<1x4x16xf32>
    %696 = vector.shape_cast %695 : vector<1x4x16xf32> to vector<4x16xf32>
    %697 = vector.shape_cast %694 : vector<4x16xf32> to vector<1x4x16xf32>
    tpu.vector_store %arg16[%c0_536, %c46, %c0_537], %697 {strides = array<i32>} : memref<4x90x16xf32, #tpu.memory_space<vmem>>, vector<1x4x16xf32>,
    %698 = vector.extract_strided_slice %635 {offsets = [25, 0], sizes = [4, 16], strides = [1, 1]} : vector<39x16xf32> to vector<4x16xf32>
    %c0_538 = arith.constant 0 : index
    %c56 = arith.constant 56 : index
    %c0_539 = arith.constant 0 : index
    %699 = vector.load %arg16[%c0_538, %c56, %c0_539] : memref<4x90x16xf32, #tpu.memory_space<vmem>>, vector<1x4x16xf32>
    %700 = vector.shape_cast %699 : vector<1x4x16xf32> to vector<4x16xf32>
    %701 = vector.shape_cast %698 : vector<4x16xf32> to vector<1x4x16xf32>
    tpu.vector_store %arg16[%c0_538, %c56, %c0_539], %701 {strides = array<i32>} : memref<4x90x16xf32, #tpu.memory_space<vmem>>, vector<1x4x16xf32>,
    %702 = vector.extract_strided_slice %635 {offsets = [30, 0], sizes = [4, 16], strides = [1, 1]} : vector<39x16xf32> to vector<4x16xf32>
    %c0_540 = arith.constant 0 : index
    %c66 = arith.constant 66 : index
    %c0_541 = arith.constant 0 : index
    %703 = vector.load %arg16[%c0_540, %c66, %c0_541] : memref<4x90x16xf32, #tpu.memory_space<vmem>>, vector<1x4x16xf32>
    %704 = vector.shape_cast %703 : vector<1x4x16xf32> to vector<4x16xf32>
    %705 = vector.shape_cast %702 : vector<4x16xf32> to vector<1x4x16xf32>
    tpu.vector_store %arg16[%c0_540, %c66, %c0_541], %705 {strides = array<i32>} : memref<4x90x16xf32, #tpu.memory_space<vmem>>, vector<1x4x16xf32>,
    %706 = vector.extract_strided_slice %635 {offsets = [35, 0], sizes = [4, 16], strides = [1, 1]} : vector<39x16xf32> to vector<4x16xf32>
    %c0_542 = arith.constant 0 : index
    %c76 = arith.constant 76 : index
    %c0_543 = arith.constant 0 : index
    %707 = vector.load %arg16[%c0_542, %c76, %c0_543] : memref<4x90x16xf32, #tpu.memory_space<vmem>>, vector<1x4x16xf32>
    %708 = vector.shape_cast %707 : vector<1x4x16xf32> to vector<4x16xf32>
    %709 = vector.shape_cast %706 : vector<4x16xf32> to vector<1x4x16xf32>
    tpu.vector_store %arg16[%c0_542, %c76, %c0_543], %709 {strides = array<i32>} : memref<4x90x16xf32, #tpu.memory_space<vmem>>, vector<1x4x16xf32>,
    %710 = vector.extract_strided_slice %640 {offsets = [0, 0], sizes = [4, 16], strides = [1, 1]} : vector<39x16xf32> to vector<4x16xf32>
    %c3_544 = arith.constant 3 : index
    %c10_545 = arith.constant 10 : index
    %c0_546 = arith.constant 0 : index
    %711 = vector.load %arg16[%c3_544, %c10_545, %c0_546] : memref<4x90x16xf32, #tpu.memory_space<vmem>>, vector<1x4x16xf32>
    %712 = vector.shape_cast %711 : vector<1x4x16xf32> to vector<4x16xf32>
    %713 = vector.shape_cast %710 : vector<4x16xf32> to vector<1x4x16xf32>
    tpu.vector_store %arg16[%c3_544, %c10_545, %c0_546], %713 {strides = array<i32>} : memref<4x90x16xf32, #tpu.memory_space<vmem>>, vector<1x4x16xf32>,
    %714 = vector.extract_strided_slice %640 {offsets = [5, 0], sizes = [4, 16], strides = [1, 1]} : vector<39x16xf32> to vector<4x16xf32>
    %c3_547 = arith.constant 3 : index
    %c20_548 = arith.constant 20 : index
    %c0_549 = arith.constant 0 : index
    %715 = vector.load %arg16[%c3_547, %c20_548, %c0_549] : memref<4x90x16xf32, #tpu.memory_space<vmem>>, vector<1x4x16xf32>
    %716 = vector.shape_cast %715 : vector<1x4x16xf32> to vector<4x16xf32>
    %717 = vector.shape_cast %714 : vector<4x16xf32> to vector<1x4x16xf32>
    tpu.vector_store %arg16[%c3_547, %c20_548, %c0_549], %717 {strides = array<i32>} : memref<4x90x16xf32, #tpu.memory_space<vmem>>, vector<1x4x16xf32>,
    %718 = vector.extract_strided_slice %640 {offsets = [10, 0], sizes = [4, 16], strides = [1, 1]} : vector<39x16xf32> to vector<4x16xf32>
    %c3_550 = arith.constant 3 : index
    %c30_551 = arith.constant 30 : index
    %c0_552 = arith.constant 0 : index
    %719 = vector.load %arg16[%c3_550, %c30_551, %c0_552] : memref<4x90x16xf32, #tpu.memory_space<vmem>>, vector<1x4x16xf32>
    %720 = vector.shape_cast %719 : vector<1x4x16xf32> to vector<4x16xf32>
    %721 = vector.shape_cast %718 : vector<4x16xf32> to vector<1x4x16xf32>
    tpu.vector_store %arg16[%c3_550, %c30_551, %c0_552], %721 {strides = array<i32>} : memref<4x90x16xf32, #tpu.memory_space<vmem>>, vector<1x4x16xf32>,
    %722 = vector.extract_strided_slice %640 {offsets = [15, 0], sizes = [4, 16], strides = [1, 1]} : vector<39x16xf32> to vector<4x16xf32>
    %c3_553 = arith.constant 3 : index
    %c40_554 = arith.constant 40 : index
    %c0_555 = arith.constant 0 : index
    %723 = vector.load %arg16[%c3_553, %c40_554, %c0_555] : memref<4x90x16xf32, #tpu.memory_space<vmem>>, vector<1x4x16xf32>
    %724 = vector.shape_cast %723 : vector<1x4x16xf32> to vector<4x16xf32>
    %725 = vector.shape_cast %722 : vector<4x16xf32> to vector<1x4x16xf32>
    tpu.vector_store %arg16[%c3_553, %c40_554, %c0_555], %725 {strides = array<i32>} : memref<4x90x16xf32, #tpu.memory_space<vmem>>, vector<1x4x16xf32>,
    %726 = vector.extract_strided_slice %640 {offsets = [20, 0], sizes = [4, 16], strides = [1, 1]} : vector<39x16xf32> to vector<4x16xf32>
    %c3_556 = arith.constant 3 : index
    %c50_557 = arith.constant 50 : index
    %c0_558 = arith.constant 0 : index
    %727 = vector.load %arg16[%c3_556, %c50_557, %c0_558] : memref<4x90x16xf32, #tpu.memory_space<vmem>>, vector<1x4x16xf32>
    %728 = vector.shape_cast %727 : vector<1x4x16xf32> to vector<4x16xf32>
    %729 = vector.shape_cast %726 : vector<4x16xf32> to vector<1x4x16xf32>
    tpu.vector_store %arg16[%c3_556, %c50_557, %c0_558], %729 {strides = array<i32>} : memref<4x90x16xf32, #tpu.memory_space<vmem>>, vector<1x4x16xf32>,
    %730 = vector.extract_strided_slice %640 {offsets = [25, 0], sizes = [4, 16], strides = [1, 1]} : vector<39x16xf32> to vector<4x16xf32>
    %c3_559 = arith.constant 3 : index
    %c60_560 = arith.constant 60 : index
    %c0_561 = arith.constant 0 : index
    %731 = vector.load %arg16[%c3_559, %c60_560, %c0_561] : memref<4x90x16xf32, #tpu.memory_space<vmem>>, vector<1x4x16xf32>
    %732 = vector.shape_cast %731 : vector<1x4x16xf32> to vector<4x16xf32>
    %733 = vector.shape_cast %730 : vector<4x16xf32> to vector<1x4x16xf32>
    tpu.vector_store %arg16[%c3_559, %c60_560, %c0_561], %733 {strides = array<i32>} : memref<4x90x16xf32, #tpu.memory_space<vmem>>, vector<1x4x16xf32>,
    %734 = vector.extract_strided_slice %640 {offsets = [30, 0], sizes = [4, 16], strides = [1, 1]} : vector<39x16xf32> to vector<4x16xf32>
    %c3_562 = arith.constant 3 : index
    %c70_563 = arith.constant 70 : index
    %c0_564 = arith.constant 0 : index
    %735 = vector.load %arg16[%c3_562, %c70_563, %c0_564] : memref<4x90x16xf32, #tpu.memory_space<vmem>>, vector<1x4x16xf32>
    %736 = vector.shape_cast %735 : vector<1x4x16xf32> to vector<4x16xf32>
    %737 = vector.shape_cast %734 : vector<4x16xf32> to vector<1x4x16xf32>
    tpu.vector_store %arg16[%c3_562, %c70_563, %c0_564], %737 {strides = array<i32>} : memref<4x90x16xf32, #tpu.memory_space<vmem>>, vector<1x4x16xf32>,
    %738 = vector.extract_strided_slice %640 {offsets = [35, 0], sizes = [4, 16], strides = [1, 1]} : vector<39x16xf32> to vector<4x16xf32>
    %c3_565 = arith.constant 3 : index
    %c80_566 = arith.constant 80 : index
    %c0_567 = arith.constant 0 : index
    %739 = vector.load %arg16[%c3_565, %c80_566, %c0_567] : memref<4x90x16xf32, #tpu.memory_space<vmem>>, vector<1x4x16xf32>
    %740 = vector.shape_cast %739 : vector<1x4x16xf32> to vector<4x16xf32>
    %741 = vector.shape_cast %738 : vector<4x16xf32> to vector<1x4x16xf32>
    tpu.vector_store %arg16[%c3_565, %c80_566, %c0_567], %741 {strides = array<i32>} : memref<4x90x16xf32, #tpu.memory_space<vmem>>, vector<1x4x16xf32>,
    %742 = vector.extract_strided_slice %645 {offsets = [0, 0], sizes = [4, 16], strides = [1, 1]} : vector<39x16xf32> to vector<4x16xf32>
    %c0_568 = arith.constant 0 : index
    %c11_569 = arith.constant 11 : index
    %c0_570 = arith.constant 0 : index
    %743 = vector.load %arg16[%c0_568, %c11_569, %c0_570] : memref<4x90x16xf32, #tpu.memory_space<vmem>>, vector<1x4x16xf32>
    %744 = vector.shape_cast %743 : vector<1x4x16xf32> to vector<4x16xf32>
    %745 = vector.shape_cast %742 : vector<4x16xf32> to vector<1x4x16xf32>
    tpu.vector_store %arg16[%c0_568, %c11_569, %c0_570], %745 {strides = array<i32>} : memref<4x90x16xf32, #tpu.memory_space<vmem>>, vector<1x4x16xf32>,
    %746 = vector.extract_strided_slice %645 {offsets = [5, 0], sizes = [4, 16], strides = [1, 1]} : vector<39x16xf32> to vector<4x16xf32>
    %c0_571 = arith.constant 0 : index
    %c21_572 = arith.constant 21 : index
    %c0_573 = arith.constant 0 : index
    %747 = vector.load %arg16[%c0_571, %c21_572, %c0_573] : memref<4x90x16xf32, #tpu.memory_space<vmem>>, vector<1x4x16xf32>
    %748 = vector.shape_cast %747 : vector<1x4x16xf32> to vector<4x16xf32>
    %749 = vector.shape_cast %746 : vector<4x16xf32> to vector<1x4x16xf32>
    tpu.vector_store %arg16[%c0_571, %c21_572, %c0_573], %749 {strides = array<i32>} : memref<4x90x16xf32, #tpu.memory_space<vmem>>, vector<1x4x16xf32>,
    %750 = vector.extract_strided_slice %645 {offsets = [10, 0], sizes = [4, 16], strides = [1, 1]} : vector<39x16xf32> to vector<4x16xf32>
    %c0_574 = arith.constant 0 : index
    %c31_575 = arith.constant 31 : index
    %c0_576 = arith.constant 0 : index
    %751 = vector.load %arg16[%c0_574, %c31_575, %c0_576] : memref<4x90x16xf32, #tpu.memory_space<vmem>>, vector<1x4x16xf32>
    %752 = vector.shape_cast %751 : vector<1x4x16xf32> to vector<4x16xf32>
    %753 = vector.shape_cast %750 : vector<4x16xf32> to vector<1x4x16xf32>
    tpu.vector_store %arg16[%c0_574, %c31_575, %c0_576], %753 {strides = array<i32>} : memref<4x90x16xf32, #tpu.memory_space<vmem>>, vector<1x4x16xf32>,
    %754 = vector.extract_strided_slice %645 {offsets = [15, 0], sizes = [4, 16], strides = [1, 1]} : vector<39x16xf32> to vector<4x16xf32>
    %c0_577 = arith.constant 0 : index
    %c41_578 = arith.constant 41 : index
    %c0_579 = arith.constant 0 : index
    %755 = vector.load %arg16[%c0_577, %c41_578, %c0_579] : memref<4x90x16xf32, #tpu.memory_space<vmem>>, vector<1x4x16xf32>
    %756 = vector.shape_cast %755 : vector<1x4x16xf32> to vector<4x16xf32>
    %757 = vector.shape_cast %754 : vector<4x16xf32> to vector<1x4x16xf32>
    tpu.vector_store %arg16[%c0_577, %c41_578, %c0_579], %757 {strides = array<i32>} : memref<4x90x16xf32, #tpu.memory_space<vmem>>, vector<1x4x16xf32>,
    %758 = vector.extract_strided_slice %645 {offsets = [20, 0], sizes = [4, 16], strides = [1, 1]} : vector<39x16xf32> to vector<4x16xf32>
    %c0_580 = arith.constant 0 : index
    %c51 = arith.constant 51 : index
    %c0_581 = arith.constant 0 : index
    %759 = vector.load %arg16[%c0_580, %c51, %c0_581] : memref<4x90x16xf32, #tpu.memory_space<vmem>>, vector<1x4x16xf32>
    %760 = vector.shape_cast %759 : vector<1x4x16xf32> to vector<4x16xf32>
    %761 = vector.shape_cast %758 : vector<4x16xf32> to vector<1x4x16xf32>
    tpu.vector_store %arg16[%c0_580, %c51, %c0_581], %761 {strides = array<i32>} : memref<4x90x16xf32, #tpu.memory_space<vmem>>, vector<1x4x16xf32>,
    %762 = vector.extract_strided_slice %645 {offsets = [25, 0], sizes = [4, 16], strides = [1, 1]} : vector<39x16xf32> to vector<4x16xf32>
    %c0_582 = arith.constant 0 : index
    %c61 = arith.constant 61 : index
    %c0_583 = arith.constant 0 : index
    %763 = vector.load %arg16[%c0_582, %c61, %c0_583] : memref<4x90x16xf32, #tpu.memory_space<vmem>>, vector<1x4x16xf32>
    %764 = vector.shape_cast %763 : vector<1x4x16xf32> to vector<4x16xf32>
    %765 = vector.shape_cast %762 : vector<4x16xf32> to vector<1x4x16xf32>
    tpu.vector_store %arg16[%c0_582, %c61, %c0_583], %765 {strides = array<i32>} : memref<4x90x16xf32, #tpu.memory_space<vmem>>, vector<1x4x16xf32>,
    %766 = vector.extract_strided_slice %645 {offsets = [30, 0], sizes = [4, 16], strides = [1, 1]} : vector<39x16xf32> to vector<4x16xf32>
    %c0_584 = arith.constant 0 : index
    %c71 = arith.constant 71 : index
    %c0_585 = arith.constant 0 : index
    %767 = vector.load %arg16[%c0_584, %c71, %c0_585] : memref<4x90x16xf32, #tpu.memory_space<vmem>>, vector<1x4x16xf32>
    %768 = vector.shape_cast %767 : vector<1x4x16xf32> to vector<4x16xf32>
    %769 = vector.shape_cast %766 : vector<4x16xf32> to vector<1x4x16xf32>
    tpu.vector_store %arg16[%c0_584, %c71, %c0_585], %769 {strides = array<i32>} : memref<4x90x16xf32, #tpu.memory_space<vmem>>, vector<1x4x16xf32>,
    %770 = vector.extract_strided_slice %645 {offsets = [35, 0], sizes = [4, 16], strides = [1, 1]} : vector<39x16xf32> to vector<4x16xf32>
    %c0_586 = arith.constant 0 : index
    %c81 = arith.constant 81 : index
    %c0_587 = arith.constant 0 : index
    %771 = vector.load %arg16[%c0_586, %c81, %c0_587] : memref<4x90x16xf32, #tpu.memory_space<vmem>>, vector<1x4x16xf32>
    %772 = vector.shape_cast %771 : vector<1x4x16xf32> to vector<4x16xf32>
    %773 = vector.shape_cast %770 : vector<4x16xf32> to vector<1x4x16xf32>
    tpu.vector_store %arg16[%c0_586, %c81, %c0_587], %773 {strides = array<i32>} : memref<4x90x16xf32, #tpu.memory_space<vmem>>, vector<1x4x16xf32>,
    %cst_588 = arith.constant 0.000000e+00 : f32
    %774 = vector.broadcast %cst_588 : f32 to vector<79x16xf32>
    %c0_589 = arith.constant 0 : index
    %c0_590 = arith.constant 0 : index
    %c0_591 = arith.constant 0 : index
    %775 = vector.load %arg16[%c0_589, %c0_590, %c0_591] : memref<4x90x16xf32, #tpu.memory_space<vmem>>, vector<1x79x16xf32>
    %776 = vector.shape_cast %775 : vector<1x79x16xf32> to vector<79x16xf32>
    %c0_592 = arith.constant 0 : index
    %c0_593 = arith.constant 0 : index
    %c0_594 = arith.constant 0 : index
    %777 = vector.load %arg10[%c0_592, %c0_593, %c0_594] : memref<9x1x16xf32, #tpu.memory_space<vmem>>, vector<1x1x16xf32>
    %778 = vector.shape_cast %777 : vector<1x1x16xf32> to vector<1x16xf32>
    %779 = vector.broadcast %778 : vector<1x16xf32> to vector<79x16xf32>
    %780 = arith.mulf %776, %779 : vector<79x16xf32>
    %781 = arith.addf %774, %780 : vector<79x16xf32>
    %c1_595 = arith.constant 1 : index
    %c0_596 = arith.constant 0 : index
    %c0_597 = arith.constant 0 : index
    %782 = vector.load %arg16[%c1_595, %c0_596, %c0_597] : memref<4x90x16xf32, #tpu.memory_space<vmem>>, vector<1x79x16xf32>
    %783 = vector.shape_cast %782 : vector<1x79x16xf32> to vector<79x16xf32>
    %c1_598 = arith.constant 1 : index
    %c0_599 = arith.constant 0 : index
    %c0_600 = arith.constant 0 : index
    %784 = vector.load %arg10[%c1_598, %c0_599, %c0_600] : memref<9x1x16xf32, #tpu.memory_space<vmem>>, vector<1x1x16xf32>
    %785 = vector.shape_cast %784 : vector<1x1x16xf32> to vector<1x16xf32>
    %786 = vector.broadcast %785 : vector<1x16xf32> to vector<79x16xf32>
    %787 = arith.mulf %783, %786 : vector<79x16xf32>
    %788 = arith.addf %781, %787 : vector<79x16xf32>
    %c2_601 = arith.constant 2 : index
    %c0_602 = arith.constant 0 : index
    %c0_603 = arith.constant 0 : index
    %789 = vector.load %arg16[%c2_601, %c0_602, %c0_603] : memref<4x90x16xf32, #tpu.memory_space<vmem>>, vector<1x79x16xf32>
    %790 = vector.shape_cast %789 : vector<1x79x16xf32> to vector<79x16xf32>
    %c2_604 = arith.constant 2 : index
    %c0_605 = arith.constant 0 : index
    %c0_606 = arith.constant 0 : index
    %791 = vector.load %arg10[%c2_604, %c0_605, %c0_606] : memref<9x1x16xf32, #tpu.memory_space<vmem>>, vector<1x1x16xf32>
    %792 = vector.shape_cast %791 : vector<1x1x16xf32> to vector<1x16xf32>
    %793 = vector.broadcast %792 : vector<1x16xf32> to vector<79x16xf32>
    %794 = arith.mulf %790, %793 : vector<79x16xf32>
    %795 = arith.addf %788, %794 : vector<79x16xf32>
    %c0_607 = arith.constant 0 : index
    %c5_608 = arith.constant 5 : index
    %c0_609 = arith.constant 0 : index
    %796 = vector.load %arg16[%c0_607, %c5_608, %c0_609] : memref<4x90x16xf32, #tpu.memory_space<vmem>>, vector<1x79x16xf32>
    %797 = vector.shape_cast %796 : vector<1x79x16xf32> to vector<79x16xf32>
    %c3_610 = arith.constant 3 : index
    %c0_611 = arith.constant 0 : index
    %c0_612 = arith.constant 0 : index
    %798 = vector.load %arg10[%c3_610, %c0_611, %c0_612] : memref<9x1x16xf32, #tpu.memory_space<vmem>>, vector<1x1x16xf32>
    %799 = vector.shape_cast %798 : vector<1x1x16xf32> to vector<1x16xf32>
    %800 = vector.broadcast %799 : vector<1x16xf32> to vector<79x16xf32>
    %801 = arith.mulf %797, %800 : vector<79x16xf32>
    %802 = arith.addf %795, %801 : vector<79x16xf32>
    %c1_613 = arith.constant 1 : index
    %c5_614 = arith.constant 5 : index
    %c0_615 = arith.constant 0 : index
    %803 = vector.load %arg16[%c1_613, %c5_614, %c0_615] : memref<4x90x16xf32, #tpu.memory_space<vmem>>, vector<1x79x16xf32>
    %804 = vector.shape_cast %803 : vector<1x79x16xf32> to vector<79x16xf32>
    %c4_616 = arith.constant 4 : index
    %c0_617 = arith.constant 0 : index
    %c0_618 = arith.constant 0 : index
    %805 = vector.load %arg10[%c4_616, %c0_617, %c0_618] : memref<9x1x16xf32, #tpu.memory_space<vmem>>, vector<1x1x16xf32>
    %806 = vector.shape_cast %805 : vector<1x1x16xf32> to vector<1x16xf32>
    %807 = vector.broadcast %806 : vector<1x16xf32> to vector<79x16xf32>
    %808 = arith.mulf %804, %807 : vector<79x16xf32>
    %809 = arith.addf %802, %808 : vector<79x16xf32>
    %c2_619 = arith.constant 2 : index
    %c5_620 = arith.constant 5 : index
    %c0_621 = arith.constant 0 : index
    %810 = vector.load %arg16[%c2_619, %c5_620, %c0_621] : memref<4x90x16xf32, #tpu.memory_space<vmem>>, vector<1x79x16xf32>
    %811 = vector.shape_cast %810 : vector<1x79x16xf32> to vector<79x16xf32>
    %c5_622 = arith.constant 5 : index
    %c0_623 = arith.constant 0 : index
    %c0_624 = arith.constant 0 : index
    %812 = vector.load %arg10[%c5_622, %c0_623, %c0_624] : memref<9x1x16xf32, #tpu.memory_space<vmem>>, vector<1x1x16xf32>
    %813 = vector.shape_cast %812 : vector<1x1x16xf32> to vector<1x16xf32>
    %814 = vector.broadcast %813 : vector<1x16xf32> to vector<79x16xf32>
    %815 = arith.mulf %811, %814 : vector<79x16xf32>
    %816 = arith.addf %809, %815 : vector<79x16xf32>
    %c0_625 = arith.constant 0 : index
    %c10_626 = arith.constant 10 : index
    %c0_627 = arith.constant 0 : index
    %817 = vector.load %arg16[%c0_625, %c10_626, %c0_627] : memref<4x90x16xf32, #tpu.memory_space<vmem>>, vector<1x79x16xf32>
    %818 = vector.shape_cast %817 : vector<1x79x16xf32> to vector<79x16xf32>
    %c6_628 = arith.constant 6 : index
    %c0_629 = arith.constant 0 : index
    %c0_630 = arith.constant 0 : index
    %819 = vector.load %arg10[%c6_628, %c0_629, %c0_630] : memref<9x1x16xf32, #tpu.memory_space<vmem>>, vector<1x1x16xf32>
    %820 = vector.shape_cast %819 : vector<1x1x16xf32> to vector<1x16xf32>
    %821 = vector.broadcast %820 : vector<1x16xf32> to vector<79x16xf32>
    %822 = arith.mulf %818, %821 : vector<79x16xf32>
    %823 = arith.addf %816, %822 : vector<79x16xf32>
    %c1_631 = arith.constant 1 : index
    %c10_632 = arith.constant 10 : index
    %c0_633 = arith.constant 0 : index
    %824 = vector.load %arg16[%c1_631, %c10_632, %c0_633] : memref<4x90x16xf32, #tpu.memory_space<vmem>>, vector<1x79x16xf32>
    %825 = vector.shape_cast %824 : vector<1x79x16xf32> to vector<79x16xf32>
    %c7_634 = arith.constant 7 : index
    %c0_635 = arith.constant 0 : index
    %c0_636 = arith.constant 0 : index
    %826 = vector.load %arg10[%c7_634, %c0_635, %c0_636] : memref<9x1x16xf32, #tpu.memory_space<vmem>>, vector<1x1x16xf32>
    %827 = vector.shape_cast %826 : vector<1x1x16xf32> to vector<1x16xf32>
    %828 = vector.broadcast %827 : vector<1x16xf32> to vector<79x16xf32>
    %829 = arith.mulf %825, %828 : vector<79x16xf32>
    %830 = arith.addf %823, %829 : vector<79x16xf32>
    %c2_637 = arith.constant 2 : index
    %c10_638 = arith.constant 10 : index
    %c0_639 = arith.constant 0 : index
    %831 = vector.load %arg16[%c2_637, %c10_638, %c0_639] : memref<4x90x16xf32, #tpu.memory_space<vmem>>, vector<1x79x16xf32>
    %832 = vector.shape_cast %831 : vector<1x79x16xf32> to vector<79x16xf32>
    %c8_640 = arith.constant 8 : index
    %c0_641 = arith.constant 0 : index
    %c0_642 = arith.constant 0 : index
    %833 = vector.load %arg10[%c8_640, %c0_641, %c0_642] : memref<9x1x16xf32, #tpu.memory_space<vmem>>, vector<1x1x16xf32>
    %834 = vector.shape_cast %833 : vector<1x1x16xf32> to vector<1x16xf32>
    %835 = vector.broadcast %834 : vector<1x16xf32> to vector<79x16xf32>
    %836 = arith.mulf %832, %835 : vector<79x16xf32>
    %837 = arith.addf %830, %836 : vector<79x16xf32>
    %cst_643 = arith.constant dense<0.000000e+00> : vector<79xf32>
    %838 = vector.multi_reduction <add>, %837, %cst_643 [1] : vector<79x16xf32> to vector<79xf32>
    %839 = vector.shape_cast %838 : vector<79xf32> to vector<79x1xf32>
    %c0_644 = arith.constant 0 : index
    %c0_645 = arith.constant 0 : index
    %840 = vector.load %arg11[%c0_644, %c0_645] : memref<1x1xf32, #tpu.memory_space<vmem>>, vector<1x1xf32>
    %841 = vector.broadcast %840 : vector<1x1xf32> to vector<79x1xf32>
    %842 = arith.addf %839, %841 : vector<79x1xf32>
    %cst_646 = arith.constant 0.000000e+00 : f32
    %843 = vector.broadcast %cst_646 : f32 to vector<79x1xf32>
    %844 = arith.maximumf %842, %843 : vector<79x1xf32>
    %cst_647 = arith.constant 0.000000e+00 : f32
    %845 = vector.broadcast %cst_647 : f32 to vector<79x16xf32>
    %c1_648 = arith.constant 1 : index
    %c0_649 = arith.constant 0 : index
    %c0_650 = arith.constant 0 : index
    %846 = vector.load %arg16[%c1_648, %c0_649, %c0_650] : memref<4x90x16xf32, #tpu.memory_space<vmem>>, vector<1x79x16xf32>
    %847 = vector.shape_cast %846 : vector<1x79x16xf32> to vector<79x16xf32>
    %c0_651 = arith.constant 0 : index
    %c0_652 = arith.constant 0 : index
    %c0_653 = arith.constant 0 : index
    %848 = vector.load %arg10[%c0_651, %c0_652, %c0_653] : memref<9x1x16xf32, #tpu.memory_space<vmem>>, vector<1x1x16xf32>
    %849 = vector.shape_cast %848 : vector<1x1x16xf32> to vector<1x16xf32>
    %850 = vector.broadcast %849 : vector<1x16xf32> to vector<79x16xf32>
    %851 = arith.mulf %847, %850 : vector<79x16xf32>
    %852 = arith.addf %845, %851 : vector<79x16xf32>
    %c2_654 = arith.constant 2 : index
    %c0_655 = arith.constant 0 : index
    %c0_656 = arith.constant 0 : index
    %853 = vector.load %arg16[%c2_654, %c0_655, %c0_656] : memref<4x90x16xf32, #tpu.memory_space<vmem>>, vector<1x79x16xf32>
    %854 = vector.shape_cast %853 : vector<1x79x16xf32> to vector<79x16xf32>
    %c1_657 = arith.constant 1 : index
    %c0_658 = arith.constant 0 : index
    %c0_659 = arith.constant 0 : index
    %855 = vector.load %arg10[%c1_657, %c0_658, %c0_659] : memref<9x1x16xf32, #tpu.memory_space<vmem>>, vector<1x1x16xf32>
    %856 = vector.shape_cast %855 : vector<1x1x16xf32> to vector<1x16xf32>
    %857 = vector.broadcast %856 : vector<1x16xf32> to vector<79x16xf32>
    %858 = arith.mulf %854, %857 : vector<79x16xf32>
    %859 = arith.addf %852, %858 : vector<79x16xf32>
    %c3_660 = arith.constant 3 : index
    %c0_661 = arith.constant 0 : index
    %c0_662 = arith.constant 0 : index
    %860 = vector.load %arg16[%c3_660, %c0_661, %c0_662] : memref<4x90x16xf32, #tpu.memory_space<vmem>>, vector<1x79x16xf32>
    %861 = vector.shape_cast %860 : vector<1x79x16xf32> to vector<79x16xf32>
    %c2_663 = arith.constant 2 : index
    %c0_664 = arith.constant 0 : index
    %c0_665 = arith.constant 0 : index
    %862 = vector.load %arg10[%c2_663, %c0_664, %c0_665] : memref<9x1x16xf32, #tpu.memory_space<vmem>>, vector<1x1x16xf32>
    %863 = vector.shape_cast %862 : vector<1x1x16xf32> to vector<1x16xf32>
    %864 = vector.broadcast %863 : vector<1x16xf32> to vector<79x16xf32>
    %865 = arith.mulf %861, %864 : vector<79x16xf32>
    %866 = arith.addf %859, %865 : vector<79x16xf32>
    %c1_666 = arith.constant 1 : index
    %c5_667 = arith.constant 5 : index
    %c0_668 = arith.constant 0 : index
    %867 = vector.load %arg16[%c1_666, %c5_667, %c0_668] : memref<4x90x16xf32, #tpu.memory_space<vmem>>, vector<1x79x16xf32>
    %868 = vector.shape_cast %867 : vector<1x79x16xf32> to vector<79x16xf32>
    %c3_669 = arith.constant 3 : index
    %c0_670 = arith.constant 0 : index
    %c0_671 = arith.constant 0 : index
    %869 = vector.load %arg10[%c3_669, %c0_670, %c0_671] : memref<9x1x16xf32, #tpu.memory_space<vmem>>, vector<1x1x16xf32>
    %870 = vector.shape_cast %869 : vector<1x1x16xf32> to vector<1x16xf32>
    %871 = vector.broadcast %870 : vector<1x16xf32> to vector<79x16xf32>
    %872 = arith.mulf %868, %871 : vector<79x16xf32>
    %873 = arith.addf %866, %872 : vector<79x16xf32>
    %c2_672 = arith.constant 2 : index
    %c5_673 = arith.constant 5 : index
    %c0_674 = arith.constant 0 : index
    %874 = vector.load %arg16[%c2_672, %c5_673, %c0_674] : memref<4x90x16xf32, #tpu.memory_space<vmem>>, vector<1x79x16xf32>
    %875 = vector.shape_cast %874 : vector<1x79x16xf32> to vector<79x16xf32>
    %c4_675 = arith.constant 4 : index
    %c0_676 = arith.constant 0 : index
    %c0_677 = arith.constant 0 : index
    %876 = vector.load %arg10[%c4_675, %c0_676, %c0_677] : memref<9x1x16xf32, #tpu.memory_space<vmem>>, vector<1x1x16xf32>
    %877 = vector.shape_cast %876 : vector<1x1x16xf32> to vector<1x16xf32>
    %878 = vector.broadcast %877 : vector<1x16xf32> to vector<79x16xf32>
    %879 = arith.mulf %875, %878 : vector<79x16xf32>
    %880 = arith.addf %873, %879 : vector<79x16xf32>
    %c3_678 = arith.constant 3 : index
    %c5_679 = arith.constant 5 : index
    %c0_680 = arith.constant 0 : index
    %881 = vector.load %arg16[%c3_678, %c5_679, %c0_680] : memref<4x90x16xf32, #tpu.memory_space<vmem>>, vector<1x79x16xf32>
    %882 = vector.shape_cast %881 : vector<1x79x16xf32> to vector<79x16xf32>
    %c5_681 = arith.constant 5 : index
    %c0_682 = arith.constant 0 : index
    %c0_683 = arith.constant 0 : index
    %883 = vector.load %arg10[%c5_681, %c0_682, %c0_683] : memref<9x1x16xf32, #tpu.memory_space<vmem>>, vector<1x1x16xf32>
    %884 = vector.shape_cast %883 : vector<1x1x16xf32> to vector<1x16xf32>
    %885 = vector.broadcast %884 : vector<1x16xf32> to vector<79x16xf32>
    %886 = arith.mulf %882, %885 : vector<79x16xf32>
    %887 = arith.addf %880, %886 : vector<79x16xf32>
    %c1_684 = arith.constant 1 : index
    %c10_685 = arith.constant 10 : index
    %c0_686 = arith.constant 0 : index
    %888 = vector.load %arg16[%c1_684, %c10_685, %c0_686] : memref<4x90x16xf32, #tpu.memory_space<vmem>>, vector<1x79x16xf32>
    %889 = vector.shape_cast %888 : vector<1x79x16xf32> to vector<79x16xf32>
    %c6_687 = arith.constant 6 : index
    %c0_688 = arith.constant 0 : index
    %c0_689 = arith.constant 0 : index
    %890 = vector.load %arg10[%c6_687, %c0_688, %c0_689] : memref<9x1x16xf32, #tpu.memory_space<vmem>>, vector<1x1x16xf32>
    %891 = vector.shape_cast %890 : vector<1x1x16xf32> to vector<1x16xf32>
    %892 = vector.broadcast %891 : vector<1x16xf32> to vector<79x16xf32>
    %893 = arith.mulf %889, %892 : vector<79x16xf32>
    %894 = arith.addf %887, %893 : vector<79x16xf32>
    %c2_690 = arith.constant 2 : index
    %c10_691 = arith.constant 10 : index
    %c0_692 = arith.constant 0 : index
    %895 = vector.load %arg16[%c2_690, %c10_691, %c0_692] : memref<4x90x16xf32, #tpu.memory_space<vmem>>, vector<1x79x16xf32>
    %896 = vector.shape_cast %895 : vector<1x79x16xf32> to vector<79x16xf32>
    %c7_693 = arith.constant 7 : index
    %c0_694 = arith.constant 0 : index
    %c0_695 = arith.constant 0 : index
    %897 = vector.load %arg10[%c7_693, %c0_694, %c0_695] : memref<9x1x16xf32, #tpu.memory_space<vmem>>, vector<1x1x16xf32>
    %898 = vector.shape_cast %897 : vector<1x1x16xf32> to vector<1x16xf32>
    %899 = vector.broadcast %898 : vector<1x16xf32> to vector<79x16xf32>
    %900 = arith.mulf %896, %899 : vector<79x16xf32>
    %901 = arith.addf %894, %900 : vector<79x16xf32>
    %c3_696 = arith.constant 3 : index
    %c10_697 = arith.constant 10 : index
    %c0_698 = arith.constant 0 : index
    %902 = vector.load %arg16[%c3_696, %c10_697, %c0_698] : memref<4x90x16xf32, #tpu.memory_space<vmem>>, vector<1x79x16xf32>
    %903 = vector.shape_cast %902 : vector<1x79x16xf32> to vector<79x16xf32>
    %c8_699 = arith.constant 8 : index
    %c0_700 = arith.constant 0 : index
    %c0_701 = arith.constant 0 : index
    %904 = vector.load %arg10[%c8_699, %c0_700, %c0_701] : memref<9x1x16xf32, #tpu.memory_space<vmem>>, vector<1x1x16xf32>
    %905 = vector.shape_cast %904 : vector<1x1x16xf32> to vector<1x16xf32>
    %906 = vector.broadcast %905 : vector<1x16xf32> to vector<79x16xf32>
    %907 = arith.mulf %903, %906 : vector<79x16xf32>
    %908 = arith.addf %901, %907 : vector<79x16xf32>
    %cst_702 = arith.constant dense<0.000000e+00> : vector<79xf32>
    %909 = vector.multi_reduction <add>, %908, %cst_702 [1] : vector<79x16xf32> to vector<79xf32>
    %910 = vector.shape_cast %909 : vector<79xf32> to vector<79x1xf32>
    %c0_703 = arith.constant 0 : index
    %c0_704 = arith.constant 0 : index
    %911 = vector.load %arg11[%c0_703, %c0_704] : memref<1x1xf32, #tpu.memory_space<vmem>>, vector<1x1xf32>
    %912 = vector.broadcast %911 : vector<1x1xf32> to vector<79x1xf32>
    %913 = arith.addf %910, %912 : vector<79x1xf32>
    %cst_705 = arith.constant 0.000000e+00 : f32
    %914 = vector.broadcast %cst_705 : f32 to vector<79x1xf32>
    %915 = arith.maximumf %913, %914 : vector<79x1xf32>
    %cst_706 = arith.constant 0.000000e+00 : f32
    %916 = vector.broadcast %cst_706 : f32 to vector<79x16xf32>
    %c2_707 = arith.constant 2 : index
    %c0_708 = arith.constant 0 : index
    %c0_709 = arith.constant 0 : index
    %917 = vector.load %arg16[%c2_707, %c0_708, %c0_709] : memref<4x90x16xf32, #tpu.memory_space<vmem>>, vector<1x79x16xf32>
    %918 = vector.shape_cast %917 : vector<1x79x16xf32> to vector<79x16xf32>
    %c0_710 = arith.constant 0 : index
    %c0_711 = arith.constant 0 : index
    %c0_712 = arith.constant 0 : index
    %919 = vector.load %arg10[%c0_710, %c0_711, %c0_712] : memref<9x1x16xf32, #tpu.memory_space<vmem>>, vector<1x1x16xf32>
    %920 = vector.shape_cast %919 : vector<1x1x16xf32> to vector<1x16xf32>
    %921 = vector.broadcast %920 : vector<1x16xf32> to vector<79x16xf32>
    %922 = arith.mulf %918, %921 : vector<79x16xf32>
    %923 = arith.addf %916, %922 : vector<79x16xf32>
    %c3_713 = arith.constant 3 : index
    %c0_714 = arith.constant 0 : index
    %c0_715 = arith.constant 0 : index
    %924 = vector.load %arg16[%c3_713, %c0_714, %c0_715] : memref<4x90x16xf32, #tpu.memory_space<vmem>>, vector<1x79x16xf32>
    %925 = vector.shape_cast %924 : vector<1x79x16xf32> to vector<79x16xf32>
    %c1_716 = arith.constant 1 : index
    %c0_717 = arith.constant 0 : index
    %c0_718 = arith.constant 0 : index
    %926 = vector.load %arg10[%c1_716, %c0_717, %c0_718] : memref<9x1x16xf32, #tpu.memory_space<vmem>>, vector<1x1x16xf32>
    %927 = vector.shape_cast %926 : vector<1x1x16xf32> to vector<1x16xf32>
    %928 = vector.broadcast %927 : vector<1x16xf32> to vector<79x16xf32>
    %929 = arith.mulf %925, %928 : vector<79x16xf32>
    %930 = arith.addf %923, %929 : vector<79x16xf32>
    %c0_719 = arith.constant 0 : index
    %c1_720 = arith.constant 1 : index
    %c0_721 = arith.constant 0 : index
    %931 = vector.load %arg16[%c0_719, %c1_720, %c0_721] : memref<4x90x16xf32, #tpu.memory_space<vmem>>, vector<1x79x16xf32>
    %932 = vector.shape_cast %931 : vector<1x79x16xf32> to vector<79x16xf32>
    %c2_722 = arith.constant 2 : index
    %c0_723 = arith.constant 0 : index
    %c0_724 = arith.constant 0 : index
    %933 = vector.load %arg10[%c2_722, %c0_723, %c0_724] : memref<9x1x16xf32, #tpu.memory_space<vmem>>, vector<1x1x16xf32>
    %934 = vector.shape_cast %933 : vector<1x1x16xf32> to vector<1x16xf32>
    %935 = vector.broadcast %934 : vector<1x16xf32> to vector<79x16xf32>
    %936 = arith.mulf %932, %935 : vector<79x16xf32>
    %937 = arith.addf %930, %936 : vector<79x16xf32>
    %c2_725 = arith.constant 2 : index
    %c5_726 = arith.constant 5 : index
    %c0_727 = arith.constant 0 : index
    %938 = vector.load %arg16[%c2_725, %c5_726, %c0_727] : memref<4x90x16xf32, #tpu.memory_space<vmem>>, vector<1x79x16xf32>
    %939 = vector.shape_cast %938 : vector<1x79x16xf32> to vector<79x16xf32>
    %c3_728 = arith.constant 3 : index
    %c0_729 = arith.constant 0 : index
    %c0_730 = arith.constant 0 : index
    %940 = vector.load %arg10[%c3_728, %c0_729, %c0_730] : memref<9x1x16xf32, #tpu.memory_space<vmem>>, vector<1x1x16xf32>
    %941 = vector.shape_cast %940 : vector<1x1x16xf32> to vector<1x16xf32>
    %942 = vector.broadcast %941 : vector<1x16xf32> to vector<79x16xf32>
    %943 = arith.mulf %939, %942 : vector<79x16xf32>
    %944 = arith.addf %937, %943 : vector<79x16xf32>
    %c3_731 = arith.constant 3 : index
    %c5_732 = arith.constant 5 : index
    %c0_733 = arith.constant 0 : index
    %945 = vector.load %arg16[%c3_731, %c5_732, %c0_733] : memref<4x90x16xf32, #tpu.memory_space<vmem>>, vector<1x79x16xf32>
    %946 = vector.shape_cast %945 : vector<1x79x16xf32> to vector<79x16xf32>
    %c4_734 = arith.constant 4 : index
    %c0_735 = arith.constant 0 : index
    %c0_736 = arith.constant 0 : index
    %947 = vector.load %arg10[%c4_734, %c0_735, %c0_736] : memref<9x1x16xf32, #tpu.memory_space<vmem>>, vector<1x1x16xf32>
    %948 = vector.shape_cast %947 : vector<1x1x16xf32> to vector<1x16xf32>
    %949 = vector.broadcast %948 : vector<1x16xf32> to vector<79x16xf32>
    %950 = arith.mulf %946, %949 : vector<79x16xf32>
    %951 = arith.addf %944, %950 : vector<79x16xf32>
    %c0_737 = arith.constant 0 : index
    %c6_738 = arith.constant 6 : index
    %c0_739 = arith.constant 0 : index
    %952 = vector.load %arg16[%c0_737, %c6_738, %c0_739] : memref<4x90x16xf32, #tpu.memory_space<vmem>>, vector<1x79x16xf32>
    %953 = vector.shape_cast %952 : vector<1x79x16xf32> to vector<79x16xf32>
    %c5_740 = arith.constant 5 : index
    %c0_741 = arith.constant 0 : index
    %c0_742 = arith.constant 0 : index
    %954 = vector.load %arg10[%c5_740, %c0_741, %c0_742] : memref<9x1x16xf32, #tpu.memory_space<vmem>>, vector<1x1x16xf32>
    %955 = vector.shape_cast %954 : vector<1x1x16xf32> to vector<1x16xf32>
    %956 = vector.broadcast %955 : vector<1x16xf32> to vector<79x16xf32>
    %957 = arith.mulf %953, %956 : vector<79x16xf32>
    %958 = arith.addf %951, %957 : vector<79x16xf32>
    %c2_743 = arith.constant 2 : index
    %c10_744 = arith.constant 10 : index
    %c0_745 = arith.constant 0 : index
    %959 = vector.load %arg16[%c2_743, %c10_744, %c0_745] : memref<4x90x16xf32, #tpu.memory_space<vmem>>, vector<1x79x16xf32>
    %960 = vector.shape_cast %959 : vector<1x79x16xf32> to vector<79x16xf32>
    %c6_746 = arith.constant 6 : index
    %c0_747 = arith.constant 0 : index
    %c0_748 = arith.constant 0 : index
    %961 = vector.load %arg10[%c6_746, %c0_747, %c0_748] : memref<9x1x16xf32, #tpu.memory_space<vmem>>, vector<1x1x16xf32>
    %962 = vector.shape_cast %961 : vector<1x1x16xf32> to vector<1x16xf32>
    %963 = vector.broadcast %962 : vector<1x16xf32> to vector<79x16xf32>
    %964 = arith.mulf %960, %963 : vector<79x16xf32>
    %965 = arith.addf %958, %964 : vector<79x16xf32>
    %c3_749 = arith.constant 3 : index
    %c10_750 = arith.constant 10 : index
    %c0_751 = arith.constant 0 : index
    %966 = vector.load %arg16[%c3_749, %c10_750, %c0_751] : memref<4x90x16xf32, #tpu.memory_space<vmem>>, vector<1x79x16xf32>
    %967 = vector.shape_cast %966 : vector<1x79x16xf32> to vector<79x16xf32>
    %c7_752 = arith.constant 7 : index
    %c0_753 = arith.constant 0 : index
    %c0_754 = arith.constant 0 : index
    %968 = vector.load %arg10[%c7_752, %c0_753, %c0_754] : memref<9x1x16xf32, #tpu.memory_space<vmem>>, vector<1x1x16xf32>
    %969 = vector.shape_cast %968 : vector<1x1x16xf32> to vector<1x16xf32>
    %970 = vector.broadcast %969 : vector<1x16xf32> to vector<79x16xf32>
    %971 = arith.mulf %967, %970 : vector<79x16xf32>
    %972 = arith.addf %965, %971 : vector<79x16xf32>
    %c0_755 = arith.constant 0 : index
    %c11_756 = arith.constant 11 : index
    %c0_757 = arith.constant 0 : index
    %973 = vector.load %arg16[%c0_755, %c11_756, %c0_757] : memref<4x90x16xf32, #tpu.memory_space<vmem>>, vector<1x79x16xf32>
    %974 = vector.shape_cast %973 : vector<1x79x16xf32> to vector<79x16xf32>
    %c8_758 = arith.constant 8 : index
    %c0_759 = arith.constant 0 : index
    %c0_760 = arith.constant 0 : index
    %975 = vector.load %arg10[%c8_758, %c0_759, %c0_760] : memref<9x1x16xf32, #tpu.memory_space<vmem>>, vector<1x1x16xf32>
    %976 = vector.shape_cast %975 : vector<1x1x16xf32> to vector<1x16xf32>
    %977 = vector.broadcast %976 : vector<1x16xf32> to vector<79x16xf32>
    %978 = arith.mulf %974, %977 : vector<79x16xf32>
    %979 = arith.addf %972, %978 : vector<79x16xf32>
    %cst_761 = arith.constant dense<0.000000e+00> : vector<79xf32>
    %980 = vector.multi_reduction <add>, %979, %cst_761 [1] : vector<79x16xf32> to vector<79xf32>
    %981 = vector.shape_cast %980 : vector<79xf32> to vector<79x1xf32>
    %c0_762 = arith.constant 0 : index
    %c0_763 = arith.constant 0 : index
    %982 = vector.load %arg11[%c0_762, %c0_763] : memref<1x1xf32, #tpu.memory_space<vmem>>, vector<1x1xf32>
    %983 = vector.broadcast %982 : vector<1x1xf32> to vector<79x1xf32>
    %984 = arith.addf %981, %983 : vector<79x1xf32>
    %cst_764 = arith.constant 0.000000e+00 : f32
    %985 = vector.broadcast %cst_764 : f32 to vector<79x1xf32>
    %986 = arith.maximumf %984, %985 : vector<79x1xf32>
    %cst_765 = arith.constant 0.000000e+00 : f32
    %987 = vector.broadcast %cst_765 : f32 to vector<79x16xf32>
    %c3_766 = arith.constant 3 : index
    %c0_767 = arith.constant 0 : index
    %c0_768 = arith.constant 0 : index
    %988 = vector.load %arg16[%c3_766, %c0_767, %c0_768] : memref<4x90x16xf32, #tpu.memory_space<vmem>>, vector<1x79x16xf32>
    %989 = vector.shape_cast %988 : vector<1x79x16xf32> to vector<79x16xf32>
    %c0_769 = arith.constant 0 : index
    %c0_770 = arith.constant 0 : index
    %c0_771 = arith.constant 0 : index
    %990 = vector.load %arg10[%c0_769, %c0_770, %c0_771] : memref<9x1x16xf32, #tpu.memory_space<vmem>>, vector<1x1x16xf32>
    %991 = vector.shape_cast %990 : vector<1x1x16xf32> to vector<1x16xf32>
    %992 = vector.broadcast %991 : vector<1x16xf32> to vector<79x16xf32>
    %993 = arith.mulf %989, %992 : vector<79x16xf32>
    %994 = arith.addf %987, %993 : vector<79x16xf32>
    %c0_772 = arith.constant 0 : index
    %c1_773 = arith.constant 1 : index
    %c0_774 = arith.constant 0 : index
    %995 = vector.load %arg16[%c0_772, %c1_773, %c0_774] : memref<4x90x16xf32, #tpu.memory_space<vmem>>, vector<1x79x16xf32>
    %996 = vector.shape_cast %995 : vector<1x79x16xf32> to vector<79x16xf32>
    %c1_775 = arith.constant 1 : index
    %c0_776 = arith.constant 0 : index
    %c0_777 = arith.constant 0 : index
    %997 = vector.load %arg10[%c1_775, %c0_776, %c0_777] : memref<9x1x16xf32, #tpu.memory_space<vmem>>, vector<1x1x16xf32>
    %998 = vector.shape_cast %997 : vector<1x1x16xf32> to vector<1x16xf32>
    %999 = vector.broadcast %998 : vector<1x16xf32> to vector<79x16xf32>
    %1000 = arith.mulf %996, %999 : vector<79x16xf32>
    %1001 = arith.addf %994, %1000 : vector<79x16xf32>
    %c1_778 = arith.constant 1 : index
    %c1_779 = arith.constant 1 : index
    %c0_780 = arith.constant 0 : index
    %1002 = vector.load %arg16[%c1_778, %c1_779, %c0_780] : memref<4x90x16xf32, #tpu.memory_space<vmem>>, vector<1x79x16xf32>
    %1003 = vector.shape_cast %1002 : vector<1x79x16xf32> to vector<79x16xf32>
    %c2_781 = arith.constant 2 : index
    %c0_782 = arith.constant 0 : index
    %c0_783 = arith.constant 0 : index
    %1004 = vector.load %arg10[%c2_781, %c0_782, %c0_783] : memref<9x1x16xf32, #tpu.memory_space<vmem>>, vector<1x1x16xf32>
    %1005 = vector.shape_cast %1004 : vector<1x1x16xf32> to vector<1x16xf32>
    %1006 = vector.broadcast %1005 : vector<1x16xf32> to vector<79x16xf32>
    %1007 = arith.mulf %1003, %1006 : vector<79x16xf32>
    %1008 = arith.addf %1001, %1007 : vector<79x16xf32>
    %c3_784 = arith.constant 3 : index
    %c5_785 = arith.constant 5 : index
    %c0_786 = arith.constant 0 : index
    %1009 = vector.load %arg16[%c3_784, %c5_785, %c0_786] : memref<4x90x16xf32, #tpu.memory_space<vmem>>, vector<1x79x16xf32>
    %1010 = vector.shape_cast %1009 : vector<1x79x16xf32> to vector<79x16xf32>
    %c3_787 = arith.constant 3 : index
    %c0_788 = arith.constant 0 : index
    %c0_789 = arith.constant 0 : index
    %1011 = vector.load %arg10[%c3_787, %c0_788, %c0_789] : memref<9x1x16xf32, #tpu.memory_space<vmem>>, vector<1x1x16xf32>
    %1012 = vector.shape_cast %1011 : vector<1x1x16xf32> to vector<1x16xf32>
    %1013 = vector.broadcast %1012 : vector<1x16xf32> to vector<79x16xf32>
    %1014 = arith.mulf %1010, %1013 : vector<79x16xf32>
    %1015 = arith.addf %1008, %1014 : vector<79x16xf32>
    %c0_790 = arith.constant 0 : index
    %c6_791 = arith.constant 6 : index
    %c0_792 = arith.constant 0 : index
    %1016 = vector.load %arg16[%c0_790, %c6_791, %c0_792] : memref<4x90x16xf32, #tpu.memory_space<vmem>>, vector<1x79x16xf32>
    %1017 = vector.shape_cast %1016 : vector<1x79x16xf32> to vector<79x16xf32>
    %c4_793 = arith.constant 4 : index
    %c0_794 = arith.constant 0 : index
    %c0_795 = arith.constant 0 : index
    %1018 = vector.load %arg10[%c4_793, %c0_794, %c0_795] : memref<9x1x16xf32, #tpu.memory_space<vmem>>, vector<1x1x16xf32>
    %1019 = vector.shape_cast %1018 : vector<1x1x16xf32> to vector<1x16xf32>
    %1020 = vector.broadcast %1019 : vector<1x16xf32> to vector<79x16xf32>
    %1021 = arith.mulf %1017, %1020 : vector<79x16xf32>
    %1022 = arith.addf %1015, %1021 : vector<79x16xf32>
    %c1_796 = arith.constant 1 : index
    %c6_797 = arith.constant 6 : index
    %c0_798 = arith.constant 0 : index
    %1023 = vector.load %arg16[%c1_796, %c6_797, %c0_798] : memref<4x90x16xf32, #tpu.memory_space<vmem>>, vector<1x79x16xf32>
    %1024 = vector.shape_cast %1023 : vector<1x79x16xf32> to vector<79x16xf32>
    %c5_799 = arith.constant 5 : index
    %c0_800 = arith.constant 0 : index
    %c0_801 = arith.constant 0 : index
    %1025 = vector.load %arg10[%c5_799, %c0_800, %c0_801] : memref<9x1x16xf32, #tpu.memory_space<vmem>>, vector<1x1x16xf32>
    %1026 = vector.shape_cast %1025 : vector<1x1x16xf32> to vector<1x16xf32>
    %1027 = vector.broadcast %1026 : vector<1x16xf32> to vector<79x16xf32>
    %1028 = arith.mulf %1024, %1027 : vector<79x16xf32>
    %1029 = arith.addf %1022, %1028 : vector<79x16xf32>
    %c3_802 = arith.constant 3 : index
    %c10_803 = arith.constant 10 : index
    %c0_804 = arith.constant 0 : index
    %1030 = vector.load %arg16[%c3_802, %c10_803, %c0_804] : memref<4x90x16xf32, #tpu.memory_space<vmem>>, vector<1x79x16xf32>
    %1031 = vector.shape_cast %1030 : vector<1x79x16xf32> to vector<79x16xf32>
    %c6_805 = arith.constant 6 : index
    %c0_806 = arith.constant 0 : index
    %c0_807 = arith.constant 0 : index
    %1032 = vector.load %arg10[%c6_805, %c0_806, %c0_807] : memref<9x1x16xf32, #tpu.memory_space<vmem>>, vector<1x1x16xf32>
    %1033 = vector.shape_cast %1032 : vector<1x1x16xf32> to vector<1x16xf32>
    %1034 = vector.broadcast %1033 : vector<1x16xf32> to vector<79x16xf32>
    %1035 = arith.mulf %1031, %1034 : vector<79x16xf32>
    %1036 = arith.addf %1029, %1035 : vector<79x16xf32>
    %c0_808 = arith.constant 0 : index
    %c11_809 = arith.constant 11 : index
    %c0_810 = arith.constant 0 : index
    %1037 = vector.load %arg16[%c0_808, %c11_809, %c0_810] : memref<4x90x16xf32, #tpu.memory_space<vmem>>, vector<1x79x16xf32>
    %1038 = vector.shape_cast %1037 : vector<1x79x16xf32> to vector<79x16xf32>
    %c7_811 = arith.constant 7 : index
    %c0_812 = arith.constant 0 : index
    %c0_813 = arith.constant 0 : index
    %1039 = vector.load %arg10[%c7_811, %c0_812, %c0_813] : memref<9x1x16xf32, #tpu.memory_space<vmem>>, vector<1x1x16xf32>
    %1040 = vector.shape_cast %1039 : vector<1x1x16xf32> to vector<1x16xf32>
    %1041 = vector.broadcast %1040 : vector<1x16xf32> to vector<79x16xf32>
    %1042 = arith.mulf %1038, %1041 : vector<79x16xf32>
    %1043 = arith.addf %1036, %1042 : vector<79x16xf32>
    %c1_814 = arith.constant 1 : index
    %c11_815 = arith.constant 11 : index
    %c0_816 = arith.constant 0 : index
    %1044 = vector.load %arg16[%c1_814, %c11_815, %c0_816] : memref<4x90x16xf32, #tpu.memory_space<vmem>>, vector<1x79x16xf32>
    %1045 = vector.shape_cast %1044 : vector<1x79x16xf32> to vector<79x16xf32>
    %c8_817 = arith.constant 8 : index
    %c0_818 = arith.constant 0 : index
    %c0_819 = arith.constant 0 : index
    %1046 = vector.load %arg10[%c8_817, %c0_818, %c0_819] : memref<9x1x16xf32, #tpu.memory_space<vmem>>, vector<1x1x16xf32>
    %1047 = vector.shape_cast %1046 : vector<1x1x16xf32> to vector<1x16xf32>
    %1048 = vector.broadcast %1047 : vector<1x16xf32> to vector<79x16xf32>
    %1049 = arith.mulf %1045, %1048 : vector<79x16xf32>
    %1050 = arith.addf %1043, %1049 : vector<79x16xf32>
    %cst_820 = arith.constant dense<0.000000e+00> : vector<79xf32>
    %1051 = vector.multi_reduction <add>, %1050, %cst_820 [1] : vector<79x16xf32> to vector<79xf32>
    %1052 = vector.shape_cast %1051 : vector<79xf32> to vector<79x1xf32>
    %c0_821 = arith.constant 0 : index
    %c0_822 = arith.constant 0 : index
    %1053 = vector.load %arg11[%c0_821, %c0_822] : memref<1x1xf32, #tpu.memory_space<vmem>>, vector<1x1xf32>
    %1054 = vector.broadcast %1053 : vector<1x1xf32> to vector<79x1xf32>
    %1055 = arith.addf %1052, %1054 : vector<79x1xf32>
    %cst_823 = arith.constant 0.000000e+00 : f32
    %1056 = vector.broadcast %cst_823 : f32 to vector<79x1xf32>
    %1057 = arith.maximumf %1055, %1056 : vector<79x1xf32>
    %1058 = tpu.concatenate %844, %915, %986, %1057 in 1 : vector<79x1xf32>, vector<79x1xf32>, vector<79x1xf32>, vector<79x1xf32> -> vector<79x4xf32>
    %c0_824 = arith.constant 0 : index
    %c0_825 = arith.constant 0 : index
    %c0_826 = arith.constant 0 : index
    %1059 = vector.load %arg12[%c0_824, %c0_825, %c0_826] : memref<1x79x4xf32, #tpu.memory_space<vmem>>, vector<1x79x4xf32>
    %1060 = vector.shape_cast %1059 : vector<1x79x4xf32> to vector<79x4xf32>
    %1061 = vector.shape_cast %1058 : vector<79x4xf32> to vector<1x79x4xf32>
    tpu.vector_store %arg12[%c0_824, %c0_825, %c0_826], %1061 {strides = array<i32>} : memref<1x79x4xf32, #tpu.memory_space<vmem>>, vector<1x79x4xf32>,
    return
  }
  func.func @transform_0(%arg0: i32) -> (i32, i32, i32, i32) {
    %c0_i32 = arith.constant 0 : i32
    %c0_i32_0 = arith.constant 0 : i32
    %c0_i32_1 = arith.constant 0 : i32
    %c0_i32_2 = arith.constant 0 : i32
    return %arg0, %c0_i32, %c0_i32_0, %c0_i32_1 : i32, i32, i32, i32
  }
  func.func @transform_1(%arg0: i32) -> (i32, i32, i32) {
    %c0_i32 = arith.constant 0 : i32
    %c0_i32_0 = arith.constant 0 : i32
    %c0_i32_1 = arith.constant 0 : i32
    %c0_i32_2 = arith.constant 0 : i32
    return %c0_i32, %c0_i32_0, %c0_i32_1 : i32, i32, i32
  }
  func.func @transform_2(%arg0: i32) -> (i32, i32) {
    %c0_i32 = arith.constant 0 : i32
    %c0_i32_0 = arith.constant 0 : i32
    %c0_i32_1 = arith.constant 0 : i32
    return %c0_i32, %c0_i32_0 : i32, i32
  }
  func.func @transform_3(%arg0: i32) -> (i32, i32, i32) {
    %c0_i32 = arith.constant 0 : i32
    %c0_i32_0 = arith.constant 0 : i32
    %c0_i32_1 = arith.constant 0 : i32
    %c0_i32_2 = arith.constant 0 : i32
    return %c0_i32, %c0_i32_0, %c0_i32_1 : i32, i32, i32
  }
  func.func @transform_4(%arg0: i32) -> (i32, i32) {
    %c0_i32 = arith.constant 0 : i32
    %c0_i32_0 = arith.constant 0 : i32
    %c0_i32_1 = arith.constant 0 : i32
    return %c0_i32, %c0_i32_0 : i32, i32
  }
  func.func @transform_5(%arg0: i32) -> (i32, i32, i32) {
    %c0_i32 = arith.constant 0 : i32
    %c0_i32_0 = arith.constant 0 : i32
    %c0_i32_1 = arith.constant 0 : i32
    %c0_i32_2 = arith.constant 0 : i32
    return %c0_i32, %c0_i32_0, %c0_i32_1 : i32, i32, i32
  }
  func.func @transform_6(%arg0: i32) -> (i32, i32) {
    %c0_i32 = arith.constant 0 : i32
    %c0_i32_0 = arith.constant 0 : i32
    %c0_i32_1 = arith.constant 0 : i32
    return %c0_i32, %c0_i32_0 : i32, i32
  }
  func.func @transform_7(%arg0: i32) -> (i32, i32, i32) {
    %c0_i32 = arith.constant 0 : i32
    %c0_i32_0 = arith.constant 0 : i32
    %c0_i32_1 = arith.constant 0 : i32
    %c0_i32_2 = arith.constant 0 : i32
    return %c0_i32, %c0_i32_0, %c0_i32_1 : i32, i32, i32
  }
  func.func @transform_8(%arg0: i32) -> (i32, i32) {
    %c0_i32 = arith.constant 0 : i32
    %c0_i32_0 = arith.constant 0 : i32
    %c0_i32_1 = arith.constant 0 : i32
    return %c0_i32, %c0_i32_0 : i32, i32
  }
  func.func @transform_9(%arg0: i32) -> (i32, i32, i32) {
    %c0_i32 = arith.constant 0 : i32
    %c0_i32_0 = arith.constant 0 : i32
    %c0_i32_1 = arith.constant 0 : i32
    %c0_i32_2 = arith.constant 0 : i32
    return %c0_i32, %c0_i32_0, %c0_i32_1 : i32, i32, i32
  }
  func.func @transform_10(%arg0: i32) -> (i32, i32) {
    %c0_i32 = arith.constant 0 : i32
    %c0_i32_0 = arith.constant 0 : i32
    %c0_i32_1 = arith.constant 0 : i32
    return %c0_i32, %c0_i32_0 : i32, i32
  }
  func.func @transform_11(%arg0: i32) -> (i32, i32, i32) {
    %c0_i32 = arith.constant 0 : i32
    %c0_i32_0 = arith.constant 0 : i32
    %c0_i32_1 = arith.constant 0 : i32
    return %arg0, %c0_i32, %c0_i32_0 : i32, i32, i32
  }
}

</mosaic_0001>

<llo_original>
// kernel: autoencoder_forward.1
$region0: #{autoencoder_forward.1}
  #allocation0 [shape = 'u32[]', space=smem, size = 0x4, offset = 0x4, fixed_abs, tag = 'smem constant byte address 0x4 - core index']
  #allocation1 [shape = 'u32[144,128]{1,0:T(1,128)}', space=vmem, size = 0x12000, scoped, tag = 'internal scratch']
  #allocation2 [shape = 'f32[2,50,48]{2,1,0:T(8,128)}', space=vmem, size = 0xe000, scoped, tag = 'scratch operand']
  #allocation3 [shape = 'f32[25,48]{1,0:T(8,128)}', space=vmem, size = 0x4000, scoped, tag = 'scratch operand']
  #allocation4 [shape = 'f32[2,45,32]{2,1,0:T(8,128)}', space=vmem, size = 0xc000, scoped, tag = 'scratch operand']
  #allocation5 [shape = 'f32[4,90,16]{2,1,0:T(8,128)}', space=vmem, size = 0x30000, scoped, tag = 'scratch operand']
  #allocation6 [shape = 'f32[1,1]{1,0:T(1,128)S(1)}', space=vmem, size = 0x200, scoped, tag = 'scoped memory for autoencoder_forward.1']
  %s0 = inlined_call_operand.vmem [shape: f32[2,4,90,1], index: 0, kind: input, shape index: {}]
  %s1 = inlined_call_operand.vmem [shape: f32[9,1,48], index: 1, kind: input, shape index: {}]
  %s2 = inlined_call_operand.vmem [shape: f32[1,48], index: 2, kind: input, shape index: {}]
  %s3 = inlined_call_operand.vmem [shape: f32[9,48,48], index: 3, kind: input, shape index: {}]
  %s4 = inlined_call_operand.vmem [shape: f32[1,48], index: 4, kind: input, shape index: {}]
  %s5 = inlined_call_operand.vmem [shape: f32[4,48,128], index: 5, kind: input, shape index: {}]
  %s6 = inlined_call_operand.vmem [shape: f32[1,32], index: 6, kind: input, shape index: {}]
  %s7 = inlined_call_operand.vmem [shape: f32[4,32,64], index: 7, kind: input, shape index: {}]
  %s8 = inlined_call_operand.vmem [shape: f32[1,16], index: 8, kind: input, shape index: {}]
  %s9 = inlined_call_operand.vmem [shape: f32[9,1,16], index: 9, kind: input, shape index: {}]
  %s10 = inlined_call_operand.<no memory space> [shape: f32[1,1], index: 10, kind: input, shape index: {}]
  %s11 = inlined_call_operand.vmem [shape: f32[2,79,4], index: 11, kind: output, shape index: {}]
  %s12 = sld [smem:[#allocation0]]
  $region77: #{autoencoder_forward.1} parent=0
    _
  %s14 = ssub.s32 1, %s12
  %s15 = scalar_select 0, %s14, %s12
  %v16 = vstv %s10
  %17 = vst [vmem:[#allocation6] sm:$0x1] %v16
  loop: start=0, step=1, limit=4
  $region2: #{autoencoder_forward.1} parent=0 // loop_pre_header
    _
  $region3: #{autoencoder_forward.1} parent=0 // loop_header
    %s19 = sphi 0, %s23
    %p20 = scmp.ge.s32.totalorder %s19, 4
    %s29 = sphi 0, %s31
    %s32 = sphi 0, %s29
    %s33 = sphi 0, %s32
    %s49 = sphi 0, %s33
    %s53 = sphi 0, %s53
    %s55 = sphi 0, %s53
    %s56 = sphi 0, %s55
    %s70 = sphi 0, %s56
    %s74 = sphi 0, %s74
    %s76 = sphi 0, %s74
    %s77 = sphi 0, %s76
    %s91 = sphi 0, %s77
    %s95 = sphi 0, %s95
    %s97 = sphi 0, %s95
    %s98 = sphi 0, %s97
    %s112 = sphi 0, %s98
    %s116 = sphi 0, %s116
    %s118 = sphi 0, %s116
    %s119 = sphi 0, %s118
    %s133 = sphi 0, %s119
    %s137 = sphi 0, %s137
    %s139 = sphi 0, %s137
    %s140 = sphi 0, %s139
    %s154 = sphi 0, %s140
    %s158 = sphi 0, %s158
    %s160 = sphi 0, %s158
    %s161 = sphi 0, %s160
    %s175 = sphi 0, %s161
    %s179 = sphi 0, %s179
    %s181 = sphi 0, %s179
    %s182 = sphi 0, %s181
    %s196 = sphi 0, %s182
    %s200 = sphi 0, %s200
    %s202 = sphi 0, %s200
    %s203 = sphi 0, %s202
    %s217 = sphi 0, %s203
    %s221 = sphi 0, %s221
    %s223 = sphi 0, %s221
    %s224 = sphi 0, %s223
    %s238 = sphi 0, %s224
    %s242 = sphi 0, %s242
    %s244 = sphi 0, %s242
    %s245 = sphi 0, %s244
    %s259 = sphi 0, %s245
    %s265 = sphi 0, %s267
    %s268 = sphi 0, %s265
    %s269 = sphi 0, %s268
    %s285 = sphi 0, %s269
  $region4: #{autoencoder_forward.1} parent=0 // loop_header_branch
    %22 = sbr.rel (%p20) target = $region8
  $region5: #{autoencoder_forward.1} parent=0 // loop_body
    %s24 = ssub.s32 %s19, 1
    %s25 = ssub.s32 %s19, 2
    %s26 = sadd.s32 %s19, 1
    %s27 = ssub.s32 %s19, %s26
    %p28 = scmp.eq.s32.totalorder %s27, 0
    %s30 = sadd.s32 %s29, 1
    %s31 = scalar_select %p28, %s29, %s30
    %p34 = pneg %p28
    %p35 = scmp.eq.s32.totalorder %s19, 1
    %p36 = por %p34, %p35
    %p37 = scmp.ne.s32.totalorder %s29, %s32
    %p38 = scmp.eq.s32.totalorder %s19, 0
    %p39 = por %p37, %p38
    %p40 = scmp.ne.s32.totalorder %s29, %s32
    %p41 = scmp.eq.s32.totalorder %s24, 1
    %p42 = por %p40, %p41
    %p43 = scmp.ne.s32.totalorder %s32, %s33
    %p44 = scmp.eq.s32.totalorder %s24, 0
    %p45 = por %p43, %p44
    %p46 = scmp.ne.s32.totalorder %s32, %s33
    %p47 = scmp.eq.s32.totalorder %s25, 1
    %p48 = por %p46, %p47
    %p50 = scmp.ne.s32.totalorder %s33, %s49
    %p51 = scmp.eq.s32.totalorder %s25, 0
    %p52 = por %p50, %p51
    %s54 = sadd.s32 %s53, 1
    %p57 = scmp.eq.s32.totalorder %s19, 1
    %p58 = scmp.ne.s32.totalorder %s53, %s55
    %p59 = scmp.eq.s32.totalorder %s19, 0
    %p60 = por %p58, %p59
    %p61 = scmp.ne.s32.totalorder %s53, %s55
    %p62 = scmp.eq.s32.totalorder %s24, 1
    %p63 = por %p61, %p62
    %p64 = scmp.ne.s32.totalorder %s55, %s56
    %p65 = scmp.eq.s32.totalorder %s24, 0
    %p66 = por %p64, %p65
    %p67 = scmp.ne.s32.totalorder %s55, %s56
    %p68 = scmp.eq.s32.totalorder %s25, 1
    %p69 = por %p67, %p68
    %p71 = scmp.ne.s32.totalorder %s56, %s70
    %p72 = scmp.eq.s32.totalorder %s25, 0
    %p73 = por %p71, %p72
    %s75 = sadd.s32 %s74, 1
    %p78 = scmp.eq.s32.totalorder %s19, 1
    %p79 = scmp.ne.s32.totalorder %s74, %s76
    %p80 = scmp.eq.s32.totalorder %s19, 0
    %p81 = por %p79, %p80
    %p82 = scmp.ne.s32.totalorder %s74, %s76
    %p83 = scmp.eq.s32.totalorder %s24, 1
    %p84 = por %p82, %p83
    %p85 = scmp.ne.s32.totalorder %s76, %s77
    %p86 = scmp.eq.s32.totalorder %s24, 0
    %p87 = por %p85, %p86
    %p88 = scmp.ne.s32.totalorder %s76, %s77
    %p89 = scmp.eq.s32.totalorder %s25, 1
    %p90 = por %p88, %p89
    %p92 = scmp.ne.s32.totalorder %s77, %s91
    %p93 = scmp.eq.s32.totalorder %s25, 0
    %p94 = por %p92, %p93
    %s96 = sadd.s32 %s95, 1
    %p99 = scmp.eq.s32.totalorder %s19, 1
    %p100 = scmp.ne.s32.totalorder %s95, %s97
    %p101 = scmp.eq.s32.totalorder %s19, 0
    %p102 = por %p100, %p101
    %p103 = scmp.ne.s32.totalorder %s95, %s97
    %p104 = scmp.eq.s32.totalorder %s24, 1
    %p105 = por %p103, %p104
    %p106 = scmp.ne.s32.totalorder %s97, %s98
    %p107 = scmp.eq.s32.totalorder %s24, 0
    %p108 = por %p106, %p107
    %p109 = scmp.ne.s32.totalorder %s97, %s98
    %p110 = scmp.eq.s32.totalorder %s25, 1
    %p111 = por %p109, %p110
    %p113 = scmp.ne.s32.totalorder %s98, %s112
    %p114 = scmp.eq.s32.totalorder %s25, 0
    %p115 = por %p113, %p114
    %s117 = sadd.s32 %s116, 1
    %p120 = scmp.eq.s32.totalorder %s19, 1
    %p121 = scmp.ne.s32.totalorder %s116, %s118
    %p122 = scmp.eq.s32.totalorder %s19, 0
    %p123 = por %p121, %p122
    %p124 = scmp.ne.s32.totalorder %s116, %s118
    %p125 = scmp.eq.s32.totalorder %s24, 1
    %p126 = por %p124, %p125
    %p127 = scmp.ne.s32.totalorder %s118, %s119
    %p128 = scmp.eq.s32.totalorder %s24, 0
    %p129 = por %p127, %p128
    %p130 = scmp.ne.s32.totalorder %s118, %s119
    %p131 = scmp.eq.s32.totalorder %s25, 1
    %p132 = por %p130, %p131
    %p134 = scmp.ne.s32.totalorder %s119, %s133
    %p135 = scmp.eq.s32.totalorder %s25, 0
    %p136 = por %p134, %p135
    %s138 = sadd.s32 %s137, 1
    %p141 = scmp.eq.s32.totalorder %s19, 1
    %p142 = scmp.ne.s32.totalorder %s137, %s139
    %p143 = scmp.eq.s32.totalorder %s19, 0
    %p144 = por %p142, %p143
    %p145 = scmp.ne.s32.totalorder %s137, %s139
    %p146 = scmp.eq.s32.totalorder %s24, 1
    %p147 = por %p145, %p146
    %p148 = scmp.ne.s32.totalorder %s139, %s140
    %p149 = scmp.eq.s32.totalorder %s24, 0
    %p150 = por %p148, %p149
    %p151 = scmp.ne.s32.totalorder %s139, %s140
    %p152 = scmp.eq.s32.totalorder %s25, 1
    %p153 = por %p151, %p152
    %p155 = scmp.ne.s32.totalorder %s140, %s154
    %p156 = scmp.eq.s32.totalorder %s25, 0
    %p157 = por %p155, %p156
    %s159 = sadd.s32 %s158, 1
    %p162 = scmp.eq.s32.totalorder %s19, 1
    %p163 = scmp.ne.s32.totalorder %s158, %s160
    %p164 = scmp.eq.s32.totalorder %s19, 0
    %p165 = por %p163, %p164
    %p166 = scmp.ne.s32.totalorder %s158, %s160
    %p167 = scmp.eq.s32.totalorder %s24, 1
    %p168 = por %p166, %p167
    %p169 = scmp.ne.s32.totalorder %s160, %s161
    %p170 = scmp.eq.s32.totalorder %s24, 0
    %p171 = por %p169, %p170
    %p172 = scmp.ne.s32.totalorder %s160, %s161
    %p173 = scmp.eq.s32.totalorder %s25, 1
    %p174 = por %p172, %p173
    %p176 = scmp.ne.s32.totalorder %s161, %s175
    %p177 = scmp.eq.s32.totalorder %s25, 0
    %p178 = por %p176, %p177
    %s180 = sadd.s32 %s179, 1
    %p183 = scmp.eq.s32.totalorder %s19, 1
    %p184 = scmp.ne.s32.totalorder %s179, %s181
    %p185 = scmp.eq.s32.totalorder %s19, 0
    %p186 = por %p184, %p185
    %p187 = scmp.ne.s32.totalorder %s179, %s181
    %p188 = scmp.eq.s32.totalorder %s24, 1
    %p189 = por %p187, %p188
    %p190 = scmp.ne.s32.totalorder %s181, %s182
    %p191 = scmp.eq.s32.totalorder %s24, 0
    %p192 = por %p190, %p191
    %p193 = scmp.ne.s32.totalorder %s181, %s182
    %p194 = scmp.eq.s32.totalorder %s25, 1
    %p195 = por %p193, %p194
    %p197 = scmp.ne.s32.totalorder %s182, %s196
    %p198 = scmp.eq.s32.totalorder %s25, 0
    %p199 = por %p197, %p198
    %s201 = sadd.s32 %s200, 1
    %p204 = scmp.eq.s32.totalorder %s19, 1
    %p205 = scmp.ne.s32.totalorder %s200, %s202
    %p206 = scmp.eq.s32.totalorder %s19, 0
    %p207 = por %p205, %p206
    %p208 = scmp.ne.s32.totalorder %s200, %s202
    %p209 = scmp.eq.s32.totalorder %s24, 1
    %p210 = por %p208, %p209
    %p211 = scmp.ne.s32.totalorder %s202, %s203
    %p212 = scmp.eq.s32.totalorder %s24, 0
    %p213 = por %p211, %p212
    %p214 = scmp.ne.s32.totalorder %s202, %s203
    %p215 = scmp.eq.s32.totalorder %s25, 1
    %p216 = por %p214, %p215
    %p218 = scmp.ne.s32.totalorder %s203, %s217
    %p219 = scmp.eq.s32.totalorder %s25, 0
    %p220 = por %p218, %p219
    %s222 = sadd.s32 %s221, 1
    %p225 = scmp.eq.s32.totalorder %s19, 1
    %p226 = scmp.ne.s32.totalorder %s221, %s223
    %p227 = scmp.eq.s32.totalorder %s19, 0
    %p228 = por %p226, %p227
    %p229 = scmp.ne.s32.totalorder %s221, %s223
    %p230 = scmp.eq.s32.totalorder %s24, 1
    %p231 = por %p229, %p230
    %p232 = scmp.ne.s32.totalorder %s223, %s224
    %p233 = scmp.eq.s32.totalorder %s24, 0
    %p234 = por %p232, %p233
    %p235 = scmp.ne.s32.totalorder %s223, %s224
    %p236 = scmp.eq.s32.totalorder %s25, 1
    %p237 = por %p235, %p236
    %p239 = scmp.ne.s32.totalorder %s224, %s238
    %p240 = scmp.eq.s32.totalorder %s25, 0
    %p241 = por %p239, %p240
    %s243 = sadd.s32 %s242, 1
    %p246 = scmp.eq.s32.totalorder %s19, 1
    %p247 = scmp.ne.s32.totalorder %s242, %s244
    %p248 = scmp.eq.s32.totalorder %s19, 0
    %p249 = por %p247, %p248
    %p250 = scmp.ne.s32.totalorder %s242, %s244
    %p251 = scmp.eq.s32.totalorder %s24, 1
    %p252 = por %p250, %p251
    %p253 = scmp.ne.s32.totalorder %s244, %s245
    %p254 = scmp.eq.s32.totalorder %s24, 0
    %p255 = por %p253, %p254
    %p256 = scmp.ne.s32.totalorder %s244, %s245
    %p257 = scmp.eq.s32.totalorder %s25, 1
    %p258 = por %p256, %p257
    %p260 = scmp.ne.s32.totalorder %s245, %s259
    %p261 = scmp.eq.s32.totalorder %s25, 0
    %p262 = por %p260, %p261
    %s263 = ssub.s32 %s19, %s26
    %p264 = scmp.eq.s32.totalorder %s263, 0
    %s266 = sadd.s32 %s265, 1
    %s267 = scalar_select %p264, %s265, %s266
    %p270 = pneg %p264
    %p271 = scmp.eq.s32.totalorder %s19, 1
    %p272 = por %p270, %p271
    %p273 = scmp.ne.s32.totalorder %s265, %s268
    %p274 = scmp.eq.s32.totalorder %s19, 0
    %p275 = por %p273, %p274
    %p276 = scmp.ne.s32.totalorder %s265, %s268
    %p277 = scmp.eq.s32.totalorder %s24, 1
    %p278 = por %p276, %p277
    %p279 = scmp.ne.s32.totalorder %s268, %s269
    %p280 = scmp.eq.s32.totalorder %s24, 0
    %p281 = por %p279, %p280
    %p282 = scmp.ne.s32.totalorder %s268, %s269
    %p283 = scmp.eq.s32.totalorder %s25, 1
    %p284 = por %p282, %p283
    %p286 = scmp.ne.s32.totalorder %s269, %s285
    %p287 = scmp.eq.s32.totalorder %s25, 0
    %p288 = por %p286, %p287
    %p289 = scmp.le.s32.totalorder 1, %s19
    %p290 = scmp.lt.s32.totalorder %s19, 3
    %p291 = pnand %p289, %p290
    %p292 = pneg %p291
    // Predicated region
    $region9: #{autoencoder_forward.1} parent=5 // pred_check
      _
    $region10: #{autoencoder_forward.1} parent=5 // pred_check_branch
      %294 = sbr.rel (%p291) target = $region12
    $region11: #{autoencoder_forward.1} parent=5 // pred_region
      %s295 = ssub.s32 %s19, 1
      // Predicated region
      $region13: #{autoencoder_forward.1} parent=11 // pred_check
        %p296 = pneg %p66
      $region14: #{autoencoder_forward.1} parent=11 // pred_check_branch
        %298 = sbr.rel (%p296) target = $region16
      $region15: #{autoencoder_forward.1} parent=11 // pred_region
        _
      $region16: #{autoencoder_forward.1} parent=11 // pred_fallthru
        _
      // Predicated region
      $region17: #{autoencoder_forward.1} parent=11 // pred_check
        %p299 = pneg %p87
      $region18: #{autoencoder_forward.1} parent=11 // pred_check_branch
        %301 = sbr.rel (%p299) target = $region20
      $region19: #{autoencoder_forward.1} parent=11 // pred_region
        _
      $region20: #{autoencoder_forward.1} parent=11 // pred_fallthru
        _
      // Predicated region
      $region21: #{autoencoder_forward.1} parent=11 // pred_check
        %p302 = pneg %p108
      $region22: #{autoencoder_forward.1} parent=11 // pred_check_branch
        %304 = sbr.rel (%p302) target = $region24
      $region23: #{autoencoder_forward.1} parent=11 // pred_region
        _
      $region24: #{autoencoder_forward.1} parent=11 // pred_fallthru
        _
      // Predicated region
      $region25: #{autoencoder_forward.1} parent=11 // pred_check
        %p305 = pneg %p129
      $region26: #{autoencoder_forward.1} parent=11 // pred_check_branch
        %307 = sbr.rel (%p305) target = $region28
      $region27: #{autoencoder_forward.1} parent=11 // pred_region
        _
      $region28: #{autoencoder_forward.1} parent=11 // pred_fallthru
        _
      // Predicated region
      $region29: #{autoencoder_forward.1} parent=11 // pred_check
        %p308 = pneg %p150
      $region30: #{autoencoder_forward.1} parent=11 // pred_check_branch
        %310 = sbr.rel (%p308) target = $region32
      $region31: #{autoencoder_forward.1} parent=11 // pred_region
        _
      $region32: #{autoencoder_forward.1} parent=11 // pred_fallthru
        _
      // Predicated region
      $region33: #{autoencoder_forward.1} parent=11 // pred_check
        %p311 = pneg %p171
      $region34: #{autoencoder_forward.1} parent=11 // pred_check_branch
        %313 = sbr.rel (%p311) target = $region36
      $region35: #{autoencoder_forward.1} parent=11 // pred_region
        _
      $region36: #{autoencoder_forward.1} parent=11 // pred_fallthru
        _
      // Predicated region
      $region37: #{autoencoder_forward.1} parent=11 // pred_check
        %p314 = pneg %p192
      $region38: #{autoencoder_forward.1} parent=11 // pred_check_branch
        %316 = sbr.rel (%p314) target = $region40
      $region39: #{autoencoder_forward.1} parent=11 // pred_region
        _
      $region40: #{autoencoder_forward.1} parent=11 // pred_fallthru
        _
      // Predicated region
      $region41: #{autoencoder_forward.1} parent=11 // pred_check
        %p317 = pneg %p213
      $region42: #{autoencoder_forward.1} parent=11 // pred_check_branch
        %319 = sbr.rel (%p317) target = $region44
      $region43: #{autoencoder_forward.1} parent=11 // pred_region
        _
      $region44: #{autoencoder_forward.1} parent=11 // pred_fallthru
        _
      // Predicated region
      $region45: #{autoencoder_forward.1} parent=11 // pred_check
        %p320 = pneg %p234
      $region46: #{autoencoder_forward.1} parent=11 // pred_check_branch
        %322 = sbr.rel (%p320) target = $region48
      $region47: #{autoencoder_forward.1} parent=11 // pred_region
        _
      $region48: #{autoencoder_forward.1} parent=11 // pred_fallthru
        _
      // Predicated region
      $region49: #{autoencoder_forward.1} parent=11 // pred_check
        %p323 = pneg %p255
      $region50: #{autoencoder_forward.1} parent=11 // pred_check_branch
        %325 = sbr.rel (%p323) target = $region52
      $region51: #{autoencoder_forward.1} parent=11 // pred_region
        _
      $region52: #{autoencoder_forward.1} parent=11 // pred_fallthru
        _
    $region12: #{autoencoder_forward.1} parent=5 // pred_fallthru
      _
    %p326 = scmp.lt.s32.totalorder %s19, 2
    // Predicated region
    $region53: #{autoencoder_forward.1} parent=5 // pred_check
      %p327 = pneg %p326
    $region54: #{autoencoder_forward.1} parent=5 // pred_check_branch
      %329 = sbr.rel (%p327) target = $region56
    $region55: #{autoencoder_forward.1} parent=5 // pred_region
      // Predicated region
      $region57: #{autoencoder_forward.1} parent=55 // pred_check
        %p330 = pneg %p39
      $region58: #{autoencoder_forward.1} parent=55 // pred_check_branch
        %332 = sbr.rel (%p330) target = $region60
      $region59: #{autoencoder_forward.1} parent=55 // pred_region
        %p333 = scmp.lt.s32.totalorder %s19, 1
        %s334 = scalar_select %p333, %s19, 1
        %s335 = smul.addr %s334, 48
        %s336 = smul.addr %s335, 8
        %s337 = scalar_lea.vmem %s0, %s336
      $region60: #{autoencoder_forward.1} parent=55 // pred_fallthru
        _
    $region56: #{autoencoder_forward.1} parent=5 // pred_fallthru
      _
    %p338 = scmp.le.s32.totalorder 1, %s19
    %p339 = scmp.lt.s32.totalorder %s19, 3
    %p340 = pnand %p338, %p339
    %p341 = pneg %p340
    // Predicated region
    $region61: #{autoencoder_forward.1} parent=5 // pred_check
      _
    $region62: #{autoencoder_forward.1} parent=5 // pred_check_branch
      %343 = sbr.rel (%p340) target = $region64
    $region63: #{autoencoder_forward.1} parent=5 // pred_region
      %s344 = ssub.s32 %s19, 1
      %p345 = scmp.lt.s32.totalorder %s24, 1
      %s346 = scalar_select %p345, %s24, 1
      %s347 = smul.addr %s346, 48
      %s348 = smul.addr %s347, 8
      %s349 = scalar_lea.vmem %s0, %s348
      %p350 = pneg %p45
      %p351 = pneg %p42
      %p352 = pneg %p66
      %p353 = pneg %p63
      %p354 = pneg %p87
      %p355 = pneg %p84
      %p356 = pneg %p108
      %p357 = pneg %p105
      %p358 = pneg %p129
      %p359 = pneg %p126
      %p360 = pneg %p150
      %p361 = pneg %p147
      %p362 = pneg %p171
      %p363 = pneg %p168
      %p364 = pneg %p192
      %p365 = pneg %p189
      %p366 = pneg %p213
      %p367 = pneg %p210
      %p368 = pneg %p234
      %p369 = pneg %p231
      %p370 = pneg %p255
      %p371 = pneg %p252
      %p372 = pneg %p281
      %p373 = pneg %p278
      %p374 = scmp.lt.s32.totalorder %s24, 1
      %s375 = scalar_select %p374, %s24, 1
      %s376 = smul.addr %s375, 10
      %s377 = smul.addr %s376, 8
      %s378 = scalar_lea.vmem %s11, %s377
      %p379 = scmp.lt.s32.totalorder %s24, 1
      %s380 = scalar_select %p379, %s24, 1
      %s381 = smul.addr %s380, 48
      %s382 = smul.addr %s381, 8
      %s383 = scalar_lea.vmem %s0, %s382
      %p384 = scmp.lt.s32.totalorder %s24, 1
      %s385 = scalar_select %p384, %s24, 1
      %s386 = smul.addr %s385, 10
      %s387 = smul.addr %s386, 8
      %s388 = scalar_lea.vmem %s11, %s387
      %vm389 = vcmask 392192
      %390 = vst.msk [vmem:[#allocation2] sm:$0xff] %vm389, 0.0
      %391 = vst.msk [vmem:[#allocation2 + $0x8] sm:$0xff] %vm389, 0.0
      %392 = vst.msk [vmem:[#allocation2 + $0x10] sm:$0xff] %vm389, 0.0
      %393 = vst.msk [vmem:[#allocation2 + $0x18] sm:$0xff] %vm389, 0.0
      %394 = vst.msk [vmem:[#allocation2 + $0x20] sm:$0xff] %vm389, 0.0
      %395 = vst.msk [vmem:[#allocation2 + $0x28] sm:$0xff] %vm389, 0.0
      %vm396 = vcmask 386048
      %397 = vst.msk [vmem:[#allocation2 + $0x30] sm:$0x3] %vm396, 0.0
      %398 = vst.msk [vmem:[#allocation2 + $0x38] sm:$0xff] %vm389, 0.0
      %399 = vst.msk [vmem:[#allocation2 + $0x40] sm:$0xff] %vm389, 0.0
      %400 = vst.msk [vmem:[#allocation2 + $0x48] sm:$0xff] %vm389, 0.0
      %401 = vst.msk [vmem:[#allocation2 + $0x50] sm:$0xff] %vm389, 0.0
      %402 = vst.msk [vmem:[#allocation2 + $0x58] sm:$0xff] %vm389, 0.0
      %403 = vst.msk [vmem:[#allocation2 + $0x60] sm:$0xff] %vm389, 0.0
      %404 = vst.msk [vmem:[#allocation2 + $0x68] sm:$0x3] %vm396, 0.0
      %405 = vst.msk [vmem:[#allocation3] sm:$0xff] %vm389, 0.0
      %406 = vst.msk [vmem:[#allocation3 + $0x8] sm:$0xff] %vm389, 0.0
      %407 = vst.msk [vmem:[#allocation3 + $0x10] sm:$0xff] %vm389, 0.0
      %vm408 = vcmask 385024
      %409 = vst.msk [vmem:[#allocation3 + $0x18] sm:$0x1] %vm408, 0.0
      %vm410 = vcmask 261120
      %411 = vst.msk [vmem:[#allocation4] sm:$0xff] %vm410, 0.0
      %412 = vst.msk [vmem:[#allocation4 + $0x8] sm:$0xff] %vm410, 0.0
      %413 = vst.msk [vmem:[#allocation4 + $0x10] sm:$0xff] %vm410, 0.0
      %414 = vst.msk [vmem:[#allocation4 + $0x18] sm:$0xff] %vm410, 0.0
      %415 = vst.msk [vmem:[#allocation4 + $0x20] sm:$0xff] %vm410, 0.0
      %vm416 = vcmask 258048
      %417 = vst.msk [vmem:[#allocation4 + $0x28] sm:$0x1f] %vm416, 0.0
      %418 = vst.msk [vmem:[#allocation4 + $0x30] sm:$0xff] %vm410, 0.0
      %419 = vst.msk [vmem:[#allocation4 + $0x38] sm:$0xff] %vm410, 0.0
      %420 = vst.msk [vmem:[#allocation4 + $0x40] sm:$0xff] %vm410, 0.0
      %421 = vst.msk [vmem:[#allocation4 + $0x48] sm:$0xff] %vm410, 0.0
      %422 = vst.msk [vmem:[#allocation4 + $0x50] sm:$0xff] %vm410, 0.0
      %423 = vst.msk [vmem:[#allocation4 + $0x58] sm:$0x1f] %vm416, 0.0
      %vm424 = vcmask 130048
      %425 = vst.msk [vmem:[#allocation5] sm:$0xff] %vm424, 0.0
      %426 = vst.msk [vmem:[#allocation5 + $0x8] sm:$0xff] %vm424, 0.0
      %427 = vst.msk [vmem:[#allocation5 + $0x10] sm:$0xff] %vm424, 0.0
      %428 = vst.msk [vmem:[#allocation5 + $0x18] sm:$0xff] %vm424, 0.0
      %429 = vst.msk [vmem:[#allocation5 + $0x20] sm:$0xff] %vm424, 0.0
      %430 = vst.msk [vmem:[#allocation5 + $0x28] sm:$0xff] %vm424, 0.0
      %431 = vst.msk [vmem:[#allocation5 + $0x30] sm:$0xff] %vm424, 0.0
      %432 = vst.msk [vmem:[#allocation5 + $0x38] sm:$0xff] %vm424, 0.0
      %433 = vst.msk [vmem:[#allocation5 + $0x40] sm:$0xff] %vm424, 0.0
      %434 = vst.msk [vmem:[#allocation5 + $0x48] sm:$0xff] %vm424, 0.0
      %435 = vst.msk [vmem:[#allocation5 + $0x50] sm:$0xff] %vm424, 0.0
      %vm436 = vcmask 123904
      %437 = vst.msk [vmem:[#allocation5 + $0x58] sm:$0x3] %vm436, 0.0
      %438 = vst.msk [vmem:[#allocation5 + $0x60] sm:$0xff] %vm424, 0.0
      %439 = vst.msk [vmem:[#allocation5 + $0x68] sm:$0xff] %vm424, 0.0
      %440 = vst.msk [vmem:[#allocation5 + $0x70] sm:$0xff] %vm424, 0.0
      %441 = vst.msk [vmem:[#allocation5 + $0x78] sm:$0xff] %vm424, 0.0
      %442 = vst.msk [vmem:[#allocation5 + $0x80] sm:$0xff] %vm424, 0.0
      %443 = vst.msk [vmem:[#allocation5 + $0x88] sm:$0xff] %vm424, 0.0
      %444 = vst.msk [vmem:[#allocation5 + $0x90] sm:$0xff] %vm424, 0.0
      %445 = vst.msk [vmem:[#allocation5 + $0x98] sm:$0xff] %vm424, 0.0
      %446 = vst.msk [vmem:[#allocation5 + $0xa0] sm:$0xff] %vm424, 0.0
      %447 = vst.msk [vmem:[#allocation5 + $0xa8] sm:$0xff] %vm424, 0.0
      %448 = vst.msk [vmem:[#allocation5 + $0xb0] sm:$0xff] %vm424, 0.0
      %449 = vst.msk [vmem:[#allocation5 + $0xb8] sm:$0x3] %vm436, 0.0
      %450 = vst.msk [vmem:[#allocation5 + $0xc0] sm:$0xff] %vm424, 0.0
      %451 = vst.msk [vmem:[#allocation5 + $0xc8] sm:$0xff] %vm424, 0.0
      %452 = vst.msk [vmem:[#allocation5 + $0xd0] sm:$0xff] %vm424, 0.0
      %453 = vst.msk [vmem:[#allocation5 + $0xd8] sm:$0xff] %vm424, 0.0
      %454 = vst.msk [vmem:[#allocation5 + $0xe0] sm:$0xff] %vm424, 0.0
      %455 = vst.msk [vmem:[#allocation5 + $0xe8] sm:$0xff] %vm424, 0.0
      %456 = vst.msk [vmem:[#allocation5 + $0xf0] sm:$0xff] %vm424, 0.0
      %457 = vst.msk [vmem:[#allocation5 + $0xf8] sm:$0xff] %vm424, 0.0
      %458 = vst.msk [vmem:[#allocation5 + $0x100] sm:$0xff] %vm424, 0.0
      %459 = vst.msk [vmem:[#allocation5 + $0x108] sm:$0xff] %vm424, 0.0
      %460 = vst.msk [vmem:[#allocation5 + $0x110] sm:$0xff] %vm424, 0.0
      %461 = vst.msk [vmem:[#allocation5 + $0x118] sm:$0x3] %vm436, 0.0
      %462 = vst.msk [vmem:[#allocation5 + $0x120] sm:$0xff] %vm424, 0.0
      %463 = vst.msk [vmem:[#allocation5 + $0x128] sm:$0xff] %vm424, 0.0
      %464 = vst.msk [vmem:[#allocation5 + $0x130] sm:$0xff] %vm424, 0.0
      %465 = vst.msk [vmem:[#allocation5 + $0x138] sm:$0xff] %vm424, 0.0
      %466 = vst.msk [vmem:[#allocation5 + $0x140] sm:$0xff] %vm424, 0.0
      %467 = vst.msk [vmem:[#allocation5 + $0x148] sm:$0xff] %vm424, 0.0
      %468 = vst.msk [vmem:[#allocation5 + $0x150] sm:$0xff] %vm424, 0.0
      %469 = vst.msk [vmem:[#allocation5 + $0x158] sm:$0xff] %vm424, 0.0
      %470 = vst.msk [vmem:[#allocation5 + $0x160] sm:$0xff] %vm424, 0.0
      %471 = vst.msk [vmem:[#allocation5 + $0x168] sm:$0xff] %vm424, 0.0
      %472 = vst.msk [vmem:[#allocation5 + $0x170] sm:$0xff] %vm424, 0.0
      %473 = vst.msk [vmem:[#allocation5 + $0x178] sm:$0x3] %vm436, 0.0
      %v474 = vld [vmem:[%s383] sm:$0xff]
      %v475 = vld [vmem:[%s383 + $0x8] sm:$0xff]
      %v476 = vld [vmem:[%s383 + $0x10] sm:$0xff]
      %v477 = vld [vmem:[%s383 + $0x18] sm:$0xff]
      %v478 = vld [vmem:[%s383 + $0x20] sm:$0xff]
      %v479 = vld [vmem:[%s383 + $0x28] sm:$0xff]
      %v480 = vld [vmem:[%s383 + $0x30] sm:$0xff]
      %v481 = vld [vmem:[%s383 + $0x38] sm:$0xff]
      %v482 = vld [vmem:[%s383 + $0x40] sm:$0xff]
      %v483 = vld [vmem:[%s383 + $0x48] sm:$0x3]
      %v484 = vld [vmem:[%s1] sm:$0x1]
      %486 = vset.pattern.permute.xlu0 0
      %487 = vperm.xlu0 %486, %v474
      %v488 = vpop.permute.xlu0 %487
      %491 = vset.pattern.permute.xlu0 0
      %492 = vperm.xlu0 %491, %v475
      %v493 = vpop.permute.xlu0 %492
      %496 = vset.pattern.permute.xlu0 0
      %497 = vperm.xlu0 %496, %v476
      %v498 = vpop.permute.xlu0 %497
      %501 = vset.pattern.permute.xlu0 0
      %502 = vperm.xlu0 %501, %v477
      %v503 = vpop.permute.xlu0 %502
      %506 = vset.pattern.permute.xlu0 0
      %507 = vperm.xlu0 %506, %v478
      %v508 = vpop.permute.xlu0 %507
      %511 = vset.pattern.permute.xlu0 0
      %512 = vperm.xlu0 %511, %v479
      %v513 = vpop.permute.xlu0 %512
      %516 = vset.pattern.permute.xlu0 0
      %517 = vperm.xlu0 %516, %v480
      %v518 = vpop.permute.xlu0 %517
      %521 = vset.pattern.permute.xlu0 0
      %522 = vperm.xlu0 %521, %v481
      %v523 = vpop.permute.xlu0 %522
      %526 = vset.pattern.permute.xlu0 0
      %527 = vperm.xlu0 %526, %v482
      %v528 = vpop.permute.xlu0 %527
      %531 = vset.pattern.permute.xlu0 0
      %532 = vperm.xlu0 %531, %v483
      %v533 = vpop.permute.xlu0 %532
      %v536 = vlaneseq
      %v537 = vshrl.u32 %v536, 7
      %v538 = vsub.s32 0, %v537
      %v539 = vrot.slane %v484, %v538
      %v541 = vmul.f32 %v488, %v539
      %v542 = vmul.f32 %v493, %v539
      %v543 = vmul.f32 %v498, %v539
      %v544 = vmul.f32 %v503, %v539
      %v545 = vmul.f32 %v508, %v539
      %v546 = vmul.f32 %v513, %v539
      %v547 = vmul.f32 %v518, %v539
      %v548 = vmul.f32 %v523, %v539
      %v549 = vmul.f32 %v528, %v539
      %v550 = vmul.f32 %v533, %v539
      %v551 = vadd.f32 %v541, 0.0
      %v552 = vadd.f32 %v542, 0.0
      %v553 = vadd.f32 %v543, 0.0
      %v554 = vadd.f32 %v544, 0.0
      %v555 = vadd.f32 %v545, 0.0
      %v556 = vadd.f32 %v546, 0.0
      %v557 = vadd.f32 %v547, 0.0
      %v558 = vadd.f32 %v548, 0.0
      %v559 = vadd.f32 %v549, 0.0
      %v560 = vadd.f32 %v550, 0.0
      %s561 = scalar_lea.vmem %s383, 96
      %v562 = vld [vmem:[%s561] sm:$0xff]
      %v563 = vld [vmem:[%s561 + $0x8] sm:$0xff]
      %v564 = vld [vmem:[%s561 + $0x10] sm:$0xff]
      %v565 = vld [vmem:[%s561 + $0x18] sm:$0xff]
      %v566 = vld [vmem:[%s561 + $0x20] sm:$0xff]
      %v567 = vld [vmem:[%s561 + $0x28] sm:$0xff]
      %v568 = vld [vmem:[%s561 + $0x30] sm:$0xff]
      %v569 = vld [vmem:[%s561 + $0x38] sm:$0xff]
      %v570 = vld [vmem:[%s561 + $0x40] sm:$0xff]
      %v571 = vld [vmem:[%s561 + $0x48] sm:$0x3]
      %s572 = scalar_lea.vmem %s1, 1
      %v573 = vld [vmem:[%s572] sm:$0x1]
      %575 = vset.pattern.permute.xlu0 0
      %576 = vperm.xlu0 %575, %v562
      %v577 = vpop.permute.xlu0 %576
      %580 = vset.pattern.permute.xlu0 0
      %581 = vperm.xlu0 %580, %v563
      %v582 = vpop.permute.xlu0 %581
      %585 = vset.pattern.permute.xlu0 0
      %586 = vperm.xlu0 %585, %v564
      %v587 = vpop.permute.xlu0 %586
      %590 = vset.pattern.permute.xlu0 0
      %591 = vperm.xlu0 %590, %v565
      %v592 = vpop.permute.xlu0 %591
      %595 = vset.pattern.permute.xlu0 0
      %596 = vperm.xlu0 %595, %v566
      %v597 = vpop.permute.xlu0 %596
      %600 = vset.pattern.permute.xlu0 0
      %601 = vperm.xlu0 %600, %v567
      %v602 = vpop.permute.xlu0 %601
      %605 = vset.pattern.permute.xlu0 0
      %606 = vperm.xlu0 %605, %v568
      %v607 = vpop.permute.xlu0 %606
      %610 = vset.pattern.permute.xlu0 0
      %611 = vperm.xlu0 %610, %v569
      %v612 = vpop.permute.xlu0 %611
      %615 = vset.pattern.permute.xlu0 0
      %616 = vperm.xlu0 %615, %v570
      %v617 = vpop.permute.xlu0 %616
      %620 = vset.pattern.permute.xlu0 0
      %621 = vperm.xlu0 %620, %v571
      %v622 = vpop.permute.xlu0 %621
      %v625 = vlaneseq
      %v626 = vshrl.u32 %v625, 7
      %v627 = vsub.s32 0, %v626
      %v628 = vrot.slane %v573, %v627
      %v630 = vmul.f32 %v577, %v628
      %v631 = vmul.f32 %v582, %v628
      %v632 = vmul.f32 %v587, %v628
      %v633 = vmul.f32 %v592, %v628
      %v634 = vmul.f32 %v597, %v628
      %v635 = vmul.f32 %v602, %v628
      %v636 = vmul.f32 %v607, %v628
      %v637 = vmul.f32 %v612, %v628
      %v638 = vmul.f32 %v617, %v628
      %v639 = vmul.f32 %v622, %v628
      %v640 = vadd.f32 %v551, %v630
      %v641 = vadd.f32 %v552, %v631
      %v642 = vadd.f32 %v553, %v632
      %v643 = vadd.f32 %v554, %v633
      %v644 = vadd.f32 %v555, %v634
      %v645 = vadd.f32 %v556, %v635
      %v646 = vadd.f32 %v557, %v636
      %v647 = vadd.f32 %v558, %v637
      %v648 = vadd.f32 %v559, %v638
      %v649 = vadd.f32 %v560, %v639
      %s650 = scalar_lea.vmem %s383, 192
      %v651 = vld [vmem:[%s650] sm:$0xff]
      %v652 = vld [vmem:[%s650 + $0x8] sm:$0xff]
      %v653 = vld [vmem:[%s650 + $0x10] sm:$0xff]
      %v654 = vld [vmem:[%s650 + $0x18] sm:$0xff]
      %v655 = vld [vmem:[%s650 + $0x20] sm:$0xff]
      %v656 = vld [vmem:[%s650 + $0x28] sm:$0xff]
      %v657 = vld [vmem:[%s650 + $0x30] sm:$0xff]
      %v658 = vld [vmem:[%s650 + $0x38] sm:$0xff]
      %v659 = vld [vmem:[%s650 + $0x40] sm:$0xff]
      %v660 = vld [vmem:[%s650 + $0x48] sm:$0x3]
      %s661 = scalar_lea.vmem %s1, 2
      %v662 = vld [vmem:[%s661] sm:$0x1]
      %664 = vset.pattern.permute.xlu0 0
      %665 = vperm.xlu0 %664, %v651
      %v666 = vpop.permute.xlu0 %665
      %669 = vset.pattern.permute.xlu0 0
      %670 = vperm.xlu0 %669, %v652
      %v671 = vpop.permute.xlu0 %670
      %674 = vset.pattern.permute.xlu0 0
      %675 = vperm.xlu0 %674, %v653
      %v676 = vpop.permute.xlu0 %675
      %679 = vset.pattern.permute.xlu0 0
      %680 = vperm.xlu0 %679, %v654
      %v681 = vpop.permute.xlu0 %680
      %684 = vset.pattern.permute.xlu0 0
      %685 = vperm.xlu0 %684, %v655
      %v686 = vpop.permute.xlu0 %685
      %689 = vset.pattern.permute.xlu0 0
      %690 = vperm.xlu0 %689, %v656
      %v691 = vpop.permute.xlu0 %690
      %694 = vset.pattern.permute.xlu0 0
      %695 = vperm.xlu0 %694, %v657
      %v696 = vpop.permute.xlu0 %695
      %699 = vset.pattern.permute.xlu0 0
      %700 = vperm.xlu0 %699, %v658
      %v701 = vpop.permute.xlu0 %700
      %704 = vset.pattern.permute.xlu0 0
      %705 = vperm.xlu0 %704, %v659
      %v706 = vpop.permute.xlu0 %705
      %709 = vset.pattern.permute.xlu0 0
      %710 = vperm.xlu0 %709, %v660
      %v711 = vpop.permute.xlu0 %710
      %v714 = vlaneseq
      %v715 = vshrl.u32 %v714, 7
      %v716 = vsub.s32 0, %v715
      %v717 = vrot.slane %v662, %v716
      %v719 = vmul.f32 %v666, %v717
      %v720 = vmul.f32 %v671, %v717
      %v721 = vmul.f32 %v676, %v717
      %v722 = vmul.f32 %v681, %v717
      %v723 = vmul.f32 %v686, %v717
      %v724 = vmul.f32 %v691, %v717
      %v725 = vmul.f32 %v696, %v717
      %v726 = vmul.f32 %v701, %v717
      %v727 = vmul.f32 %v706, %v717
      %v728 = vmul.f32 %v711, %v717
      %v729 = vadd.f32 %v640, %v719
      %v730 = vadd.f32 %v641, %v720
      %v731 = vadd.f32 %v642, %v721
      %v732 = vadd.f32 %v643, %v722
      %v733 = vadd.f32 %v644, %v723
      %v734 = vadd.f32 %v645, %v724
      %v735 = vadd.f32 %v646, %v725
      %v736 = vadd.f32 %v647, %v726
      %v737 = vadd.f32 %v648, %v727
      %v738 = vadd.f32 %v649, %v728
      %v739 = vld [vmem:[%s383 + $0x5] sm:$0xff]
      %v740 = vld [vmem:[%s383 + $0xd] sm:$0xff]
      %v741 = vld [vmem:[%s383 + $0x15] sm:$0xff]
      %v742 = vld [vmem:[%s383 + $0x1d] sm:$0xff]
      %v743 = vld [vmem:[%s383 + $0x25] sm:$0xff]
      %v744 = vld [vmem:[%s383 + $0x2d] sm:$0xff]
      %v745 = vld [vmem:[%s383 + $0x35] sm:$0xff]
      %v746 = vld [vmem:[%s383 + $0x3d] sm:$0xff]
      %v747 = vld [vmem:[%s383 + $0x45] sm:$0xff]
      %v748 = vld [vmem:[%s383 + $0x4d] sm:$0x3]
      %s749 = scalar_lea.vmem %s1, 3
      %v750 = vld [vmem:[%s749] sm:$0x1]
      %752 = vset.pattern.permute.xlu0 0
      %753 = vperm.xlu0 %752, %v739
      %v754 = vpop.permute.xlu0 %753
      %757 = vset.pattern.permute.xlu0 0
      %758 = vperm.xlu0 %757, %v740
      %v759 = vpop.permute.xlu0 %758
      %762 = vset.pattern.permute.xlu0 0
      %763 = vperm.xlu0 %762, %v741
      %v764 = vpop.permute.xlu0 %763
      %767 = vset.pattern.permute.xlu0 0
      %768 = vperm.xlu0 %767, %v742
      %v769 = vpop.permute.xlu0 %768
      %772 = vset.pattern.permute.xlu0 0
      %773 = vperm.xlu0 %772, %v743
      %v774 = vpop.permute.xlu0 %773
      %777 = vset.pattern.permute.xlu0 0
      %778 = vperm.xlu0 %777, %v744
      %v779 = vpop.permute.xlu0 %778
      %782 = vset.pattern.permute.xlu0 0
      %783 = vperm.xlu0 %782, %v745
      %v784 = vpop.permute.xlu0 %783
      %787 = vset.pattern.permute.xlu0 0
      %788 = vperm.xlu0 %787, %v746
      %v789 = vpop.permute.xlu0 %788
      %792 = vset.pattern.permute.xlu0 0
      %793 = vperm.xlu0 %792, %v747
      %v794 = vpop.permute.xlu0 %793
      %797 = vset.pattern.permute.xlu0 0
      %798 = vperm.xlu0 %797, %v748
      %v799 = vpop.permute.xlu0 %798
      %v802 = vlaneseq
      %v803 = vshrl.u32 %v802, 7
      %v804 = vsub.s32 0, %v803
      %v805 = vrot.slane %v750, %v804
      %v807 = vmul.f32 %v754, %v805
      %v808 = vmul.f32 %v759, %v805
      %v809 = vmul.f32 %v764, %v805
      %v810 = vmul.f32 %v769, %v805
      %v811 = vmul.f32 %v774, %v805
      %v812 = vmul.f32 %v779, %v805
      %v813 = vmul.f32 %v784, %v805
      %v814 = vmul.f32 %v789, %v805
      %v815 = vmul.f32 %v794, %v805
      %v816 = vmul.f32 %v799, %v805
      %v817 = vadd.f32 %v729, %v807
      %v818 = vadd.f32 %v730, %v808
      %v819 = vadd.f32 %v731, %v809
      %v820 = vadd.f32 %v732, %v810
      %v821 = vadd.f32 %v733, %v811
      %v822 = vadd.f32 %v734, %v812
      %v823 = vadd.f32 %v735, %v813
      %v824 = vadd.f32 %v736, %v814
      %v825 = vadd.f32 %v737, %v815
      %v826 = vadd.f32 %v738, %v816
      %v827 = vld [vmem:[%s561 + $0x5] sm:$0xff]
      %v828 = vld [vmem:[%s561 + $0xd] sm:$0xff]
      %v829 = vld [vmem:[%s561 + $0x15] sm:$0xff]
      %v830 = vld [vmem:[%s561 + $0x1d] sm:$0xff]
      %v831 = vld [vmem:[%s561 + $0x25] sm:$0xff]
      %v832 = vld [vmem:[%s561 + $0x2d] sm:$0xff]
      %v833 = vld [vmem:[%s561 + $0x35] sm:$0xff]
      %v834 = vld [vmem:[%s561 + $0x3d] sm:$0xff]
      %v835 = vld [vmem:[%s561 + $0x45] sm:$0xff]
      %v836 = vld [vmem:[%s561 + $0x4d] sm:$0x3]
      %s837 = scalar_lea.vmem %s1, 4
      %v838 = vld [vmem:[%s837] sm:$0x1]
      %840 = vset.pattern.permute.xlu0 0
      %841 = vperm.xlu0 %840, %v827
      %v842 = vpop.permute.xlu0 %841
      %845 = vset.pattern.permute.xlu0 0
      %846 = vperm.xlu0 %845, %v828
      %v847 = vpop.permute.xlu0 %846
      %850 = vset.pattern.permute.xlu0 0
      %851 = vperm.xlu0 %850, %v829
      %v852 = vpop.permute.xlu0 %851
      %855 = vset.pattern.permute.xlu0 0
      %856 = vperm.xlu0 %855, %v830
      %v857 = vpop.permute.xlu0 %856
      %860 = vset.pattern.permute.xlu0 0
      %861 = vperm.xlu0 %860, %v831
      %v862 = vpop.permute.xlu0 %861
      %865 = vset.pattern.permute.xlu0 0
      %866 = vperm.xlu0 %865, %v832
      %v867 = vpop.permute.xlu0 %866
      %870 = vset.pattern.permute.xlu0 0
      %871 = vperm.xlu0 %870, %v833
      %v872 = vpop.permute.xlu0 %871
      %875 = vset.pattern.permute.xlu0 0
      %876 = vperm.xlu0 %875, %v834
      %v877 = vpop.permute.xlu0 %876
      %880 = vset.pattern.permute.xlu0 0
      %881 = vperm.xlu0 %880, %v835
      %v882 = vpop.permute.xlu0 %881
      %885 = vset.pattern.permute.xlu0 0
      %886 = vperm.xlu0 %885, %v836
      %v887 = vpop.permute.xlu0 %886
      %v890 = vlaneseq
      %v891 = vshrl.u32 %v890, 7
      %v892 = vsub.s32 0, %v891
      %v893 = vrot.slane %v838, %v892
      %v895 = vmul.f32 %v842, %v893
      %v896 = vmul.f32 %v847, %v893
      %v897 = vmul.f32 %v852, %v893
      %v898 = vmul.f32 %v857, %v893
      %v899 = vmul.f32 %v862, %v893
      %v900 = vmul.f32 %v867, %v893
      %v901 = vmul.f32 %v872, %v893
      %v902 = vmul.f32 %v877, %v893
      %v903 = vmul.f32 %v882, %v893
      %v904 = vmul.f32 %v887, %v893
      %v905 = vadd.f32 %v817, %v895
      %v906 = vadd.f32 %v818, %v896
      %v907 = vadd.f32 %v819, %v897
      %v908 = vadd.f32 %v820, %v898
      %v909 = vadd.f32 %v821, %v899
      %v910 = vadd.f32 %v822, %v900
      %v911 = vadd.f32 %v823, %v901
      %v912 = vadd.f32 %v824, %v902
      %v913 = vadd.f32 %v825, %v903
      %v914 = vadd.f32 %v826, %v904
      %v915 = vld [vmem:[%s650 + $0x5] sm:$0xff]
      %v916 = vld [vmem:[%s650 + $0xd] sm:$0xff]
      %v917 = vld [vmem:[%s650 + $0x15] sm:$0xff]
      %v918 = vld [vmem:[%s650 + $0x1d] sm:$0xff]
      %v919 = vld [vmem:[%s650 + $0x25] sm:$0xff]
      %v920 = vld [vmem:[%s650 + $0x2d] sm:$0xff]
      %v921 = vld [vmem:[%s650 + $0x35] sm:$0xff]
      %v922 = vld [vmem:[%s650 + $0x3d] sm:$0xff]
      %v923 = vld [vmem:[%s650 + $0x45] sm:$0xff]
      %v924 = vld [vmem:[%s650 + $0x4d] sm:$0x3]
      %s925 = scalar_lea.vmem %s1, 5
      %v926 = vld [vmem:[%s925] sm:$0x1]
      %928 = vset.pattern.permute.xlu0 0
      %929 = vperm.xlu0 %928, %v915
      %v930 = vpop.permute.xlu0 %929
      %933 = vset.pattern.permute.xlu0 0
      %934 = vperm.xlu0 %933, %v916
      %v935 = vpop.permute.xlu0 %934
      %938 = vset.pattern.permute.xlu0 0
      %939 = vperm.xlu0 %938, %v917
      %v940 = vpop.permute.xlu0 %939
      %943 = vset.pattern.permute.xlu0 0
      %944 = vperm.xlu0 %943, %v918
      %v945 = vpop.permute.xlu0 %944
      %948 = vset.pattern.permute.xlu0 0
      %949 = vperm.xlu0 %948, %v919
      %v950 = vpop.permute.xlu0 %949
      %953 = vset.pattern.permute.xlu0 0
      %954 = vperm.xlu0 %953, %v920
      %v955 = vpop.permute.xlu0 %954
      %958 = vset.pattern.permute.xlu0 0
      %959 = vperm.xlu0 %958, %v921
      %v960 = vpop.permute.xlu0 %959
      %963 = vset.pattern.permute.xlu0 0
      %964 = vperm.xlu0 %963, %v922
      %v965 = vpop.permute.xlu0 %964
      %968 = vset.pattern.permute.xlu0 0
      %969 = vperm.xlu0 %968, %v923
      %v970 = vpop.permute.xlu0 %969
      %973 = vset.pattern.permute.xlu0 0
      %974 = vperm.xlu0 %973, %v924
      %v975 = vpop.permute.xlu0 %974
      %v978 = vlaneseq
      %v979 = vshrl.u32 %v978, 7
      %v980 = vsub.s32 0, %v979
      %v981 = vrot.slane %v926, %v980
      %v983 = vmul.f32 %v930, %v981
      %v984 = vmul.f32 %v935, %v981
      %v985 = vmul.f32 %v940, %v981
      %v986 = vmul.f32 %v945, %v981
      %v987 = vmul.f32 %v950, %v981
      %v988 = vmul.f32 %v955, %v981
      %v989 = vmul.f32 %v960, %v981
      %v990 = vmul.f32 %v965, %v981
      %v991 = vmul.f32 %v970, %v981
      %v992 = vmul.f32 %v975, %v981
      %v993 = vadd.f32 %v905, %v983
      %v994 = vadd.f32 %v906, %v984
      %v995 = vadd.f32 %v907, %v985
      %v996 = vadd.f32 %v908, %v986
      %v997 = vadd.f32 %v909, %v987
      %v998 = vadd.f32 %v910, %v988
      %v999 = vadd.f32 %v911, %v989
      %v1000 = vadd.f32 %v912, %v990
      %v1001 = vadd.f32 %v913, %v991
      %v1002 = vadd.f32 %v914, %v992
      %v1003 = vld [vmem:[%s383 + $0xa] sm:$0xff]
      %v1004 = vld [vmem:[%s383 + $0x12] sm:$0xff]
      %v1005 = vld [vmem:[%s383 + $0x1a] sm:$0xff]
      %v1006 = vld [vmem:[%s383 + $0x22] sm:$0xff]
      %v1007 = vld [vmem:[%s383 + $0x2a] sm:$0xff]
      %v1008 = vld [vmem:[%s383 + $0x32] sm:$0xff]
      %v1009 = vld [vmem:[%s383 + $0x3a] sm:$0xff]
      %v1010 = vld [vmem:[%s383 + $0x42] sm:$0xff]
      %v1011 = vld [vmem:[%s383 + $0x4a] sm:$0xff]
      %v1012 = vld [vmem:[%s383 + $0x52] sm:$0x3]
      %s1013 = scalar_lea.vmem %s1, 6
      %v1014 = vld [vmem:[%s1013] sm:$0x1]
      %1016 = vset.pattern.permute.xlu0 0
      %1017 = vperm.xlu0 %1016, %v1003
      %v1018 = vpop.permute.xlu0 %1017
      %1021 = vset.pattern.permute.xlu0 0
      %1022 = vperm.xlu0 %1021, %v1004
      %v1023 = vpop.permute.xlu0 %1022
      %1026 = vset.pattern.permute.xlu0 0
      %1027 = vperm.xlu0 %1026, %v1005
      %v1028 = vpop.permute.xlu0 %1027
      %1031 = vset.pattern.permute.xlu0 0
      %1032 = vperm.xlu0 %1031, %v1006
      %v1033 = vpop.permute.xlu0 %1032
      %1036 = vset.pattern.permute.xlu0 0
      %1037 = vperm.xlu0 %1036, %v1007
      %v1038 = vpop.permute.xlu0 %1037
      %1041 = vset.pattern.permute.xlu0 0
      %1042 = vperm.xlu0 %1041, %v1008
      %v1043 = vpop.permute.xlu0 %1042
      %1046 = vset.pattern.permute.xlu0 0
      %1047 = vperm.xlu0 %1046, %v1009
      %v1048 = vpop.permute.xlu0 %1047
      %1051 = vset.pattern.permute.xlu0 0
      %1052 = vperm.xlu0 %1051, %v1010
      %v1053 = vpop.permute.xlu0 %1052
      %1056 = vset.pattern.permute.xlu0 0
      %1057 = vperm.xlu0 %1056, %v1011
      %v1058 = vpop.permute.xlu0 %1057
      %1061 = vset.pattern.permute.xlu0 0
      %1062 = vperm.xlu0 %1061, %v1012
      %v1063 = vpop.permute.xlu0 %1062
      %v1066 = vlaneseq
      %v1067 = vshrl.u32 %v1066, 7
      %v1068 = vsub.s32 0, %v1067
      %v1069 = vrot.slane %v1014, %v1068
      %v1071 = vmul.f32 %v1018, %v1069
      %v1072 = vmul.f32 %v1023, %v1069
      %v1073 = vmul.f32 %v1028, %v1069
      %v1074 = vmul.f32 %v1033, %v1069
      %v1075 = vmul.f32 %v1038, %v1069
      %v1076 = vmul.f32 %v1043, %v1069
      %v1077 = vmul.f32 %v1048, %v1069
      %v1078 = vmul.f32 %v1053, %v1069
      %v1079 = vmul.f32 %v1058, %v1069
      %v1080 = vmul.f32 %v1063, %v1069
      %v1081 = vadd.f32 %v993, %v1071
      %v1082 = vadd.f32 %v994, %v1072
      %v1083 = vadd.f32 %v995, %v1073
      %v1084 = vadd.f32 %v996, %v1074
      %v1085 = vadd.f32 %v997, %v1075
      %v1086 = vadd.f32 %v998, %v1076
      %v1087 = vadd.f32 %v999, %v1077
      %v1088 = vadd.f32 %v1000, %v1078
      %v1089 = vadd.f32 %v1001, %v1079
      %v1090 = vadd.f32 %v1002, %v1080
      %v1091 = vld [vmem:[%s561 + $0xa] sm:$0xff]
      %v1092 = vld [vmem:[%s561 + $0x12] sm:$0xff]
      %v1093 = vld [vmem:[%s561 + $0x1a] sm:$0xff]
      %v1094 = vld [vmem:[%s561 + $0x22] sm:$0xff]
      %v1095 = vld [vmem:[%s561 + $0x2a] sm:$0xff]
      %v1096 = vld [vmem:[%s561 + $0x32] sm:$0xff]
      %v1097 = vld [vmem:[%s561 + $0x3a] sm:$0xff]
      %v1098 = vld [vmem:[%s561 + $0x42] sm:$0xff]
      %v1099 = vld [vmem:[%s561 + $0x4a] sm:$0xff]
      %v1100 = vld [vmem:[%s561 + $0x52] sm:$0x3]
      %s1101 = scalar_lea.vmem %s1, 7
      %v1102 = vld [vmem:[%s1101] sm:$0x1]
      %1104 = vset.pattern.permute.xlu0 0
      %1105 = vperm.xlu0 %1104, %v1091
      %v1106 = vpop.permute.xlu0 %1105
      %1109 = vset.pattern.permute.xlu0 0
      %1110 = vperm.xlu0 %1109, %v1092
      %v1111 = vpop.permute.xlu0 %1110
      %1114 = vset.pattern.permute.xlu0 0
      %1115 = vperm.xlu0 %1114, %v1093
      %v1116 = vpop.permute.xlu0 %1115
      %1119 = vset.pattern.permute.xlu0 0
      %1120 = vperm.xlu0 %1119, %v1094
      %v1121 = vpop.permute.xlu0 %1120
      %1124 = vset.pattern.permute.xlu0 0
      %1125 = vperm.xlu0 %1124, %v1095
      %v1126 = vpop.permute.xlu0 %1125
      %1129 = vset.pattern.permute.xlu0 0
      %1130 = vperm.xlu0 %1129, %v1096
      %v1131 = vpop.permute.xlu0 %1130
      %1134 = vset.pattern.permute.xlu0 0
      %1135 = vperm.xlu0 %1134, %v1097
      %v1136 = vpop.permute.xlu0 %1135
      %1139 = vset.pattern.permute.xlu0 0
      %1140 = vperm.xlu0 %1139, %v1098
      %v1141 = vpop.permute.xlu0 %1140
      %1144 = vset.pattern.permute.xlu0 0
      %1145 = vperm.xlu0 %1144, %v1099
      %v1146 = vpop.permute.xlu0 %1145
      %1149 = vset.pattern.permute.xlu0 0
      %1150 = vperm.xlu0 %1149, %v1100
      %v1151 = vpop.permute.xlu0 %1150
      %v1154 = vlaneseq
      %v1155 = vshrl.u32 %v1154, 7
      %v1156 = vsub.s32 0, %v1155
      %v1157 = vrot.slane %v1102, %v1156
      %v1159 = vmul.f32 %v1106, %v1157
      %v1160 = vmul.f32 %v1111, %v1157
      %v1161 = vmul.f32 %v1116, %v1157
      %v1162 = vmul.f32 %v1121, %v1157
      %v1163 = vmul.f32 %v1126, %v1157
      %v1164 = vmul.f32 %v1131, %v1157
      %v1165 = vmul.f32 %v1136, %v1157
      %v1166 = vmul.f32 %v1141, %v1157
      %v1167 = vmul.f32 %v1146, %v1157
      %v1168 = vmul.f32 %v1151, %v1157
      %v1169 = vadd.f32 %v1081, %v1159
      %v1170 = vadd.f32 %v1082, %v1160
      %v1171 = vadd.f32 %v1083, %v1161
      %v1172 = vadd.f32 %v1084, %v1162
      %v1173 = vadd.f32 %v1085, %v1163
      %v1174 = vadd.f32 %v1086, %v1164
      %v1175 = vadd.f32 %v1087, %v1165
      %v1176 = vadd.f32 %v1088, %v1166
      %v1177 = vadd.f32 %v1089, %v1167
      %v1178 = vadd.f32 %v1090, %v1168
      %v1179 = vld [vmem:[%s650 + $0xa] sm:$0xff]
      %v1180 = vld [vmem:[%s650 + $0x12] sm:$0xff]
      %v1181 = vld [vmem:[%s650 + $0x1a] sm:$0xff]
      %v1182 = vld [vmem:[%s650 + $0x22] sm:$0xff]
      %v1183 = vld [vmem:[%s650 + $0x2a] sm:$0xff]
      %v1184 = vld [vmem:[%s650 + $0x32] sm:$0xff]
      %v1185 = vld [vmem:[%s650 + $0x3a] sm:$0xff]
      %v1186 = vld [vmem:[%s650 + $0x42] sm:$0xff]
      %v1187 = vld [vmem:[%s650 + $0x4a] sm:$0xff]
      %v1188 = vld [vmem:[%s650 + $0x52] sm:$0x3]
      %s1189 = scalar_lea.vmem %s1, 8
      %v1190 = vld [vmem:[%s1189] sm:$0x1]
      %1192 = vset.pattern.permute.xlu0 0
      %1193 = vperm.xlu0 %1192, %v1179
      %v1194 = vpop.permute.xlu0 %1193
      %1197 = vset.pattern.permute.xlu0 0
      %1198 = vperm.xlu0 %1197, %v1180
      %v1199 = vpop.permute.xlu0 %1198
      %1202 = vset.pattern.permute.xlu0 0
      %1203 = vperm.xlu0 %1202, %v1181
      %v1204 = vpop.permute.xlu0 %1203
      %1207 = vset.pattern.permute.xlu0 0
      %1208 = vperm.xlu0 %1207, %v1182
      %v1209 = vpop.permute.xlu0 %1208
      %1212 = vset.pattern.permute.xlu0 0
      %1213 = vperm.xlu0 %1212, %v1183
      %v1214 = vpop.permute.xlu0 %1213
      %1217 = vset.pattern.permute.xlu0 0
      %1218 = vperm.xlu0 %1217, %v1184
      %v1219 = vpop.permute.xlu0 %1218
      %1222 = vset.pattern.permute.xlu0 0
      %1223 = vperm.xlu0 %1222, %v1185
      %v1224 = vpop.permute.xlu0 %1223
      %1227 = vset.pattern.permute.xlu0 0
      %1228 = vperm.xlu0 %1227, %v1186
      %v1229 = vpop.permute.xlu0 %1228
      %1232 = vset.pattern.permute.xlu0 0
      %1233 = vperm.xlu0 %1232, %v1187
      %v1234 = vpop.permute.xlu0 %1233
      %1237 = vset.pattern.permute.xlu0 0
      %1238 = vperm.xlu0 %1237, %v1188
      %v1239 = vpop.permute.xlu0 %1238
      %v1242 = vlaneseq
      %v1243 = vshrl.u32 %v1242, 7
      %v1244 = vsub.s32 0, %v1243
      %v1245 = vrot.slane %v1190, %v1244
      %v1247 = vmul.f32 %v1194, %v1245
      %v1248 = vmul.f32 %v1199, %v1245
      %v1249 = vmul.f32 %v1204, %v1245
      %v1250 = vmul.f32 %v1209, %v1245
      %v1251 = vmul.f32 %v1214, %v1245
      %v1252 = vmul.f32 %v1219, %v1245
      %v1253 = vmul.f32 %v1224, %v1245
      %v1254 = vmul.f32 %v1229, %v1245
      %v1255 = vmul.f32 %v1234, %v1245
      %v1256 = vmul.f32 %v1239, %v1245
      %v1257 = vadd.f32 %v1169, %v1247
      %v1258 = vadd.f32 %v1170, %v1248
      %v1259 = vadd.f32 %v1171, %v1249
      %v1260 = vadd.f32 %v1172, %v1250
      %v1261 = vadd.f32 %v1173, %v1251
      %v1262 = vadd.f32 %v1174, %v1252
      %v1263 = vadd.f32 %v1175, %v1253
      %v1264 = vadd.f32 %v1176, %v1254
      %v1265 = vadd.f32 %v1177, %v1255
      %v1266 = vadd.f32 %v1178, %v1256
      %v1267 = vld [vmem:[%s2] sm:$0x1]
      %v1269 = vlaneseq
      %v1270 = vshrl.u32 %v1269, 7
      %v1271 = vsub.s32 0, %v1270
      %v1272 = vrot.slane %v1267, %v1271
      %v1274 = vadd.f32 %v1257, %v1272
      %v1275 = vadd.f32 %v1258, %v1272
      %v1276 = vadd.f32 %v1259, %v1272
      %v1277 = vadd.f32 %v1260, %v1272
      %v1278 = vadd.f32 %v1261, %v1272
      %v1279 = vadd.f32 %v1262, %v1272
      %v1280 = vadd.f32 %v1263, %v1272
      %v1281 = vadd.f32 %v1264, %v1272
      %v1282 = vadd.f32 %v1265, %v1272
      %v1283 = vadd.f32 %v1266, %v1272
      %v1284 = vmax.f32 %v1274, 0.0
      %v1285 = vmax.f32 %v1275, 0.0
      %v1286 = vmax.f32 %v1276, 0.0
      %v1287 = vmax.f32 %v1277, 0.0
      %v1288 = vmax.f32 %v1278, 0.0
      %v1289 = vmax.f32 %v1279, 0.0
      %v1290 = vmax.f32 %v1280, 0.0
      %v1291 = vmax.f32 %v1281, 0.0
      %v1292 = vmax.f32 %v1282, 0.0
      %v1293 = vmax.f32 %v1283, 0.0
      %s1294 = scalar_lea.vmem [#allocation2], 56
      %vm1295 = vcmask 388096
      %1296 = vst.msk [vmem:[%s1294 + $0x5] sm:$0xf] %vm1295, %v1284
      %vm1297 = vcmask 390146
      %1298 = vst.msk [vmem:[%s1294 + $0x8] sm:$0x3c] %vm1297, %v1285
      %vm1299 = vcmask 392196
      %1300 = vst.msk [vmem:[%s1294 + $0xb] sm:$0xf0] %vm1299, %v1286
      %vm1301 = vcmask 392198
      %1302 = vst.msk [vmem:[%s1294 + $0xe] sm:$0xc0] %vm1301, %v1287
      %1303 = vst.msk [vmem:[%s1294 + $0x16] sm:$0x3] %vm396, %v1288
      %1304 = vst.msk [vmem:[%s1294 + $0x19] sm:$0xf] %vm1295, %v1289
      %1305 = vst.msk [vmem:[%s1294 + $0x1c] sm:$0x3c] %vm1297, %v1290
      %1306 = vst.msk [vmem:[%s1294 + $0x1f] sm:$0xf0] %vm1299, %v1291
      %1307 = vst.msk [vmem:[%s1294 + $0x22] sm:$0xc0] %vm1301, %v1292
      %1308 = vst.msk [vmem:[%s1294 + $0x2a] sm:$0x3] %vm396, %v1293
      %v1309 = vld [vmem:[%s650] sm:$0xff]
      %v1310 = vld [vmem:[%s650 + $0x8] sm:$0xff]
      %v1311 = vld [vmem:[%s650 + $0x10] sm:$0xff]
      %v1312 = vld [vmem:[%s650 + $0x18] sm:$0xff]
      %v1313 = vld [vmem:[%s650 + $0x20] sm:$0xff]
      %v1314 = vld [vmem:[%s650 + $0x28] sm:$0xff]
      %v1315 = vld [vmem:[%s650 + $0x30] sm:$0xff]
      %v1316 = vld [vmem:[%s650 + $0x38] sm:$0xff]
      %v1317 = vld [vmem:[%s650 + $0x40] sm:$0xff]
      %v1318 = vld [vmem:[%s650 + $0x48] sm:$0x3]
      %v1319 = vld [vmem:[%s1] sm:$0x1]
      %1321 = vset.pattern.permute.xlu0 0
      %1322 = vperm.xlu0 %1321, %v1309
      %v1323 = vpop.permute.xlu0 %1322
      %1326 = vset.pattern.permute.xlu0 0
      %1327 = vperm.xlu0 %1326, %v1310
      %v1328 = vpop.permute.xlu0 %1327
      %1331 = vset.pattern.permute.xlu0 0
      %1332 = vperm.xlu0 %1331, %v1311
      %v1333 = vpop.permute.xlu0 %1332
      %1336 = vset.pattern.permute.xlu0 0
      %1337 = vperm.xlu0 %1336, %v1312
      %v1338 = vpop.permute.xlu0 %1337
      %1341 = vset.pattern.permute.xlu0 0
      %1342 = vperm.xlu0 %1341, %v1313
      %v1343 = vpop.permute.xlu0 %1342
      %1346 = vset.pattern.permute.xlu0 0
      %1347 = vperm.xlu0 %1346, %v1314
      %v1348 = vpop.permute.xlu0 %1347
      %1351 = vset.pattern.permute.xlu0 0
      %1352 = vperm.xlu0 %1351, %v1315
      %v1353 = vpop.permute.xlu0 %1352
      %1356 = vset.pattern.permute.xlu0 0
      %1357 = vperm.xlu0 %1356, %v1316
      %v1358 = vpop.permute.xlu0 %1357
      %1361 = vset.pattern.permute.xlu0 0
      %1362 = vperm.xlu0 %1361, %v1317
      %v1363 = vpop.permute.xlu0 %1362
      %1366 = vset.pattern.permute.xlu0 0
      %1367 = vperm.xlu0 %1366, %v1318
      %v1368 = vpop.permute.xlu0 %1367
      %v1371 = vlaneseq
      %v1372 = vshrl.u32 %v1371, 7
      %v1373 = vsub.s32 0, %v1372
      %v1374 = vrot.slane %v1319, %v1373
      %v1376 = vmul.f32 %v1323, %v1374
      %v1377 = vmul.f32 %v1328, %v1374
      %v1378 = vmul.f32 %v1333, %v1374
      %v1379 = vmul.f32 %v1338, %v1374
      %v1380 = vmul.f32 %v1343, %v1374
      %v1381 = vmul.f32 %v1348, %v1374
      %v1382 = vmul.f32 %v1353, %v1374
      %v1383 = vmul.f32 %v1358, %v1374
      %v1384 = vmul.f32 %v1363, %v1374
      %v1385 = vmul.f32 %v1368, %v1374
      %v1386 = vadd.f32 %v1376, 0.0
      %v1387 = vadd.f32 %v1377, 0.0
      %v1388 = vadd.f32 %v1378, 0.0
      %v1389 = vadd.f32 %v1379, 0.0
      %v1390 = vadd.f32 %v1380, 0.0
      %v1391 = vadd.f32 %v1381, 0.0
      %v1392 = vadd.f32 %v1382, 0.0
      %v1393 = vadd.f32 %v1383, 0.0
      %v1394 = vadd.f32 %v1384, 0.0
      %v1395 = vadd.f32 %v1385, 0.0
      %s1396 = scalar_lea.vmem %s383, 288
      %v1397 = vld [vmem:[%s1396] sm:$0xff]
      %v1398 = vld [vmem:[%s1396 + $0x8] sm:$0xff]
      %v1399 = vld [vmem:[%s1396 + $0x10] sm:$0xff]
      %v1400 = vld [vmem:[%s1396 + $0x18] sm:$0xff]
      %v1401 = vld [vmem:[%s1396 + $0x20] sm:$0xff]
      %v1402 = vld [vmem:[%s1396 + $0x28] sm:$0xff]
      %v1403 = vld [vmem:[%s1396 + $0x30] sm:$0xff]
      %v1404 = vld [vmem:[%s1396 + $0x38] sm:$0xff]
      %v1405 = vld [vmem:[%s1396 + $0x40] sm:$0xff]
      %v1406 = vld [vmem:[%s1396 + $0x48] sm:$0x3]
      %v1407 = vld [vmem:[%s572] sm:$0x1]
      %1409 = vset.pattern.permute.xlu0 0
      %1410 = vperm.xlu0 %1409, %v1397
      %v1411 = vpop.permute.xlu0 %1410
      %1414 = vset.pattern.permute.xlu0 0
      %1415 = vperm.xlu0 %1414, %v1398
      %v1416 = vpop.permute.xlu0 %1415
      %1419 = vset.pattern.permute.xlu0 0
      %1420 = vperm.xlu0 %1419, %v1399
      %v1421 = vpop.permute.xlu0 %1420
      %1424 = vset.pattern.permute.xlu0 0
      %1425 = vperm.xlu0 %1424, %v1400
      %v1426 = vpop.permute.xlu0 %1425
      %1429 = vset.pattern.permute.xlu0 0
      %1430 = vperm.xlu0 %1429, %v1401
      %v1431 = vpop.permute.xlu0 %1430
      %1434 = vset.pattern.permute.xlu0 0
      %1435 = vperm.xlu0 %1434, %v1402
      %v1436 = vpop.permute.xlu0 %1435
      %1439 = vset.pattern.permute.xlu0 0
      %1440 = vperm.xlu0 %1439, %v1403
      %v1441 = vpop.permute.xlu0 %1440
      %1444 = vset.pattern.permute.xlu0 0
      %1445 = vperm.xlu0 %1444, %v1404
      %v1446 = vpop.permute.xlu0 %1445
      %1449 = vset.pattern.permute.xlu0 0
      %1450 = vperm.xlu0 %1449, %v1405
      %v1451 = vpop.permute.xlu0 %1450
      %1454 = vset.pattern.permute.xlu0 0
      %1455 = vperm.xlu0 %1454, %v1406
      %v1456 = vpop.permute.xlu0 %1455
      %v1459 = vlaneseq
      %v1460 = vshrl.u32 %v1459, 7
      %v1461 = vsub.s32 0, %v1460
      %v1462 = vrot.slane %v1407, %v1461
      %v1464 = vmul.f32 %v1411, %v1462
      %v1465 = vmul.f32 %v1416, %v1462
      %v1466 = vmul.f32 %v1421, %v1462
      %v1467 = vmul.f32 %v1426, %v1462
      %v1468 = vmul.f32 %v1431, %v1462
      %v1469 = vmul.f32 %v1436, %v1462
      %v1470 = vmul.f32 %v1441, %v1462
      %v1471 = vmul.f32 %v1446, %v1462
      %v1472 = vmul.f32 %v1451, %v1462
      %v1473 = vmul.f32 %v1456, %v1462
      %v1474 = vadd.f32 %v1386, %v1464
      %v1475 = vadd.f32 %v1387, %v1465
      %v1476 = vadd.f32 %v1388, %v1466
      %v1477 = vadd.f32 %v1389, %v1467
      %v1478 = vadd.f32 %v1390, %v1468
      %v1479 = vadd.f32 %v1391, %v1469
      %v1480 = vadd.f32 %v1392, %v1470
      %v1481 = vadd.f32 %v1393, %v1471
      %v1482 = vadd.f32 %v1394, %v1472
      %v1483 = vadd.f32 %v1395, %v1473
      %v1484 = vld [vmem:[%s383 + $0x1] sm:$0xff]
      %v1485 = vld [vmem:[%s383 + $0x9] sm:$0xff]
      %v1486 = vld [vmem:[%s383 + $0x11] sm:$0xff]
      %v1487 = vld [vmem:[%s383 + $0x19] sm:$0xff]
      %v1488 = vld [vmem:[%s383 + $0x21] sm:$0xff]
      %v1489 = vld [vmem:[%s383 + $0x29] sm:$0xff]
      %v1490 = vld [vmem:[%s383 + $0x31] sm:$0xff]
      %v1491 = vld [vmem:[%s383 + $0x39] sm:$0xff]
      %v1492 = vld [vmem:[%s383 + $0x41] sm:$0xff]
      %v1493 = vld [vmem:[%s383 + $0x49] sm:$0x3]
      %v1494 = vld [vmem:[%s661] sm:$0x1]
      %1496 = vset.pattern.permute.xlu0 0
      %1497 = vperm.xlu0 %1496, %v1484
      %v1498 = vpop.permute.xlu0 %1497
      %1501 = vset.pattern.permute.xlu0 0
      %1502 = vperm.xlu0 %1501, %v1485
      %v1503 = vpop.permute.xlu0 %1502
      %1506 = vset.pattern.permute.xlu0 0
      %1507 = vperm.xlu0 %1506, %v1486
      %v1508 = vpop.permute.xlu0 %1507
      %1511 = vset.pattern.permute.xlu0 0
      %1512 = vperm.xlu0 %1511, %v1487
      %v1513 = vpop.permute.xlu0 %1512
      %1516 = vset.pattern.permute.xlu0 0
      %1517 = vperm.xlu0 %1516, %v1488
      %v1518 = vpop.permute.xlu0 %1517
      %1521 = vset.pattern.permute.xlu0 0
      %1522 = vperm.xlu0 %1521, %v1489
      %v1523 = vpop.permute.xlu0 %1522
      %1526 = vset.pattern.permute.xlu0 0
      %1527 = vperm.xlu0 %1526, %v1490
      %v1528 = vpop.permute.xlu0 %1527
      %1531 = vset.pattern.permute.xlu0 0
      %1532 = vperm.xlu0 %1531, %v1491
      %v1533 = vpop.permute.xlu0 %1532
      %1536 = vset.pattern.permute.xlu0 0
      %1537 = vperm.xlu0 %1536, %v1492
      %v1538 = vpop.permute.xlu0 %1537
      %1541 = vset.pattern.permute.xlu0 0
      %1542 = vperm.xlu0 %1541, %v1493
      %v1543 = vpop.permute.xlu0 %1542
      %v1546 = vlaneseq
      %v1547 = vshrl.u32 %v1546, 7
      %v1548 = vsub.s32 0, %v1547
      %v1549 = vrot.slane %v1494, %v1548
      %v1551 = vmul.f32 %v1498, %v1549
      %v1552 = vmul.f32 %v1503, %v1549
      %v1553 = vmul.f32 %v1508, %v1549
      %v1554 = vmul.f32 %v1513, %v1549
      %v1555 = vmul.f32 %v1518, %v1549
      %v1556 = vmul.f32 %v1523, %v1549
      %v1557 = vmul.f32 %v1528, %v1549
      %v1558 = vmul.f32 %v1533, %v1549
      %v1559 = vmul.f32 %v1538, %v1549
      %v1560 = vmul.f32 %v1543, %v1549
      %v1561 = vadd.f32 %v1474, %v1551
      %v1562 = vadd.f32 %v1475, %v1552
      %v1563 = vadd.f32 %v1476, %v1553
      %v1564 = vadd.f32 %v1477, %v1554
      %v1565 = vadd.f32 %v1478, %v1555
      %v1566 = vadd.f32 %v1479, %v1556
      %v1567 = vadd.f32 %v1480, %v1557
      %v1568 = vadd.f32 %v1481, %v1558
      %v1569 = vadd.f32 %v1482, %v1559
      %v1570 = vadd.f32 %v1483, %v1560
      %v1571 = vld [vmem:[%s650 + $0x5] sm:$0xff]
      %v1572 = vld [vmem:[%s650 + $0xd] sm:$0xff]
      %v1573 = vld [vmem:[%s650 + $0x15] sm:$0xff]
      %v1574 = vld [vmem:[%s650 + $0x1d] sm:$0xff]
      %v1575 = vld [vmem:[%s650 + $0x25] sm:$0xff]
      %v1576 = vld [vmem:[%s650 + $0x2d] sm:$0xff]
      %v1577 = vld [vmem:[%s650 + $0x35] sm:$0xff]
      %v1578 = vld [vmem:[%s650 + $0x3d] sm:$0xff]
      %v1579 = vld [vmem:[%s650 + $0x45] sm:$0xff]
      %v1580 = vld [vmem:[%s650 + $0x4d] sm:$0x3]
      %v1581 = vld [vmem:[%s749] sm:$0x1]
      %1583 = vset.pattern.permute.xlu0 0
      %1584 = vperm.xlu0 %1583, %v1571
      %v1585 = vpop.permute.xlu0 %1584
      %1588 = vset.pattern.permute.xlu0 0
      %1589 = vperm.xlu0 %1588, %v1572
      %v1590 = vpop.permute.xlu0 %1589
      %1593 = vset.pattern.permute.xlu0 0
      %1594 = vperm.xlu0 %1593, %v1573
      %v1595 = vpop.permute.xlu0 %1594
      %1598 = vset.pattern.permute.xlu0 0
      %1599 = vperm.xlu0 %1598, %v1574
      %v1600 = vpop.permute.xlu0 %1599
      %1603 = vset.pattern.permute.xlu0 0
      %1604 = vperm.xlu0 %1603, %v1575
      %v1605 = vpop.permute.xlu0 %1604
      %1608 = vset.pattern.permute.xlu0 0
      %1609 = vperm.xlu0 %1608, %v1576
      %v1610 = vpop.permute.xlu0 %1609
      %1613 = vset.pattern.permute.xlu0 0
      %1614 = vperm.xlu0 %1613, %v1577
      %v1615 = vpop.permute.xlu0 %1614
      %1618 = vset.pattern.permute.xlu0 0
      %1619 = vperm.xlu0 %1618, %v1578
      %v1620 = vpop.permute.xlu0 %1619
      %1623 = vset.pattern.permute.xlu0 0
      %1624 = vperm.xlu0 %1623, %v1579
      %v1625 = vpop.permute.xlu0 %1624
      %1628 = vset.pattern.permute.xlu0 0
      %1629 = vperm.xlu0 %1628, %v1580
      %v1630 = vpop.permute.xlu0 %1629
      %v1633 = vlaneseq
      %v1634 = vshrl.u32 %v1633, 7
      %v1635 = vsub.s32 0, %v1634
      %v1636 = vrot.slane %v1581, %v1635
      %v1638 = vmul.f32 %v1585, %v1636
      %v1639 = vmul.f32 %v1590, %v1636
      %v1640 = vmul.f32 %v1595, %v1636
      %v1641 = vmul.f32 %v1600, %v1636
      %v1642 = vmul.f32 %v1605, %v1636
      %v1643 = vmul.f32 %v1610, %v1636
      %v1644 = vmul.f32 %v1615, %v1636
      %v1645 = vmul.f32 %v1620, %v1636
      %v1646 = vmul.f32 %v1625, %v1636
      %v1647 = vmul.f32 %v1630, %v1636
      %v1648 = vadd.f32 %v1561, %v1638
      %v1649 = vadd.f32 %v1562, %v1639
      %v1650 = vadd.f32 %v1563, %v1640
      %v1651 = vadd.f32 %v1564, %v1641
      %v1652 = vadd.f32 %v1565, %v1642
      %v1653 = vadd.f32 %v1566, %v1643
      %v1654 = vadd.f32 %v1567, %v1644
      %v1655 = vadd.f32 %v1568, %v1645
      %v1656 = vadd.f32 %v1569, %v1646
      %v1657 = vadd.f32 %v1570, %v1647
      %v1658 = vld [vmem:[%s1396 + $0x5] sm:$0xff]
      %v1659 = vld [vmem:[%s1396 + $0xd] sm:$0xff]
      %v1660 = vld [vmem:[%s1396 + $0x15] sm:$0xff]
      %v1661 = vld [vmem:[%s1396 + $0x1d] sm:$0xff]
      %v1662 = vld [vmem:[%s1396 + $0x25] sm:$0xff]
      %v1663 = vld [vmem:[%s1396 + $0x2d] sm:$0xff]
      %v1664 = vld [vmem:[%s1396 + $0x35] sm:$0xff]
      %v1665 = vld [vmem:[%s1396 + $0x3d] sm:$0xff]
      %v1666 = vld [vmem:[%s1396 + $0x45] sm:$0xff]
      %v1667 = vld [vmem:[%s1396 + $0x4d] sm:$0x3]
      %v1668 = vld [vmem:[%s837] sm:$0x1]
      %1670 = vset.pattern.permute.xlu0 0
      %1671 = vperm.xlu0 %1670, %v1658
      %v1672 = vpop.permute.xlu0 %1671
      %1675 = vset.pattern.permute.xlu0 0
      %1676 = vperm.xlu0 %1675, %v1659
      %v1677 = vpop.permute.xlu0 %1676
      %1680 = vset.pattern.permute.xlu0 0
      %1681 = vperm.xlu0 %1680, %v1660
      %v1682 = vpop.permute.xlu0 %1681
      %1685 = vset.pattern.permute.xlu0 0
      %1686 = vperm.xlu0 %1685, %v1661
      %v1687 = vpop.permute.xlu0 %1686
      %1690 = vset.pattern.permute.xlu0 0
      %1691 = vperm.xlu0 %1690, %v1662
      %v1692 = vpop.permute.xlu0 %1691
      %1695 = vset.pattern.permute.xlu0 0
      %1696 = vperm.xlu0 %1695, %v1663
      %v1697 = vpop.permute.xlu0 %1696
      %1700 = vset.pattern.permute.xlu0 0
      %1701 = vperm.xlu0 %1700, %v1664
      %v1702 = vpop.permute.xlu0 %1701
      %1705 = vset.pattern.permute.xlu0 0
      %1706 = vperm.xlu0 %1705, %v1665
      %v1707 = vpop.permute.xlu0 %1706
      %1710 = vset.pattern.permute.xlu0 0
      %1711 = vperm.xlu0 %1710, %v1666
      %v1712 = vpop.permute.xlu0 %1711
      %1715 = vset.pattern.permute.xlu0 0
      %1716 = vperm.xlu0 %1715, %v1667
      %v1717 = vpop.permute.xlu0 %1716
      %v1720 = vlaneseq
      %v1721 = vshrl.u32 %v1720, 7
      %v1722 = vsub.s32 0, %v1721
      %v1723 = vrot.slane %v1668, %v1722
      %v1725 = vmul.f32 %v1672, %v1723
      %v1726 = vmul.f32 %v1677, %v1723
      %v1727 = vmul.f32 %v1682, %v1723
      %v1728 = vmul.f32 %v1687, %v1723
      %v1729 = vmul.f32 %v1692, %v1723
      %v1730 = vmul.f32 %v1697, %v1723
      %v1731 = vmul.f32 %v1702, %v1723
      %v1732 = vmul.f32 %v1707, %v1723
      %v1733 = vmul.f32 %v1712, %v1723
      %v1734 = vmul.f32 %v1717, %v1723
      %v1735 = vadd.f32 %v1648, %v1725
      %v1736 = vadd.f32 %v1649, %v1726
      %v1737 = vadd.f32 %v1650, %v1727
      %v1738 = vadd.f32 %v1651, %v1728
      %v1739 = vadd.f32 %v1652, %v1729
      %v1740 = vadd.f32 %v1653, %v1730
      %v1741 = vadd.f32 %v1654, %v1731
      %v1742 = vadd.f32 %v1655, %v1732
      %v1743 = vadd.f32 %v1656, %v1733
      %v1744 = vadd.f32 %v1657, %v1734
      %v1745 = vld [vmem:[%s383 + $0x6] sm:$0xff]
      %v1746 = vld [vmem:[%s383 + $0xe] sm:$0xff]
      %v1747 = vld [vmem:[%s383 + $0x16] sm:$0xff]
      %v1748 = vld [vmem:[%s383 + $0x1e] sm:$0xff]
      %v1749 = vld [vmem:[%s383 + $0x26] sm:$0xff]
      %v1750 = vld [vmem:[%s383 + $0x2e] sm:$0xff]
      %v1751 = vld [vmem:[%s383 + $0x36] sm:$0xff]
      %v1752 = vld [vmem:[%s383 + $0x3e] sm:$0xff]
      %v1753 = vld [vmem:[%s383 + $0x46] sm:$0xff]
      %v1754 = vld [vmem:[%s383 + $0x4e] sm:$0x3]
      %v1755 = vld [vmem:[%s925] sm:$0x1]
      %1757 = vset.pattern.permute.xlu0 0
      %1758 = vperm.xlu0 %1757, %v1745
      %v1759 = vpop.permute.xlu0 %1758
      %1762 = vset.pattern.permute.xlu0 0
      %1763 = vperm.xlu0 %1762, %v1746
      %v1764 = vpop.permute.xlu0 %1763
      %1767 = vset.pattern.permute.xlu0 0
      %1768 = vperm.xlu0 %1767, %v1747
      %v1769 = vpop.permute.xlu0 %1768
      %1772 = vset.pattern.permute.xlu0 0
      %1773 = vperm.xlu0 %1772, %v1748
      %v1774 = vpop.permute.xlu0 %1773
      %1777 = vset.pattern.permute.xlu0 0
      %1778 = vperm.xlu0 %1777, %v1749
      %v1779 = vpop.permute.xlu0 %1778
      %1782 = vset.pattern.permute.xlu0 0
      %1783 = vperm.xlu0 %1782, %v1750
      %v1784 = vpop.permute.xlu0 %1783
      %1787 = vset.pattern.permute.xlu0 0
      %1788 = vperm.xlu0 %1787, %v1751
      %v1789 = vpop.permute.xlu0 %1788
      %1792 = vset.pattern.permute.xlu0 0
      %1793 = vperm.xlu0 %1792, %v1752
      %v1794 = vpop.permute.xlu0 %1793
      %1797 = vset.pattern.permute.xlu0 0
      %1798 = vperm.xlu0 %1797, %v1753
      %v1799 = vpop.permute.xlu0 %1798
      %1802 = vset.pattern.permute.xlu0 0
      %1803 = vperm.xlu0 %1802, %v1754
      %v1804 = vpop.permute.xlu0 %1803
      %v1807 = vlaneseq
      %v1808 = vshrl.u32 %v1807, 7
      %v1809 = vsub.s32 0, %v1808
      %v1810 = vrot.slane %v1755, %v1809
      %v1812 = vmul.f32 %v1759, %v1810
      %v1813 = vmul.f32 %v1764, %v1810
      %v1814 = vmul.f32 %v1769, %v1810
      %v1815 = vmul.f32 %v1774, %v1810
      %v1816 = vmul.f32 %v1779, %v1810
      %v1817 = vmul.f32 %v1784, %v1810
      %v1818 = vmul.f32 %v1789, %v1810
      %v1819 = vmul.f32 %v1794, %v1810
      %v1820 = vmul.f32 %v1799, %v1810
      %v1821 = vmul.f32 %v1804, %v1810
      %v1822 = vadd.f32 %v1735, %v1812
      %v1823 = vadd.f32 %v1736, %v1813
      %v1824 = vadd.f32 %v1737, %v1814
      %v1825 = vadd.f32 %v1738, %v1815
      %v1826 = vadd.f32 %v1739, %v1816
      %v1827 = vadd.f32 %v1740, %v1817
      %v1828 = vadd.f32 %v1741, %v1818
      %v1829 = vadd.f32 %v1742, %v1819
      %v1830 = vadd.f32 %v1743, %v1820
      %v1831 = vadd.f32 %v1744, %v1821
      %v1832 = vld [vmem:[%s650 + $0xa] sm:$0xff]
      %v1833 = vld [vmem:[%s650 + $0x12] sm:$0xff]
      %v1834 = vld [vmem:[%s650 + $0x1a] sm:$0xff]
      %v1835 = vld [vmem:[%s650 + $0x22] sm:$0xff]
      %v1836 = vld [vmem:[%s650 + $0x2a] sm:$0xff]
      %v1837 = vld [vmem:[%s650 + $0x32] sm:$0xff]
      %v1838 = vld [vmem:[%s650 + $0x3a] sm:$0xff]
      %v1839 = vld [vmem:[%s650 + $0x42] sm:$0xff]
      %v1840 = vld [vmem:[%s650 + $0x4a] sm:$0xff]
      %v1841 = vld [vmem:[%s650 + $0x52] sm:$0x3]
      %v1842 = vld [vmem:[%s1013] sm:$0x1]
      %1844 = vset.pattern.permute.xlu0 0
      %1845 = vperm.xlu0 %1844, %v1832
      %v1846 = vpop.permute.xlu0 %1845
      %1849 = vset.pattern.permute.xlu0 0
      %1850 = vperm.xlu0 %1849, %v1833
      %v1851 = vpop.permute.xlu0 %1850
      %1854 = vset.pattern.permute.xlu0 0
      %1855 = vperm.xlu0 %1854, %v1834
      %v1856 = vpop.permute.xlu0 %1855
      %1859 = vset.pattern.permute.xlu0 0
      %1860 = vperm.xlu0 %1859, %v1835
      %v1861 = vpop.permute.xlu0 %1860
      %1864 = vset.pattern.permute.xlu0 0
      %1865 = vperm.xlu0 %1864, %v1836
      %v1866 = vpop.permute.xlu0 %1865
      %1869 = vset.pattern.permute.xlu0 0
      %1870 = vperm.xlu0 %1869, %v1837
      %v1871 = vpop.permute.xlu0 %1870
      %1874 = vset.pattern.permute.xlu0 0
      %1875 = vperm.xlu0 %1874, %v1838
      %v1876 = vpop.permute.xlu0 %1875
      %1879 = vset.pattern.permute.xlu0 0
      %1880 = vperm.xlu0 %1879, %v1839
      %v1881 = vpop.permute.xlu0 %1880
      %1884 = vset.pattern.permute.xlu0 0
      %1885 = vperm.xlu0 %1884, %v1840
      %v1886 = vpop.permute.xlu0 %1885
      %1889 = vset.pattern.permute.xlu0 0
      %1890 = vperm.xlu0 %1889, %v1841
      %v1891 = vpop.permute.xlu0 %1890
      %v1894 = vlaneseq
      %v1895 = vshrl.u32 %v1894, 7
      %v1896 = vsub.s32 0, %v1895
      %v1897 = vrot.slane %v1842, %v1896
      %v1899 = vmul.f32 %v1846, %v1897
      %v1900 = vmul.f32 %v1851, %v1897
      %v1901 = vmul.f32 %v1856, %v1897
      %v1902 = vmul.f32 %v1861, %v1897
      %v1903 = vmul.f32 %v1866, %v1897
      %v1904 = vmul.f32 %v1871, %v1897
      %v1905 = vmul.f32 %v1876, %v1897
      %v1906 = vmul.f32 %v1881, %v1897
      %v1907 = vmul.f32 %v1886, %v1897
      %v1908 = vmul.f32 %v1891, %v1897
      %v1909 = vadd.f32 %v1822, %v1899
      %v1910 = vadd.f32 %v1823, %v1900
      %v1911 = vadd.f32 %v1824, %v1901
      %v1912 = vadd.f32 %v1825, %v1902
      %v1913 = vadd.f32 %v1826, %v1903
      %v1914 = vadd.f32 %v1827, %v1904
      %v1915 = vadd.f32 %v1828, %v1905
      %v1916 = vadd.f32 %v1829, %v1906
      %v1917 = vadd.f32 %v1830, %v1907
      %v1918 = vadd.f32 %v1831, %v1908
      %v1919 = vld [vmem:[%s1396 + $0xa] sm:$0xff]
      %v1920 = vld [vmem:[%s1396 + $0x12] sm:$0xff]
      %v1921 = vld [vmem:[%s1396 + $0x1a] sm:$0xff]
      %v1922 = vld [vmem:[%s1396 + $0x22] sm:$0xff]
      %v1923 = vld [vmem:[%s1396 + $0x2a] sm:$0xff]
      %v1924 = vld [vmem:[%s1396 + $0x32] sm:$0xff]
      %v1925 = vld [vmem:[%s1396 + $0x3a] sm:$0xff]
      %v1926 = vld [vmem:[%s1396 + $0x42] sm:$0xff]
      %v1927 = vld [vmem:[%s1396 + $0x4a] sm:$0xff]
      %v1928 = vld [vmem:[%s1396 + $0x52] sm:$0x3]
      %v1929 = vld [vmem:[%s1101] sm:$0x1]
      %1931 = vset.pattern.permute.xlu0 0
      %1932 = vperm.xlu0 %1931, %v1919
      %v1933 = vpop.permute.xlu0 %1932
      %1936 = vset.pattern.permute.xlu0 0
      %1937 = vperm.xlu0 %1936, %v1920
      %v1938 = vpop.permute.xlu0 %1937
      %1941 = vset.pattern.permute.xlu0 0
      %1942 = vperm.xlu0 %1941, %v1921
      %v1943 = vpop.permute.xlu0 %1942
      %1946 = vset.pattern.permute.xlu0 0
      %1947 = vperm.xlu0 %1946, %v1922
      %v1948 = vpop.permute.xlu0 %1947
      %1951 = vset.pattern.permute.xlu0 0
      %1952 = vperm.xlu0 %1951, %v1923
      %v1953 = vpop.permute.xlu0 %1952
      %1956 = vset.pattern.permute.xlu0 0
      %1957 = vperm.xlu0 %1956, %v1924
      %v1958 = vpop.permute.xlu0 %1957
      %1961 = vset.pattern.permute.xlu0 0
      %1962 = vperm.xlu0 %1961, %v1925
      %v1963 = vpop.permute.xlu0 %1962
      %1966 = vset.pattern.permute.xlu0 0
      %1967 = vperm.xlu0 %1966, %v1926
      %v1968 = vpop.permute.xlu0 %1967
      %1971 = vset.pattern.permute.xlu0 0
      %1972 = vperm.xlu0 %1971, %v1927
      %v1973 = vpop.permute.xlu0 %1972
      %1976 = vset.pattern.permute.xlu0 0
      %1977 = vperm.xlu0 %1976, %v1928
      %v1978 = vpop.permute.xlu0 %1977
      %v1981 = vlaneseq
      %v1982 = vshrl.u32 %v1981, 7
      %v1983 = vsub.s32 0, %v1982
      %v1984 = vrot.slane %v1929, %v1983
      %v1986 = vmul.f32 %v1933, %v1984
      %v1987 = vmul.f32 %v1938, %v1984
      %v1988 = vmul.f32 %v1943, %v1984
      %v1989 = vmul.f32 %v1948, %v1984
      %v1990 = vmul.f32 %v1953, %v1984
      %v1991 = vmul.f32 %v1958, %v1984
      %v1992 = vmul.f32 %v1963, %v1984
      %v1993 = vmul.f32 %v1968, %v1984
      %v1994 = vmul.f32 %v1973, %v1984
      %v1995 = vmul.f32 %v1978, %v1984
      %v1996 = vadd.f32 %v1909, %v1986
      %v1997 = vadd.f32 %v1910, %v1987
      %v1998 = vadd.f32 %v1911, %v1988
      %v1999 = vadd.f32 %v1912, %v1989
      %v2000 = vadd.f32 %v1913, %v1990
      %v2001 = vadd.f32 %v1914, %v1991
      %v2002 = vadd.f32 %v1915, %v1992
      %v2003 = vadd.f32 %v1916, %v1993
      %v2004 = vadd.f32 %v1917, %v1994
      %v2005 = vadd.f32 %v1918, %v1995
      %v2006 = vld [vmem:[%s383 + $0xb] sm:$0xff]
      %v2007 = vld [vmem:[%s383 + $0x13] sm:$0xff]
      %v2008 = vld [vmem:[%s383 + $0x1b] sm:$0xff]
      %v2009 = vld [vmem:[%s383 + $0x23] sm:$0xff]
      %v2010 = vld [vmem:[%s383 + $0x2b] sm:$0xff]
      %v2011 = vld [vmem:[%s383 + $0x33] sm:$0xff]
      %v2012 = vld [vmem:[%s383 + $0x3b] sm:$0xff]
      %v2013 = vld [vmem:[%s383 + $0x43] sm:$0xff]
      %v2014 = vld [vmem:[%s383 + $0x4b] sm:$0xff]
      %v2015 = vld [vmem:[%s383 + $0x53] sm:$0x3]
      %v2016 = vld [vmem:[%s1189] sm:$0x1]
      %2018 = vset.pattern.permute.xlu0 0
      %2019 = vperm.xlu0 %2018, %v2006
      %v2020 = vpop.permute.xlu0 %2019
      %2023 = vset.pattern.permute.xlu0 0
      %2024 = vperm.xlu0 %2023, %v2007
      %v2025 = vpop.permute.xlu0 %2024
      %2028 = vset.pattern.permute.xlu0 0
      %2029 = vperm.xlu0 %2028, %v2008
      %v2030 = vpop.permute.xlu0 %2029
      %2033 = vset.pattern.permute.xlu0 0
      %2034 = vperm.xlu0 %2033, %v2009
      %v2035 = vpop.permute.xlu0 %2034
      %2038 = vset.pattern.permute.xlu0 0
      %2039 = vperm.xlu0 %2038, %v2010
      %v2040 = vpop.permute.xlu0 %2039
      %2043 = vset.pattern.permute.xlu0 0
      %2044 = vperm.xlu0 %2043, %v2011
      %v2045 = vpop.permute.xlu0 %2044
      %2048 = vset.pattern.permute.xlu0 0
      %2049 = vperm.xlu0 %2048, %v2012
      %v2050 = vpop.permute.xlu0 %2049
      %2053 = vset.pattern.permute.xlu0 0
      %2054 = vperm.xlu0 %2053, %v2013
      %v2055 = vpop.permute.xlu0 %2054
      %2058 = vset.pattern.permute.xlu0 0
      %2059 = vperm.xlu0 %2058, %v2014
      %v2060 = vpop.permute.xlu0 %2059
      %2063 = vset.pattern.permute.xlu0 0
      %2064 = vperm.xlu0 %2063, %v2015
      %v2065 = vpop.permute.xlu0 %2064
      %v2068 = vlaneseq
      %v2069 = vshrl.u32 %v2068, 7
      %v2070 = vsub.s32 0, %v2069
      %v2071 = vrot.slane %v2016, %v2070
      %v2073 = vmul.f32 %v2020, %v2071
      %v2074 = vmul.f32 %v2025, %v2071
      %v2075 = vmul.f32 %v2030, %v2071
      %v2076 = vmul.f32 %v2035, %v2071
      %v2077 = vmul.f32 %v2040, %v2071
      %v2078 = vmul.f32 %v2045, %v2071
      %v2079 = vmul.f32 %v2050, %v2071
      %v2080 = vmul.f32 %v2055, %v2071
      %v2081 = vmul.f32 %v2060, %v2071
      %v2082 = vmul.f32 %v2065, %v2071
      %v2083 = vadd.f32 %v1996, %v2073
      %v2084 = vadd.f32 %v1997, %v2074
      %v2085 = vadd.f32 %v1998, %v2075
      %v2086 = vadd.f32 %v1999, %v2076
      %v2087 = vadd.f32 %v2000, %v2077
      %v2088 = vadd.f32 %v2001, %v2078
      %v2089 = vadd.f32 %v2002, %v2079
      %v2090 = vadd.f32 %v2003, %v2080
      %v2091 = vadd.f32 %v2004, %v2081
      %v2092 = vadd.f32 %v2005, %v2082
      %v2093 = vld [vmem:[%s2] sm:$0x1]
      %v2095 = vlaneseq
      %v2096 = vshrl.u32 %v2095, 7
      %v2097 = vsub.s32 0, %v2096
      %v2098 = vrot.slane %v2093, %v2097
      %v2100 = vadd.f32 %v2083, %v2098
      %v2101 = vadd.f32 %v2084, %v2098
      %v2102 = vadd.f32 %v2085, %v2098
      %v2103 = vadd.f32 %v2086, %v2098
      %v2104 = vadd.f32 %v2087, %v2098
      %v2105 = vadd.f32 %v2088, %v2098
      %v2106 = vadd.f32 %v2089, %v2098
      %v2107 = vadd.f32 %v2090, %v2098
      %v2108 = vadd.f32 %v2091, %v2098
      %v2109 = vadd.f32 %v2092, %v2098
      %v2110 = vmax.f32 %v2100, 0.0
      %v2111 = vmax.f32 %v2101, 0.0
      %v2112 = vmax.f32 %v2102, 0.0
      %v2113 = vmax.f32 %v2103, 0.0
      %v2114 = vmax.f32 %v2104, 0.0
      %v2115 = vmax.f32 %v2105, 0.0
      %v2116 = vmax.f32 %v2106, 0.0
      %v2117 = vmax.f32 %v2107, 0.0
      %v2118 = vmax.f32 %v2108, 0.0
      %v2119 = vmax.f32 %v2109, 0.0
      %2120 = vst.msk [vmem:[#allocation2 + $0x6] sm:$0xf] %vm1295, %v2110
      %2121 = vst.msk [vmem:[#allocation2 + $0x9] sm:$0x3c] %vm1297, %v2111
      %2122 = vst.msk [vmem:[#allocation2 + $0xc] sm:$0xf0] %vm1299, %v2112
      %2123 = vst.msk [vmem:[#allocation2 + $0xf] sm:$0xc0] %vm1301, %v2113
      %2124 = vst.msk [vmem:[#allocation2 + $0x17] sm:$0x3] %vm396, %v2114
      %2125 = vst.msk [vmem:[#allocation2 + $0x1a] sm:$0xf] %vm1295, %v2115
      %2126 = vst.msk [vmem:[#allocation2 + $0x1d] sm:$0x3c] %vm1297, %v2116
      %2127 = vst.msk [vmem:[#allocation2 + $0x20] sm:$0xf0] %vm1299, %v2117
      %2128 = vst.msk [vmem:[#allocation2 + $0x23] sm:$0xc0] %vm1301, %v2118
      %2129 = vst.msk [vmem:[#allocation2 + $0x2b] sm:$0x3] %vm396, %v2119
      %v2130 = vld [vmem:[#allocation2] sm:$0xff]
      %v2131 = vld [vmem:[#allocation2 + $0x8] sm:$0xff]
      %v2132 = vld [vmem:[#allocation2 + $0x10] sm:$0xff]
      %v2133 = vld [vmem:[#allocation2 + $0x18] sm:$0xff]
      %v2134 = vld [vmem:[#allocation2 + $0x20] sm:$0x3]
      %v2135 = vld [vmem:[%s3] sm:$0xff]
      %v2136 = vld [vmem:[%s3 + $0x8] sm:$0xff]
      %v2137 = vld [vmem:[%s3 + $0x10] sm:$0xff]
      %v2138 = vld [vmem:[%s3 + $0x18] sm:$0xff]
      %v2139 = vld [vmem:[%s3 + $0x20] sm:$0xff]
      %v2140 = vld [vmem:[%s3 + $0x28] sm:$0xff]
      %v2141 = vld [vmem:[%s1294] sm:$0xff]
      %v2142 = vld [vmem:[%s1294 + $0x8] sm:$0xff]
      %v2143 = vld [vmem:[%s1294 + $0x10] sm:$0xff]
      %v2144 = vld [vmem:[%s1294 + $0x18] sm:$0xff]
      %v2145 = vld [vmem:[%s1294 + $0x20] sm:$0x3]
      %s2146 = scalar_lea.vmem %s3, 48
      %v2147 = vld [vmem:[%s2146] sm:$0xff]
      %v2148 = vld [vmem:[%s2146 + $0x8] sm:$0xff]
      %v2149 = vld [vmem:[%s2146 + $0x10] sm:$0xff]
      %v2150 = vld [vmem:[%s2146 + $0x18] sm:$0xff]
      %v2151 = vld [vmem:[%s2146 + $0x20] sm:$0xff]
      %v2152 = vld [vmem:[%s2146 + $0x28] sm:$0xff]
      %v2154 = vsel %vm389, %v2141, 0
      %v2157 = vsel %vm389, %v2142, 0
      %v2160 = vsel %vm389, %v2143, 0
      %v2163 = vsel %vm389, %v2144, 0
      %v2166 = vsel %vm389, %v2145, 0
      %2168 = vmatprep.subr.mxu0 0.0
      %2169 = vmatpush1.msra.mxu0 %v2147
      %2170 = vmatprep.subr.mxu0 0.0
      %2171 = vmatpush1.msra.mxu0 %v2148
      %2172 = vmatprep.subr.mxu0 0.0
      %2173 = vmatpush1.msra.mxu0 %v2149
      %2174 = vmatprep.subr.mxu0 0.0
      %2175 = vmatpush1.msra.mxu0 %v2150
      %2176 = vmatprep.subr.mxu0 0.0
      %2177 = vmatpush1.msra.mxu0 %v2151
      %2178 = vmatprep.subr.mxu0 0.0
      %2179 = vmatpush1.msra.mxu0 %v2152
      %2180 = vmatprep.subr.mxu0 0.0
      %2181 = vmatpush1.msra.mxu0 0.0
      %2182 = vmatprep.subr.mxu0 0.0
      %2183 = vmatpush1.msra.mxu0 0.0
      %2184 = vmatprep.subr.mxu0 0.0
      %2185 = vmatpush1.msra.mxu0 0.0
      %2186 = vmatprep.subr.mxu0 0.0
      %2187 = vmatpush1.msra.mxu0 0.0
      %2188 = vmatprep.subr.mxu0 0.0
      %2189 = vmatpush1.msra.mxu0 0.0
      %2190 = vmatprep.subr.mxu0 0.0
      %2191 = vmatpush1.msra.mxu0 0.0
      %2192 = vmatprep.subr.mxu0 0.0
      %2193 = vmatpush1.msra.mxu0 0.0
      %2194 = vmatprep.subr.mxu0 0.0
      %2195 = vmatpush1.msra.mxu0 0.0
      %2196 = vmatprep.subr.mxu0 0.0
      %2197 = vmatpush1.msra.mxu0 0.0
      %2198 = vmatprep.subr.mxu0 0.0
      %2199 = vmatpush1.msra.mxu0 0.0
      %2200 = vmatprep.subr.mxu0 0.0
      %2201 = vmatpush1.msra.mxu0 0.0
      %2202 = vmatprep.subr.mxu0 0.0
      %2203 = vmatpush1.msra.mxu0 0.0
      %2204 = vmatprep.subr.mxu0 0.0
      %2205 = vmatpush1.msra.mxu0 0.0
      %2206 = vmatprep.subr.mxu0 0.0
      %2207 = vmatpush1.msra.mxu0 0.0
      %2208 = vmatprep.subr.mxu0 0.0
      %2209 = vmatpush1.msra.mxu0 0.0
      %2210 = vmatprep.subr.mxu0 0.0
      %2211 = vmatpush1.msra.mxu0 0.0
      %2212 = vmatprep.subr.mxu0 0.0
      %2213 = vmatpush1.msra.mxu0 0.0
      %2214 = vmatprep.subr.mxu0 0.0
      %2215 = vmatpush1.msra.mxu0 0.0
      %2216 = vmatprep.subr.mxu0 0.0
      %2217 = vmatpush1.msra.mxu0 0.0
      %2218 = vmatprep.subr.mxu0 0.0
      %2219 = vmatpush1.msra.mxu0 0.0
      %2220 = vmatprep.subr.mxu0 0.0
      %2221 = vmatpush1.msra.mxu0 0.0
      %2222 = vmatprep.subr.mxu0 0.0
      %2223 = vmatpush1.msra.mxu0 0.0
      %2224 = vmatprep.subr.mxu0 0.0
      %2225 = vmatpush1.msra.mxu0 0.0
      %2226 = vmatprep.subr.mxu0 0.0
      %2227 = vmatpush1.msra.mxu0 0.0
      %2228 = vmatprep.subr.mxu0 0.0
      %2229 = vmatpush1.msra.mxu0 0.0
      %2230 = vmatprep.subr.mxu0 0.0
      %2231 = vmatpush1.msra.mxu0 0.0
      %2232 = vmatprep.mubr.f32.mxu0 0.0
      %2233 = vmatmul.mubr.f32.gmra.mrb[0].mxu0 %v2154
      %v2234 = vpop.f32.mrb[0].mxu0
      %v2235 = vadd.f32 0.0, %v2234
      %v2236 = vpop.f32.mrb[0].mxu0
      %2237 = vmatprep.mubr.f32.mxu0 0.0
      %2238 = vmatmul.mubr.f32.gmra.mrb[0].mxu0 %v2157
      %v2239 = vpop.f32.mrb[0].mxu0
      %v2240 = vadd.f32 0.0, %v2239
      %v2241 = vpop.f32.mrb[0].mxu0
      %2242 = vmatprep.mubr.f32.mxu0 0.0
      %2243 = vmatmul.mubr.f32.gmra.mrb[0].mxu0 %v2160
      %v2244 = vpop.f32.mrb[0].mxu0
      %v2245 = vadd.f32 0.0, %v2244
      %v2246 = vpop.f32.mrb[0].mxu0
      %2247 = vmatprep.mubr.f32.mxu0 0.0
      %2248 = vmatmul.mubr.f32.gmra.mrb[0].mxu0 %v2163
      %v2249 = vpop.f32.mrb[0].mxu0
      %v2250 = vadd.f32 0.0, %v2249
      %v2251 = vpop.f32.mrb[0].mxu0
      %2252 = vmatprep.mubr.f32.mxu0 0.0
      %2253 = vmatmul.mubr.f32.gmra.mrb[0].mxu0 %v2166
      %v2254 = vpop.f32.mrb[0].mxu0
      %v2255 = vadd.f32 0.0, %v2254
      %v2256 = vpop.f32.mrb[0].mxu0
      %2257 = vdwg.mxu0
      %v2259 = vsel %vm389, %v2130, 0
      %v2262 = vsel %vm389, %v2131, 0
      %v2265 = vsel %vm389, %v2132, 0
      %v2268 = vsel %vm389, %v2133, 0
      %v2271 = vsel %vm389, %v2134, 0
      %2273 = vmatprep.subr.mxu0 0.0
      %2274 = vmatpush1.msra.mxu0 %v2135
      %2275 = vmatprep.subr.mxu0 0.0
      %2276 = vmatpush1.msra.mxu0 %v2136
      %2277 = vmatprep.subr.mxu0 0.0
      %2278 = vmatpush1.msra.mxu0 %v2137
      %2279 = vmatprep.subr.mxu0 0.0
      %2280 = vmatpush1.msra.mxu0 %v2138
      %2281 = vmatprep.subr.mxu0 0.0
      %2282 = vmatpush1.msra.mxu0 %v2139
      %2283 = vmatprep.subr.mxu0 0.0
      %2284 = vmatpush1.msra.mxu0 %v2140
      %2285 = vmatprep.subr.mxu0 0.0
      %2286 = vmatpush1.msra.mxu0 0.0
      %2287 = vmatprep.subr.mxu0 0.0
      %2288 = vmatpush1.msra.mxu0 0.0
      %2289 = vmatprep.subr.mxu0 0.0
      %2290 = vmatpush1.msra.mxu0 0.0
      %2291 = vmatprep.subr.mxu0 0.0
      %2292 = vmatpush1.msra.mxu0 0.0
      %2293 = vmatprep.subr.mxu0 0.0
      %2294 = vmatpush1.msra.mxu0 0.0
      %2295 = vmatprep.subr.mxu0 0.0
      %2296 = vmatpush1.msra.mxu0 0.0
      %2297 = vmatprep.subr.mxu0 0.0
      %2298 = vmatpush1.msra.mxu0 0.0
      %2299 = vmatprep.subr.mxu0 0.0
      %2300 = vmatpush1.msra.mxu0 0.0
      %2301 = vmatprep.subr.mxu0 0.0
      %2302 = vmatpush1.msra.mxu0 0.0
      %2303 = vmatprep.subr.mxu0 0.0
      %2304 = vmatpush1.msra.mxu0 0.0
      %2305 = vmatprep.subr.mxu0 0.0
      %2306 = vmatpush1.msra.mxu0 0.0
      %2307 = vmatprep.subr.mxu0 0.0
      %2308 = vmatpush1.msra.mxu0 0.0
      %2309 = vmatprep.subr.mxu0 0.0
      %2310 = vmatpush1.msra.mxu0 0.0
      %2311 = vmatprep.subr.mxu0 0.0
      %2312 = vmatpush1.msra.mxu0 0.0
      %2313 = vmatprep.subr.mxu0 0.0
      %2314 = vmatpush1.msra.mxu0 0.0
      %2315 = vmatprep.subr.mxu0 0.0
      %2316 = vmatpush1.msra.mxu0 0.0
      %2317 = vmatprep.subr.mxu0 0.0
      %2318 = vmatpush1.msra.mxu0 0.0
      %2319 = vmatprep.subr.mxu0 0.0
      %2320 = vmatpush1.msra.mxu0 0.0
      %2321 = vmatprep.subr.mxu0 0.0
      %2322 = vmatpush1.msra.mxu0 0.0
      %2323 = vmatprep.subr.mxu0 0.0
      %2324 = vmatpush1.msra.mxu0 0.0
      %2325 = vmatprep.subr.mxu0 0.0
      %2326 = vmatpush1.msra.mxu0 0.0
      %2327 = vmatprep.subr.mxu0 0.0
      %2328 = vmatpush1.msra.mxu0 0.0
      %2329 = vmatprep.subr.mxu0 0.0
      %2330 = vmatpush1.msra.mxu0 0.0
      %2331 = vmatprep.subr.mxu0 0.0
      %2332 = vmatpush1.msra.mxu0 0.0
      %2333 = vmatprep.subr.mxu0 0.0
      %2334 = vmatpush1.msra.mxu0 0.0
      %2335 = vmatprep.subr.mxu0 0.0
      %2336 = vmatpush1.msra.mxu0 0.0
      %2337 = vmatprep.mubr.f32.mxu0 0.0
      %2338 = vmatmul.mubr.f32.gmra.mrb[0].mxu0 %v2259
      %v2339 = vpop.f32.mrb[0].mxu0
      %v2340 = vadd.f32 %v2235, %v2339
      %v2341 = vpop.f32.mrb[0].mxu0
      %2342 = vmatprep.mubr.f32.mxu0 0.0
      %2343 = vmatmul.mubr.f32.gmra.mrb[0].mxu0 %v2262
      %v2344 = vpop.f32.mrb[0].mxu0
      %v2345 = vadd.f32 %v2240, %v2344
      %v2346 = vpop.f32.mrb[0].mxu0
      %2347 = vmatprep.mubr.f32.mxu0 0.0
      %2348 = vmatmul.mubr.f32.gmra.mrb[0].mxu0 %v2265
      %v2349 = vpop.f32.mrb[0].mxu0
      %v2350 = vadd.f32 %v2245, %v2349
      %v2351 = vpop.f32.mrb[0].mxu0
      %2352 = vmatprep.mubr.f32.mxu0 0.0
      %2353 = vmatmul.mubr.f32.gmra.mrb[0].mxu0 %v2268
      %v2354 = vpop.f32.mrb[0].mxu0
      %v2355 = vadd.f32 %v2250, %v2354
      %v2356 = vpop.f32.mrb[0].mxu0
      %2357 = vmatprep.mubr.f32.mxu0 0.0
      %2358 = vmatmul.mubr.f32.gmra.mrb[0].mxu0 %v2271
      %v2359 = vpop.f32.mrb[0].mxu0
      %v2360 = vadd.f32 %v2255, %v2359
      %v2361 = vpop.f32.mrb[0].mxu0
      %2362 = vdwg.mxu0
      %v2363 = vld [vmem:[#allocation2 + $0x1] sm:$0xff]
      %v2364 = vld [vmem:[#allocation2 + $0x9] sm:$0xff]
      %v2365 = vld [vmem:[#allocation2 + $0x11] sm:$0xff]
      %v2366 = vld [vmem:[#allocation2 + $0x19] sm:$0xff]
      %v2367 = vld [vmem:[#allocation2 + $0x21] sm:$0x3]
      %s2368 = scalar_lea.vmem %s3, 96
      %v2369 = vld [vmem:[%s2368] sm:$0xff]
      %v2370 = vld [vmem:[%s2368 + $0x8] sm:$0xff]
      %v2371 = vld [vmem:[%s2368 + $0x10] sm:$0xff]
      %v2372 = vld [vmem:[%s2368 + $0x18] sm:$0xff]
      %v2373 = vld [vmem:[%s2368 + $0x20] sm:$0xff]
      %v2374 = vld [vmem:[%s2368 + $0x28] sm:$0xff]
      %v2376 = vsel %vm389, %v2363, 0
      %v2379 = vsel %vm389, %v2364, 0
      %v2382 = vsel %vm389, %v2365, 0
      %v2385 = vsel %vm389, %v2366, 0
      %v2388 = vsel %vm389, %v2367, 0
      %2390 = vmatprep.subr.mxu0 0.0
      %2391 = vmatpush1.msra.mxu0 %v2369
      %2392 = vmatprep.subr.mxu0 0.0
      %2393 = vmatpush1.msra.mxu0 %v2370
      %2394 = vmatprep.subr.mxu0 0.0
      %2395 = vmatpush1.msra.mxu0 %v2371
      %2396 = vmatprep.subr.mxu0 0.0
      %2397 = vmatpush1.msra.mxu0 %v2372
      %2398 = vmatprep.subr.mxu0 0.0
      %2399 = vmatpush1.msra.mxu0 %v2373
      %2400 = vmatprep.subr.mxu0 0.0
      %2401 = vmatpush1.msra.mxu0 %v2374
      %2402 = vmatprep.subr.mxu0 0.0
      %2403 = vmatpush1.msra.mxu0 0.0
      %2404 = vmatprep.subr.mxu0 0.0
      %2405 = vmatpush1.msra.mxu0 0.0
      %2406 = vmatprep.subr.mxu0 0.0
      %2407 = vmatpush1.msra.mxu0 0.0
      %2408 = vmatprep.subr.mxu0 0.0
      %2409 = vmatpush1.msra.mxu0 0.0
      %2410 = vmatprep.subr.mxu0 0.0
      %2411 = vmatpush1.msra.mxu0 0.0
      %2412 = vmatprep.subr.mxu0 0.0
      %2413 = vmatpush1.msra.mxu0 0.0
      %2414 = vmatprep.subr.mxu0 0.0
      %2415 = vmatpush1.msra.mxu0 0.0
      %2416 = vmatprep.subr.mxu0 0.0
      %2417 = vmatpush1.msra.mxu0 0.0
      %2418 = vmatprep.subr.mxu0 0.0
      %2419 = vmatpush1.msra.mxu0 0.0
      %2420 = vmatprep.subr.mxu0 0.0
      %2421 = vmatpush1.msra.mxu0 0.0
      %2422 = vmatprep.subr.mxu0 0.0
      %2423 = vmatpush1.msra.mxu0 0.0
      %2424 = vmatprep.subr.mxu0 0.0
      %2425 = vmatpush1.msra.mxu0 0.0
      %2426 = vmatprep.subr.mxu0 0.0
      %2427 = vmatpush1.msra.mxu0 0.0
      %2428 = vmatprep.subr.mxu0 0.0
      %2429 = vmatpush1.msra.mxu0 0.0
      %2430 = vmatprep.subr.mxu0 0.0
      %2431 = vmatpush1.msra.mxu0 0.0
      %2432 = vmatprep.subr.mxu0 0.0
      %2433 = vmatpush1.msra.mxu0 0.0
      %2434 = vmatprep.subr.mxu0 0.0
      %2435 = vmatpush1.msra.mxu0 0.0
      %2436 = vmatprep.subr.mxu0 0.0
      %2437 = vmatpush1.msra.mxu0 0.0
      %2438 = vmatprep.subr.mxu0 0.0
      %2439 = vmatpush1.msra.mxu0 0.0
      %2440 = vmatprep.subr.mxu0 0.0
      %2441 = vmatpush1.msra.mxu0 0.0
      %2442 = vmatprep.subr.mxu0 0.0
      %2443 = vmatpush1.msra.mxu0 0.0
      %2444 = vmatprep.subr.mxu0 0.0
      %2445 = vmatpush1.msra.mxu0 0.0
      %2446 = vmatprep.subr.mxu0 0.0
      %2447 = vmatpush1.msra.mxu0 0.0
      %2448 = vmatprep.subr.mxu0 0.0
      %2449 = vmatpush1.msra.mxu0 0.0
      %2450 = vmatprep.subr.mxu0 0.0
      %2451 = vmatpush1.msra.mxu0 0.0
      %2452 = vmatprep.subr.mxu0 0.0
      %2453 = vmatpush1.msra.mxu0 0.0
      %2454 = vmatprep.mubr.f32.mxu0 0.0
      %2455 = vmatmul.mubr.f32.gmra.mrb[0].mxu0 %v2376
      %v2456 = vpop.f32.mrb[0].mxu0
      %v2457 = vadd.f32 0.0, %v2456
      %v2458 = vpop.f32.mrb[0].mxu0
      %2459 = vmatprep.mubr.f32.mxu0 0.0
      %2460 = vmatmul.mubr.f32.gmra.mrb[0].mxu0 %v2379
      %v2461 = vpop.f32.mrb[0].mxu0
      %v2462 = vadd.f32 0.0, %v2461
      %v2463 = vpop.f32.mrb[0].mxu0
      %2464 = vmatprep.mubr.f32.mxu0 0.0
      %2465 = vmatmul.mubr.f32.gmra.mrb[0].mxu0 %v2382
      %v2466 = vpop.f32.mrb[0].mxu0
      %v2467 = vadd.f32 0.0, %v2466
      %v2468 = vpop.f32.mrb[0].mxu0
      %2469 = vmatprep.mubr.f32.mxu0 0.0
      %2470 = vmatmul.mubr.f32.gmra.mrb[0].mxu0 %v2385
      %v2471 = vpop.f32.mrb[0].mxu0
      %v2472 = vadd.f32 0.0, %v2471
      %v2473 = vpop.f32.mrb[0].mxu0
      %2474 = vmatprep.mubr.f32.mxu0 0.0
      %2475 = vmatmul.mubr.f32.gmra.mrb[0].mxu0 %v2388
      %v2476 = vpop.f32.mrb[0].mxu0
      %v2477 = vadd.f32 0.0, %v2476
      %v2478 = vpop.f32.mrb[0].mxu0
      %2479 = vdwg.mxu0
      %v2480 = vadd.f32 %v2340, %v2457
      %v2481 = vadd.f32 %v2345, %v2462
      %v2482 = vadd.f32 %v2350, %v2467
      %v2483 = vadd.f32 %v2355, %v2472
      %v2484 = vadd.f32 %v2360, %v2477
      %v2485 = vld [vmem:[#allocation2 + $0x5] sm:$0xff]
      %v2486 = vld [vmem:[#allocation2 + $0xd] sm:$0xff]
      %v2487 = vld [vmem:[#allocation2 + $0x15] sm:$0xff]
      %v2488 = vld [vmem:[#allocation2 + $0x1d] sm:$0xff]
      %v2489 = vld [vmem:[#allocation2 + $0x25] sm:$0x3]
      %s2490 = scalar_lea.vmem %s3, 144
      %v2491 = vld [vmem:[%s2490] sm:$0xff]
      %v2492 = vld [vmem:[%s2490 + $0x8] sm:$0xff]
      %v2493 = vld [vmem:[%s2490 + $0x10] sm:$0xff]
      %v2494 = vld [vmem:[%s2490 + $0x18] sm:$0xff]
      %v2495 = vld [vmem:[%s2490 + $0x20] sm:$0xff]
      %v2496 = vld [vmem:[%s2490 + $0x28] sm:$0xff]
      %v2498 = vsel %vm389, %v2485, 0
      %v2501 = vsel %vm389, %v2486, 0
      %v2504 = vsel %vm389, %v2487, 0
      %v2507 = vsel %vm389, %v2488, 0
      %v2510 = vsel %vm389, %v2489, 0
      %2512 = vmatprep.subr.mxu0 0.0
      %2513 = vmatpush1.msra.mxu0 %v2491
      %2514 = vmatprep.subr.mxu0 0.0
      %2515 = vmatpush1.msra.mxu0 %v2492
      %2516 = vmatprep.subr.mxu0 0.0
      %2517 = vmatpush1.msra.mxu0 %v2493
      %2518 = vmatprep.subr.mxu0 0.0
      %2519 = vmatpush1.msra.mxu0 %v2494
      %2520 = vmatprep.subr.mxu0 0.0
      %2521 = vmatpush1.msra.mxu0 %v2495
      %2522 = vmatprep.subr.mxu0 0.0
      %2523 = vmatpush1.msra.mxu0 %v2496
      %2524 = vmatprep.subr.mxu0 0.0
      %2525 = vmatpush1.msra.mxu0 0.0
      %2526 = vmatprep.subr.mxu0 0.0
      %2527 = vmatpush1.msra.mxu0 0.0
      %2528 = vmatprep.subr.mxu0 0.0
      %2529 = vmatpush1.msra.mxu0 0.0
      %2530 = vmatprep.subr.mxu0 0.0
      %2531 = vmatpush1.msra.mxu0 0.0
      %2532 = vmatprep.subr.mxu0 0.0
      %2533 = vmatpush1.msra.mxu0 0.0
      %2534 = vmatprep.subr.mxu0 0.0
      %2535 = vmatpush1.msra.mxu0 0.0
      %2536 = vmatprep.subr.mxu0 0.0
      %2537 = vmatpush1.msra.mxu0 0.0
      %2538 = vmatprep.subr.mxu0 0.0
      %2539 = vmatpush1.msra.mxu0 0.0
      %2540 = vmatprep.subr.mxu0 0.0
      %2541 = vmatpush1.msra.mxu0 0.0
      %2542 = vmatprep.subr.mxu0 0.0
      %2543 = vmatpush1.msra.mxu0 0.0
      %2544 = vmatprep.subr.mxu0 0.0
      %2545 = vmatpush1.msra.mxu0 0.0
      %2546 = vmatprep.subr.mxu0 0.0
      %2547 = vmatpush1.msra.mxu0 0.0
      %2548 = vmatprep.subr.mxu0 0.0
      %2549 = vmatpush1.msra.mxu0 0.0
      %2550 = vmatprep.subr.mxu0 0.0
      %2551 = vmatpush1.msra.mxu0 0.0
      %2552 = vmatprep.subr.mxu0 0.0
      %2553 = vmatpush1.msra.mxu0 0.0
      %2554 = vmatprep.subr.mxu0 0.0
      %2555 = vmatpush1.msra.mxu0 0.0
      %2556 = vmatprep.subr.mxu0 0.0
      %2557 = vmatpush1.msra.mxu0 0.0
      %2558 = vmatprep.subr.mxu0 0.0
      %2559 = vmatpush1.msra.mxu0 0.0
      %2560 = vmatprep.subr.mxu0 0.0
      %2561 = vmatpush1.msra.mxu0 0.0
      %2562 = vmatprep.subr.mxu0 0.0
      %2563 = vmatpush1.msra.mxu0 0.0
      %2564 = vmatprep.subr.mxu0 0.0
      %2565 = vmatpush1.msra.mxu0 0.0
      %2566 = vmatprep.subr.mxu0 0.0
      %2567 = vmatpush1.msra.mxu0 0.0
      %2568 = vmatprep.subr.mxu0 0.0
      %2569 = vmatpush1.msra.mxu0 0.0
      %2570 = vmatprep.subr.mxu0 0.0
      %2571 = vmatpush1.msra.mxu0 0.0
      %2572 = vmatprep.subr.mxu0 0.0
      %2573 = vmatpush1.msra.mxu0 0.0
      %2574 = vmatprep.subr.mxu0 0.0
      %2575 = vmatpush1.msra.mxu0 0.0
      %2576 = vmatprep.mubr.f32.mxu0 0.0
      %2577 = vmatmul.mubr.f32.gmra.mrb[0].mxu0 %v2498
      %v2578 = vpop.f32.mrb[0].mxu0
      %v2579 = vadd.f32 0.0, %v2578
      %v2580 = vpop.f32.mrb[0].mxu0
      %2581 = vmatprep.mubr.f32.mxu0 0.0
      %2582 = vmatmul.mubr.f32.gmra.mrb[0].mxu0 %v2501
      %v2583 = vpop.f32.mrb[0].mxu0
      %v2584 = vadd.f32 0.0, %v2583
      %v2585 = vpop.f32.mrb[0].mxu0
      %2586 = vmatprep.mubr.f32.mxu0 0.0
      %2587 = vmatmul.mubr.f32.gmra.mrb[0].mxu0 %v2504
      %v2588 = vpop.f32.mrb[0].mxu0
      %v2589 = vadd.f32 0.0, %v2588
      %v2590 = vpop.f32.mrb[0].mxu0
      %2591 = vmatprep.mubr.f32.mxu0 0.0
      %2592 = vmatmul.mubr.f32.gmra.mrb[0].mxu0 %v2507
      %v2593 = vpop.f32.mrb[0].mxu0
      %v2594 = vadd.f32 0.0, %v2593
      %v2595 = vpop.f32.mrb[0].mxu0
      %2596 = vmatprep.mubr.f32.mxu0 0.0
      %2597 = vmatmul.mubr.f32.gmra.mrb[0].mxu0 %v2510
      %v2598 = vpop.f32.mrb[0].mxu0
      %v2599 = vadd.f32 0.0, %v2598
      %v2600 = vpop.f32.mrb[0].mxu0
      %2601 = vdwg.mxu0
      %v2602 = vadd.f32 %v2480, %v2579
      %v2603 = vadd.f32 %v2481, %v2584
      %v2604 = vadd.f32 %v2482, %v2589
      %v2605 = vadd.f32 %v2483, %v2594
      %v2606 = vadd.f32 %v2484, %v2599
      %v2607 = vld [vmem:[%s1294 + $0x5] sm:$0xff]
      %v2608 = vld [vmem:[%s1294 + $0xd] sm:$0xff]
      %v2609 = vld [vmem:[%s1294 + $0x15] sm:$0xff]
      %v2610 = vld [vmem:[%s1294 + $0x1d] sm:$0xff]
      %v2611 = vld [vmem:[%s1294 + $0x25] sm:$0x3]
      %s2612 = scalar_lea.vmem %s3, 192
      %v2613 = vld [vmem:[%s2612] sm:$0xff]
      %v2614 = vld [vmem:[%s2612 + $0x8] sm:$0xff]
      %v2615 = vld [vmem:[%s2612 + $0x10] sm:$0xff]
      %v2616 = vld [vmem:[%s2612 + $0x18] sm:$0xff]
      %v2617 = vld [vmem:[%s2612 + $0x20] sm:$0xff]
      %v2618 = vld [vmem:[%s2612 + $0x28] sm:$0xff]
      %v2620 = vsel %vm389, %v2607, 0
      %v2623 = vsel %vm389, %v2608, 0
      %v2626 = vsel %vm389, %v2609, 0
      %v2629 = vsel %vm389, %v2610, 0
      %v2632 = vsel %vm389, %v2611, 0
      %2634 = vmatprep.subr.mxu0 0.0
      %2635 = vmatpush1.msra.mxu0 %v2613
      %2636 = vmatprep.subr.mxu0 0.0
      %2637 = vmatpush1.msra.mxu0 %v2614
      %2638 = vmatprep.subr.mxu0 0.0
      %2639 = vmatpush1.msra.mxu0 %v2615
      %2640 = vmatprep.subr.mxu0 0.0
      %2641 = vmatpush1.msra.mxu0 %v2616
      %2642 = vmatprep.subr.mxu0 0.0
      %2643 = vmatpush1.msra.mxu0 %v2617
      %2644 = vmatprep.subr.mxu0 0.0
      %2645 = vmatpush1.msra.mxu0 %v2618
      %2646 = vmatprep.subr.mxu0 0.0
      %2647 = vmatpush1.msra.mxu0 0.0
      %2648 = vmatprep.subr.mxu0 0.0
      %2649 = vmatpush1.msra.mxu0 0.0
      %2650 = vmatprep.subr.mxu0 0.0
      %2651 = vmatpush1.msra.mxu0 0.0
      %2652 = vmatprep.subr.mxu0 0.0
      %2653 = vmatpush1.msra.mxu0 0.0
      %2654 = vmatprep.subr.mxu0 0.0
      %2655 = vmatpush1.msra.mxu0 0.0
      %2656 = vmatprep.subr.mxu0 0.0
      %2657 = vmatpush1.msra.mxu0 0.0
      %2658 = vmatprep.subr.mxu0 0.0
      %2659 = vmatpush1.msra.mxu0 0.0
      %2660 = vmatprep.subr.mxu0 0.0
      %2661 = vmatpush1.msra.mxu0 0.0
      %2662 = vmatprep.subr.mxu0 0.0
      %2663 = vmatpush1.msra.mxu0 0.0
      %2664 = vmatprep.subr.mxu0 0.0
      %2665 = vmatpush1.msra.mxu0 0.0
      %2666 = vmatprep.subr.mxu0 0.0
      %2667 = vmatpush1.msra.mxu0 0.0
      %2668 = vmatprep.subr.mxu0 0.0
      %2669 = vmatpush1.msra.mxu0 0.0
      %2670 = vmatprep.subr.mxu0 0.0
      %2671 = vmatpush1.msra.mxu0 0.0
      %2672 = vmatprep.subr.mxu0 0.0
      %2673 = vmatpush1.msra.mxu0 0.0
      %2674 = vmatprep.subr.mxu0 0.0
      %2675 = vmatpush1.msra.mxu0 0.0
      %2676 = vmatprep.subr.mxu0 0.0
      %2677 = vmatpush1.msra.mxu0 0.0
      %2678 = vmatprep.subr.mxu0 0.0
      %2679 = vmatpush1.msra.mxu0 0.0
      %2680 = vmatprep.subr.mxu0 0.0
      %2681 = vmatpush1.msra.mxu0 0.0
      %2682 = vmatprep.subr.mxu0 0.0
      %2683 = vmatpush1.msra.mxu0 0.0
      %2684 = vmatprep.subr.mxu0 0.0
      %2685 = vmatpush1.msra.mxu0 0.0
      %2686 = vmatprep.subr.mxu0 0.0
      %2687 = vmatpush1.msra.mxu0 0.0
      %2688 = vmatprep.subr.mxu0 0.0
      %2689 = vmatpush1.msra.mxu0 0.0
      %2690 = vmatprep.subr.mxu0 0.0
      %2691 = vmatpush1.msra.mxu0 0.0
      %2692 = vmatprep.subr.mxu0 0.0
      %2693 = vmatpush1.msra.mxu0 0.0
      %2694 = vmatprep.subr.mxu0 0.0
      %2695 = vmatpush1.msra.mxu0 0.0
      %2696 = vmatprep.subr.mxu0 0.0
      %2697 = vmatpush1.msra.mxu0 0.0
      %2698 = vmatprep.mubr.f32.mxu0 0.0
      %2699 = vmatmul.mubr.f32.gmra.mrb[0].mxu0 %v2620
      %v2700 = vpop.f32.mrb[0].mxu0
      %v2701 = vadd.f32 0.0, %v2700
      %v2702 = vpop.f32.mrb[0].mxu0
      %2703 = vmatprep.mubr.f32.mxu0 0.0
      %2704 = vmatmul.mubr.f32.gmra.mrb[0].mxu0 %v2623
      %v2705 = vpop.f32.mrb[0].mxu0
      %v2706 = vadd.f32 0.0, %v2705
      %v2707 = vpop.f32.mrb[0].mxu0
      %2708 = vmatprep.mubr.f32.mxu0 0.0
      %2709 = vmatmul.mubr.f32.gmra.mrb[0].mxu0 %v2626
      %v2710 = vpop.f32.mrb[0].mxu0
      %v2711 = vadd.f32 0.0, %v2710
      %v2712 = vpop.f32.mrb[0].mxu0
      %2713 = vmatprep.mubr.f32.mxu0 0.0
      %2714 = vmatmul.mubr.f32.gmra.mrb[0].mxu0 %v2629
      %v2715 = vpop.f32.mrb[0].mxu0
      %v2716 = vadd.f32 0.0, %v2715
      %v2717 = vpop.f32.mrb[0].mxu0
      %2718 = vmatprep.mubr.f32.mxu0 0.0
      %2719 = vmatmul.mubr.f32.gmra.mrb[0].mxu0 %v2632
      %v2720 = vpop.f32.mrb[0].mxu0
      %v2721 = vadd.f32 0.0, %v2720
      %v2722 = vpop.f32.mrb[0].mxu0
      %2723 = vdwg.mxu0
      %v2724 = vadd.f32 %v2602, %v2701
      %v2725 = vadd.f32 %v2603, %v2706
      %v2726 = vadd.f32 %v2604, %v2711
      %v2727 = vadd.f32 %v2605, %v2716
      %v2728 = vadd.f32 %v2606, %v2721
      %v2729 = vld [vmem:[#allocation2 + $0x6] sm:$0xff]
      %v2730 = vld [vmem:[#allocation2 + $0xe] sm:$0xff]
      %v2731 = vld [vmem:[#allocation2 + $0x16] sm:$0xff]
      %v2732 = vld [vmem:[#allocation2 + $0x1e] sm:$0xff]
      %v2733 = vld [vmem:[#allocation2 + $0x26] sm:$0x3]
      %s2734 = scalar_lea.vmem %s3, 240
      %v2735 = vld [vmem:[%s2734] sm:$0xff]
      %v2736 = vld [vmem:[%s2734 + $0x8] sm:$0xff]
      %v2737 = vld [vmem:[%s2734 + $0x10] sm:$0xff]
      %v2738 = vld [vmem:[%s2734 + $0x18] sm:$0xff]
      %v2739 = vld [vmem:[%s2734 + $0x20] sm:$0xff]
      %v2740 = vld [vmem:[%s2734 + $0x28] sm:$0xff]
      %v2742 = vsel %vm389, %v2729, 0
      %v2745 = vsel %vm389, %v2730, 0
      %v2748 = vsel %vm389, %v2731, 0
      %v2751 = vsel %vm389, %v2732, 0
      %v2754 = vsel %vm389, %v2733, 0
      %2756 = vmatprep.subr.mxu0 0.0
      %2757 = vmatpush1.msra.mxu0 %v2735
      %2758 = vmatprep.subr.mxu0 0.0
      %2759 = vmatpush1.msra.mxu0 %v2736
      %2760 = vmatprep.subr.mxu0 0.0
      %2761 = vmatpush1.msra.mxu0 %v2737
      %2762 = vmatprep.subr.mxu0 0.0
      %2763 = vmatpush1.msra.mxu0 %v2738
      %2764 = vmatprep.subr.mxu0 0.0
      %2765 = vmatpush1.msra.mxu0 %v2739
      %2766 = vmatprep.subr.mxu0 0.0
      %2767 = vmatpush1.msra.mxu0 %v2740
      %2768 = vmatprep.subr.mxu0 0.0
      %2769 = vmatpush1.msra.mxu0 0.0
      %2770 = vmatprep.subr.mxu0 0.0
      %2771 = vmatpush1.msra.mxu0 0.0
      %2772 = vmatprep.subr.mxu0 0.0
      %2773 = vmatpush1.msra.mxu0 0.0
      %2774 = vmatprep.subr.mxu0 0.0
      %2775 = vmatpush1.msra.mxu0 0.0
      %2776 = vmatprep.subr.mxu0 0.0
      %2777 = vmatpush1.msra.mxu0 0.0
      %2778 = vmatprep.subr.mxu0 0.0
      %2779 = vmatpush1.msra.mxu0 0.0
      %2780 = vmatprep.subr.mxu0 0.0
      %2781 = vmatpush1.msra.mxu0 0.0
      %2782 = vmatprep.subr.mxu0 0.0
      %2783 = vmatpush1.msra.mxu0 0.0
      %2784 = vmatprep.subr.mxu0 0.0
      %2785 = vmatpush1.msra.mxu0 0.0
      %2786 = vmatprep.subr.mxu0 0.0
      %2787 = vmatpush1.msra.mxu0 0.0
      %2788 = vmatprep.subr.mxu0 0.0
      %2789 = vmatpush1.msra.mxu0 0.0
      %2790 = vmatprep.subr.mxu0 0.0
      %2791 = vmatpush1.msra.mxu0 0.0
      %2792 = vmatprep.subr.mxu0 0.0
      %2793 = vmatpush1.msra.mxu0 0.0
      %2794 = vmatprep.subr.mxu0 0.0
      %2795 = vmatpush1.msra.mxu0 0.0
      %2796 = vmatprep.subr.mxu0 0.0
      %2797 = vmatpush1.msra.mxu0 0.0
      %2798 = vmatprep.subr.mxu0 0.0
      %2799 = vmatpush1.msra.mxu0 0.0
      %2800 = vmatprep.subr.mxu0 0.0
      %2801 = vmatpush1.msra.mxu0 0.0
      %2802 = vmatprep.subr.mxu0 0.0
      %2803 = vmatpush1.msra.mxu0 0.0
      %2804 = vmatprep.subr.mxu0 0.0
      %2805 = vmatpush1.msra.mxu0 0.0
      %2806 = vmatprep.subr.mxu0 0.0
      %2807 = vmatpush1.msra.mxu0 0.0
      %2808 = vmatprep.subr.mxu0 0.0
      %2809 = vmatpush1.msra.mxu0 0.0
      %2810 = vmatprep.subr.mxu0 0.0
      %2811 = vmatpush1.msra.mxu0 0.0
      %2812 = vmatprep.subr.mxu0 0.0
      %2813 = vmatpush1.msra.mxu0 0.0
      %2814 = vmatprep.subr.mxu0 0.0
      %2815 = vmatpush1.msra.mxu0 0.0
      %2816 = vmatprep.subr.mxu0 0.0
      %2817 = vmatpush1.msra.mxu0 0.0
      %2818 = vmatprep.subr.mxu0 0.0
      %2819 = vmatpush1.msra.mxu0 0.0
      %2820 = vmatprep.mubr.f32.mxu0 0.0
      %2821 = vmatmul.mubr.f32.gmra.mrb[0].mxu0 %v2742
      %v2822 = vpop.f32.mrb[0].mxu0
      %v2823 = vadd.f32 0.0, %v2822
      %v2824 = vpop.f32.mrb[0].mxu0
      %2825 = vmatprep.mubr.f32.mxu0 0.0
      %2826 = vmatmul.mubr.f32.gmra.mrb[0].mxu0 %v2745
      %v2827 = vpop.f32.mrb[0].mxu0
      %v2828 = vadd.f32 0.0, %v2827
      %v2829 = vpop.f32.mrb[0].mxu0
      %2830 = vmatprep.mubr.f32.mxu0 0.0
      %2831 = vmatmul.mubr.f32.gmra.mrb[0].mxu0 %v2748
      %v2832 = vpop.f32.mrb[0].mxu0
      %v2833 = vadd.f32 0.0, %v2832
      %v2834 = vpop.f32.mrb[0].mxu0
      %2835 = vmatprep.mubr.f32.mxu0 0.0
      %2836 = vmatmul.mubr.f32.gmra.mrb[0].mxu0 %v2751
      %v2837 = vpop.f32.mrb[0].mxu0
      %v2838 = vadd.f32 0.0, %v2837
      %v2839 = vpop.f32.mrb[0].mxu0
      %2840 = vmatprep.mubr.f32.mxu0 0.0
      %2841 = vmatmul.mubr.f32.gmra.mrb[0].mxu0 %v2754
      %v2842 = vpop.f32.mrb[0].mxu0
      %v2843 = vadd.f32 0.0, %v2842
      %v2844 = vpop.f32.mrb[0].mxu0
      %2845 = vdwg.mxu0
      %v2846 = vadd.f32 %v2724, %v2823
      %v2847 = vadd.f32 %v2725, %v2828
      %v2848 = vadd.f32 %v2726, %v2833
      %v2849 = vadd.f32 %v2727, %v2838
      %v2850 = vadd.f32 %v2728, %v2843
      %v2851 = vld [vmem:[#allocation2 + $0xa] sm:$0xff]
      %v2852 = vld [vmem:[#allocation2 + $0x12] sm:$0xff]
      %v2853 = vld [vmem:[#allocation2 + $0x1a] sm:$0xff]
      %v2854 = vld [vmem:[#allocation2 + $0x22] sm:$0xff]
      %v2855 = vld [vmem:[#allocation2 + $0x2a] sm:$0x3]
      %s2856 = scalar_lea.vmem %s3, 288
      %v2857 = vld [vmem:[%s2856] sm:$0xff]
      %v2858 = vld [vmem:[%s2856 + $0x8] sm:$0xff]
      %v2859 = vld [vmem:[%s2856 + $0x10] sm:$0xff]
      %v2860 = vld [vmem:[%s2856 + $0x18] sm:$0xff]
      %v2861 = vld [vmem:[%s2856 + $0x20] sm:$0xff]
      %v2862 = vld [vmem:[%s2856 + $0x28] sm:$0xff]
      %v2864 = vsel %vm389, %v2851, 0
      %v2867 = vsel %vm389, %v2852, 0
      %v2870 = vsel %vm389, %v2853, 0
      %v2873 = vsel %vm389, %v2854, 0
      %v2876 = vsel %vm389, %v2855, 0
      %2878 = vmatprep.subr.mxu0 0.0
      %2879 = vmatpush1.msra.mxu0 %v2857
      %2880 = vmatprep.subr.mxu0 0.0
      %2881 = vmatpush1.msra.mxu0 %v2858
      %2882 = vmatprep.subr.mxu0 0.0
      %2883 = vmatpush1.msra.mxu0 %v2859
      %2884 = vmatprep.subr.mxu0 0.0
      %2885 = vmatpush1.msra.mxu0 %v2860
      %2886 = vmatprep.subr.mxu0 0.0
      %2887 = vmatpush1.msra.mxu0 %v2861
      %2888 = vmatprep.subr.mxu0 0.0
      %2889 = vmatpush1.msra.mxu0 %v2862
      %2890 = vmatprep.subr.mxu0 0.0
      %2891 = vmatpush1.msra.mxu0 0.0
      %2892 = vmatprep.subr.mxu0 0.0
      %2893 = vmatpush1.msra.mxu0 0.0
      %2894 = vmatprep.subr.mxu0 0.0
      %2895 = vmatpush1.msra.mxu0 0.0
      %2896 = vmatprep.subr.mxu0 0.0
      %2897 = vmatpush1.msra.mxu0 0.0
      %2898 = vmatprep.subr.mxu0 0.0
      %2899 = vmatpush1.msra.mxu0 0.0
      %2900 = vmatprep.subr.mxu0 0.0
      %2901 = vmatpush1.msra.mxu0 0.0
      %2902 = vmatprep.subr.mxu0 0.0
      %2903 = vmatpush1.msra.mxu0 0.0
      %2904 = vmatprep.subr.mxu0 0.0
      %2905 = vmatpush1.msra.mxu0 0.0
      %2906 = vmatprep.subr.mxu0 0.0
      %2907 = vmatpush1.msra.mxu0 0.0
      %2908 = vmatprep.subr.mxu0 0.0
      %2909 = vmatpush1.msra.mxu0 0.0
      %2910 = vmatprep.subr.mxu0 0.0
      %2911 = vmatpush1.msra.mxu0 0.0
      %2912 = vmatprep.subr.mxu0 0.0
      %2913 = vmatpush1.msra.mxu0 0.0
      %2914 = vmatprep.subr.mxu0 0.0
      %2915 = vmatpush1.msra.mxu0 0.0
      %2916 = vmatprep.subr.mxu0 0.0
      %2917 = vmatpush1.msra.mxu0 0.0
      %2918 = vmatprep.subr.mxu0 0.0
      %2919 = vmatpush1.msra.mxu0 0.0
      %2920 = vmatprep.subr.mxu0 0.0
      %2921 = vmatpush1.msra.mxu0 0.0
      %2922 = vmatprep.subr.mxu0 0.0
      %2923 = vmatpush1.msra.mxu0 0.0
      %2924 = vmatprep.subr.mxu0 0.0
      %2925 = vmatpush1.msra.mxu0 0.0
      %2926 = vmatprep.subr.mxu0 0.0
      %2927 = vmatpush1.msra.mxu0 0.0
      %2928 = vmatprep.subr.mxu0 0.0
      %2929 = vmatpush1.msra.mxu0 0.0
      %2930 = vmatprep.subr.mxu0 0.0
      %2931 = vmatpush1.msra.mxu0 0.0
      %2932 = vmatprep.subr.mxu0 0.0
      %2933 = vmatpush1.msra.mxu0 0.0
      %2934 = vmatprep.subr.mxu0 0.0
      %2935 = vmatpush1.msra.mxu0 0.0
      %2936 = vmatprep.subr.mxu0 0.0
      %2937 = vmatpush1.msra.mxu0 0.0
      %2938 = vmatprep.subr.mxu0 0.0
      %2939 = vmatpush1.msra.mxu0 0.0
      %2940 = vmatprep.subr.mxu0 0.0
      %2941 = vmatpush1.msra.mxu0 0.0
      %2942 = vmatprep.mubr.f32.mxu0 0.0
      %2943 = vmatmul.mubr.f32.gmra.mrb[0].mxu0 %v2864
      %v2944 = vpop.f32.mrb[0].mxu0
      %v2945 = vadd.f32 0.0, %v2944
      %v2946 = vpop.f32.mrb[0].mxu0
      %2947 = vmatprep.mubr.f32.mxu0 0.0
      %2948 = vmatmul.mubr.f32.gmra.mrb[0].mxu0 %v2867
      %v2949 = vpop.f32.mrb[0].mxu0
      %v2950 = vadd.f32 0.0, %v2949
      %v2951 = vpop.f32.mrb[0].mxu0
      %2952 = vmatprep.mubr.f32.mxu0 0.0
      %2953 = vmatmul.mubr.f32.gmra.mrb[0].mxu0 %v2870
      %v2954 = vpop.f32.mrb[0].mxu0
      %v2955 = vadd.f32 0.0, %v2954
      %v2956 = vpop.f32.mrb[0].mxu0
      %2957 = vmatprep.mubr.f32.mxu0 0.0
      %2958 = vmatmul.mubr.f32.gmra.mrb[0].mxu0 %v2873
      %v2959 = vpop.f32.mrb[0].mxu0
      %v2960 = vadd.f32 0.0, %v2959
      %v2961 = vpop.f32.mrb[0].mxu0
      %2962 = vmatprep.mubr.f32.mxu0 0.0
      %2963 = vmatmul.mubr.f32.gmra.mrb[0].mxu0 %v2876
      %v2964 = vpop.f32.mrb[0].mxu0
      %v2965 = vadd.f32 0.0, %v2964
      %v2966 = vpop.f32.mrb[0].mxu0
      %2967 = vdwg.mxu0
      %v2968 = vadd.f32 %v2846, %v2945
      %v2969 = vadd.f32 %v2847, %v2950
      %v2970 = vadd.f32 %v2848, %v2955
      %v2971 = vadd.f32 %v2849, %v2960
      %v2972 = vadd.f32 %v2850, %v2965
      %v2973 = vld [vmem:[%s1294 + $0xa] sm:$0xff]
      %v2974 = vld [vmem:[%s1294 + $0x12] sm:$0xff]
      %v2975 = vld [vmem:[%s1294 + $0x1a] sm:$0xff]
      %v2976 = vld [vmem:[%s1294 + $0x22] sm:$0xff]
      %v2977 = vld [vmem:[%s1294 + $0x2a] sm:$0x3]
      %s2978 = scalar_lea.vmem %s3, 336
      %v2979 = vld [vmem:[%s2978] sm:$0xff]
      %v2980 = vld [vmem:[%s2978 + $0x8] sm:$0xff]
      %v2981 = vld [vmem:[%s2978 + $0x10] sm:$0xff]
      %v2982 = vld [vmem:[%s2978 + $0x18] sm:$0xff]
      %v2983 = vld [vmem:[%s2978 + $0x20] sm:$0xff]
      %v2984 = vld [vmem:[%s2978 + $0x28] sm:$0xff]
      %v2986 = vsel %vm389, %v2973, 0
      %v2989 = vsel %vm389, %v2974, 0
      %v2992 = vsel %vm389, %v2975, 0
      %v2995 = vsel %vm389, %v2976, 0
      %v2998 = vsel %vm389, %v2977, 0
      %3000 = vmatprep.subr.mxu0 0.0
      %3001 = vmatpush1.msra.mxu0 %v2979
      %3002 = vmatprep.subr.mxu0 0.0
      %3003 = vmatpush1.msra.mxu0 %v2980
      %3004 = vmatprep.subr.mxu0 0.0
      %3005 = vmatpush1.msra.mxu0 %v2981
      %3006 = vmatprep.subr.mxu0 0.0
      %3007 = vmatpush1.msra.mxu0 %v2982
      %3008 = vmatprep.subr.mxu0 0.0
      %3009 = vmatpush1.msra.mxu0 %v2983
      %3010 = vmatprep.subr.mxu0 0.0
      %3011 = vmatpush1.msra.mxu0 %v2984
      %3012 = vmatprep.subr.mxu0 0.0
      %3013 = vmatpush1.msra.mxu0 0.0
      %3014 = vmatprep.subr.mxu0 0.0
      %3015 = vmatpush1.msra.mxu0 0.0
      %3016 = vmatprep.subr.mxu0 0.0
      %3017 = vmatpush1.msra.mxu0 0.0
      %3018 = vmatprep.subr.mxu0 0.0
      %3019 = vmatpush1.msra.mxu0 0.0
      %3020 = vmatprep.subr.mxu0 0.0
      %3021 = vmatpush1.msra.mxu0 0.0
      %3022 = vmatprep.subr.mxu0 0.0
      %3023 = vmatpush1.msra.mxu0 0.0
      %3024 = vmatprep.subr.mxu0 0.0
      %3025 = vmatpush1.msra.mxu0 0.0
      %3026 = vmatprep.subr.mxu0 0.0
      %3027 = vmatpush1.msra.mxu0 0.0
      %3028 = vmatprep.subr.mxu0 0.0
      %3029 = vmatpush1.msra.mxu0 0.0
      %3030 = vmatprep.subr.mxu0 0.0
      %3031 = vmatpush1.msra.mxu0 0.0
      %3032 = vmatprep.subr.mxu0 0.0
      %3033 = vmatpush1.msra.mxu0 0.0
      %3034 = vmatprep.subr.mxu0 0.0
      %3035 = vmatpush1.msra.mxu0 0.0
      %3036 = vmatprep.subr.mxu0 0.0
      %3037 = vmatpush1.msra.mxu0 0.0
      %3038 = vmatprep.subr.mxu0 0.0
      %3039 = vmatpush1.msra.mxu0 0.0
      %3040 = vmatprep.subr.mxu0 0.0
      %3041 = vmatpush1.msra.mxu0 0.0
      %3042 = vmatprep.subr.mxu0 0.0
      %3043 = vmatpush1.msra.mxu0 0.0
      %3044 = vmatprep.subr.mxu0 0.0
      %3045 = vmatpush1.msra.mxu0 0.0
      %3046 = vmatprep.subr.mxu0 0.0
      %3047 = vmatpush1.msra.mxu0 0.0
      %3048 = vmatprep.subr.mxu0 0.0
      %3049 = vmatpush1.msra.mxu0 0.0
      %3050 = vmatprep.subr.mxu0 0.0
      %3051 = vmatpush1.msra.mxu0 0.0
      %3052 = vmatprep.subr.mxu0 0.0
      %3053 = vmatpush1.msra.mxu0 0.0
      %3054 = vmatprep.subr.mxu0 0.0
      %3055 = vmatpush1.msra.mxu0 0.0
      %3056 = vmatprep.subr.mxu0 0.0
      %3057 = vmatpush1.msra.mxu0 0.0
      %3058 = vmatprep.subr.mxu0 0.0
      %3059 = vmatpush1.msra.mxu0 0.0
      %3060 = vmatprep.subr.mxu0 0.0
      %3061 = vmatpush1.msra.mxu0 0.0
      %3062 = vmatprep.subr.mxu0 0.0
      %3063 = vmatpush1.msra.mxu0 0.0
      %3064 = vmatprep.mubr.f32.mxu0 0.0
      %3065 = vmatmul.mubr.f32.gmra.mrb[0].mxu0 %v2986
      %v3066 = vpop.f32.mrb[0].mxu0
      %v3067 = vadd.f32 0.0, %v3066
      %v3068 = vpop.f32.mrb[0].mxu0
      %3069 = vmatprep.mubr.f32.mxu0 0.0
      %3070 = vmatmul.mubr.f32.gmra.mrb[0].mxu0 %v2989
      %v3071 = vpop.f32.mrb[0].mxu0
      %v3072 = vadd.f32 0.0, %v3071
      %v3073 = vpop.f32.mrb[0].mxu0
      %3074 = vmatprep.mubr.f32.mxu0 0.0
      %3075 = vmatmul.mubr.f32.gmra.mrb[0].mxu0 %v2992
      %v3076 = vpop.f32.mrb[0].mxu0
      %v3077 = vadd.f32 0.0, %v3076
      %v3078 = vpop.f32.mrb[0].mxu0
      %3079 = vmatprep.mubr.f32.mxu0 0.0
      %3080 = vmatmul.mubr.f32.gmra.mrb[0].mxu0 %v2995
      %v3081 = vpop.f32.mrb[0].mxu0
      %v3082 = vadd.f32 0.0, %v3081
      %v3083 = vpop.f32.mrb[0].mxu0
      %3084 = vmatprep.mubr.f32.mxu0 0.0
      %3085 = vmatmul.mubr.f32.gmra.mrb[0].mxu0 %v2998
      %v3086 = vpop.f32.mrb[0].mxu0
      %v3087 = vadd.f32 0.0, %v3086
      %v3088 = vpop.f32.mrb[0].mxu0
      %3089 = vdwg.mxu0
      %v3090 = vadd.f32 %v2968, %v3067
      %v3091 = vadd.f32 %v2969, %v3072
      %v3092 = vadd.f32 %v2970, %v3077
      %v3093 = vadd.f32 %v2971, %v3082
      %v3094 = vadd.f32 %v2972, %v3087
      %v3095 = vld [vmem:[#allocation2 + $0xb] sm:$0xff]
      %v3096 = vld [vmem:[#allocation2 + $0x13] sm:$0xff]
      %v3097 = vld [vmem:[#allocation2 + $0x1b] sm:$0xff]
      %v3098 = vld [vmem:[#allocation2 + $0x23] sm:$0xff]
      %v3099 = vld [vmem:[#allocation2 + $0x2b] sm:$0x3]
      %s3100 = scalar_lea.vmem %s3, 384
      %v3101 = vld [vmem:[%s3100] sm:$0xff]
      %v3102 = vld [vmem:[%s3100 + $0x8] sm:$0xff]
      %v3103 = vld [vmem:[%s3100 + $0x10] sm:$0xff]
      %v3104 = vld [vmem:[%s3100 + $0x18] sm:$0xff]
      %v3105 = vld [vmem:[%s3100 + $0x20] sm:$0xff]
      %v3106 = vld [vmem:[%s3100 + $0x28] sm:$0xff]
      %v3108 = vsel %vm389, %v3095, 0
      %v3111 = vsel %vm389, %v3096, 0
      %v3114 = vsel %vm389, %v3097, 0
      %v3117 = vsel %vm389, %v3098, 0
      %v3120 = vsel %vm389, %v3099, 0
      %3122 = vmatprep.subr.mxu0 0.0
      %3123 = vmatpush1.msra.mxu0 %v3101
      %3124 = vmatprep.subr.mxu0 0.0
      %3125 = vmatpush1.msra.mxu0 %v3102
      %3126 = vmatprep.subr.mxu0 0.0
      %3127 = vmatpush1.msra.mxu0 %v3103
      %3128 = vmatprep.subr.mxu0 0.0
      %3129 = vmatpush1.msra.mxu0 %v3104
      %3130 = vmatprep.subr.mxu0 0.0
      %3131 = vmatpush1.msra.mxu0 %v3105
      %3132 = vmatprep.subr.mxu0 0.0
      %3133 = vmatpush1.msra.mxu0 %v3106
      %3134 = vmatprep.subr.mxu0 0.0
      %3135 = vmatpush1.msra.mxu0 0.0
      %3136 = vmatprep.subr.mxu0 0.0
      %3137 = vmatpush1.msra.mxu0 0.0
      %3138 = vmatprep.subr.mxu0 0.0
      %3139 = vmatpush1.msra.mxu0 0.0
      %3140 = vmatprep.subr.mxu0 0.0
      %3141 = vmatpush1.msra.mxu0 0.0
      %3142 = vmatprep.subr.mxu0 0.0
      %3143 = vmatpush1.msra.mxu0 0.0
      %3144 = vmatprep.subr.mxu0 0.0
      %3145 = vmatpush1.msra.mxu0 0.0
      %3146 = vmatprep.subr.mxu0 0.0
      %3147 = vmatpush1.msra.mxu0 0.0
      %3148 = vmatprep.subr.mxu0 0.0
      %3149 = vmatpush1.msra.mxu0 0.0
      %3150 = vmatprep.subr.mxu0 0.0
      %3151 = vmatpush1.msra.mxu0 0.0
      %3152 = vmatprep.subr.mxu0 0.0
      %3153 = vmatpush1.msra.mxu0 0.0
      %3154 = vmatprep.subr.mxu0 0.0
      %3155 = vmatpush1.msra.mxu0 0.0
      %3156 = vmatprep.subr.mxu0 0.0
      %3157 = vmatpush1.msra.mxu0 0.0
      %3158 = vmatprep.subr.mxu0 0.0
      %3159 = vmatpush1.msra.mxu0 0.0
      %3160 = vmatprep.subr.mxu0 0.0
      %3161 = vmatpush1.msra.mxu0 0.0
      %3162 = vmatprep.subr.mxu0 0.0
      %3163 = vmatpush1.msra.mxu0 0.0
      %3164 = vmatprep.subr.mxu0 0.0
      %3165 = vmatpush1.msra.mxu0 0.0
      %3166 = vmatprep.subr.mxu0 0.0
      %3167 = vmatpush1.msra.mxu0 0.0
      %3168 = vmatprep.subr.mxu0 0.0
      %3169 = vmatpush1.msra.mxu0 0.0
      %3170 = vmatprep.subr.mxu0 0.0
      %3171 = vmatpush1.msra.mxu0 0.0
      %3172 = vmatprep.subr.mxu0 0.0
      %3173 = vmatpush1.msra.mxu0 0.0
      %3174 = vmatprep.subr.mxu0 0.0
      %3175 = vmatpush1.msra.mxu0 0.0
      %3176 = vmatprep.subr.mxu0 0.0
      %3177 = vmatpush1.msra.mxu0 0.0
      %3178 = vmatprep.subr.mxu0 0.0
      %3179 = vmatpush1.msra.mxu0 0.0
      %3180 = vmatprep.subr.mxu0 0.0
      %3181 = vmatpush1.msra.mxu0 0.0
      %3182 = vmatprep.subr.mxu0 0.0
      %3183 = vmatpush1.msra.mxu0 0.0
      %3184 = vmatprep.subr.mxu0 0.0
      %3185 = vmatpush1.msra.mxu0 0.0
      %3186 = vmatprep.mubr.f32.mxu0 0.0
      %3187 = vmatmul.mubr.f32.gmra.mrb[0].mxu0 %v3108
      %v3188 = vpop.f32.mrb[0].mxu0
      %v3189 = vadd.f32 0.0, %v3188
      %v3190 = vpop.f32.mrb[0].mxu0
      %3191 = vmatprep.mubr.f32.mxu0 0.0
      %3192 = vmatmul.mubr.f32.gmra.mrb[0].mxu0 %v3111
      %v3193 = vpop.f32.mrb[0].mxu0
      %v3194 = vadd.f32 0.0, %v3193
      %v3195 = vpop.f32.mrb[0].mxu0
      %3196 = vmatprep.mubr.f32.mxu0 0.0
      %3197 = vmatmul.mubr.f32.gmra.mrb[0].mxu0 %v3114
      %v3198 = vpop.f32.mrb[0].mxu0
      %v3199 = vadd.f32 0.0, %v3198
      %v3200 = vpop.f32.mrb[0].mxu0
      %3201 = vmatprep.mubr.f32.mxu0 0.0
      %3202 = vmatmul.mubr.f32.gmra.mrb[0].mxu0 %v3117
      %v3203 = vpop.f32.mrb[0].mxu0
      %v3204 = vadd.f32 0.0, %v3203
      %v3205 = vpop.f32.mrb[0].mxu0
      %3206 = vmatprep.mubr.f32.mxu0 0.0
      %3207 = vmatmul.mubr.f32.gmra.mrb[0].mxu0 %v3120
      %v3208 = vpop.f32.mrb[0].mxu0
      %v3209 = vadd.f32 0.0, %v3208
      %v3210 = vpop.f32.mrb[0].mxu0
      %3211 = vdwg.mxu0
      %v3212 = vadd.f32 %v3090, %v3189
      %v3213 = vadd.f32 %v3091, %v3194
      %v3214 = vadd.f32 %v3092, %v3199
      %v3215 = vadd.f32 %v3093, %v3204
      %v3216 = vadd.f32 %v3094, %v3209
      %v3217 = vld [vmem:[%s4] sm:$0x1]
      %v3219 = vlaneseq
      %v3220 = vshrl.u32 %v3219, 7
      %v3221 = vsub.s32 0, %v3220
      %v3222 = vrot.slane %v3217, %v3221
      %v3224 = vadd.f32 %v3212, %v3222
      %v3225 = vadd.f32 %v3213, %v3222
      %v3226 = vadd.f32 %v3214, %v3222
      %v3227 = vadd.f32 %v3215, %v3222
      %v3228 = vadd.f32 %v3216, %v3222
      %v3229 = vmax.f32 %v3224, 0.0
      %v3230 = vmax.f32 %v3225, 0.0
      %v3231 = vmax.f32 %v3226, 0.0
      %v3232 = vmax.f32 %v3227, 0.0
      %v3233 = vmax.f32 %v3228, 0.0
      %3234 = vst.msk [vmem:[#allocation3] sm:$0xf] %vm1295, %v3229
      %3235 = vst.msk [vmem:[#allocation3 + $0x3] sm:$0x3c] %vm1297, %v3230
      %3236 = vst.msk [vmem:[#allocation3 + $0x6] sm:$0xf0] %vm1299, %v3231
      %3237 = vst.msk [vmem:[#allocation3 + $0x9] sm:$0xc0] %vm1301, %v3232
      %3238 = vst.msk [vmem:[#allocation3 + $0x11] sm:$0x3] %vm396, %v3233
      %v3239 = vld [vmem:[#allocation3] sm:$0xff]
      %v3240 = vld [vmem:[#allocation3 + $0x8] sm:$0xff]
      %v3241 = vld [vmem:[#allocation3 + $0x10] sm:$0x7]
      %v3242 = vld [vmem:[%s5] sm:$0xff]
      %v3243 = vld [vmem:[%s5 + $0x8] sm:$0xff]
      %v3244 = vld [vmem:[%s5 + $0x10] sm:$0xff]
      %v3245 = vld [vmem:[%s5 + $0x18] sm:$0xff]
      %v3246 = vld [vmem:[%s5 + $0x20] sm:$0xff]
      %v3247 = vld [vmem:[%s5 + $0x28] sm:$0xff]
      %v3249 = vsel %vm389, %v3239, 0
      %v3252 = vsel %vm389, %v3240, 0
      %v3255 = vsel %vm389, %v3241, 0
      %3257 = vmatprep.subr.mxu0 0.0
      %3258 = vmatpush1.msra.mxu0 %v3242
      %3259 = vmatprep.subr.mxu0 0.0
      %3260 = vmatpush1.msra.mxu0 %v3243
      %3261 = vmatprep.subr.mxu0 0.0
      %3262 = vmatpush1.msra.mxu0 %v3244
      %3263 = vmatprep.subr.mxu0 0.0
      %3264 = vmatpush1.msra.mxu0 %v3245
      %3265 = vmatprep.subr.mxu0 0.0
      %3266 = vmatpush1.msra.mxu0 %v3246
      %3267 = vmatprep.subr.mxu0 0.0
      %3268 = vmatpush1.msra.mxu0 %v3247
      %3269 = vmatprep.subr.mxu0 0.0
      %3270 = vmatpush1.msra.mxu0 0.0
      %3271 = vmatprep.subr.mxu0 0.0
      %3272 = vmatpush1.msra.mxu0 0.0
      %3273 = vmatprep.subr.mxu0 0.0
      %3274 = vmatpush1.msra.mxu0 0.0
      %3275 = vmatprep.subr.mxu0 0.0
      %3276 = vmatpush1.msra.mxu0 0.0
      %3277 = vmatprep.subr.mxu0 0.0
      %3278 = vmatpush1.msra.mxu0 0.0
      %3279 = vmatprep.subr.mxu0 0.0
      %3280 = vmatpush1.msra.mxu0 0.0
      %3281 = vmatprep.subr.mxu0 0.0
      %3282 = vmatpush1.msra.mxu0 0.0
      %3283 = vmatprep.subr.mxu0 0.0
      %3284 = vmatpush1.msra.mxu0 0.0
      %3285 = vmatprep.subr.mxu0 0.0
      %3286 = vmatpush1.msra.mxu0 0.0
      %3287 = vmatprep.subr.mxu0 0.0
      %3288 = vmatpush1.msra.mxu0 0.0
      %3289 = vmatprep.subr.mxu0 0.0
      %3290 = vmatpush1.msra.mxu0 0.0
      %3291 = vmatprep.subr.mxu0 0.0
      %3292 = vmatpush1.msra.mxu0 0.0
      %3293 = vmatprep.subr.mxu0 0.0
      %3294 = vmatpush1.msra.mxu0 0.0
      %3295 = vmatprep.subr.mxu0 0.0
      %3296 = vmatpush1.msra.mxu0 0.0
      %3297 = vmatprep.subr.mxu0 0.0
      %3298 = vmatpush1.msra.mxu0 0.0
      %3299 = vmatprep.subr.mxu0 0.0
      %3300 = vmatpush1.msra.mxu0 0.0
      %3301 = vmatprep.subr.mxu0 0.0
      %3302 = vmatpush1.msra.mxu0 0.0
      %3303 = vmatprep.subr.mxu0 0.0
      %3304 = vmatpush1.msra.mxu0 0.0
      %3305 = vmatprep.subr.mxu0 0.0
      %3306 = vmatpush1.msra.mxu0 0.0
      %3307 = vmatprep.subr.mxu0 0.0
      %3308 = vmatpush1.msra.mxu0 0.0
      %3309 = vmatprep.subr.mxu0 0.0
      %3310 = vmatpush1.msra.mxu0 0.0
      %3311 = vmatprep.subr.mxu0 0.0
      %3312 = vmatpush1.msra.mxu0 0.0
      %3313 = vmatprep.subr.mxu0 0.0
      %3314 = vmatpush1.msra.mxu0 0.0
      %3315 = vmatprep.subr.mxu0 0.0
      %3316 = vmatpush1.msra.mxu0 0.0
      %3317 = vmatprep.subr.mxu0 0.0
      %3318 = vmatpush1.msra.mxu0 0.0
      %3319 = vmatprep.subr.mxu0 0.0
      %3320 = vmatpush1.msra.mxu0 0.0
      %3321 = vmatprep.mubr.f32.mxu0 0.0
      %3322 = vmatmul.mubr.f32.gmra.mrb[0].mxu0 %v3249
      %v3323 = vpop.f32.mrb[0].mxu0
      %v3324 = vadd.f32 0.0, %v3323
      %v3325 = vpop.f32.mrb[0].mxu0
      %3326 = vmatprep.mubr.f32.mxu0 0.0
      %3327 = vmatmul.mubr.f32.gmra.mrb[0].mxu0 %v3252
      %v3328 = vpop.f32.mrb[0].mxu0
      %v3329 = vadd.f32 0.0, %v3328
      %v3330 = vpop.f32.mrb[0].mxu0
      %3331 = vmatprep.mubr.f32.mxu0 0.0
      %3332 = vmatmul.mubr.f32.gmra.mrb[0].mxu0 %v3255
      %v3333 = vpop.f32.mrb[0].mxu0
      %v3334 = vadd.f32 0.0, %v3333
      %v3335 = vpop.f32.mrb[0].mxu0
      %3336 = vdwg.mxu0
      %v3337 = vld [vmem:[#allocation3 + $0x1] sm:$0xff]
      %v3338 = vld [vmem:[#allocation3 + $0x9] sm:$0xff]
      %v3339 = vld [vmem:[#allocation3 + $0x11] sm:$0x7]
      %s3340 = scalar_lea.vmem %s5, 48
      %v3341 = vld [vmem:[%s3340] sm:$0xff]
      %v3342 = vld [vmem:[%s3340 + $0x8] sm:$0xff]
      %v3343 = vld [vmem:[%s3340 + $0x10] sm:$0xff]
      %v3344 = vld [vmem:[%s3340 + $0x18] sm:$0xff]
      %v3345 = vld [vmem:[%s3340 + $0x20] sm:$0xff]
      %v3346 = vld [vmem:[%s3340 + $0x28] sm:$0xff]
      %v3348 = vsel %vm389, %v3337, 0
      %v3351 = vsel %vm389, %v3338, 0
      %v3354 = vsel %vm389, %v3339, 0
      %3356 = vmatprep.subr.mxu0 0.0
      %3357 = vmatpush1.msra.mxu0 %v3341
      %3358 = vmatprep.subr.mxu0 0.0
      %3359 = vmatpush1.msra.mxu0 %v3342
      %3360 = vmatprep.subr.mxu0 0.0
      %3361 = vmatpush1.msra.mxu0 %v3343
      %3362 = vmatprep.subr.mxu0 0.0
      %3363 = vmatpush1.msra.mxu0 %v3344
      %3364 = vmatprep.subr.mxu0 0.0
      %3365 = vmatpush1.msra.mxu0 %v3345
      %3366 = vmatprep.subr.mxu0 0.0
      %3367 = vmatpush1.msra.mxu0 %v3346
      %3368 = vmatprep.subr.mxu0 0.0
      %3369 = vmatpush1.msra.mxu0 0.0
      %3370 = vmatprep.subr.mxu0 0.0
      %3371 = vmatpush1.msra.mxu0 0.0
      %3372 = vmatprep.subr.mxu0 0.0
      %3373 = vmatpush1.msra.mxu0 0.0
      %3374 = vmatprep.subr.mxu0 0.0
      %3375 = vmatpush1.msra.mxu0 0.0
      %3376 = vmatprep.subr.mxu0 0.0
      %3377 = vmatpush1.msra.mxu0 0.0
      %3378 = vmatprep.subr.mxu0 0.0
      %3379 = vmatpush1.msra.mxu0 0.0
      %3380 = vmatprep.subr.mxu0 0.0
      %3381 = vmatpush1.msra.mxu0 0.0
      %3382 = vmatprep.subr.mxu0 0.0
      %3383 = vmatpush1.msra.mxu0 0.0
      %3384 = vmatprep.subr.mxu0 0.0
      %3385 = vmatpush1.msra.mxu0 0.0
      %3386 = vmatprep.subr.mxu0 0.0
      %3387 = vmatpush1.msra.mxu0 0.0
      %3388 = vmatprep.subr.mxu0 0.0
      %3389 = vmatpush1.msra.mxu0 0.0
      %3390 = vmatprep.subr.mxu0 0.0
      %3391 = vmatpush1.msra.mxu0 0.0
      %3392 = vmatprep.subr.mxu0 0.0
      %3393 = vmatpush1.msra.mxu0 0.0
      %3394 = vmatprep.subr.mxu0 0.0
      %3395 = vmatpush1.msra.mxu0 0.0
      %3396 = vmatprep.subr.mxu0 0.0
      %3397 = vmatpush1.msra.mxu0 0.0
      %3398 = vmatprep.subr.mxu0 0.0
      %3399 = vmatpush1.msra.mxu0 0.0
      %3400 = vmatprep.subr.mxu0 0.0
      %3401 = vmatpush1.msra.mxu0 0.0
      %3402 = vmatprep.subr.mxu0 0.0
      %3403 = vmatpush1.msra.mxu0 0.0
      %3404 = vmatprep.subr.mxu0 0.0
      %3405 = vmatpush1.msra.mxu0 0.0
      %3406 = vmatprep.subr.mxu0 0.0
      %3407 = vmatpush1.msra.mxu0 0.0
      %3408 = vmatprep.subr.mxu0 0.0
      %3409 = vmatpush1.msra.mxu0 0.0
      %3410 = vmatprep.subr.mxu0 0.0
      %3411 = vmatpush1.msra.mxu0 0.0
      %3412 = vmatprep.subr.mxu0 0.0
      %3413 = vmatpush1.msra.mxu0 0.0
      %3414 = vmatprep.subr.mxu0 0.0
      %3415 = vmatpush1.msra.mxu0 0.0
      %3416 = vmatprep.subr.mxu0 0.0
      %3417 = vmatpush1.msra.mxu0 0.0
      %3418 = vmatprep.subr.mxu0 0.0
      %3419 = vmatpush1.msra.mxu0 0.0
      %3420 = vmatprep.mubr.f32.mxu0 0.0
      %3421 = vmatmul.mubr.f32.gmra.mrb[0].mxu0 %v3348
      %v3422 = vpop.f32.mrb[0].mxu0
      %v3423 = vadd.f32 0.0, %v3422
      %v3424 = vpop.f32.mrb[0].mxu0
      %3425 = vmatprep.mubr.f32.mxu0 0.0
      %3426 = vmatmul.mubr.f32.gmra.mrb[0].mxu0 %v3351
      %v3427 = vpop.f32.mrb[0].mxu0
      %v3428 = vadd.f32 0.0, %v3427
      %v3429 = vpop.f32.mrb[0].mxu0
      %3430 = vmatprep.mubr.f32.mxu0 0.0
      %3431 = vmatmul.mubr.f32.gmra.mrb[0].mxu0 %v3354
      %v3432 = vpop.f32.mrb[0].mxu0
      %v3433 = vadd.f32 0.0, %v3432
      %v3434 = vpop.f32.mrb[0].mxu0
      %3435 = vdwg.mxu0
      %3439 = vrot.lane.b32.xlu0 %v3423, 32
      %v3440 = vpop.permute.xlu0 %3439
      %3441 = vrot.lane.b32.xlu0 %v3428, 32
      %v3442 = vpop.permute.xlu0 %3441
      %3443 = vrot.lane.b32.xlu0 %v3433, 32
      %v3444 = vpop.permute.xlu0 %3443
      %v3448 = vadd.f32 %v3324, %v3440
      %v3449 = vadd.f32 %v3329, %v3442
      %v3450 = vadd.f32 %v3334, %v3444
      %3451 = vrot.lane.b32.xlu0 %v3423, 64
      %v3452 = vpop.permute.xlu0 %3451
      %3453 = vrot.lane.b32.xlu0 %v3428, 64
      %v3454 = vpop.permute.xlu0 %3453
      %3455 = vrot.lane.b32.xlu0 %v3433, 64
      %v3456 = vpop.permute.xlu0 %3455
      %v3460 = vadd.f32 %v3324, %v3452
      %v3461 = vadd.f32 %v3329, %v3454
      %v3462 = vadd.f32 %v3334, %v3456
      %v3463 = vld [vmem:[#allocation3 + $0x5] sm:$0xff]
      %v3464 = vld [vmem:[#allocation3 + $0xd] sm:$0xff]
      %v3465 = vld [vmem:[#allocation3 + $0x15] sm:$0x7]
      %s3466 = scalar_lea.vmem %s5, 96
      %v3467 = vld [vmem:[%s3466] sm:$0xff]
      %v3468 = vld [vmem:[%s3466 + $0x8] sm:$0xff]
      %v3469 = vld [vmem:[%s3466 + $0x10] sm:$0xff]
      %v3470 = vld [vmem:[%s3466 + $0x18] sm:$0xff]
      %v3471 = vld [vmem:[%s3466 + $0x20] sm:$0xff]
      %v3472 = vld [vmem:[%s3466 + $0x28] sm:$0xff]
      %v3474 = vsel %vm389, %v3463, 0
      %v3477 = vsel %vm389, %v3464, 0
      %v3480 = vsel %vm389, %v3465, 0
      %3482 = vmatprep.subr.mxu0 0.0
      %3483 = vmatpush1.msra.mxu0 %v3467
      %3484 = vmatprep.subr.mxu0 0.0
      %3485 = vmatpush1.msra.mxu0 %v3468
      %3486 = vmatprep.subr.mxu0 0.0
      %3487 = vmatpush1.msra.mxu0 %v3469
      %3488 = vmatprep.subr.mxu0 0.0
      %3489 = vmatpush1.msra.mxu0 %v3470
      %3490 = vmatprep.subr.mxu0 0.0
      %3491 = vmatpush1.msra.mxu0 %v3471
      %3492 = vmatprep.subr.mxu0 0.0
      %3493 = vmatpush1.msra.mxu0 %v3472
      %3494 = vmatprep.subr.mxu0 0.0
      %3495 = vmatpush1.msra.mxu0 0.0
      %3496 = vmatprep.subr.mxu0 0.0
      %3497 = vmatpush1.msra.mxu0 0.0
      %3498 = vmatprep.subr.mxu0 0.0
      %3499 = vmatpush1.msra.mxu0 0.0
      %3500 = vmatprep.subr.mxu0 0.0
      %3501 = vmatpush1.msra.mxu0 0.0
      %3502 = vmatprep.subr.mxu0 0.0
      %3503 = vmatpush1.msra.mxu0 0.0
      %3504 = vmatprep.subr.mxu0 0.0
      %3505 = vmatpush1.msra.mxu0 0.0
      %3506 = vmatprep.subr.mxu0 0.0
      %3507 = vmatpush1.msra.mxu0 0.0
      %3508 = vmatprep.subr.mxu0 0.0
      %3509 = vmatpush1.msra.mxu0 0.0
      %3510 = vmatprep.subr.mxu0 0.0
      %3511 = vmatpush1.msra.mxu0 0.0
      %3512 = vmatprep.subr.mxu0 0.0
      %3513 = vmatpush1.msra.mxu0 0.0
      %3514 = vmatprep.subr.mxu0 0.0
      %3515 = vmatpush1.msra.mxu0 0.0
      %3516 = vmatprep.subr.mxu0 0.0
      %3517 = vmatpush1.msra.mxu0 0.0
      %3518 = vmatprep.subr.mxu0 0.0
      %3519 = vmatpush1.msra.mxu0 0.0
      %3520 = vmatprep.subr.mxu0 0.0
      %3521 = vmatpush1.msra.mxu0 0.0
      %3522 = vmatprep.subr.mxu0 0.0
      %3523 = vmatpush1.msra.mxu0 0.0
      %3524 = vmatprep.subr.mxu0 0.0
      %3525 = vmatpush1.msra.mxu0 0.0
      %3526 = vmatprep.subr.mxu0 0.0
      %3527 = vmatpush1.msra.mxu0 0.0
      %3528 = vmatprep.subr.mxu0 0.0
      %3529 = vmatpush1.msra.mxu0 0.0
      %3530 = vmatprep.subr.mxu0 0.0
      %3531 = vmatpush1.msra.mxu0 0.0
      %3532 = vmatprep.subr.mxu0 0.0
      %3533 = vmatpush1.msra.mxu0 0.0
      %3534 = vmatprep.subr.mxu0 0.0
      %3535 = vmatpush1.msra.mxu0 0.0
      %3536 = vmatprep.subr.mxu0 0.0
      %3537 = vmatpush1.msra.mxu0 0.0
      %3538 = vmatprep.subr.mxu0 0.0
      %3539 = vmatpush1.msra.mxu0 0.0
      %3540 = vmatprep.subr.mxu0 0.0
      %3541 = vmatpush1.msra.mxu0 0.0
      %3542 = vmatprep.subr.mxu0 0.0
      %3543 = vmatpush1.msra.mxu0 0.0
      %3544 = vmatprep.subr.mxu0 0.0
      %3545 = vmatpush1.msra.mxu0 0.0
      %3546 = vmatprep.mubr.f32.mxu0 0.0
      %3547 = vmatmul.mubr.f32.gmra.mrb[0].mxu0 %v3474
      %v3548 = vpop.f32.mrb[0].mxu0
      %v3549 = vadd.f32 0.0, %v3548
      %v3550 = vpop.f32.mrb[0].mxu0
      %3551 = vmatprep.mubr.f32.mxu0 0.0
      %3552 = vmatmul.mubr.f32.gmra.mrb[0].mxu0 %v3477
      %v3553 = vpop.f32.mrb[0].mxu0
      %v3554 = vadd.f32 0.0, %v3553
      %v3555 = vpop.f32.mrb[0].mxu0
      %3556 = vmatprep.mubr.f32.mxu0 0.0
      %3557 = vmatmul.mubr.f32.gmra.mrb[0].mxu0 %v3480
      %v3558 = vpop.f32.mrb[0].mxu0
      %v3559 = vadd.f32 0.0, %v3558
      %v3560 = vpop.f32.mrb[0].mxu0
      %3561 = vdwg.mxu0
      %3565 = vrot.lane.b32.xlu0 %v3549, 64
      %v3566 = vpop.permute.xlu0 %3565
      %3567 = vrot.lane.b32.xlu0 %v3554, 64
      %v3568 = vpop.permute.xlu0 %3567
      %3569 = vrot.lane.b32.xlu0 %v3559, 64
      %v3570 = vpop.permute.xlu0 %3569
      %v3574 = vadd.f32 %v3324, %v3566
      %v3575 = vadd.f32 %v3329, %v3568
      %v3576 = vadd.f32 %v3334, %v3570
      %v3577 = vadd.f32 %v3460, %v3566
      %v3578 = vadd.f32 %v3461, %v3568
      %v3579 = vadd.f32 %v3462, %v3570
      %v3580 = vld [vmem:[#allocation3 + $0x6] sm:$0xff]
      %v3581 = vld [vmem:[#allocation3 + $0xe] sm:$0xff]
      %v3582 = vld [vmem:[#allocation3 + $0x16] sm:$0x7]
      %s3583 = scalar_lea.vmem %s5, 144
      %v3584 = vld [vmem:[%s3583] sm:$0xff]
      %v3585 = vld [vmem:[%s3583 + $0x8] sm:$0xff]
      %v3586 = vld [vmem:[%s3583 + $0x10] sm:$0xff]
      %v3587 = vld [vmem:[%s3583 + $0x18] sm:$0xff]
      %v3588 = vld [vmem:[%s3583 + $0x20] sm:$0xff]
      %v3589 = vld [vmem:[%s3583 + $0x28] sm:$0xff]
      %v3591 = vsel %vm389, %v3580, 0
      %v3594 = vsel %vm389, %v3581, 0
      %v3597 = vsel %vm389, %v3582, 0
      %3599 = vmatprep.subr.mxu0 0.0
      %3600 = vmatpush1.msra.mxu0 %v3584
      %3601 = vmatprep.subr.mxu0 0.0
      %3602 = vmatpush1.msra.mxu0 %v3585
      %3603 = vmatprep.subr.mxu0 0.0
      %3604 = vmatpush1.msra.mxu0 %v3586
      %3605 = vmatprep.subr.mxu0 0.0
      %3606 = vmatpush1.msra.mxu0 %v3587
      %3607 = vmatprep.subr.mxu0 0.0
      %3608 = vmatpush1.msra.mxu0 %v3588
      %3609 = vmatprep.subr.mxu0 0.0
      %3610 = vmatpush1.msra.mxu0 %v3589
      %3611 = vmatprep.subr.mxu0 0.0
      %3612 = vmatpush1.msra.mxu0 0.0
      %3613 = vmatprep.subr.mxu0 0.0
      %3614 = vmatpush1.msra.mxu0 0.0
      %3615 = vmatprep.subr.mxu0 0.0
      %3616 = vmatpush1.msra.mxu0 0.0
      %3617 = vmatprep.subr.mxu0 0.0
      %3618 = vmatpush1.msra.mxu0 0.0
      %3619 = vmatprep.subr.mxu0 0.0
      %3620 = vmatpush1.msra.mxu0 0.0
      %3621 = vmatprep.subr.mxu0 0.0
      %3622 = vmatpush1.msra.mxu0 0.0
      %3623 = vmatprep.subr.mxu0 0.0
      %3624 = vmatpush1.msra.mxu0 0.0
      %3625 = vmatprep.subr.mxu0 0.0
      %3626 = vmatpush1.msra.mxu0 0.0
      %3627 = vmatprep.subr.mxu0 0.0
      %3628 = vmatpush1.msra.mxu0 0.0
      %3629 = vmatprep.subr.mxu0 0.0
      %3630 = vmatpush1.msra.mxu0 0.0
      %3631 = vmatprep.subr.mxu0 0.0
      %3632 = vmatpush1.msra.mxu0 0.0
      %3633 = vmatprep.subr.mxu0 0.0
      %3634 = vmatpush1.msra.mxu0 0.0
      %3635 = vmatprep.subr.mxu0 0.0
      %3636 = vmatpush1.msra.mxu0 0.0
      %3637 = vmatprep.subr.mxu0 0.0
      %3638 = vmatpush1.msra.mxu0 0.0
      %3639 = vmatprep.subr.mxu0 0.0
      %3640 = vmatpush1.msra.mxu0 0.0
      %3641 = vmatprep.subr.mxu0 0.0
      %3642 = vmatpush1.msra.mxu0 0.0
      %3643 = vmatprep.subr.mxu0 0.0
      %3644 = vmatpush1.msra.mxu0 0.0
      %3645 = vmatprep.subr.mxu0 0.0
      %3646 = vmatpush1.msra.mxu0 0.0
      %3647 = vmatprep.subr.mxu0 0.0
      %3648 = vmatpush1.msra.mxu0 0.0
      %3649 = vmatprep.subr.mxu0 0.0
      %3650 = vmatpush1.msra.mxu0 0.0
      %3651 = vmatprep.subr.mxu0 0.0
      %3652 = vmatpush1.msra.mxu0 0.0
      %3653 = vmatprep.subr.mxu0 0.0
      %3654 = vmatpush1.msra.mxu0 0.0
      %3655 = vmatprep.subr.mxu0 0.0
      %3656 = vmatpush1.msra.mxu0 0.0
      %3657 = vmatprep.subr.mxu0 0.0
      %3658 = vmatpush1.msra.mxu0 0.0
      %3659 = vmatprep.subr.mxu0 0.0
      %3660 = vmatpush1.msra.mxu0 0.0
      %3661 = vmatprep.subr.mxu0 0.0
      %3662 = vmatpush1.msra.mxu0 0.0
      %3663 = vmatprep.mubr.f32.mxu0 0.0
      %3664 = vmatmul.mubr.f32.gmra.mrb[0].mxu0 %v3591
      %v3665 = vpop.f32.mrb[0].mxu0
      %v3666 = vadd.f32 0.0, %v3665
      %v3667 = vpop.f32.mrb[0].mxu0
      %3668 = vmatprep.mubr.f32.mxu0 0.0
      %3669 = vmatmul.mubr.f32.gmra.mrb[0].mxu0 %v3594
      %v3670 = vpop.f32.mrb[0].mxu0
      %v3671 = vadd.f32 0.0, %v3670
      %v3672 = vpop.f32.mrb[0].mxu0
      %3673 = vmatprep.mubr.f32.mxu0 0.0
      %3674 = vmatmul.mubr.f32.gmra.mrb[0].mxu0 %v3597
      %v3675 = vpop.f32.mrb[0].mxu0
      %v3676 = vadd.f32 0.0, %v3675
      %v3677 = vpop.f32.mrb[0].mxu0
      %3678 = vdwg.mxu0
      %3682 = vrot.lane.b32.xlu0 %v3666, 96
      %v3683 = vpop.permute.xlu0 %3682
      %3684 = vrot.lane.b32.xlu0 %v3671, 96
      %v3685 = vpop.permute.xlu0 %3684
      %3686 = vrot.lane.b32.xlu0 %v3676, 96
      %v3687 = vpop.permute.xlu0 %3686
      %v3691 = vadd.f32 %v3577, %v3683
      %v3692 = vadd.f32 %v3578, %v3685
      %v3693 = vadd.f32 %v3579, %v3687
      %v3694 = vld [vmem:[%s6] sm:$0x1]
      %v3696 = vlaneseq
      %v3697 = vshrl.u32 %v3696, 7
      %v3698 = vsub.s32 0, %v3697
      %v3699 = vrot.slane %v3694, %v3698
      %v3701 = vadd.f32 %v3324, %v3699
      %v3702 = vadd.f32 %v3329, %v3699
      %v3703 = vadd.f32 %v3334, %v3699
      %v3704 = vmax.f32 %v3701, 0.0
      %v3705 = vmax.f32 %v3702, 0.0
      %v3706 = vmax.f32 %v3703, 0.0
      %3707 = vrot.lane.b32.xlu0 %v3699, 32
      %v3708 = vpop.permute.xlu0 %3707
      %v3710 = vadd.f32 %v3448, %v3708
      %v3711 = vadd.f32 %v3449, %v3708
      %v3712 = vadd.f32 %v3450, %v3708
      %v3713 = vmax.f32 %v3710, 0.0
      %v3714 = vmax.f32 %v3711, 0.0
      %v3715 = vmax.f32 %v3712, 0.0
      %3716 = vrot.lane.b32.xlu0 %v3699, 64
      %v3717 = vpop.permute.xlu0 %3716
      %v3719 = vadd.f32 %v3574, %v3717
      %v3720 = vadd.f32 %v3575, %v3717
      %v3721 = vadd.f32 %v3576, %v3717
      %v3722 = vmax.f32 %v3719, 0.0
      %v3723 = vmax.f32 %v3720, 0.0
      %v3724 = vmax.f32 %v3721, 0.0
      %3725 = vrot.lane.b32.xlu0 %v3699, 96
      %v3726 = vpop.permute.xlu0 %3725
      %v3728 = vadd.f32 %v3691, %v3726
      %v3729 = vadd.f32 %v3692, %v3726
      %v3730 = vadd.f32 %v3693, %v3726
      %v3731 = vmax.f32 %v3728, 0.0
      %v3732 = vmax.f32 %v3729, 0.0
      %v3733 = vmax.f32 %v3730, 0.0
      %vm3734 = vcmask 257024
      %3735 = vst.msk [vmem:[#allocation4] sm:$0xf] %vm3734, %v3704
      %vm3736 = vcmask 261125
      %3737 = vst.msk [vmem:[#allocation4 + $0x5] sm:$0xe0] %vm3736, %v3704
      %vm3738 = vcmask 253952
      %3739 = vst.msk [vmem:[#allocation4 + $0xd] sm:$0x1] %vm3738, %v3705
      %vm3740 = vcmask 259074
      %3741 = vst.msk [vmem:[#allocation4 + $0x12] sm:$0x3c] %vm3740, %v3705
      %vm3742 = vcmask 261127
      %3743 = vst.msk [vmem:[#allocation4 + $0x17] sm:$0x80] %vm3742, %v3705
      %vm3744 = vcmask 256000
      %3745 = vst.msk [vmem:[#allocation4 + $0x1f] sm:$0x7] %vm3744, %v3706
      %3747 = vrot.lane.b32.xlu0 %v3713, 96
      %v3748 = vpop.permute.xlu0 %3747
      %s3750 = scalar_lea.vmem [#allocation4], 48
      %3751 = vst.msk [vmem:[%s3750] sm:$0xf] %vm3734, %v3748
      %3753 = vrot.lane.b32.xlu0 %v3714, 96
      %v3754 = vpop.permute.xlu0 %3753
      %3756 = vst.msk [vmem:[%s3750 + $0x5] sm:$0xe0] %vm3736, %v3748
      %3757 = vst.msk [vmem:[%s3750 + $0xd] sm:$0x1] %vm3738, %v3754
      %3758 = vst.msk [vmem:[%s3750 + $0x12] sm:$0x3c] %vm3740, %v3754
      %3760 = vrot.lane.b32.xlu0 %v3715, 96
      %v3761 = vpop.permute.xlu0 %3760
      %3763 = vst.msk [vmem:[%s3750 + $0x17] sm:$0x80] %vm3742, %v3754
      %3764 = vst.msk [vmem:[%s3750 + $0x1f] sm:$0x7] %vm3744, %v3761
      %3766 = vrot.lane.b32.xlu0 %v3722, 64
      %v3767 = vpop.permute.xlu0 %3766
      %3769 = vst.msk [vmem:[#allocation4 + $0x5] sm:$0xf] %vm3734, %v3767
      %3771 = vrot.lane.b32.xlu0 %v3723, 64
      %v3772 = vpop.permute.xlu0 %3771
      %3774 = vst.msk [vmem:[#allocation4 + $0xa] sm:$0xe0] %vm3736, %v3767
      %3775 = vst.msk [vmem:[#allocation4 + $0x12] sm:$0x1] %vm3738, %v3772
      %3776 = vst.msk [vmem:[#allocation4 + $0x17] sm:$0x3c] %vm3740, %v3772
      %3778 = vrot.lane.b32.xlu0 %v3724, 64
      %v3779 = vpop.permute.xlu0 %3778
      %3781 = vst.msk [vmem:[#allocation4 + $0x1c] sm:$0x80] %vm3742, %v3772
      %3782 = vst.msk [vmem:[#allocation4 + $0x24] sm:$0x7] %vm3744, %v3779
      %3784 = vrot.lane.b32.xlu0 %v3731, 32
      %v3785 = vpop.permute.xlu0 %3784
      %3787 = vst.msk [vmem:[%s3750 + $0x5] sm:$0xf] %vm3734, %v3785
      %3789 = vrot.lane.b32.xlu0 %v3732, 32
      %v3790 = vpop.permute.xlu0 %3789
      %3792 = vst.msk [vmem:[%s3750 + $0xa] sm:$0xe0] %vm3736, %v3785
      %3793 = vst.msk [vmem:[%s3750 + $0x12] sm:$0x1] %vm3738, %v3790
      %3794 = vst.msk [vmem:[%s3750 + $0x17] sm:$0x3c] %vm3740, %v3790
      %3796 = vrot.lane.b32.xlu0 %v3733, 32
      %v3797 = vpop.permute.xlu0 %3796
      %3799 = vst.msk [vmem:[%s3750 + $0x1c] sm:$0x80] %vm3742, %v3790
      %3800 = vst.msk [vmem:[%s3750 + $0x24] sm:$0x7] %vm3744, %v3797
      %v3801 = vld [vmem:[#allocation4] sm:$0xff]
      %v3802 = vld [vmem:[#allocation4 + $0x8] sm:$0xff]
      %v3803 = vld [vmem:[#allocation4 + $0x10] sm:$0xff]
      %v3804 = vld [vmem:[#allocation4 + $0x18] sm:$0xff]
      %v3805 = vld [vmem:[#allocation4 + $0x20] sm:$0x7f]
      %v3806 = vld [vmem:[%s7] sm:$0xff]
      %v3807 = vld [vmem:[%s7 + $0x8] sm:$0xff]
      %v3808 = vld [vmem:[%s7 + $0x10] sm:$0xff]
      %v3809 = vld [vmem:[%s7 + $0x18] sm:$0xff]
      %v3811 = vsel %vm410, %v3801, 0
      %v3814 = vsel %vm410, %v3802, 0
      %v3817 = vsel %vm410, %v3803, 0
      %v3820 = vsel %vm410, %v3804, 0
      %v3823 = vsel %vm410, %v3805, 0
      %3825 = vmatprep.subr.mxu0 0.0
      %3826 = vmatpush1.msra.mxu0 %v3806
      %3827 = vmatprep.subr.mxu0 0.0
      %3828 = vmatpush1.msra.mxu0 %v3807
      %3829 = vmatprep.subr.mxu0 0.0
      %3830 = vmatpush1.msra.mxu0 %v3808
      %3831 = vmatprep.subr.mxu0 0.0
      %3832 = vmatpush1.msra.mxu0 %v3809
      %3833 = vmatprep.subr.mxu0 0.0
      %3834 = vmatpush1.msra.mxu0 0.0
      %3835 = vmatprep.subr.mxu0 0.0
      %3836 = vmatpush1.msra.mxu0 0.0
      %3837 = vmatprep.subr.mxu0 0.0
      %3838 = vmatpush1.msra.mxu0 0.0
      %3839 = vmatprep.subr.mxu0 0.0
      %3840 = vmatpush1.msra.mxu0 0.0
      %3841 = vmatprep.subr.mxu0 0.0
      %3842 = vmatpush1.msra.mxu0 0.0
      %3843 = vmatprep.subr.mxu0 0.0
      %3844 = vmatpush1.msra.mxu0 0.0
      %3845 = vmatprep.subr.mxu0 0.0
      %3846 = vmatpush1.msra.mxu0 0.0
      %3847 = vmatprep.subr.mxu0 0.0
      %3848 = vmatpush1.msra.mxu0 0.0
      %3849 = vmatprep.subr.mxu0 0.0
      %3850 = vmatpush1.msra.mxu0 0.0
      %3851 = vmatprep.subr.mxu0 0.0
      %3852 = vmatpush1.msra.mxu0 0.0
      %3853 = vmatprep.subr.mxu0 0.0
      %3854 = vmatpush1.msra.mxu0 0.0
      %3855 = vmatprep.subr.mxu0 0.0
      %3856 = vmatpush1.msra.mxu0 0.0
      %3857 = vmatprep.subr.mxu0 0.0
      %3858 = vmatpush1.msra.mxu0 0.0
      %3859 = vmatprep.subr.mxu0 0.0
      %3860 = vmatpush1.msra.mxu0 0.0
      %3861 = vmatprep.subr.mxu0 0.0
      %3862 = vmatpush1.msra.mxu0 0.0
      %3863 = vmatprep.subr.mxu0 0.0
      %3864 = vmatpush1.msra.mxu0 0.0
      %3865 = vmatprep.subr.mxu0 0.0
      %3866 = vmatpush1.msra.mxu0 0.0
      %3867 = vmatprep.subr.mxu0 0.0
      %3868 = vmatpush1.msra.mxu0 0.0
      %3869 = vmatprep.subr.mxu0 0.0
      %3870 = vmatpush1.msra.mxu0 0.0
      %3871 = vmatprep.subr.mxu0 0.0
      %3872 = vmatpush1.msra.mxu0 0.0
      %3873 = vmatprep.subr.mxu0 0.0
      %3874 = vmatpush1.msra.mxu0 0.0
      %3875 = vmatprep.subr.mxu0 0.0
      %3876 = vmatpush1.msra.mxu0 0.0
      %3877 = vmatprep.subr.mxu0 0.0
      %3878 = vmatpush1.msra.mxu0 0.0
      %3879 = vmatprep.subr.mxu0 0.0
      %3880 = vmatpush1.msra.mxu0 0.0
      %3881 = vmatprep.subr.mxu0 0.0
      %3882 = vmatpush1.msra.mxu0 0.0
      %3883 = vmatprep.subr.mxu0 0.0
      %3884 = vmatpush1.msra.mxu0 0.0
      %3885 = vmatprep.subr.mxu0 0.0
      %3886 = vmatpush1.msra.mxu0 0.0
      %3887 = vmatprep.subr.mxu0 0.0
      %3888 = vmatpush1.msra.mxu0 0.0
      %3889 = vmatprep.mubr.f32.mxu0 0.0
      %3890 = vmatmul.mubr.f32.gmra.mrb[0].mxu0 %v3811
      %v3891 = vpop.f32.mrb[0].mxu0
      %v3892 = vadd.f32 0.0, %v3891
      %v3893 = vpop.f32.mrb[0].mxu0
      %3894 = vmatprep.mubr.f32.mxu0 0.0
      %3895 = vmatmul.mubr.f32.gmra.mrb[0].mxu0 %v3814
      %v3896 = vpop.f32.mrb[0].mxu0
      %v3897 = vadd.f32 0.0, %v3896
      %v3898 = vpop.f32.mrb[0].mxu0
      %3899 = vmatprep.mubr.f32.mxu0 0.0
      %3900 = vmatmul.mubr.f32.gmra.mrb[0].mxu0 %v3817
      %v3901 = vpop.f32.mrb[0].mxu0
      %v3902 = vadd.f32 0.0, %v3901
      %v3903 = vpop.f32.mrb[0].mxu0
      %3904 = vmatprep.mubr.f32.mxu0 0.0
      %3905 = vmatmul.mubr.f32.gmra.mrb[0].mxu0 %v3820
      %v3906 = vpop.f32.mrb[0].mxu0
      %v3907 = vadd.f32 0.0, %v3906
      %v3908 = vpop.f32.mrb[0].mxu0
      %3909 = vmatprep.mubr.f32.mxu0 0.0
      %3910 = vmatmul.mubr.f32.gmra.mrb[0].mxu0 %v3823
      %v3911 = vpop.f32.mrb[0].mxu0
      %v3912 = vadd.f32 0.0, %v3911
      %v3913 = vpop.f32.mrb[0].mxu0
      %3914 = vdwg.mxu0
      %v3915 = vld [vmem:[%s3750] sm:$0xff]
      %v3916 = vld [vmem:[%s3750 + $0x8] sm:$0xff]
      %v3917 = vld [vmem:[%s3750 + $0x10] sm:$0xff]
      %v3918 = vld [vmem:[%s3750 + $0x18] sm:$0xff]
      %v3919 = vld [vmem:[%s3750 + $0x20] sm:$0x7f]
      %s3920 = scalar_lea.vmem %s7, 32
      %v3921 = vld [vmem:[%s3920] sm:$0xff]
      %v3922 = vld [vmem:[%s3920 + $0x8] sm:$0xff]
      %v3923 = vld [vmem:[%s3920 + $0x10] sm:$0xff]
      %v3924 = vld [vmem:[%s3920 + $0x18] sm:$0xff]
      %v3926 = vsel %vm410, %v3915, 0
      %v3929 = vsel %vm410, %v3916, 0
      %v3932 = vsel %vm410, %v3917, 0
      %v3935 = vsel %vm410, %v3918, 0
      %v3938 = vsel %vm410, %v3919, 0
      %3940 = vmatprep.subr.mxu0 0.0
      %3941 = vmatpush1.msra.mxu0 %v3921
      %3942 = vmatprep.subr.mxu0 0.0
      %3943 = vmatpush1.msra.mxu0 %v3922
      %3944 = vmatprep.subr.mxu0 0.0
      %3945 = vmatpush1.msra.mxu0 %v3923
      %3946 = vmatprep.subr.mxu0 0.0
      %3947 = vmatpush1.msra.mxu0 %v3924
      %3948 = vmatprep.subr.mxu0 0.0
      %3949 = vmatpush1.msra.mxu0 0.0
      %3950 = vmatprep.subr.mxu0 0.0
      %3951 = vmatpush1.msra.mxu0 0.0
      %3952 = vmatprep.subr.mxu0 0.0
      %3953 = vmatpush1.msra.mxu0 0.0
      %3954 = vmatprep.subr.mxu0 0.0
      %3955 = vmatpush1.msra.mxu0 0.0
      %3956 = vmatprep.subr.mxu0 0.0
      %3957 = vmatpush1.msra.mxu0 0.0
      %3958 = vmatprep.subr.mxu0 0.0
      %3959 = vmatpush1.msra.mxu0 0.0
      %3960 = vmatprep.subr.mxu0 0.0
      %3961 = vmatpush1.msra.mxu0 0.0
      %3962 = vmatprep.subr.mxu0 0.0
      %3963 = vmatpush1.msra.mxu0 0.0
      %3964 = vmatprep.subr.mxu0 0.0
      %3965 = vmatpush1.msra.mxu0 0.0
      %3966 = vmatprep.subr.mxu0 0.0
      %3967 = vmatpush1.msra.mxu0 0.0
      %3968 = vmatprep.subr.mxu0 0.0
      %3969 = vmatpush1.msra.mxu0 0.0
      %3970 = vmatprep.subr.mxu0 0.0
      %3971 = vmatpush1.msra.mxu0 0.0
      %3972 = vmatprep.subr.mxu0 0.0
      %3973 = vmatpush1.msra.mxu0 0.0
      %3974 = vmatprep.subr.mxu0 0.0
      %3975 = vmatpush1.msra.mxu0 0.0
      %3976 = vmatprep.subr.mxu0 0.0
      %3977 = vmatpush1.msra.mxu0 0.0
      %3978 = vmatprep.subr.mxu0 0.0
      %3979 = vmatpush1.msra.mxu0 0.0
      %3980 = vmatprep.subr.mxu0 0.0
      %3981 = vmatpush1.msra.mxu0 0.0
      %3982 = vmatprep.subr.mxu0 0.0
      %3983 = vmatpush1.msra.mxu0 0.0
      %3984 = vmatprep.subr.mxu0 0.0
      %3985 = vmatpush1.msra.mxu0 0.0
      %3986 = vmatprep.subr.mxu0 0.0
      %3987 = vmatpush1.msra.mxu0 0.0
      %3988 = vmatprep.subr.mxu0 0.0
      %3989 = vmatpush1.msra.mxu0 0.0
      %3990 = vmatprep.subr.mxu0 0.0
      %3991 = vmatpush1.msra.mxu0 0.0
      %3992 = vmatprep.subr.mxu0 0.0
      %3993 = vmatpush1.msra.mxu0 0.0
      %3994 = vmatprep.subr.mxu0 0.0
      %3995 = vmatpush1.msra.mxu0 0.0
      %3996 = vmatprep.subr.mxu0 0.0
      %3997 = vmatpush1.msra.mxu0 0.0
      %3998 = vmatprep.subr.mxu0 0.0
      %3999 = vmatpush1.msra.mxu0 0.0
      %4000 = vmatprep.subr.mxu0 0.0
      %4001 = vmatpush1.msra.mxu0 0.0
      %4002 = vmatprep.subr.mxu0 0.0
      %4003 = vmatpush1.msra.mxu0 0.0
      %4004 = vmatprep.mubr.f32.mxu0 0.0
      %4005 = vmatmul.mubr.f32.gmra.mrb[0].mxu0 %v3926
      %v4006 = vpop.f32.mrb[0].mxu0
      %v4007 = vadd.f32 0.0, %v4006
      %v4008 = vpop.f32.mrb[0].mxu0
      %4009 = vmatprep.mubr.f32.mxu0 0.0
      %4010 = vmatmul.mubr.f32.gmra.mrb[0].mxu0 %v3929
      %v4011 = vpop.f32.mrb[0].mxu0
      %v4012 = vadd.f32 0.0, %v4011
      %v4013 = vpop.f32.mrb[0].mxu0
      %4014 = vmatprep.mubr.f32.mxu0 0.0
      %4015 = vmatmul.mubr.f32.gmra.mrb[0].mxu0 %v3932
      %v4016 = vpop.f32.mrb[0].mxu0
      %v4017 = vadd.f32 0.0, %v4016
      %v4018 = vpop.f32.mrb[0].mxu0
      %4019 = vmatprep.mubr.f32.mxu0 0.0
      %4020 = vmatmul.mubr.f32.gmra.mrb[0].mxu0 %v3935
      %v4021 = vpop.f32.mrb[0].mxu0
      %v4022 = vadd.f32 0.0, %v4021
      %v4023 = vpop.f32.mrb[0].mxu0
      %4024 = vmatprep.mubr.f32.mxu0 0.0
      %4025 = vmatmul.mubr.f32.gmra.mrb[0].mxu0 %v3938
      %v4026 = vpop.f32.mrb[0].mxu0
      %v4027 = vadd.f32 0.0, %v4026
      %v4028 = vpop.f32.mrb[0].mxu0
      %4029 = vdwg.mxu0
      %4035 = vrot.lane.b32.xlu0 %v4007, 16
      %v4036 = vpop.permute.xlu0 %4035
      %4037 = vrot.lane.b32.xlu0 %v4012, 16
      %v4038 = vpop.permute.xlu0 %4037
      %4039 = vrot.lane.b32.xlu0 %v4017, 16
      %v4040 = vpop.permute.xlu0 %4039
      %4041 = vrot.lane.b32.xlu0 %v4022, 16
      %v4042 = vpop.permute.xlu0 %4041
      %4043 = vrot.lane.b32.xlu0 %v4027, 16
      %v4044 = vpop.permute.xlu0 %4043
      %v4050 = vadd.f32 %v3892, %v4036
      %v4051 = vadd.f32 %v3897, %v4038
      %v4052 = vadd.f32 %v3902, %v4040
      %v4053 = vadd.f32 %v3907, %v4042
      %v4054 = vadd.f32 %v3912, %v4044
      %4055 = vrot.lane.b32.xlu0 %v4007, 32
      %v4056 = vpop.permute.xlu0 %4055
      %4057 = vrot.lane.b32.xlu0 %v4012, 32
      %v4058 = vpop.permute.xlu0 %4057
      %4059 = vrot.lane.b32.xlu0 %v4017, 32
      %v4060 = vpop.permute.xlu0 %4059
      %4061 = vrot.lane.b32.xlu0 %v4022, 32
      %v4062 = vpop.permute.xlu0 %4061
      %4063 = vrot.lane.b32.xlu0 %v4027, 32
      %v4064 = vpop.permute.xlu0 %4063
      %v4070 = vadd.f32 %v3892, %v4056
      %v4071 = vadd.f32 %v3897, %v4058
      %v4072 = vadd.f32 %v3902, %v4060
      %v4073 = vadd.f32 %v3907, %v4062
      %v4074 = vadd.f32 %v3912, %v4064
      %v4075 = vld [vmem:[#allocation4 + $0x5] sm:$0xff]
      %v4076 = vld [vmem:[#allocation4 + $0xd] sm:$0xff]
      %v4077 = vld [vmem:[#allocation4 + $0x15] sm:$0xff]
      %v4078 = vld [vmem:[#allocation4 + $0x1d] sm:$0xff]
      %v4079 = vld [vmem:[#allocation4 + $0x25] sm:$0x7f]
      %s4080 = scalar_lea.vmem %s7, 64
      %v4081 = vld [vmem:[%s4080] sm:$0xff]
      %v4082 = vld [vmem:[%s4080 + $0x8] sm:$0xff]
      %v4083 = vld [vmem:[%s4080 + $0x10] sm:$0xff]
      %v4084 = vld [vmem:[%s4080 + $0x18] sm:$0xff]
      %v4086 = vsel %vm410, %v4075, 0
      %v4089 = vsel %vm410, %v4076, 0
      %v4092 = vsel %vm410, %v4077, 0
      %v4095 = vsel %vm410, %v4078, 0
      %v4098 = vsel %vm410, %v4079, 0
      %4100 = vmatprep.subr.mxu0 0.0
      %4101 = vmatpush1.msra.mxu0 %v4081
      %4102 = vmatprep.subr.mxu0 0.0
      %4103 = vmatpush1.msra.mxu0 %v4082
      %4104 = vmatprep.subr.mxu0 0.0
      %4105 = vmatpush1.msra.mxu0 %v4083
      %4106 = vmatprep.subr.mxu0 0.0
      %4107 = vmatpush1.msra.mxu0 %v4084
      %4108 = vmatprep.subr.mxu0 0.0
      %4109 = vmatpush1.msra.mxu0 0.0
      %4110 = vmatprep.subr.mxu0 0.0
      %4111 = vmatpush1.msra.mxu0 0.0
      %4112 = vmatprep.subr.mxu0 0.0
      %4113 = vmatpush1.msra.mxu0 0.0
      %4114 = vmatprep.subr.mxu0 0.0
      %4115 = vmatpush1.msra.mxu0 0.0
      %4116 = vmatprep.subr.mxu0 0.0
      %4117 = vmatpush1.msra.mxu0 0.0
      %4118 = vmatprep.subr.mxu0 0.0
      %4119 = vmatpush1.msra.mxu0 0.0
      %4120 = vmatprep.subr.mxu0 0.0
      %4121 = vmatpush1.msra.mxu0 0.0
      %4122 = vmatprep.subr.mxu0 0.0
      %4123 = vmatpush1.msra.mxu0 0.0
      %4124 = vmatprep.subr.mxu0 0.0
      %4125 = vmatpush1.msra.mxu0 0.0
      %4126 = vmatprep.subr.mxu0 0.0
      %4127 = vmatpush1.msra.mxu0 0.0
      %4128 = vmatprep.subr.mxu0 0.0
      %4129 = vmatpush1.msra.mxu0 0.0
      %4130 = vmatprep.subr.mxu0 0.0
      %4131 = vmatpush1.msra.mxu0 0.0
      %4132 = vmatprep.subr.mxu0 0.0
      %4133 = vmatpush1.msra.mxu0 0.0
      %4134 = vmatprep.subr.mxu0 0.0
      %4135 = vmatpush1.msra.mxu0 0.0
      %4136 = vmatprep.subr.mxu0 0.0
      %4137 = vmatpush1.msra.mxu0 0.0
      %4138 = vmatprep.subr.mxu0 0.0
      %4139 = vmatpush1.msra.mxu0 0.0
      %4140 = vmatprep.subr.mxu0 0.0
      %4141 = vmatpush1.msra.mxu0 0.0
      %4142 = vmatprep.subr.mxu0 0.0
      %4143 = vmatpush1.msra.mxu0 0.0
      %4144 = vmatprep.subr.mxu0 0.0
      %4145 = vmatpush1.msra.mxu0 0.0
      %4146 = vmatprep.subr.mxu0 0.0
      %4147 = vmatpush1.msra.mxu0 0.0
      %4148 = vmatprep.subr.mxu0 0.0
      %4149 = vmatpush1.msra.mxu0 0.0
      %4150 = vmatprep.subr.mxu0 0.0
      %4151 = vmatpush1.msra.mxu0 0.0
      %4152 = vmatprep.subr.mxu0 0.0
      %4153 = vmatpush1.msra.mxu0 0.0
      %4154 = vmatprep.subr.mxu0 0.0
      %4155 = vmatpush1.msra.mxu0 0.0
      %4156 = vmatprep.subr.mxu0 0.0
      %4157 = vmatpush1.msra.mxu0 0.0
      %4158 = vmatprep.subr.mxu0 0.0
      %4159 = vmatpush1.msra.mxu0 0.0
      %4160 = vmatprep.subr.mxu0 0.0
      %4161 = vmatpush1.msra.mxu0 0.0
      %4162 = vmatprep.subr.mxu0 0.0
      %4163 = vmatpush1.msra.mxu0 0.0
      %4164 = vmatprep.mubr.f32.mxu0 0.0
      %4165 = vmatmul.mubr.f32.gmra.mrb[0].mxu0 %v4086
      %v4166 = vpop.f32.mrb[0].mxu0
      %v4167 = vadd.f32 0.0, %v4166
      %v4168 = vpop.f32.mrb[0].mxu0
      %4169 = vmatprep.mubr.f32.mxu0 0.0
      %4170 = vmatmul.mubr.f32.gmra.mrb[0].mxu0 %v4089
      %v4171 = vpop.f32.mrb[0].mxu0
      %v4172 = vadd.f32 0.0, %v4171
      %v4173 = vpop.f32.mrb[0].mxu0
      %4174 = vmatprep.mubr.f32.mxu0 0.0
      %4175 = vmatmul.mubr.f32.gmra.mrb[0].mxu0 %v4092
      %v4176 = vpop.f32.mrb[0].mxu0
      %v4177 = vadd.f32 0.0, %v4176
      %v4178 = vpop.f32.mrb[0].mxu0
      %4179 = vmatprep.mubr.f32.mxu0 0.0
      %4180 = vmatmul.mubr.f32.gmra.mrb[0].mxu0 %v4095
      %v4181 = vpop.f32.mrb[0].mxu0
      %v4182 = vadd.f32 0.0, %v4181
      %v4183 = vpop.f32.mrb[0].mxu0
      %4184 = vmatprep.mubr.f32.mxu0 0.0
      %4185 = vmatmul.mubr.f32.gmra.mrb[0].mxu0 %v4098
      %v4186 = vpop.f32.mrb[0].mxu0
      %v4187 = vadd.f32 0.0, %v4186
      %v4188 = vpop.f32.mrb[0].mxu0
      %4189 = vdwg.mxu0
      %4195 = vrot.lane.b32.xlu0 %v4167, 32
      %v4196 = vpop.permute.xlu0 %4195
      %4197 = vrot.lane.b32.xlu0 %v4172, 32
      %v4198 = vpop.permute.xlu0 %4197
      %4199 = vrot.lane.b32.xlu0 %v4177, 32
      %v4200 = vpop.permute.xlu0 %4199
      %4201 = vrot.lane.b32.xlu0 %v4182, 32
      %v4202 = vpop.permute.xlu0 %4201
      %4203 = vrot.lane.b32.xlu0 %v4187, 32
      %v4204 = vpop.permute.xlu0 %4203
      %v4210 = vadd.f32 %v3892, %v4196
      %v4211 = vadd.f32 %v3897, %v4198
      %v4212 = vadd.f32 %v3902, %v4200
      %v4213 = vadd.f32 %v3907, %v4202
      %v4214 = vadd.f32 %v3912, %v4204
      %v4215 = vadd.f32 %v4070, %v4196
      %v4216 = vadd.f32 %v4071, %v4198
      %v4217 = vadd.f32 %v4072, %v4200
      %v4218 = vadd.f32 %v4073, %v4202
      %v4219 = vadd.f32 %v4074, %v4204
      %v4220 = vld [vmem:[%s3750 + $0x5] sm:$0xff]
      %v4221 = vld [vmem:[%s3750 + $0xd] sm:$0xff]
      %v4222 = vld [vmem:[%s3750 + $0x15] sm:$0xff]
      %v4223 = vld [vmem:[%s3750 + $0x1d] sm:$0xff]
      %v4224 = vld [vmem:[%s3750 + $0x25] sm:$0x7f]
      %s4225 = scalar_lea.vmem %s7, 96
      %v4226 = vld [vmem:[%s4225] sm:$0xff]
      %v4227 = vld [vmem:[%s4225 + $0x8] sm:$0xff]
      %v4228 = vld [vmem:[%s4225 + $0x10] sm:$0xff]
      %v4229 = vld [vmem:[%s4225 + $0x18] sm:$0xff]
      %v4231 = vsel %vm410, %v4220, 0
      %v4234 = vsel %vm410, %v4221, 0
      %v4237 = vsel %vm410, %v4222, 0
      %v4240 = vsel %vm410, %v4223, 0
      %v4243 = vsel %vm410, %v4224, 0
      %4245 = vmatprep.subr.mxu0 0.0
      %4246 = vmatpush1.msra.mxu0 %v4226
      %4247 = vmatprep.subr.mxu0 0.0
      %4248 = vmatpush1.msra.mxu0 %v4227
      %4249 = vmatprep.subr.mxu0 0.0
      %4250 = vmatpush1.msra.mxu0 %v4228
      %4251 = vmatprep.subr.mxu0 0.0
      %4252 = vmatpush1.msra.mxu0 %v4229
      %4253 = vmatprep.subr.mxu0 0.0
      %4254 = vmatpush1.msra.mxu0 0.0
      %4255 = vmatprep.subr.mxu0 0.0
      %4256 = vmatpush1.msra.mxu0 0.0
      %4257 = vmatprep.subr.mxu0 0.0
      %4258 = vmatpush1.msra.mxu0 0.0
      %4259 = vmatprep.subr.mxu0 0.0
      %4260 = vmatpush1.msra.mxu0 0.0
      %4261 = vmatprep.subr.mxu0 0.0
      %4262 = vmatpush1.msra.mxu0 0.0
      %4263 = vmatprep.subr.mxu0 0.0
      %4264 = vmatpush1.msra.mxu0 0.0
      %4265 = vmatprep.subr.mxu0 0.0
      %4266 = vmatpush1.msra.mxu0 0.0
      %4267 = vmatprep.subr.mxu0 0.0
      %4268 = vmatpush1.msra.mxu0 0.0
      %4269 = vmatprep.subr.mxu0 0.0
      %4270 = vmatpush1.msra.mxu0 0.0
      %4271 = vmatprep.subr.mxu0 0.0
      %4272 = vmatpush1.msra.mxu0 0.0
      %4273 = vmatprep.subr.mxu0 0.0
      %4274 = vmatpush1.msra.mxu0 0.0
      %4275 = vmatprep.subr.mxu0 0.0
      %4276 = vmatpush1.msra.mxu0 0.0
      %4277 = vmatprep.subr.mxu0 0.0
      %4278 = vmatpush1.msra.mxu0 0.0
      %4279 = vmatprep.subr.mxu0 0.0
      %4280 = vmatpush1.msra.mxu0 0.0
      %4281 = vmatprep.subr.mxu0 0.0
      %4282 = vmatpush1.msra.mxu0 0.0
      %4283 = vmatprep.subr.mxu0 0.0
      %4284 = vmatpush1.msra.mxu0 0.0
      %4285 = vmatprep.subr.mxu0 0.0
      %4286 = vmatpush1.msra.mxu0 0.0
      %4287 = vmatprep.subr.mxu0 0.0
      %4288 = vmatpush1.msra.mxu0 0.0
      %4289 = vmatprep.subr.mxu0 0.0
      %4290 = vmatpush1.msra.mxu0 0.0
      %4291 = vmatprep.subr.mxu0 0.0
      %4292 = vmatpush1.msra.mxu0 0.0
      %4293 = vmatprep.subr.mxu0 0.0
      %4294 = vmatpush1.msra.mxu0 0.0
      %4295 = vmatprep.subr.mxu0 0.0
      %4296 = vmatpush1.msra.mxu0 0.0
      %4297 = vmatprep.subr.mxu0 0.0
      %4298 = vmatpush1.msra.mxu0 0.0
      %4299 = vmatprep.subr.mxu0 0.0
      %4300 = vmatpush1.msra.mxu0 0.0
      %4301 = vmatprep.subr.mxu0 0.0
      %4302 = vmatpush1.msra.mxu0 0.0
      %4303 = vmatprep.subr.mxu0 0.0
      %4304 = vmatpush1.msra.mxu0 0.0
      %4305 = vmatprep.subr.mxu0 0.0
      %4306 = vmatpush1.msra.mxu0 0.0
      %4307 = vmatprep.subr.mxu0 0.0
      %4308 = vmatpush1.msra.mxu0 0.0
      %4309 = vmatprep.mubr.f32.mxu0 0.0
      %4310 = vmatmul.mubr.f32.gmra.mrb[0].mxu0 %v4231
      %v4311 = vpop.f32.mrb[0].mxu0
      %v4312 = vadd.f32 0.0, %v4311
      %v4313 = vpop.f32.mrb[0].mxu0
      %4314 = vmatprep.mubr.f32.mxu0 0.0
      %4315 = vmatmul.mubr.f32.gmra.mrb[0].mxu0 %v4234
      %v4316 = vpop.f32.mrb[0].mxu0
      %v4317 = vadd.f32 0.0, %v4316
      %v4318 = vpop.f32.mrb[0].mxu0
      %4319 = vmatprep.mubr.f32.mxu0 0.0
      %4320 = vmatmul.mubr.f32.gmra.mrb[0].mxu0 %v4237
      %v4321 = vpop.f32.mrb[0].mxu0
      %v4322 = vadd.f32 0.0, %v4321
      %v4323 = vpop.f32.mrb[0].mxu0
      %4324 = vmatprep.mubr.f32.mxu0 0.0
      %4325 = vmatmul.mubr.f32.gmra.mrb[0].mxu0 %v4240
      %v4326 = vpop.f32.mrb[0].mxu0
      %v4327 = vadd.f32 0.0, %v4326
      %v4328 = vpop.f32.mrb[0].mxu0
      %4329 = vmatprep.mubr.f32.mxu0 0.0
      %4330 = vmatmul.mubr.f32.gmra.mrb[0].mxu0 %v4243
      %v4331 = vpop.f32.mrb[0].mxu0
      %v4332 = vadd.f32 0.0, %v4331
      %v4333 = vpop.f32.mrb[0].mxu0
      %4334 = vdwg.mxu0
      %4340 = vrot.lane.b32.xlu0 %v4312, 48
      %v4341 = vpop.permute.xlu0 %4340
      %4342 = vrot.lane.b32.xlu0 %v4317, 48
      %v4343 = vpop.permute.xlu0 %4342
      %4344 = vrot.lane.b32.xlu0 %v4322, 48
      %v4345 = vpop.permute.xlu0 %4344
      %4346 = vrot.lane.b32.xlu0 %v4327, 48
      %v4347 = vpop.permute.xlu0 %4346
      %4348 = vrot.lane.b32.xlu0 %v4332, 48
      %v4349 = vpop.permute.xlu0 %4348
      %v4355 = vadd.f32 %v4215, %v4341
      %v4356 = vadd.f32 %v4216, %v4343
      %v4357 = vadd.f32 %v4217, %v4345
      %v4358 = vadd.f32 %v4218, %v4347
      %v4359 = vadd.f32 %v4219, %v4349
      %v4360 = vld [vmem:[%s8] sm:$0x1]
      %v4362 = vlaneseq
      %v4363 = vshrl.u32 %v4362, 7
      %v4364 = vsub.s32 0, %v4363
      %v4365 = vrot.slane %v4360, %v4364
      %v4367 = vadd.f32 %v3892, %v4365
      %v4368 = vadd.f32 %v3897, %v4365
      %v4369 = vadd.f32 %v3902, %v4365
      %v4370 = vadd.f32 %v3907, %v4365
      %v4371 = vadd.f32 %v3912, %v4365
      %v4372 = vmax.f32 %v4367, 0.0
      %v4373 = vmax.f32 %v4368, 0.0
      %v4374 = vmax.f32 %v4369, 0.0
      %v4375 = vmax.f32 %v4370, 0.0
      %v4376 = vmax.f32 %v4371, 0.0
      %4377 = vrot.lane.b32.xlu0 %v4365, 16
      %v4378 = vpop.permute.xlu0 %4377
      %v4380 = vadd.f32 %v4050, %v4378
      %v4381 = vadd.f32 %v4051, %v4378
      %v4382 = vadd.f32 %v4052, %v4378
      %v4383 = vadd.f32 %v4053, %v4378
      %v4384 = vadd.f32 %v4054, %v4378
      %v4385 = vmax.f32 %v4380, 0.0
      %v4386 = vmax.f32 %v4381, 0.0
      %v4387 = vmax.f32 %v4382, 0.0
      %v4388 = vmax.f32 %v4383, 0.0
      %v4389 = vmax.f32 %v4384, 0.0
      %4390 = vrot.lane.b32.xlu0 %v4365, 32
      %v4391 = vpop.permute.xlu0 %4390
      %v4393 = vadd.f32 %v4210, %v4391
      %v4394 = vadd.f32 %v4211, %v4391
      %v4395 = vadd.f32 %v4212, %v4391
      %v4396 = vadd.f32 %v4213, %v4391
      %v4397 = vadd.f32 %v4214, %v4391
      %v4398 = vmax.f32 %v4393, 0.0
      %v4399 = vmax.f32 %v4394, 0.0
      %v4400 = vmax.f32 %v4395, 0.0
      %v4401 = vmax.f32 %v4396, 0.0
      %v4402 = vmax.f32 %v4397, 0.0
      %4403 = vrot.lane.b32.xlu0 %v4365, 48
      %v4404 = vpop.permute.xlu0 %4403
      %v4406 = vadd.f32 %v4355, %v4404
      %v4407 = vadd.f32 %v4356, %v4404
      %v4408 = vadd.f32 %v4357, %v4404
      %v4409 = vadd.f32 %v4358, %v4404
      %v4410 = vadd.f32 %v4359, %v4404
      %v4411 = vmax.f32 %v4406, 0.0
      %v4412 = vmax.f32 %v4407, 0.0
      %v4413 = vmax.f32 %v4408, 0.0
      %v4414 = vmax.f32 %v4409, 0.0
      %v4415 = vmax.f32 %v4410, 0.0
      %s4416 = scalar_lea.vmem [#allocation5], 96
      %vm4417 = vcmask 125952
      %4418 = vst.msk [vmem:[%s4416 + $0x5] sm:$0xf] %vm4417, %v4372
      %vm4419 = vcmask 130053
      %4420 = vst.msk [vmem:[%s4416 + $0xa] sm:$0xe0] %vm4419, %v4372
      %vm4421 = vcmask 122880
      %4422 = vst.msk [vmem:[%s4416 + $0x12] sm:$0x1] %vm4421, %v4373
      %vm4423 = vcmask 128002
      %4424 = vst.msk [vmem:[%s4416 + $0x17] sm:$0x3c] %vm4423, %v4373
      %vm4425 = vcmask 130055
      %4426 = vst.msk [vmem:[%s4416 + $0x1c] sm:$0x80] %vm4425, %v4373
      %vm4427 = vcmask 124928
      %4428 = vst.msk [vmem:[%s4416 + $0x24] sm:$0x7] %vm4427, %v4374
      %vm4429 = vcmask 130052
      %4430 = vst.msk [vmem:[%s4416 + $0x29] sm:$0xf0] %vm4429, %v4374
      %vm4431 = vcmask 126977
      %4432 = vst.msk [vmem:[%s4416 + $0x36] sm:$0x1e] %vm4431, %v4375
      %vm4433 = vcmask 130054
      %4434 = vst.msk [vmem:[%s4416 + $0x3b] sm:$0xc0] %vm4433, %v4375
      %4435 = vst.msk [vmem:[%s4416 + $0x43] sm:$0x3] %vm436, %v4376
      %vm4436 = vcmask 129027
      %4437 = vst.msk [vmem:[%s4416 + $0x48] sm:$0x78] %vm4436, %v4376
      %4439 = vrot.lane.b32.xlu0 %v4385, 112
      %v4440 = vpop.permute.xlu0 %4439
      %s4442 = scalar_lea.vmem [#allocation5], 192
      %4443 = vst.msk [vmem:[%s4442 + $0x5] sm:$0xf] %vm4417, %v4440
      %4445 = vrot.lane.b32.xlu0 %v4386, 112
      %v4446 = vpop.permute.xlu0 %4445
      %4448 = vst.msk [vmem:[%s4442 + $0xa] sm:$0xe0] %vm4419, %v4440
      %4449 = vst.msk [vmem:[%s4442 + $0x12] sm:$0x1] %vm4421, %v4446
      %4450 = vst.msk [vmem:[%s4442 + $0x17] sm:$0x3c] %vm4423, %v4446
      %4452 = vrot.lane.b32.xlu0 %v4387, 112
      %v4453 = vpop.permute.xlu0 %4452
      %4455 = vst.msk [vmem:[%s4442 + $0x1c] sm:$0x80] %vm4425, %v4446
      %4456 = vst.msk [vmem:[%s4442 + $0x24] sm:$0x7] %vm4427, %v4453
      %4457 = vst.msk [vmem:[%s4442 + $0x29] sm:$0xf0] %vm4429, %v4453
      %4459 = vrot.lane.b32.xlu0 %v4388, 112
      %v4460 = vpop.permute.xlu0 %4459
      %4462 = vst.msk [vmem:[%s4442 + $0x36] sm:$0x1e] %vm4431, %v4460
      %4464 = vrot.lane.b32.xlu0 %v4389, 112
      %v4465 = vpop.permute.xlu0 %4464
      %4467 = vst.msk [vmem:[%s4442 + $0x3b] sm:$0xc0] %vm4433, %v4460
      %4468 = vst.msk [vmem:[%s4442 + $0x43] sm:$0x3] %vm436, %v4465
      %4469 = vst.msk [vmem:[%s4442 + $0x48] sm:$0x78] %vm4436, %v4465
      %4471 = vrot.lane.b32.xlu0 %v4398, 96
      %v4472 = vpop.permute.xlu0 %4471
      %4474 = vst.msk [vmem:[%s4416 + $0xa] sm:$0xf] %vm4417, %v4472
      %4476 = vrot.lane.b32.xlu0 %v4399, 96
      %v4477 = vpop.permute.xlu0 %4476
      %4479 = vst.msk [vmem:[%s4416 + $0xf] sm:$0xe0] %vm4419, %v4472
      %4480 = vst.msk [vmem:[%s4416 + $0x17] sm:$0x1] %vm4421, %v4477
      %4481 = vst.msk [vmem:[%s4416 + $0x1c] sm:$0x3c] %vm4423, %v4477
      %4483 = vrot.lane.b32.xlu0 %v4400, 96
      %v4484 = vpop.permute.xlu0 %4483
      %4486 = vst.msk [vmem:[%s4416 + $0x21] sm:$0x80] %vm4425, %v4477
      %4487 = vst.msk [vmem:[%s4416 + $0x29] sm:$0x7] %vm4427, %v4484
      %4488 = vst.msk [vmem:[%s4416 + $0x2e] sm:$0xf0] %vm4429, %v4484
      %4490 = vrot.lane.b32.xlu0 %v4401, 96
      %v4491 = vpop.permute.xlu0 %4490
      %4493 = vst.msk [vmem:[%s4416 + $0x3b] sm:$0x1e] %vm4431, %v4491
      %4495 = vrot.lane.b32.xlu0 %v4402, 96
      %v4496 = vpop.permute.xlu0 %4495
      %4498 = vst.msk [vmem:[%s4416 + $0x40] sm:$0xc0] %vm4433, %v4491
      %4499 = vst.msk [vmem:[%s4416 + $0x48] sm:$0x3] %vm436, %v4496
      %4500 = vst.msk [vmem:[%s4416 + $0x4d] sm:$0x78] %vm4436, %v4496
      %4502 = vrot.lane.b32.xlu0 %v4411, 80
      %v4503 = vpop.permute.xlu0 %4502
      %4505 = vst.msk [vmem:[%s4442 + $0xa] sm:$0xf] %vm4417, %v4503
      %4507 = vrot.lane.b32.xlu0 %v4412, 80
      %v4508 = vpop.permute.xlu0 %4507
      %4510 = vst.msk [vmem:[%s4442 + $0xf] sm:$0xe0] %vm4419, %v4503
      %4511 = vst.msk [vmem:[%s4442 + $0x17] sm:$0x1] %vm4421, %v4508
      %4512 = vst.msk [vmem:[%s4442 + $0x1c] sm:$0x3c] %vm4423, %v4508
      %4514 = vrot.lane.b32.xlu0 %v4413, 80
      %v4515 = vpop.permute.xlu0 %4514
      %4517 = vst.msk [vmem:[%s4442 + $0x21] sm:$0x80] %vm4425, %v4508
      %4518 = vst.msk [vmem:[%s4442 + $0x29] sm:$0x7] %vm4427, %v4515
      %4519 = vst.msk [vmem:[%s4442 + $0x2e] sm:$0xf0] %vm4429, %v4515
      %4521 = vrot.lane.b32.xlu0 %v4414, 80
      %v4522 = vpop.permute.xlu0 %4521
      %4524 = vst.msk [vmem:[%s4442 + $0x3b] sm:$0x1e] %vm4431, %v4522
      %4526 = vrot.lane.b32.xlu0 %v4415, 80
      %v4527 = vpop.permute.xlu0 %4526
      %4529 = vst.msk [vmem:[%s4442 + $0x40] sm:$0xc0] %vm4433, %v4522
      %4530 = vst.msk [vmem:[%s4442 + $0x48] sm:$0x3] %vm436, %v4527
      %4531 = vst.msk [vmem:[%s4442 + $0x4d] sm:$0x78] %vm4436, %v4527
      %v4532 = vld [vmem:[%s3750] sm:$0xff]
      %v4533 = vld [vmem:[%s3750 + $0x8] sm:$0xff]
      %v4534 = vld [vmem:[%s3750 + $0x10] sm:$0xff]
      %v4535 = vld [vmem:[%s3750 + $0x18] sm:$0xff]
      %v4536 = vld [vmem:[%s3750 + $0x20] sm:$0x7f]
      %v4537 = vld [vmem:[%s7] sm:$0xff]
      %v4538 = vld [vmem:[%s7 + $0x8] sm:$0xff]
      %v4539 = vld [vmem:[%s7 + $0x10] sm:$0xff]
      %v4540 = vld [vmem:[%s7 + $0x18] sm:$0xff]
      %v4542 = vsel %vm410, %v4532, 0
      %v4545 = vsel %vm410, %v4533, 0
      %v4548 = vsel %vm410, %v4534, 0
      %v4551 = vsel %vm410, %v4535, 0
      %v4554 = vsel %vm410, %v4536, 0
      %4556 = vmatprep.subr.mxu0 0.0
      %4557 = vmatpush1.msra.mxu0 %v4537
      %4558 = vmatprep.subr.mxu0 0.0
      %4559 = vmatpush1.msra.mxu0 %v4538
      %4560 = vmatprep.subr.mxu0 0.0
      %4561 = vmatpush1.msra.mxu0 %v4539
      %4562 = vmatprep.subr.mxu0 0.0
      %4563 = vmatpush1.msra.mxu0 %v4540
      %4564 = vmatprep.subr.mxu0 0.0
      %4565 = vmatpush1.msra.mxu0 0.0
      %4566 = vmatprep.subr.mxu0 0.0
      %4567 = vmatpush1.msra.mxu0 0.0
      %4568 = vmatprep.subr.mxu0 0.0
      %4569 = vmatpush1.msra.mxu0 0.0
      %4570 = vmatprep.subr.mxu0 0.0
      %4571 = vmatpush1.msra.mxu0 0.0
      %4572 = vmatprep.subr.mxu0 0.0
      %4573 = vmatpush1.msra.mxu0 0.0
      %4574 = vmatprep.subr.mxu0 0.0
      %4575 = vmatpush1.msra.mxu0 0.0
      %4576 = vmatprep.subr.mxu0 0.0
      %4577 = vmatpush1.msra.mxu0 0.0
      %4578 = vmatprep.subr.mxu0 0.0
      %4579 = vmatpush1.msra.mxu0 0.0
      %4580 = vmatprep.subr.mxu0 0.0
      %4581 = vmatpush1.msra.mxu0 0.0
      %4582 = vmatprep.subr.mxu0 0.0
      %4583 = vmatpush1.msra.mxu0 0.0
      %4584 = vmatprep.subr.mxu0 0.0
      %4585 = vmatpush1.msra.mxu0 0.0
      %4586 = vmatprep.subr.mxu0 0.0
      %4587 = vmatpush1.msra.mxu0 0.0
      %4588 = vmatprep.subr.mxu0 0.0
      %4589 = vmatpush1.msra.mxu0 0.0
      %4590 = vmatprep.subr.mxu0 0.0
      %4591 = vmatpush1.msra.mxu0 0.0
      %4592 = vmatprep.subr.mxu0 0.0
      %4593 = vmatpush1.msra.mxu0 0.0
      %4594 = vmatprep.subr.mxu0 0.0
      %4595 = vmatpush1.msra.mxu0 0.0
      %4596 = vmatprep.subr.mxu0 0.0
      %4597 = vmatpush1.msra.mxu0 0.0
      %4598 = vmatprep.subr.mxu0 0.0
      %4599 = vmatpush1.msra.mxu0 0.0
      %4600 = vmatprep.subr.mxu0 0.0
      %4601 = vmatpush1.msra.mxu0 0.0
      %4602 = vmatprep.subr.mxu0 0.0
      %4603 = vmatpush1.msra.mxu0 0.0
      %4604 = vmatprep.subr.mxu0 0.0
      %4605 = vmatpush1.msra.mxu0 0.0
      %4606 = vmatprep.subr.mxu0 0.0
      %4607 = vmatpush1.msra.mxu0 0.0
      %4608 = vmatprep.subr.mxu0 0.0
      %4609 = vmatpush1.msra.mxu0 0.0
      %4610 = vmatprep.subr.mxu0 0.0
      %4611 = vmatpush1.msra.mxu0 0.0
      %4612 = vmatprep.subr.mxu0 0.0
      %4613 = vmatpush1.msra.mxu0 0.0
      %4614 = vmatprep.subr.mxu0 0.0
      %4615 = vmatpush1.msra.mxu0 0.0
      %4616 = vmatprep.subr.mxu0 0.0
      %4617 = vmatpush1.msra.mxu0 0.0
      %4618 = vmatprep.subr.mxu0 0.0
      %4619 = vmatpush1.msra.mxu0 0.0
      %4620 = vmatprep.mubr.f32.mxu0 0.0
      %4621 = vmatmul.mubr.f32.gmra.mrb[0].mxu0 %v4542
      %v4622 = vpop.f32.mrb[0].mxu0
      %v4623 = vadd.f32 0.0, %v4622
      %v4624 = vpop.f32.mrb[0].mxu0
      %4625 = vmatprep.mubr.f32.mxu0 0.0
      %4626 = vmatmul.mubr.f32.gmra.mrb[0].mxu0 %v4545
      %v4627 = vpop.f32.mrb[0].mxu0
      %v4628 = vadd.f32 0.0, %v4627
      %v4629 = vpop.f32.mrb[0].mxu0
      %4630 = vmatprep.mubr.f32.mxu0 0.0
      %4631 = vmatmul.mubr.f32.gmra.mrb[0].mxu0 %v4548
      %v4632 = vpop.f32.mrb[0].mxu0
      %v4633 = vadd.f32 0.0, %v4632
      %v4634 = vpop.f32.mrb[0].mxu0
      %4635 = vmatprep.mubr.f32.mxu0 0.0
      %4636 = vmatmul.mubr.f32.gmra.mrb[0].mxu0 %v4551
      %v4637 = vpop.f32.mrb[0].mxu0
      %v4638 = vadd.f32 0.0, %v4637
      %v4639 = vpop.f32.mrb[0].mxu0
      %4640 = vmatprep.mubr.f32.mxu0 0.0
      %4641 = vmatmul.mubr.f32.gmra.mrb[0].mxu0 %v4554
      %v4642 = vpop.f32.mrb[0].mxu0
      %v4643 = vadd.f32 0.0, %v4642
      %v4644 = vpop.f32.mrb[0].mxu0
      %4645 = vdwg.mxu0
      %v4646 = vld [vmem:[#allocation4 + $0x1] sm:$0xff]
      %v4647 = vld [vmem:[#allocation4 + $0x9] sm:$0xff]
      %v4648 = vld [vmem:[#allocation4 + $0x11] sm:$0xff]
      %v4649 = vld [vmem:[#allocation4 + $0x19] sm:$0xff]
      %v4650 = vld [vmem:[#allocation4 + $0x21] sm:$0x7f]
      %v4651 = vld [vmem:[%s3920] sm:$0xff]
      %v4652 = vld [vmem:[%s3920 + $0x8] sm:$0xff]
      %v4653 = vld [vmem:[%s3920 + $0x10] sm:$0xff]
      %v4654 = vld [vmem:[%s3920 + $0x18] sm:$0xff]
      %v4656 = vsel %vm410, %v4646, 0
      %v4659 = vsel %vm410, %v4647, 0
      %v4662 = vsel %vm410, %v4648, 0
      %v4665 = vsel %vm410, %v4649, 0
      %v4668 = vsel %vm410, %v4650, 0
      %4670 = vmatprep.subr.mxu0 0.0
      %4671 = vmatpush1.msra.mxu0 %v4651
      %4672 = vmatprep.subr.mxu0 0.0
      %4673 = vmatpush1.msra.mxu0 %v4652
      %4674 = vmatprep.subr.mxu0 0.0
      %4675 = vmatpush1.msra.mxu0 %v4653
      %4676 = vmatprep.subr.mxu0 0.0
      %4677 = vmatpush1.msra.mxu0 %v4654
      %4678 = vmatprep.subr.mxu0 0.0
      %4679 = vmatpush1.msra.mxu0 0.0
      %4680 = vmatprep.subr.mxu0 0.0
      %4681 = vmatpush1.msra.mxu0 0.0
      %4682 = vmatprep.subr.mxu0 0.0
      %4683 = vmatpush1.msra.mxu0 0.0
      %4684 = vmatprep.subr.mxu0 0.0
      %4685 = vmatpush1.msra.mxu0 0.0
      %4686 = vmatprep.subr.mxu0 0.0
      %4687 = vmatpush1.msra.mxu0 0.0
      %4688 = vmatprep.subr.mxu0 0.0
      %4689 = vmatpush1.msra.mxu0 0.0
      %4690 = vmatprep.subr.mxu0 0.0
      %4691 = vmatpush1.msra.mxu0 0.0
      %4692 = vmatprep.subr.mxu0 0.0
      %4693 = vmatpush1.msra.mxu0 0.0
      %4694 = vmatprep.subr.mxu0 0.0
      %4695 = vmatpush1.msra.mxu0 0.0
      %4696 = vmatprep.subr.mxu0 0.0
      %4697 = vmatpush1.msra.mxu0 0.0
      %4698 = vmatprep.subr.mxu0 0.0
      %4699 = vmatpush1.msra.mxu0 0.0
      %4700 = vmatprep.subr.mxu0 0.0
      %4701 = vmatpush1.msra.mxu0 0.0
      %4702 = vmatprep.subr.mxu0 0.0
      %4703 = vmatpush1.msra.mxu0 0.0
      %4704 = vmatprep.subr.mxu0 0.0
      %4705 = vmatpush1.msra.mxu0 0.0
      %4706 = vmatprep.subr.mxu0 0.0
      %4707 = vmatpush1.msra.mxu0 0.0
      %4708 = vmatprep.subr.mxu0 0.0
      %4709 = vmatpush1.msra.mxu0 0.0
      %4710 = vmatprep.subr.mxu0 0.0
      %4711 = vmatpush1.msra.mxu0 0.0
      %4712 = vmatprep.subr.mxu0 0.0
      %4713 = vmatpush1.msra.mxu0 0.0
      %4714 = vmatprep.subr.mxu0 0.0
      %4715 = vmatpush1.msra.mxu0 0.0
      %4716 = vmatprep.subr.mxu0 0.0
      %4717 = vmatpush1.msra.mxu0 0.0
      %4718 = vmatprep.subr.mxu0 0.0
      %4719 = vmatpush1.msra.mxu0 0.0
      %4720 = vmatprep.subr.mxu0 0.0
      %4721 = vmatpush1.msra.mxu0 0.0
      %4722 = vmatprep.subr.mxu0 0.0
      %4723 = vmatpush1.msra.mxu0 0.0
      %4724 = vmatprep.subr.mxu0 0.0
      %4725 = vmatpush1.msra.mxu0 0.0
      %4726 = vmatprep.subr.mxu0 0.0
      %4727 = vmatpush1.msra.mxu0 0.0
      %4728 = vmatprep.subr.mxu0 0.0
      %4729 = vmatpush1.msra.mxu0 0.0
      %4730 = vmatprep.subr.mxu0 0.0
      %4731 = vmatpush1.msra.mxu0 0.0
      %4732 = vmatprep.subr.mxu0 0.0
      %4733 = vmatpush1.msra.mxu0 0.0
      %4734 = vmatprep.mubr.f32.mxu0 0.0
      %4735 = vmatmul.mubr.f32.gmra.mrb[0].mxu0 %v4656
      %v4736 = vpop.f32.mrb[0].mxu0
      %v4737 = vadd.f32 0.0, %v4736
      %v4738 = vpop.f32.mrb[0].mxu0
      %4739 = vmatprep.mubr.f32.mxu0 0.0
      %4740 = vmatmul.mubr.f32.gmra.mrb[0].mxu0 %v4659
      %v4741 = vpop.f32.mrb[0].mxu0
      %v4742 = vadd.f32 0.0, %v4741
      %v4743 = vpop.f32.mrb[0].mxu0
      %4744 = vmatprep.mubr.f32.mxu0 0.0
      %4745 = vmatmul.mubr.f32.gmra.mrb[0].mxu0 %v4662
      %v4746 = vpop.f32.mrb[0].mxu0
      %v4747 = vadd.f32 0.0, %v4746
      %v4748 = vpop.f32.mrb[0].mxu0
      %4749 = vmatprep.mubr.f32.mxu0 0.0
      %4750 = vmatmul.mubr.f32.gmra.mrb[0].mxu0 %v4665
      %v4751 = vpop.f32.mrb[0].mxu0
      %v4752 = vadd.f32 0.0, %v4751
      %v4753 = vpop.f32.mrb[0].mxu0
      %4754 = vmatprep.mubr.f32.mxu0 0.0
      %4755 = vmatmul.mubr.f32.gmra.mrb[0].mxu0 %v4668
      %v4756 = vpop.f32.mrb[0].mxu0
      %v4757 = vadd.f32 0.0, %v4756
      %v4758 = vpop.f32.mrb[0].mxu0
      %4759 = vdwg.mxu0
      %4765 = vrot.lane.b32.xlu0 %v4737, 16
      %v4766 = vpop.permute.xlu0 %4765
      %4767 = vrot.lane.b32.xlu0 %v4742, 16
      %v4768 = vpop.permute.xlu0 %4767
      %4769 = vrot.lane.b32.xlu0 %v4747, 16
      %v4770 = vpop.permute.xlu0 %4769
      %4771 = vrot.lane.b32.xlu0 %v4752, 16
      %v4772 = vpop.permute.xlu0 %4771
      %4773 = vrot.lane.b32.xlu0 %v4757, 16
      %v4774 = vpop.permute.xlu0 %4773
      %v4780 = vadd.f32 %v4623, %v4766
      %v4781 = vadd.f32 %v4628, %v4768
      %v4782 = vadd.f32 %v4633, %v4770
      %v4783 = vadd.f32 %v4638, %v4772
      %v4784 = vadd.f32 %v4643, %v4774
      %4785 = vrot.lane.b32.xlu0 %v4737, 32
      %v4786 = vpop.permute.xlu0 %4785
      %4787 = vrot.lane.b32.xlu0 %v4742, 32
      %v4788 = vpop.permute.xlu0 %4787
      %4789 = vrot.lane.b32.xlu0 %v4747, 32
      %v4790 = vpop.permute.xlu0 %4789
      %4791 = vrot.lane.b32.xlu0 %v4752, 32
      %v4792 = vpop.permute.xlu0 %4791
      %4793 = vrot.lane.b32.xlu0 %v4757, 32
      %v4794 = vpop.permute.xlu0 %4793
      %v4800 = vadd.f32 %v4623, %v4786
      %v4801 = vadd.f32 %v4628, %v4788
      %v4802 = vadd.f32 %v4633, %v4790
      %v4803 = vadd.f32 %v4638, %v4792
      %v4804 = vadd.f32 %v4643, %v4794
      %v4805 = vld [vmem:[%s3750 + $0x5] sm:$0xff]
      %v4806 = vld [vmem:[%s3750 + $0xd] sm:$0xff]
      %v4807 = vld [vmem:[%s3750 + $0x15] sm:$0xff]
      %v4808 = vld [vmem:[%s3750 + $0x1d] sm:$0xff]
      %v4809 = vld [vmem:[%s3750 + $0x25] sm:$0x7f]
      %v4810 = vld [vmem:[%s4080] sm:$0xff]
      %v4811 = vld [vmem:[%s4080 + $0x8] sm:$0xff]
      %v4812 = vld [vmem:[%s4080 + $0x10] sm:$0xff]
      %v4813 = vld [vmem:[%s4080 + $0x18] sm:$0xff]
      %v4815 = vsel %vm410, %v4805, 0
      %v4818 = vsel %vm410, %v4806, 0
      %v4821 = vsel %vm410, %v4807, 0
      %v4824 = vsel %vm410, %v4808, 0
      %v4827 = vsel %vm410, %v4809, 0
      %4829 = vmatprep.subr.mxu0 0.0
      %4830 = vmatpush1.msra.mxu0 %v4810
      %4831 = vmatprep.subr.mxu0 0.0
      %4832 = vmatpush1.msra.mxu0 %v4811
      %4833 = vmatprep.subr.mxu0 0.0
      %4834 = vmatpush1.msra.mxu0 %v4812
      %4835 = vmatprep.subr.mxu0 0.0
      %4836 = vmatpush1.msra.mxu0 %v4813
      %4837 = vmatprep.subr.mxu0 0.0
      %4838 = vmatpush1.msra.mxu0 0.0
      %4839 = vmatprep.subr.mxu0 0.0
      %4840 = vmatpush1.msra.mxu0 0.0
      %4841 = vmatprep.subr.mxu0 0.0
      %4842 = vmatpush1.msra.mxu0 0.0
      %4843 = vmatprep.subr.mxu0 0.0
      %4844 = vmatpush1.msra.mxu0 0.0
      %4845 = vmatprep.subr.mxu0 0.0
      %4846 = vmatpush1.msra.mxu0 0.0
      %4847 = vmatprep.subr.mxu0 0.0
      %4848 = vmatpush1.msra.mxu0 0.0
      %4849 = vmatprep.subr.mxu0 0.0
      %4850 = vmatpush1.msra.mxu0 0.0
      %4851 = vmatprep.subr.mxu0 0.0
      %4852 = vmatpush1.msra.mxu0 0.0
      %4853 = vmatprep.subr.mxu0 0.0
      %4854 = vmatpush1.msra.mxu0 0.0
      %4855 = vmatprep.subr.mxu0 0.0
      %4856 = vmatpush1.msra.mxu0 0.0
      %4857 = vmatprep.subr.mxu0 0.0
      %4858 = vmatpush1.msra.mxu0 0.0
      %4859 = vmatprep.subr.mxu0 0.0
      %4860 = vmatpush1.msra.mxu0 0.0
      %4861 = vmatprep.subr.mxu0 0.0
      %4862 = vmatpush1.msra.mxu0 0.0
      %4863 = vmatprep.subr.mxu0 0.0
      %4864 = vmatpush1.msra.mxu0 0.0
      %4865 = vmatprep.subr.mxu0 0.0
      %4866 = vmatpush1.msra.mxu0 0.0
      %4867 = vmatprep.subr.mxu0 0.0
      %4868 = vmatpush1.msra.mxu0 0.0
      %4869 = vmatprep.subr.mxu0 0.0
      %4870 = vmatpush1.msra.mxu0 0.0
      %4871 = vmatprep.subr.mxu0 0.0
      %4872 = vmatpush1.msra.mxu0 0.0
      %4873 = vmatprep.subr.mxu0 0.0
      %4874 = vmatpush1.msra.mxu0 0.0
      %4875 = vmatprep.subr.mxu0 0.0
      %4876 = vmatpush1.msra.mxu0 0.0
      %4877 = vmatprep.subr.mxu0 0.0
      %4878 = vmatpush1.msra.mxu0 0.0
      %4879 = vmatprep.subr.mxu0 0.0
      %4880 = vmatpush1.msra.mxu0 0.0
      %4881 = vmatprep.subr.mxu0 0.0
      %4882 = vmatpush1.msra.mxu0 0.0
      %4883 = vmatprep.subr.mxu0 0.0
      %4884 = vmatpush1.msra.mxu0 0.0
      %4885 = vmatprep.subr.mxu0 0.0
      %4886 = vmatpush1.msra.mxu0 0.0
      %4887 = vmatprep.subr.mxu0 0.0
      %4888 = vmatpush1.msra.mxu0 0.0
      %4889 = vmatprep.subr.mxu0 0.0
      %4890 = vmatpush1.msra.mxu0 0.0
      %4891 = vmatprep.subr.mxu0 0.0
      %4892 = vmatpush1.msra.mxu0 0.0
      %4893 = vmatprep.mubr.f32.mxu0 0.0
      %4894 = vmatmul.mubr.f32.gmra.mrb[0].mxu0 %v4815
      %v4895 = vpop.f32.mrb[0].mxu0
      %v4896 = vadd.f32 0.0, %v4895
      %v4897 = vpop.f32.mrb[0].mxu0
      %4898 = vmatprep.mubr.f32.mxu0 0.0
      %4899 = vmatmul.mubr.f32.gmra.mrb[0].mxu0 %v4818
      %v4900 = vpop.f32.mrb[0].mxu0
      %v4901 = vadd.f32 0.0, %v4900
      %v4902 = vpop.f32.mrb[0].mxu0
      %4903 = vmatprep.mubr.f32.mxu0 0.0
      %4904 = vmatmul.mubr.f32.gmra.mrb[0].mxu0 %v4821
      %v4905 = vpop.f32.mrb[0].mxu0
      %v4906 = vadd.f32 0.0, %v4905
      %v4907 = vpop.f32.mrb[0].mxu0
      %4908 = vmatprep.mubr.f32.mxu0 0.0
      %4909 = vmatmul.mubr.f32.gmra.mrb[0].mxu0 %v4824
      %v4910 = vpop.f32.mrb[0].mxu0
      %v4911 = vadd.f32 0.0, %v4910
      %v4912 = vpop.f32.mrb[0].mxu0
      %4913 = vmatprep.mubr.f32.mxu0 0.0
      %4914 = vmatmul.mubr.f32.gmra.mrb[0].mxu0 %v4827
      %v4915 = vpop.f32.mrb[0].mxu0
      %v4916 = vadd.f32 0.0, %v4915
      %v4917 = vpop.f32.mrb[0].mxu0
      %4918 = vdwg.mxu0
      %4924 = vrot.lane.b32.xlu0 %v4896, 32
      %v4925 = vpop.permute.xlu0 %4924
      %4926 = vrot.lane.b32.xlu0 %v4901, 32
      %v4927 = vpop.permute.xlu0 %4926
      %4928 = vrot.lane.b32.xlu0 %v4906, 32
      %v4929 = vpop.permute.xlu0 %4928
      %4930 = vrot.lane.b32.xlu0 %v4911, 32
      %v4931 = vpop.permute.xlu0 %4930
      %4932 = vrot.lane.b32.xlu0 %v4916, 32
      %v4933 = vpop.permute.xlu0 %4932
      %v4939 = vadd.f32 %v4623, %v4925
      %v4940 = vadd.f32 %v4628, %v4927
      %v4941 = vadd.f32 %v4633, %v4929
      %v4942 = vadd.f32 %v4638, %v4931
      %v4943 = vadd.f32 %v4643, %v4933
      %v4944 = vadd.f32 %v4800, %v4925
      %v4945 = vadd.f32 %v4801, %v4927
      %v4946 = vadd.f32 %v4802, %v4929
      %v4947 = vadd.f32 %v4803, %v4931
      %v4948 = vadd.f32 %v4804, %v4933
      %v4949 = vld [vmem:[#allocation4 + $0x6] sm:$0xff]
      %v4950 = vld [vmem:[#allocation4 + $0xe] sm:$0xff]
      %v4951 = vld [vmem:[#allocation4 + $0x16] sm:$0xff]
      %v4952 = vld [vmem:[#allocation4 + $0x1e] sm:$0xff]
      %v4953 = vld [vmem:[#allocation4 + $0x26] sm:$0x7f]
      %v4954 = vld [vmem:[%s4225] sm:$0xff]
      %v4955 = vld [vmem:[%s4225 + $0x8] sm:$0xff]
      %v4956 = vld [vmem:[%s4225 + $0x10] sm:$0xff]
      %v4957 = vld [vmem:[%s4225 + $0x18] sm:$0xff]
      %v4959 = vsel %vm410, %v4949, 0
      %v4962 = vsel %vm410, %v4950, 0
      %v4965 = vsel %vm410, %v4951, 0
      %v4968 = vsel %vm410, %v4952, 0
      %v4971 = vsel %vm410, %v4953, 0
      %4973 = vmatprep.subr.mxu0 0.0
      %4974 = vmatpush1.msra.mxu0 %v4954
      %4975 = vmatprep.subr.mxu0 0.0
      %4976 = vmatpush1.msra.mxu0 %v4955
      %4977 = vmatprep.subr.mxu0 0.0
      %4978 = vmatpush1.msra.mxu0 %v4956
      %4979 = vmatprep.subr.mxu0 0.0
      %4980 = vmatpush1.msra.mxu0 %v4957
      %4981 = vmatprep.subr.mxu0 0.0
      %4982 = vmatpush1.msra.mxu0 0.0
      %4983 = vmatprep.subr.mxu0 0.0
      %4984 = vmatpush1.msra.mxu0 0.0
      %4985 = vmatprep.subr.mxu0 0.0
      %4986 = vmatpush1.msra.mxu0 0.0
      %4987 = vmatprep.subr.mxu0 0.0
      %4988 = vmatpush1.msra.mxu0 0.0
      %4989 = vmatprep.subr.mxu0 0.0
      %4990 = vmatpush1.msra.mxu0 0.0
      %4991 = vmatprep.subr.mxu0 0.0
      %4992 = vmatpush1.msra.mxu0 0.0
      %4993 = vmatprep.subr.mxu0 0.0
      %4994 = vmatpush1.msra.mxu0 0.0
      %4995 = vmatprep.subr.mxu0 0.0
      %4996 = vmatpush1.msra.mxu0 0.0
      %4997 = vmatprep.subr.mxu0 0.0
      %4998 = vmatpush1.msra.mxu0 0.0
      %4999 = vmatprep.subr.mxu0 0.0
      %5000 = vmatpush1.msra.mxu0 0.0
      %5001 = vmatprep.subr.mxu0 0.0
      %5002 = vmatpush1.msra.mxu0 0.0
      %5003 = vmatprep.subr.mxu0 0.0
      %5004 = vmatpush1.msra.mxu0 0.0
      %5005 = vmatprep.subr.mxu0 0.0
      %5006 = vmatpush1.msra.mxu0 0.0
      %5007 = vmatprep.subr.mxu0 0.0
      %5008 = vmatpush1.msra.mxu0 0.0
      %5009 = vmatprep.subr.mxu0 0.0
      %5010 = vmatpush1.msra.mxu0 0.0
      %5011 = vmatprep.subr.mxu0 0.0
      %5012 = vmatpush1.msra.mxu0 0.0
      %5013 = vmatprep.subr.mxu0 0.0
      %5014 = vmatpush1.msra.mxu0 0.0
      %5015 = vmatprep.subr.mxu0 0.0
      %5016 = vmatpush1.msra.mxu0 0.0
      %5017 = vmatprep.subr.mxu0 0.0
      %5018 = vmatpush1.msra.mxu0 0.0
      %5019 = vmatprep.subr.mxu0 0.0
      %5020 = vmatpush1.msra.mxu0 0.0
      %5021 = vmatprep.subr.mxu0 0.0
      %5022 = vmatpush1.msra.mxu0 0.0
      %5023 = vmatprep.subr.mxu0 0.0
      %5024 = vmatpush1.msra.mxu0 0.0
      %5025 = vmatprep.subr.mxu0 0.0
      %5026 = vmatpush1.msra.mxu0 0.0
      %5027 = vmatprep.subr.mxu0 0.0
      %5028 = vmatpush1.msra.mxu0 0.0
      %5029 = vmatprep.subr.mxu0 0.0
      %5030 = vmatpush1.msra.mxu0 0.0
      %5031 = vmatprep.subr.mxu0 0.0
      %5032 = vmatpush1.msra.mxu0 0.0
      %5033 = vmatprep.subr.mxu0 0.0
      %5034 = vmatpush1.msra.mxu0 0.0
      %5035 = vmatprep.subr.mxu0 0.0
      %5036 = vmatpush1.msra.mxu0 0.0
      %5037 = vmatprep.mubr.f32.mxu0 0.0
      %5038 = vmatmul.mubr.f32.gmra.mrb[0].mxu0 %v4959
      %v5039 = vpop.f32.mrb[0].mxu0
      %v5040 = vadd.f32 0.0, %v5039
      %v5041 = vpop.f32.mrb[0].mxu0
      %5042 = vmatprep.mubr.f32.mxu0 0.0
      %5043 = vmatmul.mubr.f32.gmra.mrb[0].mxu0 %v4962
      %v5044 = vpop.f32.mrb[0].mxu0
      %v5045 = vadd.f32 0.0, %v5044
      %v5046 = vpop.f32.mrb[0].mxu0
      %5047 = vmatprep.mubr.f32.mxu0 0.0
      %5048 = vmatmul.mubr.f32.gmra.mrb[0].mxu0 %v4965
      %v5049 = vpop.f32.mrb[0].mxu0
      %v5050 = vadd.f32 0.0, %v5049
      %v5051 = vpop.f32.mrb[0].mxu0
      %5052 = vmatprep.mubr.f32.mxu0 0.0
      %5053 = vmatmul.mubr.f32.gmra.mrb[0].mxu0 %v4968
      %v5054 = vpop.f32.mrb[0].mxu0
      %v5055 = vadd.f32 0.0, %v5054
      %v5056 = vpop.f32.mrb[0].mxu0
      %5057 = vmatprep.mubr.f32.mxu0 0.0
      %5058 = vmatmul.mubr.f32.gmra.mrb[0].mxu0 %v4971
      %v5059 = vpop.f32.mrb[0].mxu0
      %v5060 = vadd.f32 0.0, %v5059
      %v5061 = vpop.f32.mrb[0].mxu0
      %5062 = vdwg.mxu0
      %5068 = vrot.lane.b32.xlu0 %v5040, 48
      %v5069 = vpop.permute.xlu0 %5068
      %5070 = vrot.lane.b32.xlu0 %v5045, 48
      %v5071 = vpop.permute.xlu0 %5070
      %5072 = vrot.lane.b32.xlu0 %v5050, 48
      %v5073 = vpop.permute.xlu0 %5072
      %5074 = vrot.lane.b32.xlu0 %v5055, 48
      %v5075 = vpop.permute.xlu0 %5074
      %5076 = vrot.lane.b32.xlu0 %v5060, 48
      %v5077 = vpop.permute.xlu0 %5076
      %v5083 = vadd.f32 %v4944, %v5069
      %v5084 = vadd.f32 %v4945, %v5071
      %v5085 = vadd.f32 %v4946, %v5073
      %v5086 = vadd.f32 %v4947, %v5075
      %v5087 = vadd.f32 %v4948, %v5077
      %v5088 = vld [vmem:[%s8] sm:$0x1]
      %v5090 = vlaneseq
      %v5091 = vshrl.u32 %v5090, 7
      %v5092 = vsub.s32 0, %v5091
      %v5093 = vrot.slane %v5088, %v5092
      %v5095 = vadd.f32 %v4623, %v5093
      %v5096 = vadd.f32 %v4628, %v5093
      %v5097 = vadd.f32 %v4633, %v5093
      %v5098 = vadd.f32 %v4638, %v5093
      %v5099 = vadd.f32 %v4643, %v5093
      %v5100 = vmax.f32 %v5095, 0.0
      %v5101 = vmax.f32 %v5096, 0.0
      %v5102 = vmax.f32 %v5097, 0.0
      %v5103 = vmax.f32 %v5098, 0.0
      %v5104 = vmax.f32 %v5099, 0.0
      %5105 = vrot.lane.b32.xlu0 %v5093, 16
      %v5106 = vpop.permute.xlu0 %5105
      %v5108 = vadd.f32 %v4780, %v5106
      %v5109 = vadd.f32 %v4781, %v5106
      %v5110 = vadd.f32 %v4782, %v5106
      %v5111 = vadd.f32 %v4783, %v5106
      %v5112 = vadd.f32 %v4784, %v5106
      %v5113 = vmax.f32 %v5108, 0.0
      %v5114 = vmax.f32 %v5109, 0.0
      %v5115 = vmax.f32 %v5110, 0.0
      %v5116 = vmax.f32 %v5111, 0.0
      %v5117 = vmax.f32 %v5112, 0.0
      %5118 = vrot.lane.b32.xlu0 %v5093, 32
      %v5119 = vpop.permute.xlu0 %5118
      %v5121 = vadd.f32 %v4939, %v5119
      %v5122 = vadd.f32 %v4940, %v5119
      %v5123 = vadd.f32 %v4941, %v5119
      %v5124 = vadd.f32 %v4942, %v5119
      %v5125 = vadd.f32 %v4943, %v5119
      %v5126 = vmax.f32 %v5121, 0.0
      %v5127 = vmax.f32 %v5122, 0.0
      %v5128 = vmax.f32 %v5123, 0.0
      %v5129 = vmax.f32 %v5124, 0.0
      %v5130 = vmax.f32 %v5125, 0.0
      %5131 = vrot.lane.b32.xlu0 %v5093, 48
      %v5132 = vpop.permute.xlu0 %5131
      %v5134 = vadd.f32 %v5083, %v5132
      %v5135 = vadd.f32 %v5084, %v5132
      %v5136 = vadd.f32 %v5085, %v5132
      %v5137 = vadd.f32 %v5086, %v5132
      %v5138 = vadd.f32 %v5087, %v5132
      %v5139 = vmax.f32 %v5134, 0.0
      %v5140 = vmax.f32 %v5135, 0.0
      %v5141 = vmax.f32 %v5136, 0.0
      %v5142 = vmax.f32 %v5137, 0.0
      %v5143 = vmax.f32 %v5138, 0.0
      %s5144 = scalar_lea.vmem [#allocation5], 288
      %5145 = vst.msk [vmem:[%s5144 + $0x5] sm:$0xf] %vm4417, %v5100
      %5146 = vst.msk [vmem:[%s5144 + $0xa] sm:$0xe0] %vm4419, %v5100
      %5147 = vst.msk [vmem:[%s5144 + $0x12] sm:$0x1] %vm4421, %v5101
      %5148 = vst.msk [vmem:[%s5144 + $0x17] sm:$0x3c] %vm4423, %v5101
      %5149 = vst.msk [vmem:[%s5144 + $0x1c] sm:$0x80] %vm4425, %v5101
      %5150 = vst.msk [vmem:[%s5144 + $0x24] sm:$0x7] %vm4427, %v5102
      %5151 = vst.msk [vmem:[%s5144 + $0x29] sm:$0xf0] %vm4429, %v5102
      %5152 = vst.msk [vmem:[%s5144 + $0x36] sm:$0x1e] %vm4431, %v5103
      %5153 = vst.msk [vmem:[%s5144 + $0x3b] sm:$0xc0] %vm4433, %v5103
      %5154 = vst.msk [vmem:[%s5144 + $0x43] sm:$0x3] %vm436, %v5104
      %5155 = vst.msk [vmem:[%s5144 + $0x48] sm:$0x78] %vm4436, %v5104
      %5157 = vrot.lane.b32.xlu0 %v5113, 112
      %v5158 = vpop.permute.xlu0 %5157
      %5160 = vst.msk [vmem:[#allocation5 + $0x6] sm:$0xf] %vm4417, %v5158
      %5162 = vrot.lane.b32.xlu0 %v5114, 112
      %v5163 = vpop.permute.xlu0 %5162
      %5165 = vst.msk [vmem:[#allocation5 + $0xb] sm:$0xe0] %vm4419, %v5158
      %5166 = vst.msk [vmem:[#allocation5 + $0x13] sm:$0x1] %vm4421, %v5163
      %5167 = vst.msk [vmem:[#allocation5 + $0x18] sm:$0x3c] %vm4423, %v5163
      %5169 = vrot.lane.b32.xlu0 %v5115, 112
      %v5170 = vpop.permute.xlu0 %5169
      %5172 = vst.msk [vmem:[#allocation5 + $0x1d] sm:$0x80] %vm4425, %v5163
      %5173 = vst.msk [vmem:[#allocation5 + $0x25] sm:$0x7] %vm4427, %v5170
      %5174 = vst.msk [vmem:[#allocation5 + $0x2a] sm:$0xf0] %vm4429, %v5170
      %5176 = vrot.lane.b32.xlu0 %v5116, 112
      %v5177 = vpop.permute.xlu0 %5176
      %5179 = vst.msk [vmem:[#allocation5 + $0x37] sm:$0x1e] %vm4431, %v5177
      %5181 = vrot.lane.b32.xlu0 %v5117, 112
      %v5182 = vpop.permute.xlu0 %5181
      %5184 = vst.msk [vmem:[#allocation5 + $0x3c] sm:$0xc0] %vm4433, %v5177
      %5185 = vst.msk [vmem:[#allocation5 + $0x44] sm:$0x3] %vm436, %v5182
      %5186 = vst.msk [vmem:[#allocation5 + $0x49] sm:$0x78] %vm4436, %v5182
      %5188 = vrot.lane.b32.xlu0 %v5126, 96
      %v5189 = vpop.permute.xlu0 %5188
      %5191 = vst.msk [vmem:[%s5144 + $0xa] sm:$0xf] %vm4417, %v5189
      %5193 = vrot.lane.b32.xlu0 %v5127, 96
      %v5194 = vpop.permute.xlu0 %5193
      %5196 = vst.msk [vmem:[%s5144 + $0xf] sm:$0xe0] %vm4419, %v5189
      %5197 = vst.msk [vmem:[%s5144 + $0x17] sm:$0x1] %vm4421, %v5194
      %5198 = vst.msk [vmem:[%s5144 + $0x1c] sm:$0x3c] %vm4423, %v5194
      %5200 = vrot.lane.b32.xlu0 %v5128, 96
      %v5201 = vpop.permute.xlu0 %5200
      %5203 = vst.msk [vmem:[%s5144 + $0x21] sm:$0x80] %vm4425, %v5194
      %5204 = vst.msk [vmem:[%s5144 + $0x29] sm:$0x7] %vm4427, %v5201
      %5205 = vst.msk [vmem:[%s5144 + $0x2e] sm:$0xf0] %vm4429, %v5201
      %5207 = vrot.lane.b32.xlu0 %v5129, 96
      %v5208 = vpop.permute.xlu0 %5207
      %5210 = vst.msk [vmem:[%s5144 + $0x3b] sm:$0x1e] %vm4431, %v5208
      %5212 = vrot.lane.b32.xlu0 %v5130, 96
      %v5213 = vpop.permute.xlu0 %5212
      %5215 = vst.msk [vmem:[%s5144 + $0x40] sm:$0xc0] %vm4433, %v5208
      %5216 = vst.msk [vmem:[%s5144 + $0x48] sm:$0x3] %vm436, %v5213
      %5217 = vst.msk [vmem:[%s5144 + $0x4d] sm:$0x78] %vm4436, %v5213
      %5219 = vrot.lane.b32.xlu0 %v5139, 80
      %v5220 = vpop.permute.xlu0 %5219
      %5222 = vst.msk [vmem:[#allocation5 + $0xb] sm:$0xf] %vm4417, %v5220
      %5224 = vrot.lane.b32.xlu0 %v5140, 80
      %v5225 = vpop.permute.xlu0 %5224
      %5227 = vst.msk [vmem:[#allocation5 + $0x10] sm:$0xe0] %vm4419, %v5220
      %5228 = vst.msk [vmem:[#allocation5 + $0x18] sm:$0x1] %vm4421, %v5225
      %5229 = vst.msk [vmem:[#allocation5 + $0x1d] sm:$0x3c] %vm4423, %v5225
      %5231 = vrot.lane.b32.xlu0 %v5141, 80
      %v5232 = vpop.permute.xlu0 %5231
      %5234 = vst.msk [vmem:[#allocation5 + $0x22] sm:$0x80] %vm4425, %v5225
      %5235 = vst.msk [vmem:[#allocation5 + $0x2a] sm:$0x7] %vm4427, %v5232
      %5236 = vst.msk [vmem:[#allocation5 + $0x2f] sm:$0xf0] %vm4429, %v5232
      %5238 = vrot.lane.b32.xlu0 %v5142, 80
      %v5239 = vpop.permute.xlu0 %5238
      %5241 = vst.msk [vmem:[#allocation5 + $0x3c] sm:$0x1e] %vm4431, %v5239
      %5243 = vrot.lane.b32.xlu0 %v5143, 80
      %v5244 = vpop.permute.xlu0 %5243
      %5246 = vst.msk [vmem:[#allocation5 + $0x41] sm:$0xc0] %vm4433, %v5239
      %5247 = vst.msk [vmem:[#allocation5 + $0x49] sm:$0x3] %vm436, %v5244
      %5248 = vst.msk [vmem:[#allocation5 + $0x4e] sm:$0x78] %vm4436, %v5244
      %v5249 = vld [vmem:[#allocation5] sm:$0xff]
      %v5250 = vld [vmem:[#allocation5 + $0x8] sm:$0xff]
      %v5251 = vld [vmem:[#allocation5 + $0x10] sm:$0xff]
      %v5252 = vld [vmem:[#allocation5 + $0x18] sm:$0xff]
      %v5253 = vld [vmem:[#allocation5 + $0x20] sm:$0xff]
      %v5254 = vld [vmem:[#allocation5 + $0x28] sm:$0xff]
      %v5255 = vld [vmem:[#allocation5 + $0x30] sm:$0xff]
      %v5256 = vld [vmem:[#allocation5 + $0x38] sm:$0xff]
      %v5257 = vld [vmem:[#allocation5 + $0x40] sm:$0xff]
      %v5258 = vld [vmem:[#allocation5 + $0x48] sm:$0x7f]
      %v5259 = vld [vmem:[%s9] sm:$0x1]
      %v5261 = vlaneseq
      %v5262 = vshrl.u32 %v5261, 7
      %v5263 = vsub.s32 0, %v5262
      %v5264 = vrot.slane %v5259, %v5263
      %v5266 = vmul.f32 %v5249, %v5264
      %v5267 = vmul.f32 %v5250, %v5264
      %v5268 = vmul.f32 %v5251, %v5264
      %v5269 = vmul.f32 %v5252, %v5264
      %v5270 = vmul.f32 %v5253, %v5264
      %v5271 = vmul.f32 %v5254, %v5264
      %v5272 = vmul.f32 %v5255, %v5264
      %v5273 = vmul.f32 %v5256, %v5264
      %v5274 = vmul.f32 %v5257, %v5264
      %v5275 = vmul.f32 %v5258, %v5264
      %v5276 = vadd.f32 %v5266, 0.0
      %v5277 = vadd.f32 %v5267, 0.0
      %v5278 = vadd.f32 %v5268, 0.0
      %v5279 = vadd.f32 %v5269, 0.0
      %v5280 = vadd.f32 %v5270, 0.0
      %v5281 = vadd.f32 %v5271, 0.0
      %v5282 = vadd.f32 %v5272, 0.0
      %v5283 = vadd.f32 %v5273, 0.0
      %v5284 = vadd.f32 %v5274, 0.0
      %v5285 = vadd.f32 %v5275, 0.0
      %v5286 = vld [vmem:[%s4416] sm:$0xff]
      %v5287 = vld [vmem:[%s4416 + $0x8] sm:$0xff]
      %v5288 = vld [vmem:[%s4416 + $0x10] sm:$0xff]
      %v5289 = vld [vmem:[%s4416 + $0x18] sm:$0xff]
      %v5290 = vld [vmem:[%s4416 + $0x20] sm:$0xff]
      %v5291 = vld [vmem:[%s4416 + $0x28] sm:$0xff]
      %v5292 = vld [vmem:[%s4416 + $0x30] sm:$0xff]
      %v5293 = vld [vmem:[%s4416 + $0x38] sm:$0xff]
      %v5294 = vld [vmem:[%s4416 + $0x40] sm:$0xff]
      %v5295 = vld [vmem:[%s4416 + $0x48] sm:$0x7f]
      %s5296 = scalar_lea.vmem %s9, 1
      %v5297 = vld [vmem:[%s5296] sm:$0x1]
      %v5299 = vlaneseq
      %v5300 = vshrl.u32 %v5299, 7
      %v5301 = vsub.s32 0, %v5300
      %v5302 = vrot.slane %v5297, %v5301
      %v5304 = vmul.f32 %v5286, %v5302
      %v5305 = vmul.f32 %v5287, %v5302
      %v5306 = vmul.f32 %v5288, %v5302
      %v5307 = vmul.f32 %v5289, %v5302
      %v5308 = vmul.f32 %v5290, %v5302
      %v5309 = vmul.f32 %v5291, %v5302
      %v5310 = vmul.f32 %v5292, %v5302
      %v5311 = vmul.f32 %v5293, %v5302
      %v5312 = vmul.f32 %v5294, %v5302
      %v5313 = vmul.f32 %v5295, %v5302
      %v5314 = vadd.f32 %v5276, %v5304
      %v5315 = vadd.f32 %v5277, %v5305
      %v5316 = vadd.f32 %v5278, %v5306
      %v5317 = vadd.f32 %v5279, %v5307
      %v5318 = vadd.f32 %v5280, %v5308
      %v5319 = vadd.f32 %v5281, %v5309
      %v5320 = vadd.f32 %v5282, %v5310
      %v5321 = vadd.f32 %v5283, %v5311
      %v5322 = vadd.f32 %v5284, %v5312
      %v5323 = vadd.f32 %v5285, %v5313
      %v5324 = vld [vmem:[%s4442] sm:$0xff]
      %v5325 = vld [vmem:[%s4442 + $0x8] sm:$0xff]
      %v5326 = vld [vmem:[%s4442 + $0x10] sm:$0xff]
      %v5327 = vld [vmem:[%s4442 + $0x18] sm:$0xff]
      %v5328 = vld [vmem:[%s4442 + $0x20] sm:$0xff]
      %v5329 = vld [vmem:[%s4442 + $0x28] sm:$0xff]
      %v5330 = vld [vmem:[%s4442 + $0x30] sm:$0xff]
      %v5331 = vld [vmem:[%s4442 + $0x38] sm:$0xff]
      %v5332 = vld [vmem:[%s4442 + $0x40] sm:$0xff]
      %v5333 = vld [vmem:[%s4442 + $0x48] sm:$0x7f]
      %s5334 = scalar_lea.vmem %s9, 2
      %v5335 = vld [vmem:[%s5334] sm:$0x1]
      %v5337 = vlaneseq
      %v5338 = vshrl.u32 %v5337, 7
      %v5339 = vsub.s32 0, %v5338
      %v5340 = vrot.slane %v5335, %v5339
      %v5342 = vmul.f32 %v5324, %v5340
      %v5343 = vmul.f32 %v5325, %v5340
      %v5344 = vmul.f32 %v5326, %v5340
      %v5345 = vmul.f32 %v5327, %v5340
      %v5346 = vmul.f32 %v5328, %v5340
      %v5347 = vmul.f32 %v5329, %v5340
      %v5348 = vmul.f32 %v5330, %v5340
      %v5349 = vmul.f32 %v5331, %v5340
      %v5350 = vmul.f32 %v5332, %v5340
      %v5351 = vmul.f32 %v5333, %v5340
      %v5352 = vadd.f32 %v5314, %v5342
      %v5353 = vadd.f32 %v5315, %v5343
      %v5354 = vadd.f32 %v5316, %v5344
      %v5355 = vadd.f32 %v5317, %v5345
      %v5356 = vadd.f32 %v5318, %v5346
      %v5357 = vadd.f32 %v5319, %v5347
      %v5358 = vadd.f32 %v5320, %v5348
      %v5359 = vadd.f32 %v5321, %v5349
      %v5360 = vadd.f32 %v5322, %v5350
      %v5361 = vadd.f32 %v5323, %v5351
      %v5362 = vld [vmem:[#allocation5 + $0x5] sm:$0xff]
      %v5363 = vld [vmem:[#allocation5 + $0xd] sm:$0xff]
      %v5364 = vld [vmem:[#allocation5 + $0x15] sm:$0xff]
      %v5365 = vld [vmem:[#allocation5 + $0x1d] sm:$0xff]
      %v5366 = vld [vmem:[#allocation5 + $0x25] sm:$0xff]
      %v5367 = vld [vmem:[#allocation5 + $0x2d] sm:$0xff]
      %v5368 = vld [vmem:[#allocation5 + $0x35] sm:$0xff]
      %v5369 = vld [vmem:[#allocation5 + $0x3d] sm:$0xff]
      %v5370 = vld [vmem:[#allocation5 + $0x45] sm:$0xff]
      %v5371 = vld [vmem:[#allocation5 + $0x4d] sm:$0x7f]
      %s5372 = scalar_lea.vmem %s9, 3
      %v5373 = vld [vmem:[%s5372] sm:$0x1]
      %v5375 = vlaneseq
      %v5376 = vshrl.u32 %v5375, 7
      %v5377 = vsub.s32 0, %v5376
      %v5378 = vrot.slane %v5373, %v5377
      %v5380 = vmul.f32 %v5362, %v5378
      %v5381 = vmul.f32 %v5363, %v5378
      %v5382 = vmul.f32 %v5364, %v5378
      %v5383 = vmul.f32 %v5365, %v5378
      %v5384 = vmul.f32 %v5366, %v5378
      %v5385 = vmul.f32 %v5367, %v5378
      %v5386 = vmul.f32 %v5368, %v5378
      %v5387 = vmul.f32 %v5369, %v5378
      %v5388 = vmul.f32 %v5370, %v5378
      %v5389 = vmul.f32 %v5371, %v5378
      %v5390 = vadd.f32 %v5352, %v5380
      %v5391 = vadd.f32 %v5353, %v5381
      %v5392 = vadd.f32 %v5354, %v5382
      %v5393 = vadd.f32 %v5355, %v5383
      %v5394 = vadd.f32 %v5356, %v5384
      %v5395 = vadd.f32 %v5357, %v5385
      %v5396 = vadd.f32 %v5358, %v5386
      %v5397 = vadd.f32 %v5359, %v5387
      %v5398 = vadd.f32 %v5360, %v5388
      %v5399 = vadd.f32 %v5361, %v5389
      %v5400 = vld [vmem:[%s4416 + $0x5] sm:$0xff]
      %v5401 = vld [vmem:[%s4416 + $0xd] sm:$0xff]
      %v5402 = vld [vmem:[%s4416 + $0x15] sm:$0xff]
      %v5403 = vld [vmem:[%s4416 + $0x1d] sm:$0xff]
      %v5404 = vld [vmem:[%s4416 + $0x25] sm:$0xff]
      %v5405 = vld [vmem:[%s4416 + $0x2d] sm:$0xff]
      %v5406 = vld [vmem:[%s4416 + $0x35] sm:$0xff]
      %v5407 = vld [vmem:[%s4416 + $0x3d] sm:$0xff]
      %v5408 = vld [vmem:[%s4416 + $0x45] sm:$0xff]
      %v5409 = vld [vmem:[%s4416 + $0x4d] sm:$0x7f]
      %s5410 = scalar_lea.vmem %s9, 4
      %v5411 = vld [vmem:[%s5410] sm:$0x1]
      %v5413 = vlaneseq
      %v5414 = vshrl.u32 %v5413, 7
      %v5415 = vsub.s32 0, %v5414
      %v5416 = vrot.slane %v5411, %v5415
      %v5418 = vmul.f32 %v5400, %v5416
      %v5419 = vmul.f32 %v5401, %v5416
      %v5420 = vmul.f32 %v5402, %v5416
      %v5421 = vmul.f32 %v5403, %v5416
      %v5422 = vmul.f32 %v5404, %v5416
      %v5423 = vmul.f32 %v5405, %v5416
      %v5424 = vmul.f32 %v5406, %v5416
      %v5425 = vmul.f32 %v5407, %v5416
      %v5426 = vmul.f32 %v5408, %v5416
      %v5427 = vmul.f32 %v5409, %v5416
      %v5428 = vadd.f32 %v5390, %v5418
      %v5429 = vadd.f32 %v5391, %v5419
      %v5430 = vadd.f32 %v5392, %v5420
      %v5431 = vadd.f32 %v5393, %v5421
      %v5432 = vadd.f32 %v5394, %v5422
      %v5433 = vadd.f32 %v5395, %v5423
      %v5434 = vadd.f32 %v5396, %v5424
      %v5435 = vadd.f32 %v5397, %v5425
      %v5436 = vadd.f32 %v5398, %v5426
      %v5437 = vadd.f32 %v5399, %v5427
      %v5438 = vld [vmem:[%s4442 + $0x5] sm:$0xff]
      %v5439 = vld [vmem:[%s4442 + $0xd] sm:$0xff]
      %v5440 = vld [vmem:[%s4442 + $0x15] sm:$0xff]
      %v5441 = vld [vmem:[%s4442 + $0x1d] sm:$0xff]
      %v5442 = vld [vmem:[%s4442 + $0x25] sm:$0xff]
      %v5443 = vld [vmem:[%s4442 + $0x2d] sm:$0xff]
      %v5444 = vld [vmem:[%s4442 + $0x35] sm:$0xff]
      %v5445 = vld [vmem:[%s4442 + $0x3d] sm:$0xff]
      %v5446 = vld [vmem:[%s4442 + $0x45] sm:$0xff]
      %v5447 = vld [vmem:[%s4442 + $0x4d] sm:$0x7f]
      %s5448 = scalar_lea.vmem %s9, 5
      %v5449 = vld [vmem:[%s5448] sm:$0x1]
      %v5451 = vlaneseq
      %v5452 = vshrl.u32 %v5451, 7
      %v5453 = vsub.s32 0, %v5452
      %v5454 = vrot.slane %v5449, %v5453
      %v5456 = vmul.f32 %v5438, %v5454
      %v5457 = vmul.f32 %v5439, %v5454
      %v5458 = vmul.f32 %v5440, %v5454
      %v5459 = vmul.f32 %v5441, %v5454
      %v5460 = vmul.f32 %v5442, %v5454
      %v5461 = vmul.f32 %v5443, %v5454
      %v5462 = vmul.f32 %v5444, %v5454
      %v5463 = vmul.f32 %v5445, %v5454
      %v5464 = vmul.f32 %v5446, %v5454
      %v5465 = vmul.f32 %v5447, %v5454
      %v5466 = vadd.f32 %v5428, %v5456
      %v5467 = vadd.f32 %v5429, %v5457
      %v5468 = vadd.f32 %v5430, %v5458
      %v5469 = vadd.f32 %v5431, %v5459
      %v5470 = vadd.f32 %v5432, %v5460
      %v5471 = vadd.f32 %v5433, %v5461
      %v5472 = vadd.f32 %v5434, %v5462
      %v5473 = vadd.f32 %v5435, %v5463
      %v5474 = vadd.f32 %v5436, %v5464
      %v5475 = vadd.f32 %v5437, %v5465
      %v5476 = vld [vmem:[#allocation5 + $0xa] sm:$0xff]
      %v5477 = vld [vmem:[#allocation5 + $0x12] sm:$0xff]
      %v5478 = vld [vmem:[#allocation5 + $0x1a] sm:$0xff]
      %v5479 = vld [vmem:[#allocation5 + $0x22] sm:$0xff]
      %v5480 = vld [vmem:[#allocation5 + $0x2a] sm:$0xff]
      %v5481 = vld [vmem:[#allocation5 + $0x32] sm:$0xff]
      %v5482 = vld [vmem:[#allocation5 + $0x3a] sm:$0xff]
      %v5483 = vld [vmem:[#allocation5 + $0x42] sm:$0xff]
      %v5484 = vld [vmem:[#allocation5 + $0x4a] sm:$0xff]
      %v5485 = vld [vmem:[#allocation5 + $0x52] sm:$0x7f]
      %s5486 = scalar_lea.vmem %s9, 6
      %v5487 = vld [vmem:[%s5486] sm:$0x1]
      %v5489 = vlaneseq
      %v5490 = vshrl.u32 %v5489, 7
      %v5491 = vsub.s32 0, %v5490
      %v5492 = vrot.slane %v5487, %v5491
      %v5494 = vmul.f32 %v5476, %v5492
      %v5495 = vmul.f32 %v5477, %v5492
      %v5496 = vmul.f32 %v5478, %v5492
      %v5497 = vmul.f32 %v5479, %v5492
      %v5498 = vmul.f32 %v5480, %v5492
      %v5499 = vmul.f32 %v5481, %v5492
      %v5500 = vmul.f32 %v5482, %v5492
      %v5501 = vmul.f32 %v5483, %v5492
      %v5502 = vmul.f32 %v5484, %v5492
      %v5503 = vmul.f32 %v5485, %v5492
      %v5504 = vadd.f32 %v5466, %v5494
      %v5505 = vadd.f32 %v5467, %v5495
      %v5506 = vadd.f32 %v5468, %v5496
      %v5507 = vadd.f32 %v5469, %v5497
      %v5508 = vadd.f32 %v5470, %v5498
      %v5509 = vadd.f32 %v5471, %v5499
      %v5510 = vadd.f32 %v5472, %v5500
      %v5511 = vadd.f32 %v5473, %v5501
      %v5512 = vadd.f32 %v5474, %v5502
      %v5513 = vadd.f32 %v5475, %v5503
      %v5514 = vld [vmem:[%s4416 + $0xa] sm:$0xff]
      %v5515 = vld [vmem:[%s4416 + $0x12] sm:$0xff]
      %v5516 = vld [vmem:[%s4416 + $0x1a] sm:$0xff]
      %v5517 = vld [vmem:[%s4416 + $0x22] sm:$0xff]
      %v5518 = vld [vmem:[%s4416 + $0x2a] sm:$0xff]
      %v5519 = vld [vmem:[%s4416 + $0x32] sm:$0xff]
      %v5520 = vld [vmem:[%s4416 + $0x3a] sm:$0xff]
      %v5521 = vld [vmem:[%s4416 + $0x42] sm:$0xff]
      %v5522 = vld [vmem:[%s4416 + $0x4a] sm:$0xff]
      %v5523 = vld [vmem:[%s4416 + $0x52] sm:$0x7f]
      %s5524 = scalar_lea.vmem %s9, 7
      %v5525 = vld [vmem:[%s5524] sm:$0x1]
      %v5527 = vlaneseq
      %v5528 = vshrl.u32 %v5527, 7
      %v5529 = vsub.s32 0, %v5528
      %v5530 = vrot.slane %v5525, %v5529
      %v5532 = vmul.f32 %v5514, %v5530
      %v5533 = vmul.f32 %v5515, %v5530
      %v5534 = vmul.f32 %v5516, %v5530
      %v5535 = vmul.f32 %v5517, %v5530
      %v5536 = vmul.f32 %v5518, %v5530
      %v5537 = vmul.f32 %v5519, %v5530
      %v5538 = vmul.f32 %v5520, %v5530
      %v5539 = vmul.f32 %v5521, %v5530
      %v5540 = vmul.f32 %v5522, %v5530
      %v5541 = vmul.f32 %v5523, %v5530
      %v5542 = vadd.f32 %v5504, %v5532
      %v5543 = vadd.f32 %v5505, %v5533
      %v5544 = vadd.f32 %v5506, %v5534
      %v5545 = vadd.f32 %v5507, %v5535
      %v5546 = vadd.f32 %v5508, %v5536
      %v5547 = vadd.f32 %v5509, %v5537
      %v5548 = vadd.f32 %v5510, %v5538
      %v5549 = vadd.f32 %v5511, %v5539
      %v5550 = vadd.f32 %v5512, %v5540
      %v5551 = vadd.f32 %v5513, %v5541
      %v5552 = vld [vmem:[%s4442 + $0xa] sm:$0xff]
      %v5553 = vld [vmem:[%s4442 + $0x12] sm:$0xff]
      %v5554 = vld [vmem:[%s4442 + $0x1a] sm:$0xff]
      %v5555 = vld [vmem:[%s4442 + $0x22] sm:$0xff]
      %v5556 = vld [vmem:[%s4442 + $0x2a] sm:$0xff]
      %v5557 = vld [vmem:[%s4442 + $0x32] sm:$0xff]
      %v5558 = vld [vmem:[%s4442 + $0x3a] sm:$0xff]
      %v5559 = vld [vmem:[%s4442 + $0x42] sm:$0xff]
      %v5560 = vld [vmem:[%s4442 + $0x4a] sm:$0xff]
      %v5561 = vld [vmem:[%s4442 + $0x52] sm:$0x7f]
      %s5562 = scalar_lea.vmem %s9, 8
      %v5563 = vld [vmem:[%s5562] sm:$0x1]
      %v5565 = vlaneseq
      %v5566 = vshrl.u32 %v5565, 7
      %v5567 = vsub.s32 0, %v5566
      %v5568 = vrot.slane %v5563, %v5567
      %v5570 = vmul.f32 %v5552, %v5568
      %v5571 = vmul.f32 %v5553, %v5568
      %v5572 = vmul.f32 %v5554, %v5568
      %v5573 = vmul.f32 %v5555, %v5568
      %v5574 = vmul.f32 %v5556, %v5568
      %v5575 = vmul.f32 %v5557, %v5568
      %v5576 = vmul.f32 %v5558, %v5568
      %v5577 = vmul.f32 %v5559, %v5568
      %v5578 = vmul.f32 %v5560, %v5568
      %v5579 = vmul.f32 %v5561, %v5568
      %v5580 = vadd.f32 %v5542, %v5570
      %v5581 = vadd.f32 %v5543, %v5571
      %v5582 = vadd.f32 %v5544, %v5572
      %v5583 = vadd.f32 %v5545, %v5573
      %v5584 = vadd.f32 %v5546, %v5574
      %v5585 = vadd.f32 %v5547, %v5575
      %v5586 = vadd.f32 %v5548, %v5576
      %v5587 = vadd.f32 %v5549, %v5577
      %v5588 = vadd.f32 %v5550, %v5578
      %v5589 = vadd.f32 %v5551, %v5579
      %v5590 = vsel %vm424, %v5580, 0.0
      %5591 = vadd.xlane.f32.xlu0 %v5590
      %v5592 = vpop.xlane.xlu0 %5591
      %v5593 = vsel %vm424, %v5581, 0.0
      %5594 = vadd.xlane.f32.xlu0 %v5593
      %v5595 = vpop.xlane.xlu0 %5594
      %v5596 = vsel %vm424, %v5582, 0.0
      %5597 = vadd.xlane.f32.xlu0 %v5596
      %v5598 = vpop.xlane.xlu0 %5597
      %v5599 = vsel %vm424, %v5583, 0.0
      %5600 = vadd.xlane.f32.xlu0 %v5599
      %v5601 = vpop.xlane.xlu0 %5600
      %v5602 = vsel %vm424, %v5584, 0.0
      %5603 = vadd.xlane.f32.xlu0 %v5602
      %v5604 = vpop.xlane.xlu0 %5603
      %v5605 = vsel %vm424, %v5585, 0.0
      %5606 = vadd.xlane.f32.xlu0 %v5605
      %v5607 = vpop.xlane.xlu0 %5606
      %v5608 = vsel %vm424, %v5586, 0.0
      %5609 = vadd.xlane.f32.xlu0 %v5608
      %v5610 = vpop.xlane.xlu0 %5609
      %v5611 = vsel %vm424, %v5587, 0.0
      %5612 = vadd.xlane.f32.xlu0 %v5611
      %v5613 = vpop.xlane.xlu0 %5612
      %v5614 = vsel %vm424, %v5588, 0.0
      %5615 = vadd.xlane.f32.xlu0 %v5614
      %v5616 = vpop.xlane.xlu0 %5615
      %vm5617 = vcmask 129024
      %v5618 = vsel %vm5617, %v5589, 0.0
      %5619 = vadd.xlane.f32.xlu0 %v5618
      %v5620 = vpop.xlane.xlu0 %5619
      %v5621 = vld [vmem:[#allocation6] sm:$0x1]
      %v5623 = vlaneseq
      %v5624 = vshrl.u32 %v5623, 7
      %v5625 = vsub.s32 0, %v5624
      %v5626 = vrot.slane %v5621, %v5625
      %v5628 = vadd.f32 %v5592, %v5626
      %v5629 = vadd.f32 %v5595, %v5626
      %v5630 = vadd.f32 %v5598, %v5626
      %v5631 = vadd.f32 %v5601, %v5626
      %v5632 = vadd.f32 %v5604, %v5626
      %v5633 = vadd.f32 %v5607, %v5626
      %v5634 = vadd.f32 %v5610, %v5626
      %v5635 = vadd.f32 %v5613, %v5626
      %v5636 = vadd.f32 %v5616, %v5626
      %v5637 = vadd.f32 %v5620, %v5626
      %v5638 = vmax.f32 %v5628, 0.0
      %v5639 = vmax.f32 %v5629, 0.0
      %v5640 = vmax.f32 %v5630, 0.0
      %v5641 = vmax.f32 %v5631, 0.0
      %v5642 = vmax.f32 %v5632, 0.0
      %v5643 = vmax.f32 %v5633, 0.0
      %v5644 = vmax.f32 %v5634, 0.0
      %v5645 = vmax.f32 %v5635, 0.0
      %v5646 = vmax.f32 %v5636, 0.0
      %v5647 = vmax.f32 %v5637, 0.0
      %v5648 = vmul.f32 %v5286, %v5264
      %v5649 = vmul.f32 %v5287, %v5264
      %v5650 = vmul.f32 %v5288, %v5264
      %v5651 = vmul.f32 %v5289, %v5264
      %v5652 = vmul.f32 %v5290, %v5264
      %v5653 = vmul.f32 %v5291, %v5264
      %v5654 = vmul.f32 %v5292, %v5264
      %v5655 = vmul.f32 %v5293, %v5264
      %v5656 = vmul.f32 %v5294, %v5264
      %v5657 = vmul.f32 %v5295, %v5264
      %v5658 = vadd.f32 %v5648, 0.0
      %v5659 = vadd.f32 %v5649, 0.0
      %v5660 = vadd.f32 %v5650, 0.0
      %v5661 = vadd.f32 %v5651, 0.0
      %v5662 = vadd.f32 %v5652, 0.0
      %v5663 = vadd.f32 %v5653, 0.0
      %v5664 = vadd.f32 %v5654, 0.0
      %v5665 = vadd.f32 %v5655, 0.0
      %v5666 = vadd.f32 %v5656, 0.0
      %v5667 = vadd.f32 %v5657, 0.0
      %v5668 = vmul.f32 %v5324, %v5302
      %v5669 = vmul.f32 %v5325, %v5302
      %v5670 = vmul.f32 %v5326, %v5302
      %v5671 = vmul.f32 %v5327, %v5302
      %v5672 = vmul.f32 %v5328, %v5302
      %v5673 = vmul.f32 %v5329, %v5302
      %v5674 = vmul.f32 %v5330, %v5302
      %v5675 = vmul.f32 %v5331, %v5302
      %v5676 = vmul.f32 %v5332, %v5302
      %v5677 = vmul.f32 %v5333, %v5302
      %v5678 = vadd.f32 %v5658, %v5668
      %v5679 = vadd.f32 %v5659, %v5669
      %v5680 = vadd.f32 %v5660, %v5670
      %v5681 = vadd.f32 %v5661, %v5671
      %v5682 = vadd.f32 %v5662, %v5672
      %v5683 = vadd.f32 %v5663, %v5673
      %v5684 = vadd.f32 %v5664, %v5674
      %v5685 = vadd.f32 %v5665, %v5675
      %v5686 = vadd.f32 %v5666, %v5676
      %v5687 = vadd.f32 %v5667, %v5677
      %v5688 = vld [vmem:[%s5144] sm:$0xff]
      %v5689 = vld [vmem:[%s5144 + $0x8] sm:$0xff]
      %v5690 = vld [vmem:[%s5144 + $0x10] sm:$0xff]
      %v5691 = vld [vmem:[%s5144 + $0x18] sm:$0xff]
      %v5692 = vld [vmem:[%s5144 + $0x20] sm:$0xff]
      %v5693 = vld [vmem:[%s5144 + $0x28] sm:$0xff]
      %v5694 = vld [vmem:[%s5144 + $0x30] sm:$0xff]
      %v5695 = vld [vmem:[%s5144 + $0x38] sm:$0xff]
      %v5696 = vld [vmem:[%s5144 + $0x40] sm:$0xff]
      %v5697 = vld [vmem:[%s5144 + $0x48] sm:$0x7f]
      %v5698 = vmul.f32 %v5688, %v5340
      %v5699 = vmul.f32 %v5689, %v5340
      %v5700 = vmul.f32 %v5690, %v5340
      %v5701 = vmul.f32 %v5691, %v5340
      %v5702 = vmul.f32 %v5692, %v5340
      %v5703 = vmul.f32 %v5693, %v5340
      %v5704 = vmul.f32 %v5694, %v5340
      %v5705 = vmul.f32 %v5695, %v5340
      %v5706 = vmul.f32 %v5696, %v5340
      %v5707 = vmul.f32 %v5697, %v5340
      %v5708 = vadd.f32 %v5678, %v5698
      %v5709 = vadd.f32 %v5679, %v5699
      %v5710 = vadd.f32 %v5680, %v5700
      %v5711 = vadd.f32 %v5681, %v5701
      %v5712 = vadd.f32 %v5682, %v5702
      %v5713 = vadd.f32 %v5683, %v5703
      %v5714 = vadd.f32 %v5684, %v5704
      %v5715 = vadd.f32 %v5685, %v5705
      %v5716 = vadd.f32 %v5686, %v5706
      %v5717 = vadd.f32 %v5687, %v5707
      %v5718 = vmul.f32 %v5400, %v5378
      %v5719 = vmul.f32 %v5401, %v5378
      %v5720 = vmul.f32 %v5402, %v5378
      %v5721 = vmul.f32 %v5403, %v5378
      %v5722 = vmul.f32 %v5404, %v5378
      %v5723 = vmul.f32 %v5405, %v5378
      %v5724 = vmul.f32 %v5406, %v5378
      %v5725 = vmul.f32 %v5407, %v5378
      %v5726 = vmul.f32 %v5408, %v5378
      %v5727 = vmul.f32 %v5409, %v5378
      %v5728 = vadd.f32 %v5708, %v5718
      %v5729 = vadd.f32 %v5709, %v5719
      %v5730 = vadd.f32 %v5710, %v5720
      %v5731 = vadd.f32 %v5711, %v5721
      %v5732 = vadd.f32 %v5712, %v5722
      %v5733 = vadd.f32 %v5713, %v5723
      %v5734 = vadd.f32 %v5714, %v5724
      %v5735 = vadd.f32 %v5715, %v5725
      %v5736 = vadd.f32 %v5716, %v5726
      %v5737 = vadd.f32 %v5717, %v5727
      %v5738 = vmul.f32 %v5438, %v5416
      %v5739 = vmul.f32 %v5439, %v5416
      %v5740 = vmul.f32 %v5440, %v5416
      %v5741 = vmul.f32 %v5441, %v5416
      %v5742 = vmul.f32 %v5442, %v5416
      %v5743 = vmul.f32 %v5443, %v5416
      %v5744 = vmul.f32 %v5444, %v5416
      %v5745 = vmul.f32 %v5445, %v5416
      %v5746 = vmul.f32 %v5446, %v5416
      %v5747 = vmul.f32 %v5447, %v5416
      %v5748 = vadd.f32 %v5728, %v5738
      %v5749 = vadd.f32 %v5729, %v5739
      %v5750 = vadd.f32 %v5730, %v5740
      %v5751 = vadd.f32 %v5731, %v5741
      %v5752 = vadd.f32 %v5732, %v5742
      %v5753 = vadd.f32 %v5733, %v5743
      %v5754 = vadd.f32 %v5734, %v5744
      %v5755 = vadd.f32 %v5735, %v5745
      %v5756 = vadd.f32 %v5736, %v5746
      %v5757 = vadd.f32 %v5737, %v5747
      %v5758 = vld [vmem:[%s5144 + $0x5] sm:$0xff]
      %v5759 = vld [vmem:[%s5144 + $0xd] sm:$0xff]
      %v5760 = vld [vmem:[%s5144 + $0x15] sm:$0xff]
      %v5761 = vld [vmem:[%s5144 + $0x1d] sm:$0xff]
      %v5762 = vld [vmem:[%s5144 + $0x25] sm:$0xff]
      %v5763 = vld [vmem:[%s5144 + $0x2d] sm:$0xff]
      %v5764 = vld [vmem:[%s5144 + $0x35] sm:$0xff]
      %v5765 = vld [vmem:[%s5144 + $0x3d] sm:$0xff]
      %v5766 = vld [vmem:[%s5144 + $0x45] sm:$0xff]
      %v5767 = vld [vmem:[%s5144 + $0x4d] sm:$0x7f]
      %v5768 = vmul.f32 %v5758, %v5454
      %v5769 = vmul.f32 %v5759, %v5454
      %v5770 = vmul.f32 %v5760, %v5454
      %v5771 = vmul.f32 %v5761, %v5454
      %v5772 = vmul.f32 %v5762, %v5454
      %v5773 = vmul.f32 %v5763, %v5454
      %v5774 = vmul.f32 %v5764, %v5454
      %v5775 = vmul.f32 %v5765, %v5454
      %v5776 = vmul.f32 %v5766, %v5454
      %v5777 = vmul.f32 %v5767, %v5454
      %v5778 = vadd.f32 %v5748, %v5768
      %v5779 = vadd.f32 %v5749, %v5769
      %v5780 = vadd.f32 %v5750, %v5770
      %v5781 = vadd.f32 %v5751, %v5771
      %v5782 = vadd.f32 %v5752, %v5772
      %v5783 = vadd.f32 %v5753, %v5773
      %v5784 = vadd.f32 %v5754, %v5774
      %v5785 = vadd.f32 %v5755, %v5775
      %v5786 = vadd.f32 %v5756, %v5776
      %v5787 = vadd.f32 %v5757, %v5777
      %v5788 = vmul.f32 %v5514, %v5492
      %v5789 = vmul.f32 %v5515, %v5492
      %v5790 = vmul.f32 %v5516, %v5492
      %v5791 = vmul.f32 %v5517, %v5492
      %v5792 = vmul.f32 %v5518, %v5492
      %v5793 = vmul.f32 %v5519, %v5492
      %v5794 = vmul.f32 %v5520, %v5492
      %v5795 = vmul.f32 %v5521, %v5492
      %v5796 = vmul.f32 %v5522, %v5492
      %v5797 = vmul.f32 %v5523, %v5492
      %v5798 = vadd.f32 %v5778, %v5788
      %v5799 = vadd.f32 %v5779, %v5789
      %v5800 = vadd.f32 %v5780, %v5790
      %v5801 = vadd.f32 %v5781, %v5791
      %v5802 = vadd.f32 %v5782, %v5792
      %v5803 = vadd.f32 %v5783, %v5793
      %v5804 = vadd.f32 %v5784, %v5794
      %v5805 = vadd.f32 %v5785, %v5795
      %v5806 = vadd.f32 %v5786, %v5796
      %v5807 = vadd.f32 %v5787, %v5797
      %v5808 = vmul.f32 %v5552, %v5530
      %v5809 = vmul.f32 %v5553, %v5530
      %v5810 = vmul.f32 %v5554, %v5530
      %v5811 = vmul.f32 %v5555, %v5530
      %v5812 = vmul.f32 %v5556, %v5530
      %v5813 = vmul.f32 %v5557, %v5530
      %v5814 = vmul.f32 %v5558, %v5530
      %v5815 = vmul.f32 %v5559, %v5530
      %v5816 = vmul.f32 %v5560, %v5530
      %v5817 = vmul.f32 %v5561, %v5530
      %v5818 = vadd.f32 %v5798, %v5808
      %v5819 = vadd.f32 %v5799, %v5809
      %v5820 = vadd.f32 %v5800, %v5810
      %v5821 = vadd.f32 %v5801, %v5811
      %v5822 = vadd.f32 %v5802, %v5812
      %v5823 = vadd.f32 %v5803, %v5813
      %v5824 = vadd.f32 %v5804, %v5814
      %v5825 = vadd.f32 %v5805, %v5815
      %v5826 = vadd.f32 %v5806, %v5816
      %v5827 = vadd.f32 %v5807, %v5817
      %v5828 = vld [vmem:[%s5144 + $0xa] sm:$0xff]
      %v5829 = vld [vmem:[%s5144 + $0x12] sm:$0xff]
      %v5830 = vld [vmem:[%s5144 + $0x1a] sm:$0xff]
      %v5831 = vld [vmem:[%s5144 + $0x22] sm:$0xff]
      %v5832 = vld [vmem:[%s5144 + $0x2a] sm:$0xff]
      %v5833 = vld [vmem:[%s5144 + $0x32] sm:$0xff]
      %v5834 = vld [vmem:[%s5144 + $0x3a] sm:$0xff]
      %v5835 = vld [vmem:[%s5144 + $0x42] sm:$0xff]
      %v5836 = vld [vmem:[%s5144 + $0x4a] sm:$0xff]
      %v5837 = vld [vmem:[%s5144 + $0x52] sm:$0x7f]
      %v5838 = vmul.f32 %v5828, %v5568
      %v5839 = vmul.f32 %v5829, %v5568
      %v5840 = vmul.f32 %v5830, %v5568
      %v5841 = vmul.f32 %v5831, %v5568
      %v5842 = vmul.f32 %v5832, %v5568
      %v5843 = vmul.f32 %v5833, %v5568
      %v5844 = vmul.f32 %v5834, %v5568
      %v5845 = vmul.f32 %v5835, %v5568
      %v5846 = vmul.f32 %v5836, %v5568
      %v5847 = vmul.f32 %v5837, %v5568
      %v5848 = vadd.f32 %v5818, %v5838
      %v5849 = vadd.f32 %v5819, %v5839
      %v5850 = vadd.f32 %v5820, %v5840
      %v5851 = vadd.f32 %v5821, %v5841
      %v5852 = vadd.f32 %v5822, %v5842
      %v5853 = vadd.f32 %v5823, %v5843
      %v5854 = vadd.f32 %v5824, %v5844
      %v5855 = vadd.f32 %v5825, %v5845
      %v5856 = vadd.f32 %v5826, %v5846
      %v5857 = vadd.f32 %v5827, %v5847
      %v5858 = vsel %vm424, %v5848, 0.0
      %5859 = vadd.xlane.f32.xlu0 %v5858
      %v5860 = vpop.xlane.xlu0 %5859
      %v5861 = vsel %vm424, %v5849, 0.0
      %5862 = vadd.xlane.f32.xlu0 %v5861
      %v5863 = vpop.xlane.xlu0 %5862
      %v5864 = vsel %vm424, %v5850, 0.0
      %5865 = vadd.xlane.f32.xlu0 %v5864
      %v5866 = vpop.xlane.xlu0 %5865
      %v5867 = vsel %vm424, %v5851, 0.0
      %5868 = vadd.xlane.f32.xlu0 %v5867
      %v5869 = vpop.xlane.xlu0 %5868
      %v5870 = vsel %vm424, %v5852, 0.0
      %5871 = vadd.xlane.f32.xlu0 %v5870
      %v5872 = vpop.xlane.xlu0 %5871
      %v5873 = vsel %vm424, %v5853, 0.0
      %5874 = vadd.xlane.f32.xlu0 %v5873
      %v5875 = vpop.xlane.xlu0 %5874
      %v5876 = vsel %vm424, %v5854, 0.0
      %5877 = vadd.xlane.f32.xlu0 %v5876
      %v5878 = vpop.xlane.xlu0 %5877
      %v5879 = vsel %vm424, %v5855, 0.0
      %5880 = vadd.xlane.f32.xlu0 %v5879
      %v5881 = vpop.xlane.xlu0 %5880
      %v5882 = vsel %vm424, %v5856, 0.0
      %5883 = vadd.xlane.f32.xlu0 %v5882
      %v5884 = vpop.xlane.xlu0 %5883
      %v5885 = vsel %vm5617, %v5857, 0.0
      %5886 = vadd.xlane.f32.xlu0 %v5885
      %v5887 = vpop.xlane.xlu0 %5886
      %v5888 = vadd.f32 %v5860, %v5626
      %v5889 = vadd.f32 %v5863, %v5626
      %v5890 = vadd.f32 %v5866, %v5626
      %v5891 = vadd.f32 %v5869, %v5626
      %v5892 = vadd.f32 %v5872, %v5626
      %v5893 = vadd.f32 %v5875, %v5626
      %v5894 = vadd.f32 %v5878, %v5626
      %v5895 = vadd.f32 %v5881, %v5626
      %v5896 = vadd.f32 %v5884, %v5626
      %v5897 = vadd.f32 %v5887, %v5626
      %v5898 = vmax.f32 %v5888, 0.0
      %v5899 = vmax.f32 %v5889, 0.0
      %v5900 = vmax.f32 %v5890, 0.0
      %v5901 = vmax.f32 %v5891, 0.0
      %v5902 = vmax.f32 %v5892, 0.0
      %v5903 = vmax.f32 %v5893, 0.0
      %v5904 = vmax.f32 %v5894, 0.0
      %v5905 = vmax.f32 %v5895, 0.0
      %v5906 = vmax.f32 %v5896, 0.0
      %v5907 = vmax.f32 %v5897, 0.0
      %v5908 = vmul.f32 %v5324, %v5264
      %v5909 = vmul.f32 %v5325, %v5264
      %v5910 = vmul.f32 %v5326, %v5264
      %v5911 = vmul.f32 %v5327, %v5264
      %v5912 = vmul.f32 %v5328, %v5264
      %v5913 = vmul.f32 %v5329, %v5264
      %v5914 = vmul.f32 %v5330, %v5264
      %v5915 = vmul.f32 %v5331, %v5264
      %v5916 = vmul.f32 %v5332, %v5264
      %v5917 = vmul.f32 %v5333, %v5264
      %v5918 = vadd.f32 %v5908, 0.0
      %v5919 = vadd.f32 %v5909, 0.0
      %v5920 = vadd.f32 %v5910, 0.0
      %v5921 = vadd.f32 %v5911, 0.0
      %v5922 = vadd.f32 %v5912, 0.0
      %v5923 = vadd.f32 %v5913, 0.0
      %v5924 = vadd.f32 %v5914, 0.0
      %v5925 = vadd.f32 %v5915, 0.0
      %v5926 = vadd.f32 %v5916, 0.0
      %v5927 = vadd.f32 %v5917, 0.0
      %v5928 = vmul.f32 %v5688, %v5302
      %v5929 = vmul.f32 %v5689, %v5302
      %v5930 = vmul.f32 %v5690, %v5302
      %v5931 = vmul.f32 %v5691, %v5302
      %v5932 = vmul.f32 %v5692, %v5302
      %v5933 = vmul.f32 %v5693, %v5302
      %v5934 = vmul.f32 %v5694, %v5302
      %v5935 = vmul.f32 %v5695, %v5302
      %v5936 = vmul.f32 %v5696, %v5302
      %v5937 = vmul.f32 %v5697, %v5302
      %v5938 = vadd.f32 %v5918, %v5928
      %v5939 = vadd.f32 %v5919, %v5929
      %v5940 = vadd.f32 %v5920, %v5930
      %v5941 = vadd.f32 %v5921, %v5931
      %v5942 = vadd.f32 %v5922, %v5932
      %v5943 = vadd.f32 %v5923, %v5933
      %v5944 = vadd.f32 %v5924, %v5934
      %v5945 = vadd.f32 %v5925, %v5935
      %v5946 = vadd.f32 %v5926, %v5936
      %v5947 = vadd.f32 %v5927, %v5937
      %v5948 = vld [vmem:[#allocation5 + $0x1] sm:$0xff]
      %v5949 = vld [vmem:[#allocation5 + $0x9] sm:$0xff]
      %v5950 = vld [vmem:[#allocation5 + $0x11] sm:$0xff]
      %v5951 = vld [vmem:[#allocation5 + $0x19] sm:$0xff]
      %v5952 = vld [vmem:[#allocation5 + $0x21] sm:$0xff]
      %v5953 = vld [vmem:[#allocation5 + $0x29] sm:$0xff]
      %v5954 = vld [vmem:[#allocation5 + $0x31] sm:$0xff]
      %v5955 = vld [vmem:[#allocation5 + $0x39] sm:$0xff]
      %v5956 = vld [vmem:[#allocation5 + $0x41] sm:$0xff]
      %v5957 = vld [vmem:[#allocation5 + $0x49] sm:$0x7f]
      %v5958 = vmul.f32 %v5948, %v5340
      %v5959 = vmul.f32 %v5949, %v5340
      %v5960 = vmul.f32 %v5950, %v5340
      %v5961 = vmul.f32 %v5951, %v5340
      %v5962 = vmul.f32 %v5952, %v5340
      %v5963 = vmul.f32 %v5953, %v5340
      %v5964 = vmul.f32 %v5954, %v5340
      %v5965 = vmul.f32 %v5955, %v5340
      %v5966 = vmul.f32 %v5956, %v5340
      %v5967 = vmul.f32 %v5957, %v5340
      %v5968 = vadd.f32 %v5938, %v5958
      %v5969 = vadd.f32 %v5939, %v5959
      %v5970 = vadd.f32 %v5940, %v5960
      %v5971 = vadd.f32 %v5941, %v5961
      %v5972 = vadd.f32 %v5942, %v5962
      %v5973 = vadd.f32 %v5943, %v5963
      %v5974 = vadd.f32 %v5944, %v5964
      %v5975 = vadd.f32 %v5945, %v5965
      %v5976 = vadd.f32 %v5946, %v5966
      %v5977 = vadd.f32 %v5947, %v5967
      %v5978 = vmul.f32 %v5438, %v5378
      %v5979 = vmul.f32 %v5439, %v5378
      %v5980 = vmul.f32 %v5440, %v5378
      %v5981 = vmul.f32 %v5441, %v5378
      %v5982 = vmul.f32 %v5442, %v5378
      %v5983 = vmul.f32 %v5443, %v5378
      %v5984 = vmul.f32 %v5444, %v5378
      %v5985 = vmul.f32 %v5445, %v5378
      %v5986 = vmul.f32 %v5446, %v5378
      %v5987 = vmul.f32 %v5447, %v5378
      %v5988 = vadd.f32 %v5968, %v5978
      %v5989 = vadd.f32 %v5969, %v5979
      %v5990 = vadd.f32 %v5970, %v5980
      %v5991 = vadd.f32 %v5971, %v5981
      %v5992 = vadd.f32 %v5972, %v5982
      %v5993 = vadd.f32 %v5973, %v5983
      %v5994 = vadd.f32 %v5974, %v5984
      %v5995 = vadd.f32 %v5975, %v5985
      %v5996 = vadd.f32 %v5976, %v5986
      %v5997 = vadd.f32 %v5977, %v5987
      %v5998 = vmul.f32 %v5758, %v5416
      %v5999 = vmul.f32 %v5759, %v5416
      %v6000 = vmul.f32 %v5760, %v5416
      %v6001 = vmul.f32 %v5761, %v5416
      %v6002 = vmul.f32 %v5762, %v5416
      %v6003 = vmul.f32 %v5763, %v5416
      %v6004 = vmul.f32 %v5764, %v5416
      %v6005 = vmul.f32 %v5765, %v5416
      %v6006 = vmul.f32 %v5766, %v5416
      %v6007 = vmul.f32 %v5767, %v5416
      %v6008 = vadd.f32 %v5988, %v5998
      %v6009 = vadd.f32 %v5989, %v5999
      %v6010 = vadd.f32 %v5990, %v6000
      %v6011 = vadd.f32 %v5991, %v6001
      %v6012 = vadd.f32 %v5992, %v6002
      %v6013 = vadd.f32 %v5993, %v6003
      %v6014 = vadd.f32 %v5994, %v6004
      %v6015 = vadd.f32 %v5995, %v6005
      %v6016 = vadd.f32 %v5996, %v6006
      %v6017 = vadd.f32 %v5997, %v6007
      %v6018 = vld [vmem:[#allocation5 + $0x6] sm:$0xff]
      %v6019 = vld [vmem:[#allocation5 + $0xe] sm:$0xff]
      %v6020 = vld [vmem:[#allocation5 + $0x16] sm:$0xff]
      %v6021 = vld [vmem:[#allocation5 + $0x1e] sm:$0xff]
      %v6022 = vld [vmem:[#allocation5 + $0x26] sm:$0xff]
      %v6023 = vld [vmem:[#allocation5 + $0x2e] sm:$0xff]
      %v6024 = vld [vmem:[#allocation5 + $0x36] sm:$0xff]
      %v6025 = vld [vmem:[#allocation5 + $0x3e] sm:$0xff]
      %v6026 = vld [vmem:[#allocation5 + $0x46] sm:$0xff]
      %v6027 = vld [vmem:[#allocation5 + $0x4e] sm:$0x7f]
      %v6028 = vmul.f32 %v6018, %v5454
      %v6029 = vmul.f32 %v6019, %v5454
      %v6030 = vmul.f32 %v6020, %v5454
      %v6031 = vmul.f32 %v6021, %v5454
      %v6032 = vmul.f32 %v6022, %v5454
      %v6033 = vmul.f32 %v6023, %v5454
      %v6034 = vmul.f32 %v6024, %v5454
      %v6035 = vmul.f32 %v6025, %v5454
      %v6036 = vmul.f32 %v6026, %v5454
      %v6037 = vmul.f32 %v6027, %v5454
      %v6038 = vadd.f32 %v6008, %v6028
      %v6039 = vadd.f32 %v6009, %v6029
      %v6040 = vadd.f32 %v6010, %v6030
      %v6041 = vadd.f32 %v6011, %v6031
      %v6042 = vadd.f32 %v6012, %v6032
      %v6043 = vadd.f32 %v6013, %v6033
      %v6044 = vadd.f32 %v6014, %v6034
      %v6045 = vadd.f32 %v6015, %v6035
      %v6046 = vadd.f32 %v6016, %v6036
      %v6047 = vadd.f32 %v6017, %v6037
      %v6048 = vmul.f32 %v5552, %v5492
      %v6049 = vmul.f32 %v5553, %v5492
      %v6050 = vmul.f32 %v5554, %v5492
      %v6051 = vmul.f32 %v5555, %v5492
      %v6052 = vmul.f32 %v5556, %v5492
      %v6053 = vmul.f32 %v5557, %v5492
      %v6054 = vmul.f32 %v5558, %v5492
      %v6055 = vmul.f32 %v5559, %v5492
      %v6056 = vmul.f32 %v5560, %v5492
      %v6057 = vmul.f32 %v5561, %v5492
      %v6058 = vadd.f32 %v6038, %v6048
      %v6059 = vadd.f32 %v6039, %v6049
      %v6060 = vadd.f32 %v6040, %v6050
      %v6061 = vadd.f32 %v6041, %v6051
      %v6062 = vadd.f32 %v6042, %v6052
      %v6063 = vadd.f32 %v6043, %v6053
      %v6064 = vadd.f32 %v6044, %v6054
      %v6065 = vadd.f32 %v6045, %v6055
      %v6066 = vadd.f32 %v6046, %v6056
      %v6067 = vadd.f32 %v6047, %v6057
      %v6068 = vmul.f32 %v5828, %v5530
      %v6069 = vmul.f32 %v5829, %v5530
      %v6070 = vmul.f32 %v5830, %v5530
      %v6071 = vmul.f32 %v5831, %v5530
      %v6072 = vmul.f32 %v5832, %v5530
      %v6073 = vmul.f32 %v5833, %v5530
      %v6074 = vmul.f32 %v5834, %v5530
      %v6075 = vmul.f32 %v5835, %v5530
      %v6076 = vmul.f32 %v5836, %v5530
      %v6077 = vmul.f32 %v5837, %v5530
      %v6078 = vadd.f32 %v6058, %v6068
      %v6079 = vadd.f32 %v6059, %v6069
      %v6080 = vadd.f32 %v6060, %v6070
      %v6081 = vadd.f32 %v6061, %v6071
      %v6082 = vadd.f32 %v6062, %v6072
      %v6083 = vadd.f32 %v6063, %v6073
      %v6084 = vadd.f32 %v6064, %v6074
      %v6085 = vadd.f32 %v6065, %v6075
      %v6086 = vadd.f32 %v6066, %v6076
      %v6087 = vadd.f32 %v6067, %v6077
      %v6088 = vld [vmem:[#allocation5 + $0xb] sm:$0xff]
      %v6089 = vld [vmem:[#allocation5 + $0x13] sm:$0xff]
      %v6090 = vld [vmem:[#allocation5 + $0x1b] sm:$0xff]
      %v6091 = vld [vmem:[#allocation5 + $0x23] sm:$0xff]
      %v6092 = vld [vmem:[#allocation5 + $0x2b] sm:$0xff]
      %v6093 = vld [vmem:[#allocation5 + $0x33] sm:$0xff]
      %v6094 = vld [vmem:[#allocation5 + $0x3b] sm:$0xff]
      %v6095 = vld [vmem:[#allocation5 + $0x43] sm:$0xff]
      %v6096 = vld [vmem:[#allocation5 + $0x4b] sm:$0xff]
      %v6097 = vld [vmem:[#allocation5 + $0x53] sm:$0x7f]
      %v6098 = vmul.f32 %v6088, %v5568
      %v6099 = vmul.f32 %v6089, %v5568
      %v6100 = vmul.f32 %v6090, %v5568
      %v6101 = vmul.f32 %v6091, %v5568
      %v6102 = vmul.f32 %v6092, %v5568
      %v6103 = vmul.f32 %v6093, %v5568
      %v6104 = vmul.f32 %v6094, %v5568
      %v6105 = vmul.f32 %v6095, %v5568
      %v6106 = vmul.f32 %v6096, %v5568
      %v6107 = vmul.f32 %v6097, %v5568
      %v6108 = vadd.f32 %v6078, %v6098
      %v6109 = vadd.f32 %v6079, %v6099
      %v6110 = vadd.f32 %v6080, %v6100
      %v6111 = vadd.f32 %v6081, %v6101
      %v6112 = vadd.f32 %v6082, %v6102
      %v6113 = vadd.f32 %v6083, %v6103
      %v6114 = vadd.f32 %v6084, %v6104
      %v6115 = vadd.f32 %v6085, %v6105
      %v6116 = vadd.f32 %v6086, %v6106
      %v6117 = vadd.f32 %v6087, %v6107
      %v6118 = vsel %vm424, %v6108, 0.0
      %6119 = vadd.xlane.f32.xlu0 %v6118
      %v6120 = vpop.xlane.xlu0 %6119
      %v6121 = vsel %vm424, %v6109, 0.0
      %6122 = vadd.xlane.f32.xlu0 %v6121
      %v6123 = vpop.xlane.xlu0 %6122
      %v6124 = vsel %vm424, %v6110, 0.0
      %6125 = vadd.xlane.f32.xlu0 %v6124
      %v6126 = vpop.xlane.xlu0 %6125
      %v6127 = vsel %vm424, %v6111, 0.0
      %6128 = vadd.xlane.f32.xlu0 %v6127
      %v6129 = vpop.xlane.xlu0 %6128
      %v6130 = vsel %vm424, %v6112, 0.0
      %6131 = vadd.xlane.f32.xlu0 %v6130
      %v6132 = vpop.xlane.xlu0 %6131
      %v6133 = vsel %vm424, %v6113, 0.0
      %6134 = vadd.xlane.f32.xlu0 %v6133
      %v6135 = vpop.xlane.xlu0 %6134
      %v6136 = vsel %vm424, %v6114, 0.0
      %6137 = vadd.xlane.f32.xlu0 %v6136
      %v6138 = vpop.xlane.xlu0 %6137
      %v6139 = vsel %vm424, %v6115, 0.0
      %6140 = vadd.xlane.f32.xlu0 %v6139
      %v6141 = vpop.xlane.xlu0 %6140
      %v6142 = vsel %vm424, %v6116, 0.0
      %6143 = vadd.xlane.f32.xlu0 %v6142
      %v6144 = vpop.xlane.xlu0 %6143
      %v6145 = vsel %vm5617, %v6117, 0.0
      %6146 = vadd.xlane.f32.xlu0 %v6145
      %v6147 = vpop.xlane.xlu0 %6146
      %v6148 = vadd.f32 %v6120, %v5626
      %v6149 = vadd.f32 %v6123, %v5626
      %v6150 = vadd.f32 %v6126, %v5626
      %v6151 = vadd.f32 %v6129, %v5626
      %v6152 = vadd.f32 %v6132, %v5626
      %v6153 = vadd.f32 %v6135, %v5626
      %v6154 = vadd.f32 %v6138, %v5626
      %v6155 = vadd.f32 %v6141, %v5626
      %v6156 = vadd.f32 %v6144, %v5626
      %v6157 = vadd.f32 %v6147, %v5626
      %v6158 = vmax.f32 %v6148, 0.0
      %v6159 = vmax.f32 %v6149, 0.0
      %v6160 = vmax.f32 %v6150, 0.0
      %v6161 = vmax.f32 %v6151, 0.0
      %v6162 = vmax.f32 %v6152, 0.0
      %v6163 = vmax.f32 %v6153, 0.0
      %v6164 = vmax.f32 %v6154, 0.0
      %v6165 = vmax.f32 %v6155, 0.0
      %v6166 = vmax.f32 %v6156, 0.0
      %v6167 = vmax.f32 %v6157, 0.0
      %v6168 = vmul.f32 %v5688, %v5264
      %v6169 = vmul.f32 %v5689, %v5264
      %v6170 = vmul.f32 %v5690, %v5264
      %v6171 = vmul.f32 %v5691, %v5264
      %v6172 = vmul.f32 %v5692, %v5264
      %v6173 = vmul.f32 %v5693, %v5264
      %v6174 = vmul.f32 %v5694, %v5264
      %v6175 = vmul.f32 %v5695, %v5264
      %v6176 = vmul.f32 %v5696, %v5264
      %v6177 = vmul.f32 %v5697, %v5264
      %v6178 = vadd.f32 %v6168, 0.0
      %v6179 = vadd.f32 %v6169, 0.0
      %v6180 = vadd.f32 %v6170, 0.0
      %v6181 = vadd.f32 %v6171, 0.0
      %v6182 = vadd.f32 %v6172, 0.0
      %v6183 = vadd.f32 %v6173, 0.0
      %v6184 = vadd.f32 %v6174, 0.0
      %v6185 = vadd.f32 %v6175, 0.0
      %v6186 = vadd.f32 %v6176, 0.0
      %v6187 = vadd.f32 %v6177, 0.0
      %v6188 = vmul.f32 %v5948, %v5302
      %v6189 = vmul.f32 %v5949, %v5302
      %v6190 = vmul.f32 %v5950, %v5302
      %v6191 = vmul.f32 %v5951, %v5302
      %v6192 = vmul.f32 %v5952, %v5302
      %v6193 = vmul.f32 %v5953, %v5302
      %v6194 = vmul.f32 %v5954, %v5302
      %v6195 = vmul.f32 %v5955, %v5302
      %v6196 = vmul.f32 %v5956, %v5302
      %v6197 = vmul.f32 %v5957, %v5302
      %v6198 = vadd.f32 %v6178, %v6188
      %v6199 = vadd.f32 %v6179, %v6189
      %v6200 = vadd.f32 %v6180, %v6190
      %v6201 = vadd.f32 %v6181, %v6191
      %v6202 = vadd.f32 %v6182, %v6192
      %v6203 = vadd.f32 %v6183, %v6193
      %v6204 = vadd.f32 %v6184, %v6194
      %v6205 = vadd.f32 %v6185, %v6195
      %v6206 = vadd.f32 %v6186, %v6196
      %v6207 = vadd.f32 %v6187, %v6197
      %v6208 = vld [vmem:[%s4416 + $0x1] sm:$0xff]
      %v6209 = vld [vmem:[%s4416 + $0x9] sm:$0xff]
      %v6210 = vld [vmem:[%s4416 + $0x11] sm:$0xff]
      %v6211 = vld [vmem:[%s4416 + $0x19] sm:$0xff]
      %v6212 = vld [vmem:[%s4416 + $0x21] sm:$0xff]
      %v6213 = vld [vmem:[%s4416 + $0x29] sm:$0xff]
      %v6214 = vld [vmem:[%s4416 + $0x31] sm:$0xff]
      %v6215 = vld [vmem:[%s4416 + $0x39] sm:$0xff]
      %v6216 = vld [vmem:[%s4416 + $0x41] sm:$0xff]
      %v6217 = vld [vmem:[%s4416 + $0x49] sm:$0x7f]
      %v6218 = vmul.f32 %v6208, %v5340
      %v6219 = vmul.f32 %v6209, %v5340
      %v6220 = vmul.f32 %v6210, %v5340
      %v6221 = vmul.f32 %v6211, %v5340
      %v6222 = vmul.f32 %v6212, %v5340
      %v6223 = vmul.f32 %v6213, %v5340
      %v6224 = vmul.f32 %v6214, %v5340
      %v6225 = vmul.f32 %v6215, %v5340
      %v6226 = vmul.f32 %v6216, %v5340
      %v6227 = vmul.f32 %v6217, %v5340
      %v6228 = vadd.f32 %v6198, %v6218
      %v6229 = vadd.f32 %v6199, %v6219
      %v6230 = vadd.f32 %v6200, %v6220
      %v6231 = vadd.f32 %v6201, %v6221
      %v6232 = vadd.f32 %v6202, %v6222
      %v6233 = vadd.f32 %v6203, %v6223
      %v6234 = vadd.f32 %v6204, %v6224
      %v6235 = vadd.f32 %v6205, %v6225
      %v6236 = vadd.f32 %v6206, %v6226
      %v6237 = vadd.f32 %v6207, %v6227
      %v6238 = vmul.f32 %v5758, %v5378
      %v6239 = vmul.f32 %v5759, %v5378
      %v6240 = vmul.f32 %v5760, %v5378
      %v6241 = vmul.f32 %v5761, %v5378
      %v6242 = vmul.f32 %v5762, %v5378
      %v6243 = vmul.f32 %v5763, %v5378
      %v6244 = vmul.f32 %v5764, %v5378
      %v6245 = vmul.f32 %v5765, %v5378
      %v6246 = vmul.f32 %v5766, %v5378
      %v6247 = vmul.f32 %v5767, %v5378
      %v6248 = vadd.f32 %v6228, %v6238
      %v6249 = vadd.f32 %v6229, %v6239
      %v6250 = vadd.f32 %v6230, %v6240
      %v6251 = vadd.f32 %v6231, %v6241
      %v6252 = vadd.f32 %v6232, %v6242
      %v6253 = vadd.f32 %v6233, %v6243
      %v6254 = vadd.f32 %v6234, %v6244
      %v6255 = vadd.f32 %v6235, %v6245
      %v6256 = vadd.f32 %v6236, %v6246
      %v6257 = vadd.f32 %v6237, %v6247
      %v6258 = vmul.f32 %v6018, %v5416
      %v6259 = vmul.f32 %v6019, %v5416
      %v6260 = vmul.f32 %v6020, %v5416
      %v6261 = vmul.f32 %v6021, %v5416
      %v6262 = vmul.f32 %v6022, %v5416
      %v6263 = vmul.f32 %v6023, %v5416
      %v6264 = vmul.f32 %v6024, %v5416
      %v6265 = vmul.f32 %v6025, %v5416
      %v6266 = vmul.f32 %v6026, %v5416
      %v6267 = vmul.f32 %v6027, %v5416
      %v6268 = vadd.f32 %v6248, %v6258
      %v6269 = vadd.f32 %v6249, %v6259
      %v6270 = vadd.f32 %v6250, %v6260
      %v6271 = vadd.f32 %v6251, %v6261
      %v6272 = vadd.f32 %v6252, %v6262
      %v6273 = vadd.f32 %v6253, %v6263
      %v6274 = vadd.f32 %v6254, %v6264
      %v6275 = vadd.f32 %v6255, %v6265
      %v6276 = vadd.f32 %v6256, %v6266
      %v6277 = vadd.f32 %v6257, %v6267
      %v6278 = vld [vmem:[%s4416 + $0x6] sm:$0xff]
      %v6279 = vld [vmem:[%s4416 + $0xe] sm:$0xff]
      %v6280 = vld [vmem:[%s4416 + $0x16] sm:$0xff]
      %v6281 = vld [vmem:[%s4416 + $0x1e] sm:$0xff]
      %v6282 = vld [vmem:[%s4416 + $0x26] sm:$0xff]
      %v6283 = vld [vmem:[%s4416 + $0x2e] sm:$0xff]
      %v6284 = vld [vmem:[%s4416 + $0x36] sm:$0xff]
      %v6285 = vld [vmem:[%s4416 + $0x3e] sm:$0xff]
      %v6286 = vld [vmem:[%s4416 + $0x46] sm:$0xff]
      %v6287 = vld [vmem:[%s4416 + $0x4e] sm:$0x7f]
      %v6288 = vmul.f32 %v6278, %v5454
      %v6289 = vmul.f32 %v6279, %v5454
      %v6290 = vmul.f32 %v6280, %v5454
      %v6291 = vmul.f32 %v6281, %v5454
      %v6292 = vmul.f32 %v6282, %v5454
      %v6293 = vmul.f32 %v6283, %v5454
      %v6294 = vmul.f32 %v6284, %v5454
      %v6295 = vmul.f32 %v6285, %v5454
      %v6296 = vmul.f32 %v6286, %v5454
      %v6297 = vmul.f32 %v6287, %v5454
      %v6298 = vadd.f32 %v6268, %v6288
      %v6299 = vadd.f32 %v6269, %v6289
      %v6300 = vadd.f32 %v6270, %v6290
      %v6301 = vadd.f32 %v6271, %v6291
      %v6302 = vadd.f32 %v6272, %v6292
      %v6303 = vadd.f32 %v6273, %v6293
      %v6304 = vadd.f32 %v6274, %v6294
      %v6305 = vadd.f32 %v6275, %v6295
      %v6306 = vadd.f32 %v6276, %v6296
      %v6307 = vadd.f32 %v6277, %v6297
      %v6308 = vmul.f32 %v5828, %v5492
      %v6309 = vmul.f32 %v5829, %v5492
      %v6310 = vmul.f32 %v5830, %v5492
      %v6311 = vmul.f32 %v5831, %v5492
      %v6312 = vmul.f32 %v5832, %v5492
      %v6313 = vmul.f32 %v5833, %v5492
      %v6314 = vmul.f32 %v5834, %v5492
      %v6315 = vmul.f32 %v5835, %v5492
      %v6316 = vmul.f32 %v5836, %v5492
      %v6317 = vmul.f32 %v5837, %v5492
      %v6318 = vadd.f32 %v6298, %v6308
      %v6319 = vadd.f32 %v6299, %v6309
      %v6320 = vadd.f32 %v6300, %v6310
      %v6321 = vadd.f32 %v6301, %v6311
      %v6322 = vadd.f32 %v6302, %v6312
      %v6323 = vadd.f32 %v6303, %v6313
      %v6324 = vadd.f32 %v6304, %v6314
      %v6325 = vadd.f32 %v6305, %v6315
      %v6326 = vadd.f32 %v6306, %v6316
      %v6327 = vadd.f32 %v6307, %v6317
      %v6328 = vmul.f32 %v6088, %v5530
      %v6329 = vmul.f32 %v6089, %v5530
      %v6330 = vmul.f32 %v6090, %v5530
      %v6331 = vmul.f32 %v6091, %v5530
      %v6332 = vmul.f32 %v6092, %v5530
      %v6333 = vmul.f32 %v6093, %v5530
      %v6334 = vmul.f32 %v6094, %v5530
      %v6335 = vmul.f32 %v6095, %v5530
      %v6336 = vmul.f32 %v6096, %v5530
      %v6337 = vmul.f32 %v6097, %v5530
      %v6338 = vadd.f32 %v6318, %v6328
      %v6339 = vadd.f32 %v6319, %v6329
      %v6340 = vadd.f32 %v6320, %v6330
      %v6341 = vadd.f32 %v6321, %v6331
      %v6342 = vadd.f32 %v6322, %v6332
      %v6343 = vadd.f32 %v6323, %v6333
      %v6344 = vadd.f32 %v6324, %v6334
      %v6345 = vadd.f32 %v6325, %v6335
      %v6346 = vadd.f32 %v6326, %v6336
      %v6347 = vadd.f32 %v6327, %v6337
      %v6348 = vld [vmem:[%s4416 + $0xb] sm:$0xff]
      %v6349 = vld [vmem:[%s4416 + $0x13] sm:$0xff]
      %v6350 = vld [vmem:[%s4416 + $0x1b] sm:$0xff]
      %v6351 = vld [vmem:[%s4416 + $0x23] sm:$0xff]
      %v6352 = vld [vmem:[%s4416 + $0x2b] sm:$0xff]
      %v6353 = vld [vmem:[%s4416 + $0x33] sm:$0xff]
      %v6354 = vld [vmem:[%s4416 + $0x3b] sm:$0xff]
      %v6355 = vld [vmem:[%s4416 + $0x43] sm:$0xff]
      %v6356 = vld [vmem:[%s4416 + $0x4b] sm:$0xff]
      %v6357 = vld [vmem:[%s4416 + $0x53] sm:$0x7f]
      %v6358 = vmul.f32 %v6348, %v5568
      %v6359 = vmul.f32 %v6349, %v5568
      %v6360 = vmul.f32 %v6350, %v5568
      %v6361 = vmul.f32 %v6351, %v5568
      %v6362 = vmul.f32 %v6352, %v5568
      %v6363 = vmul.f32 %v6353, %v5568
      %v6364 = vmul.f32 %v6354, %v5568
      %v6365 = vmul.f32 %v6355, %v5568
      %v6366 = vmul.f32 %v6356, %v5568
      %v6367 = vmul.f32 %v6357, %v5568
      %v6368 = vadd.f32 %v6338, %v6358
      %v6369 = vadd.f32 %v6339, %v6359
      %v6370 = vadd.f32 %v6340, %v6360
      %v6371 = vadd.f32 %v6341, %v6361
      %v6372 = vadd.f32 %v6342, %v6362
      %v6373 = vadd.f32 %v6343, %v6363
      %v6374 = vadd.f32 %v6344, %v6364
      %v6375 = vadd.f32 %v6345, %v6365
      %v6376 = vadd.f32 %v6346, %v6366
      %v6377 = vadd.f32 %v6347, %v6367
      %v6378 = vsel %vm424, %v6368, 0.0
      %6379 = vadd.xlane.f32.xlu0 %v6378
      %v6380 = vpop.xlane.xlu0 %6379
      %v6381 = vsel %vm424, %v6369, 0.0
      %6382 = vadd.xlane.f32.xlu0 %v6381
      %v6383 = vpop.xlane.xlu0 %6382
      %v6384 = vsel %vm424, %v6370, 0.0
      %6385 = vadd.xlane.f32.xlu0 %v6384
      %v6386 = vpop.xlane.xlu0 %6385
      %v6387 = vsel %vm424, %v6371, 0.0
      %6388 = vadd.xlane.f32.xlu0 %v6387
      %v6389 = vpop.xlane.xlu0 %6388
      %v6390 = vsel %vm424, %v6372, 0.0
      %6391 = vadd.xlane.f32.xlu0 %v6390
      %v6392 = vpop.xlane.xlu0 %6391
      %v6393 = vsel %vm424, %v6373, 0.0
      %6394 = vadd.xlane.f32.xlu0 %v6393
      %v6395 = vpop.xlane.xlu0 %6394
      %v6396 = vsel %vm424, %v6374, 0.0
      %6397 = vadd.xlane.f32.xlu0 %v6396
      %v6398 = vpop.xlane.xlu0 %6397
      %v6399 = vsel %vm424, %v6375, 0.0
      %6400 = vadd.xlane.f32.xlu0 %v6399
      %v6401 = vpop.xlane.xlu0 %6400
      %v6402 = vsel %vm424, %v6376, 0.0
      %6403 = vadd.xlane.f32.xlu0 %v6402
      %v6404 = vpop.xlane.xlu0 %6403
      %v6405 = vsel %vm5617, %v6377, 0.0
      %6406 = vadd.xlane.f32.xlu0 %v6405
      %v6407 = vpop.xlane.xlu0 %6406
      %v6408 = vadd.f32 %v6380, %v5626
      %v6409 = vadd.f32 %v6383, %v5626
      %v6410 = vadd.f32 %v6386, %v5626
      %v6411 = vadd.f32 %v6389, %v5626
      %v6412 = vadd.f32 %v6392, %v5626
      %v6413 = vadd.f32 %v6395, %v5626
      %v6414 = vadd.f32 %v6398, %v5626
      %v6415 = vadd.f32 %v6401, %v5626
      %v6416 = vadd.f32 %v6404, %v5626
      %v6417 = vadd.f32 %v6407, %v5626
      %v6418 = vmax.f32 %v6408, 0.0
      %v6419 = vmax.f32 %v6409, 0.0
      %v6420 = vmax.f32 %v6410, 0.0
      %v6421 = vmax.f32 %v6411, 0.0
      %v6422 = vmax.f32 %v6412, 0.0
      %v6423 = vmax.f32 %v6413, 0.0
      %v6424 = vmax.f32 %v6414, 0.0
      %v6425 = vmax.f32 %v6415, 0.0
      %v6426 = vmax.f32 %v6416, 0.0
      %v6427 = vmax.f32 %v6417, 0.0
      %6438 = vrot.lane.b32.xlu0 %v5898, 1
      %v6439 = vpop.permute.xlu0 %6438
      %6440 = vrot.lane.b32.xlu0 %v5899, 1
      %v6441 = vpop.permute.xlu0 %6440
      %6442 = vrot.lane.b32.xlu0 %v5900, 1
      %v6443 = vpop.permute.xlu0 %6442
      %6444 = vrot.lane.b32.xlu0 %v5901, 1
      %v6445 = vpop.permute.xlu0 %6444
      %6446 = vrot.lane.b32.xlu0 %v5902, 1
      %v6447 = vpop.permute.xlu0 %6446
      %6448 = vrot.lane.b32.xlu0 %v5903, 1
      %v6449 = vpop.permute.xlu0 %6448
      %6450 = vrot.lane.b32.xlu0 %v5904, 1
      %v6451 = vpop.permute.xlu0 %6450
      %6452 = vrot.lane.b32.xlu0 %v5905, 1
      %v6453 = vpop.permute.xlu0 %6452
      %6454 = vrot.lane.b32.xlu0 %v5906, 1
      %v6455 = vpop.permute.xlu0 %6454
      %6456 = vrot.lane.b32.xlu0 %v5907, 1
      %v6457 = vpop.permute.xlu0 %6456
      %6478 = vrot.lane.b32.xlu0 %v6158, 2
      %v6479 = vpop.permute.xlu0 %6478
      %6480 = vrot.lane.b32.xlu0 %v6159, 2
      %v6481 = vpop.permute.xlu0 %6480
      %6482 = vrot.lane.b32.xlu0 %v6160, 2
      %v6483 = vpop.permute.xlu0 %6482
      %6484 = vrot.lane.b32.xlu0 %v6161, 2
      %v6485 = vpop.permute.xlu0 %6484
      %6486 = vrot.lane.b32.xlu0 %v6162, 2
      %v6487 = vpop.permute.xlu0 %6486
      %6488 = vrot.lane.b32.xlu0 %v6163, 2
      %v6489 = vpop.permute.xlu0 %6488
      %6490 = vrot.lane.b32.xlu0 %v6164, 2
      %v6491 = vpop.permute.xlu0 %6490
      %6492 = vrot.lane.b32.xlu0 %v6165, 2
      %v6493 = vpop.permute.xlu0 %6492
      %6494 = vrot.lane.b32.xlu0 %v6166, 2
      %v6495 = vpop.permute.xlu0 %6494
      %6496 = vrot.lane.b32.xlu0 %v6167, 2
      %v6497 = vpop.permute.xlu0 %6496
      %6518 = vrot.lane.b32.xlu0 %v6418, 3
      %v6519 = vpop.permute.xlu0 %6518
      %6520 = vrot.lane.b32.xlu0 %v6419, 3
      %v6521 = vpop.permute.xlu0 %6520
      %6522 = vrot.lane.b32.xlu0 %v6420, 3
      %v6523 = vpop.permute.xlu0 %6522
      %6524 = vrot.lane.b32.xlu0 %v6421, 3
      %v6525 = vpop.permute.xlu0 %6524
      %6526 = vrot.lane.b32.xlu0 %v6422, 3
      %v6527 = vpop.permute.xlu0 %6526
      %6528 = vrot.lane.b32.xlu0 %v6423, 3
      %v6529 = vpop.permute.xlu0 %6528
      %6530 = vrot.lane.b32.xlu0 %v6424, 3
      %v6531 = vpop.permute.xlu0 %6530
      %6532 = vrot.lane.b32.xlu0 %v6425, 3
      %v6533 = vpop.permute.xlu0 %6532
      %6534 = vrot.lane.b32.xlu0 %v6426, 3
      %v6535 = vpop.permute.xlu0 %6534
      %6536 = vrot.lane.b32.xlu0 %v6427, 3
      %v6537 = vpop.permute.xlu0 %6536
      %vm6548 = vcmask 7168
      %v6549 = vsel %vm6548, %v5638, %v6439
      %v6550 = vsel %vm6548, %v5639, %v6441
      %v6551 = vsel %vm6548, %v5640, %v6443
      %v6552 = vsel %vm6548, %v5641, %v6445
      %v6553 = vsel %vm6548, %v5642, %v6447
      %v6554 = vsel %vm6548, %v5643, %v6449
      %v6555 = vsel %vm6548, %v5644, %v6451
      %v6556 = vsel %vm6548, %v5645, %v6453
      %v6557 = vsel %vm6548, %v5646, %v6455
      %v6558 = vsel %vm6548, %v5647, %v6457
      %vm6559 = vcmask 15360
      %v6560 = vsel %vm6559, %v6549, %v6479
      %v6561 = vsel %vm6559, %v6550, %v6481
      %v6562 = vsel %vm6559, %v6551, %v6483
      %v6563 = vsel %vm6559, %v6552, %v6485
      %v6564 = vsel %vm6559, %v6553, %v6487
      %v6565 = vsel %vm6559, %v6554, %v6489
      %v6566 = vsel %vm6559, %v6555, %v6491
      %v6567 = vsel %vm6559, %v6556, %v6493
      %v6568 = vsel %vm6559, %v6557, %v6495
      %v6569 = vsel %vm6559, %v6558, %v6497
      %vm6570 = vcmask 23552
      %v6571 = vsel %vm6570, %v6560, %v6519
      %v6572 = vsel %vm6570, %v6561, %v6521
      %v6573 = vsel %vm6570, %v6562, %v6523
      %v6574 = vsel %vm6570, %v6563, %v6525
      %v6575 = vsel %vm6570, %v6564, %v6527
      %v6576 = vsel %vm6570, %v6565, %v6529
      %v6577 = vsel %vm6570, %v6566, %v6531
      %v6578 = vsel %vm6570, %v6567, %v6533
      %v6579 = vsel %vm6570, %v6568, %v6535
      %v6580 = vsel %vm6570, %v6569, %v6537
      %vm6581 = vcmask 31744
      %6582 = vst.msk [vmem:[%s388] sm:$0xff] %vm6581, %v6571
      %6583 = vst.msk [vmem:[%s388 + $0x8] sm:$0xff] %vm6581, %v6572
      %6584 = vst.msk [vmem:[%s388 + $0x10] sm:$0xff] %vm6581, %v6573
      %6585 = vst.msk [vmem:[%s388 + $0x18] sm:$0xff] %vm6581, %v6574
      %6586 = vst.msk [vmem:[%s388 + $0x20] sm:$0xff] %vm6581, %v6575
      %6587 = vst.msk [vmem:[%s388 + $0x28] sm:$0xff] %vm6581, %v6576
      %6588 = vst.msk [vmem:[%s388 + $0x30] sm:$0xff] %vm6581, %v6577
      %6589 = vst.msk [vmem:[%s388 + $0x38] sm:$0xff] %vm6581, %v6578
      %6590 = vst.msk [vmem:[%s388 + $0x40] sm:$0xff] %vm6581, %v6579
      %vm6591 = vcmask 30720
      %6592 = vst.msk [vmem:[%s388 + $0x48] sm:$0x7f] %vm6591, %v6580
      %p6593 = scmp.lt.s32.totalorder %s24, 1
      %s6594 = scalar_select %p6593, %s24, 1
      %s6595 = smul.addr %s6594, 10
      %s6596 = smul.addr %s6595, 8
      %s6597 = scalar_lea.vmem %s11, %s6596
      // Predicated region
      $region65: #{autoencoder_forward.1} parent=63 // pred_check
        %p6598 = pneg %p278
      $region66: #{autoencoder_forward.1} parent=63 // pred_check_branch
        %6600 = sbr.rel (%p6598) target = $region68
      $region67: #{autoencoder_forward.1} parent=63 // pred_region
        _
      $region68: #{autoencoder_forward.1} parent=63 // pred_fallthru
        _
    $region64: #{autoencoder_forward.1} parent=5 // pred_fallthru
      _
    %p6601 = scmp.le.s32.totalorder 2, %s19
    // Predicated region
    $region69: #{autoencoder_forward.1} parent=5 // pred_check
      %p6602 = pneg %p6601
    $region70: #{autoencoder_forward.1} parent=5 // pred_check_branch
      %6604 = sbr.rel (%p6602) target = $region72
    $region71: #{autoencoder_forward.1} parent=5 // pred_region
      %s6605 = ssub.s32 %s19, 2
      // Predicated region
      $region73: #{autoencoder_forward.1} parent=71 // pred_check
        %p6606 = pneg %p284
      $region74: #{autoencoder_forward.1} parent=71 // pred_check_branch
        %6608 = sbr.rel (%p6606) target = $region76
      $region75: #{autoencoder_forward.1} parent=71 // pred_region
        %p6609 = scmp.lt.s32.totalorder %s25, 1
        %s6610 = scalar_select %p6609, %s25, 1
        %s6611 = smul.addr %s6610, 10
        %s6612 = smul.addr %s6611, 8
        %s6613 = scalar_lea.vmem %s11, %s6612
      $region76: #{autoencoder_forward.1} parent=71 // pred_fallthru
        _
    $region72: #{autoencoder_forward.1} parent=5 // pred_fallthru
      _
  $region6: #{autoencoder_forward.1} parent=0 // loop_footer
    %s23 = sadd.s32 1, %s19
  $region7: #{autoencoder_forward.1} parent=0 // loop_footer_branch
    %18 = sbr.rel target = $region3
  $region8: #{autoencoder_forward.1} parent=0 // loop_exit
    _

</llo_original>
